<compile_context>
chip_gen: v7x
topology: tpu7x:2x2x1
jax: 0.10.0
libtpu: 0.0.40
codegen_flags: <defaults>
</compile_context>

<pallas_src>
import math

import jax
import jax.numpy as jnp
from jax import lax
from jax.experimental import pallas as pl
from jax.experimental.pallas import tpu as pltpu


def _make_mha_kernel(num_heads: int, head_dim: int, cout: int, hw: int):
    scale = 1.0 / math.sqrt(head_dim)

    def kernel(x_ref, w_ref, b_ref, o_ref):
        # x_ref: (1, Cin, HW)   current batch, channels on sublanes / HW on lanes
        # w_ref: (3*Cout, Cin)  fused [Wq; Wk; Wv] 1x1-conv weights
        # b_ref: (3*Cout, 1)    fused [bq; bk; bv] biases (broadcast over HW)
        # o_ref: (1, Cout, HW)  output slab for this batch
        x = x_ref[0]                                                   # (Cin, HW)

        # Single fused QKV projection on the MXU.
        qkv = (jnp.dot(w_ref[...], x, preferred_element_type=jnp.float32)
               + b_ref[...])                                           # (3*Cout, HW)

        # Hoisted out of the per-head loop (done once per kernel invocation).
        q_all = qkv[:cout] * scale                                     # (Cout, HW)
        k_all = qkv[cout:2 * cout]                                     # (Cout, HW)
        v_all = qkv[2 * cout:]                                         # (Cout, HW)

        # Unrolled per-head attention; all ops are plain 2D tiles.
        for h in range(num_heads):
            lo = h * head_dim
            hi = lo + head_dim
            q_h = q_all[lo:hi]                                         # (hd, HW)
            k_h = k_all[lo:hi]                                         # (hd, HW)
            v_h = v_all[lo:hi]                                         # (hd, HW)

            # scores[i, j] = sum_d q[d, i] * k[d, j]   -> (HW, HW)
            scores = lax.dot_general(
                q_h, k_h, (((0,), (0,)), ((), ())),
                preferred_element_type=jnp.float32)
            scores = scores - jnp.max(scores, axis=-1, keepdims=True)  # stable
            e = jnp.exp(scores)
            denom = jnp.sum(e, axis=-1, keepdims=True)                 # (HW, 1)
            attn = e * pl.reciprocal(denom, approx=True)               # (HW, HW)

            # out[d, i] = sum_j v[d, j] * attn[i, j]   -> (hd, HW), no transpose
            out_h = lax.dot_general(
                v_h, attn, (((1,), (1,)), ((), ())),
                preferred_element_type=jnp.float32)
            o_ref[0, lo:hi, :] = out_h

    return kernel


def multi_head_attention(x, params, num_heads):
    """x: (B, Cin, H, W) float32.  params: (wq, bq, wk, bk, wv, bv) with
    w*: (Cout, Cin) (1x1 conv weights, trailing 1x1 squeezed), b*: (Cout,)."""
    wq, bq, wk, bk, wv, bv = params
    B, Cin, H, W = x.shape
    HW = H * W
    Cout = wq.shape[0]
    hd = Cout // num_heads
    assert hd * num_heads == Cout

    # Lane-dense activations: (B, Cin, HW) -- pure reshape, no transpose.
    x_flat = x.reshape(B, Cin, HW).astype(jnp.float32)

    # Fused QKV weights / biases: one weight ref + one bias ref instead of six.
    wqkv = jnp.concatenate([wq, wk, wv], axis=0).astype(jnp.float32)   # (3*Cout, Cin)
    bqkv = jnp.concatenate([bq, bk, bv], axis=0).astype(jnp.float32)
    bqkv = bqkv.reshape(3 * Cout, 1)                                   # (3*Cout, 1)

    kernel = _make_mha_kernel(num_heads, hd, Cout, HW)

    out = pl.pallas_call(
        kernel,
        out_shape=jax.ShapeDtypeStruct((B, Cout, HW), jnp.float32),
        grid_spec=pltpu.PrefetchScalarGridSpec(
            num_scalar_prefetch=0,
            grid=(B,),
            in_specs=[
                pl.BlockSpec((1, Cin, HW), lambda b: (b, 0, 0)),
                pl.BlockSpec((3 * Cout, Cin), lambda b: (0, 0)),
                pl.BlockSpec((3 * Cout, 1), lambda b: (0, 0)),
            ],
            out_specs=pl.BlockSpec((1, Cout, HW), lambda b: (b, 0, 0)),
        ),
        compiler_params=pltpu.CompilerParams(
            dimension_semantics=("parallel",)),   # batch axis feeds both TCs on v7x
    )(x_flat, wqkv, bqkv)

    # (B, Cout, HW) -> (B, Cout, H, W): pure reshape, matches PyTorch .view.
    return out.reshape(B, Cout, H, W)


def _reference(x, params, num_heads):
    """Pure-JAX reference mirroring the PyTorch forward exactly."""
    wq, bq, wk, bk, wv, bv = params
    B, Cin, H, W = x.shape
    HW = H * W
    Cout = wq.shape[0]
    hd = Cout // num_heads

    def proj(w, b):
        y = jnp.einsum('bchw,oc->bohw', x, w) + b[None, :, None, None]
        return y.reshape(B, num_heads, hd, HW)

    q = jnp.swapaxes(proj(wq, bq), 2, 3)      # (B, heads, HW, hd)
    k = jnp.swapaxes(proj(wk, bk), 2, 3)
    v = proj(wv, bv)                          # (B, heads, hd, HW)
    scores = jnp.einsum('bhqd,bhkd->bhqk', q, k) / math.sqrt(hd)
    attn = jax.nn.softmax(scores, axis=-1)
    wv_ = jnp.einsum('bhqk,bhdk->bhqd', attn, v)     # attn @ value.T
    return jnp.swapaxes(wv_, 2, 3).reshape(B, Cout, H, W)


if __name__ == "__main__":
    B, Cin, H, W = 2, 4, 16, 16
    Cout, num_heads = 32, 8

    key = jax.random.PRNGKey(0)
    kx, kq, kbq, kk, kbk, kv, kbv = jax.random.split(key, 7)
    scale = 1.0 / math.sqrt(Cin)
    x = jax.random.normal(kx, (B, Cin, H, W), dtype=jnp.float32)
    params = (
        jax.random.normal(kq, (Cout, Cin), dtype=jnp.float32) * scale,
        jax.random.normal(kbq, (Cout,), dtype=jnp.float32) * 0.1,
        jax.random.normal(kk, (Cout, Cin), dtype=jnp.float32) * scale,
        jax.random.normal(kbk, (Cout,), dtype=jnp.float32) * 0.1,
        jax.random.normal(kv, (Cout, Cin), dtype=jnp.float32) * scale,
        jax.random.normal(kbv, (Cout,), dtype=jnp.float32) * 0.1,
    )

    out = multi_head_attention(x, params, num_heads)
    out = jax.block_until_ready(out)

    ref = _reference(x, params, num_heads)
    assert out.shape == (B, Cout, H, W)
    # Tolerance accounts for the EUP approximate reciprocal in the softmax
    # normalization; all other arithmetic is exact f32.
    assert jnp.allclose(out, ref, atol=5e-3, rtol=5e-3), "mismatch vs reference"

    print("KERNEL_OK")
</pallas_src>

<mosaic_0001>
module attributes {stable_mosaic.version = 11 : i64} {
  func.func @kernel(%arg0: i32, %arg1: memref<1x4x256xf32, #tpu.memory_space<vmem>>, %arg2: memref<96x4xf32, #tpu.memory_space<vmem>>, %arg3: memref<96x1xf32, #tpu.memory_space<vmem>>, %arg4: memref<1x32x256xf32, #tpu.memory_space<vmem>>) attributes {dimension_semantics = [#tpu.dimension_semantics<parallel>], iteration_bounds = array<i64: 2>, scalar_prefetch = 0 : i64, scratch_operands = 0 : i64, tpu.core_type = #tpu.core_type<tc>, window_params = [{transform_indices = @transform_0, window_bounds = array<i64: 1, 4, 256>}, {pipeline_mode = #tpu.pipeline_mode<synchronous>, transform_indices = @transform_1, window_bounds = array<i64: 96, 4>}, {pipeline_mode = #tpu.pipeline_mode<synchronous>, transform_indices = @transform_2, window_bounds = array<i64: 96, 1>}, {transform_indices = @transform_3, window_bounds = array<i64: 1, 32, 256>}]} {
    %c0 = arith.constant 0 : index
    %c0_0 = arith.constant 0 : index
    %c0_1 = arith.constant 0 : index
    %0 = vector.load %arg1[%c0, %c0_0, %c0_1] : memref<1x4x256xf32, #tpu.memory_space<vmem>>, vector<1x4x256xf32>
    %1 = vector.shape_cast %0 : vector<1x4x256xf32> to vector<4x256xf32>
    %c0_2 = arith.constant 0 : index
    %c0_3 = arith.constant 0 : index
    %2 = vector.load %arg2[%c0_2, %c0_3] : memref<96x4xf32, #tpu.memory_space<vmem>>, vector<96x4xf32>
    %cst = arith.constant dense<0.000000e+00> : vector<96x256xf32>
    %3 = tpu.matmul %2, %1, %cst {dimension_numbers = #tpu.dot_dimension_numbers<[1], [0], [0], [1], [0, 0, 1, 1], [], []>} : vector<96x4xf32>, vector<4x256xf32>, vector<96x256xf32> -> vector<96x256xf32>
    %c0_4 = arith.constant 0 : index
    %c0_5 = arith.constant 0 : index
    %4 = vector.load %arg3[%c0_4, %c0_5] : memref<96x1xf32, #tpu.memory_space<vmem>>, vector<96x1xf32>
    %5 = vector.broadcast %4 : vector<96x1xf32> to vector<96x256xf32>
    %6 = arith.addf %3, %5 : vector<96x256xf32>
    %7 = vector.extract_strided_slice %6 {offsets = [0, 0], sizes = [32, 256], strides = [1, 1]} : vector<96x256xf32> to vector<32x256xf32>
    %cst_6 = arith.constant 5.000000e-01 : f32
    %8 = vector.broadcast %cst_6 : f32 to vector<32x256xf32>
    %9 = arith.mulf %7, %8 : vector<32x256xf32>
    %10 = vector.extract_strided_slice %6 {offsets = [32, 0], sizes = [32, 256], strides = [1, 1]} : vector<96x256xf32> to vector<32x256xf32>
    %11 = vector.extract_strided_slice %6 {offsets = [64, 0], sizes = [32, 256], strides = [1, 1]} : vector<96x256xf32> to vector<32x256xf32>
    %12 = vector.extract_strided_slice %9 {offsets = [0, 0], sizes = [4, 256], strides = [1, 1]} : vector<32x256xf32> to vector<4x256xf32>
    %13 = vector.extract_strided_slice %10 {offsets = [0, 0], sizes = [4, 256], strides = [1, 1]} : vector<32x256xf32> to vector<4x256xf32>
    %14 = vector.extract_strided_slice %11 {offsets = [0, 0], sizes = [4, 256], strides = [1, 1]} : vector<32x256xf32> to vector<4x256xf32>
    %cst_7 = arith.constant dense<0.000000e+00> : vector<256x256xf32>
    %15 = tpu.matmul %12, %13, %cst_7 {dimension_numbers = #tpu.dot_dimension_numbers<[0], [0], [1], [1], [0, 1, 1, 1], [], []>} : vector<4x256xf32>, vector<4x256xf32>, vector<256x256xf32> -> vector<256x256xf32>
    %cst_8 = arith.constant dense<0xFF800000> : vector<256xf32>
    %16 = vector.multi_reduction <maximumf>, %15, %cst_8 [1] : vector<256x256xf32> to vector<256xf32>
    %17 = vector.shape_cast %16 : vector<256xf32> to vector<256x1xf32>
    %18 = vector.broadcast %17 : vector<256x1xf32> to vector<256x256xf32>
    %19 = arith.subf %15, %18 : vector<256x256xf32>
    %20 = math.exp %19 : vector<256x256xf32>
    %cst_9 = arith.constant dense<0.000000e+00> : vector<256xf32>
    %21 = vector.multi_reduction <add>, %20, %cst_9 [1] : vector<256x256xf32> to vector<256xf32>
    %22 = vector.shape_cast %21 : vector<256xf32> to vector<256x1xf32>
    %23 = tpu.reciprocal %22 {approx = true} : vector<256x1xf32> -> vector<256x1xf32>
    %24 = vector.broadcast %23 : vector<256x1xf32> to vector<256x256xf32>
    %25 = arith.mulf %20, %24 : vector<256x256xf32>
    %cst_10 = arith.constant dense<0.000000e+00> : vector<4x256xf32>
    %26 = tpu.matmul %14, %25, %cst_10 {dimension_numbers = #tpu.dot_dimension_numbers<[1], [1], [0], [0], [0, 0, 1, 0], [], []>} : vector<4x256xf32>, vector<256x256xf32>, vector<4x256xf32> -> vector<4x256xf32>
    %c0_11 = arith.constant 0 : index
    %c0_12 = arith.constant 0 : index
    %c0_13 = arith.constant 0 : index
    %27 = vector.load %arg4[%c0_11, %c0_12, %c0_13] : memref<1x32x256xf32, #tpu.memory_space<vmem>>, vector<1x4x256xf32>
    %28 = vector.shape_cast %27 : vector<1x4x256xf32> to vector<4x256xf32>
    %29 = vector.shape_cast %26 : vector<4x256xf32> to vector<1x4x256xf32>
    tpu.vector_store %arg4[%c0_11, %c0_12, %c0_13], %29 {strides = array<i32>} : memref<1x32x256xf32, #tpu.memory_space<vmem>>, vector<1x4x256xf32>,
    %30 = vector.extract_strided_slice %9 {offsets = [4, 0], sizes = [4, 256], strides = [1, 1]} : vector<32x256xf32> to vector<4x256xf32>
    %31 = vector.extract_strided_slice %10 {offsets = [4, 0], sizes = [4, 256], strides = [1, 1]} : vector<32x256xf32> to vector<4x256xf32>
    %32 = vector.extract_strided_slice %11 {offsets = [4, 0], sizes = [4, 256], strides = [1, 1]} : vector<32x256xf32> to vector<4x256xf32>
    %cst_14 = arith.constant dense<0.000000e+00> : vector<256x256xf32>
    %33 = tpu.matmul %30, %31, %cst_14 {dimension_numbers = #tpu.dot_dimension_numbers<[0], [0], [1], [1], [0, 1, 1, 1], [], []>} : vector<4x256xf32>, vector<4x256xf32>, vector<256x256xf32> -> vector<256x256xf32>
    %cst_15 = arith.constant dense<0xFF800000> : vector<256xf32>
    %34 = vector.multi_reduction <maximumf>, %33, %cst_15 [1] : vector<256x256xf32> to vector<256xf32>
    %35 = vector.shape_cast %34 : vector<256xf32> to vector<256x1xf32>
    %36 = vector.broadcast %35 : vector<256x1xf32> to vector<256x256xf32>
    %37 = arith.subf %33, %36 : vector<256x256xf32>
    %38 = math.exp %37 : vector<256x256xf32>
    %cst_16 = arith.constant dense<0.000000e+00> : vector<256xf32>
    %39 = vector.multi_reduction <add>, %38, %cst_16 [1] : vector<256x256xf32> to vector<256xf32>
    %40 = vector.shape_cast %39 : vector<256xf32> to vector<256x1xf32>
    %41 = tpu.reciprocal %40 {approx = true} : vector<256x1xf32> -> vector<256x1xf32>
    %42 = vector.broadcast %41 : vector<256x1xf32> to vector<256x256xf32>
    %43 = arith.mulf %38, %42 : vector<256x256xf32>
    %cst_17 = arith.constant dense<0.000000e+00> : vector<4x256xf32>
    %44 = tpu.matmul %32, %43, %cst_17 {dimension_numbers = #tpu.dot_dimension_numbers<[1], [1], [0], [0], [0, 0, 1, 0], [], []>} : vector<4x256xf32>, vector<256x256xf32>, vector<4x256xf32> -> vector<4x256xf32>
    %c0_18 = arith.constant 0 : index
    %c4 = arith.constant 4 : index
    %c0_19 = arith.constant 0 : index
    %45 = vector.load %arg4[%c0_18, %c4, %c0_19] : memref<1x32x256xf32, #tpu.memory_space<vmem>>, vector<1x4x256xf32>
    %46 = vector.shape_cast %45 : vector<1x4x256xf32> to vector<4x256xf32>
    %47 = vector.shape_cast %44 : vector<4x256xf32> to vector<1x4x256xf32>
    tpu.vector_store %arg4[%c0_18, %c4, %c0_19], %47 {strides = array<i32>} : memref<1x32x256xf32, #tpu.memory_space<vmem>>, vector<1x4x256xf32>,
    %48 = vector.extract_strided_slice %9 {offsets = [8, 0], sizes = [4, 256], strides = [1, 1]} : vector<32x256xf32> to vector<4x256xf32>
    %49 = vector.extract_strided_slice %10 {offsets = [8, 0], sizes = [4, 256], strides = [1, 1]} : vector<32x256xf32> to vector<4x256xf32>
    %50 = vector.extract_strided_slice %11 {offsets = [8, 0], sizes = [4, 256], strides = [1, 1]} : vector<32x256xf32> to vector<4x256xf32>
    %cst_20 = arith.constant dense<0.000000e+00> : vector<256x256xf32>
    %51 = tpu.matmul %48, %49, %cst_20 {dimension_numbers = #tpu.dot_dimension_numbers<[0], [0], [1], [1], [0, 1, 1, 1], [], []>} : vector<4x256xf32>, vector<4x256xf32>, vector<256x256xf32> -> vector<256x256xf32>
    %cst_21 = arith.constant dense<0xFF800000> : vector<256xf32>
    %52 = vector.multi_reduction <maximumf>, %51, %cst_21 [1] : vector<256x256xf32> to vector<256xf32>
    %53 = vector.shape_cast %52 : vector<256xf32> to vector<256x1xf32>
    %54 = vector.broadcast %53 : vector<256x1xf32> to vector<256x256xf32>
    %55 = arith.subf %51, %54 : vector<256x256xf32>
    %56 = math.exp %55 : vector<256x256xf32>
    %cst_22 = arith.constant dense<0.000000e+00> : vector<256xf32>
    %57 = vector.multi_reduction <add>, %56, %cst_22 [1] : vector<256x256xf32> to vector<256xf32>
    %58 = vector.shape_cast %57 : vector<256xf32> to vector<256x1xf32>
    %59 = tpu.reciprocal %58 {approx = true} : vector<256x1xf32> -> vector<256x1xf32>
    %60 = vector.broadcast %59 : vector<256x1xf32> to vector<256x256xf32>
    %61 = arith.mulf %56, %60 : vector<256x256xf32>
    %cst_23 = arith.constant dense<0.000000e+00> : vector<4x256xf32>
    %62 = tpu.matmul %50, %61, %cst_23 {dimension_numbers = #tpu.dot_dimension_numbers<[1], [1], [0], [0], [0, 0, 1, 0], [], []>} : vector<4x256xf32>, vector<256x256xf32>, vector<4x256xf32> -> vector<4x256xf32>
    %c0_24 = arith.constant 0 : index
    %c8 = arith.constant 8 : index
    %c0_25 = arith.constant 0 : index
    %63 = vector.load %arg4[%c0_24, %c8, %c0_25] : memref<1x32x256xf32, #tpu.memory_space<vmem>>, vector<1x4x256xf32>
    %64 = vector.shape_cast %63 : vector<1x4x256xf32> to vector<4x256xf32>
    %65 = vector.shape_cast %62 : vector<4x256xf32> to vector<1x4x256xf32>
    tpu.vector_store %arg4[%c0_24, %c8, %c0_25], %65 {strides = array<i32>} : memref<1x32x256xf32, #tpu.memory_space<vmem>>, vector<1x4x256xf32>,
    %66 = vector.extract_strided_slice %9 {offsets = [12, 0], sizes = [4, 256], strides = [1, 1]} : vector<32x256xf32> to vector<4x256xf32>
    %67 = vector.extract_strided_slice %10 {offsets = [12, 0], sizes = [4, 256], strides = [1, 1]} : vector<32x256xf32> to vector<4x256xf32>
    %68 = vector.extract_strided_slice %11 {offsets = [12, 0], sizes = [4, 256], strides = [1, 1]} : vector<32x256xf32> to vector<4x256xf32>
    %cst_26 = arith.constant dense<0.000000e+00> : vector<256x256xf32>
    %69 = tpu.matmul %66, %67, %cst_26 {dimension_numbers = #tpu.dot_dimension_numbers<[0], [0], [1], [1], [0, 1, 1, 1], [], []>} : vector<4x256xf32>, vector<4x256xf32>, vector<256x256xf32> -> vector<256x256xf32>
    %cst_27 = arith.constant dense<0xFF800000> : vector<256xf32>
    %70 = vector.multi_reduction <maximumf>, %69, %cst_27 [1] : vector<256x256xf32> to vector<256xf32>
    %71 = vector.shape_cast %70 : vector<256xf32> to vector<256x1xf32>
    %72 = vector.broadcast %71 : vector<256x1xf32> to vector<256x256xf32>
    %73 = arith.subf %69, %72 : vector<256x256xf32>
    %74 = math.exp %73 : vector<256x256xf32>
    %cst_28 = arith.constant dense<0.000000e+00> : vector<256xf32>
    %75 = vector.multi_reduction <add>, %74, %cst_28 [1] : vector<256x256xf32> to vector<256xf32>
    %76 = vector.shape_cast %75 : vector<256xf32> to vector<256x1xf32>
    %77 = tpu.reciprocal %76 {approx = true} : vector<256x1xf32> -> vector<256x1xf32>
    %78 = vector.broadcast %77 : vector<256x1xf32> to vector<256x256xf32>
    %79 = arith.mulf %74, %78 : vector<256x256xf32>
    %cst_29 = arith.constant dense<0.000000e+00> : vector<4x256xf32>
    %80 = tpu.matmul %68, %79, %cst_29 {dimension_numbers = #tpu.dot_dimension_numbers<[1], [1], [0], [0], [0, 0, 1, 0], [], []>} : vector<4x256xf32>, vector<256x256xf32>, vector<4x256xf32> -> vector<4x256xf32>
    %c0_30 = arith.constant 0 : index
    %c12 = arith.constant 12 : index
    %c0_31 = arith.constant 0 : index
    %81 = vector.load %arg4[%c0_30, %c12, %c0_31] : memref<1x32x256xf32, #tpu.memory_space<vmem>>, vector<1x4x256xf32>
    %82 = vector.shape_cast %81 : vector<1x4x256xf32> to vector<4x256xf32>
    %83 = vector.shape_cast %80 : vector<4x256xf32> to vector<1x4x256xf32>
    tpu.vector_store %arg4[%c0_30, %c12, %c0_31], %83 {strides = array<i32>} : memref<1x32x256xf32, #tpu.memory_space<vmem>>, vector<1x4x256xf32>,
    %84 = vector.extract_strided_slice %9 {offsets = [16, 0], sizes = [4, 256], strides = [1, 1]} : vector<32x256xf32> to vector<4x256xf32>
    %85 = vector.extract_strided_slice %10 {offsets = [16, 0], sizes = [4, 256], strides = [1, 1]} : vector<32x256xf32> to vector<4x256xf32>
    %86 = vector.extract_strided_slice %11 {offsets = [16, 0], sizes = [4, 256], strides = [1, 1]} : vector<32x256xf32> to vector<4x256xf32>
    %cst_32 = arith.constant dense<0.000000e+00> : vector<256x256xf32>
    %87 = tpu.matmul %84, %85, %cst_32 {dimension_numbers = #tpu.dot_dimension_numbers<[0], [0], [1], [1], [0, 1, 1, 1], [], []>} : vector<4x256xf32>, vector<4x256xf32>, vector<256x256xf32> -> vector<256x256xf32>
    %cst_33 = arith.constant dense<0xFF800000> : vector<256xf32>
    %88 = vector.multi_reduction <maximumf>, %87, %cst_33 [1] : vector<256x256xf32> to vector<256xf32>
    %89 = vector.shape_cast %88 : vector<256xf32> to vector<256x1xf32>
    %90 = vector.broadcast %89 : vector<256x1xf32> to vector<256x256xf32>
    %91 = arith.subf %87, %90 : vector<256x256xf32>
    %92 = math.exp %91 : vector<256x256xf32>
    %cst_34 = arith.constant dense<0.000000e+00> : vector<256xf32>
    %93 = vector.multi_reduction <add>, %92, %cst_34 [1] : vector<256x256xf32> to vector<256xf32>
    %94 = vector.shape_cast %93 : vector<256xf32> to vector<256x1xf32>
    %95 = tpu.reciprocal %94 {approx = true} : vector<256x1xf32> -> vector<256x1xf32>
    %96 = vector.broadcast %95 : vector<256x1xf32> to vector<256x256xf32>
    %97 = arith.mulf %92, %96 : vector<256x256xf32>
    %cst_35 = arith.constant dense<0.000000e+00> : vector<4x256xf32>
    %98 = tpu.matmul %86, %97, %cst_35 {dimension_numbers = #tpu.dot_dimension_numbers<[1], [1], [0], [0], [0, 0, 1, 0], [], []>} : vector<4x256xf32>, vector<256x256xf32>, vector<4x256xf32> -> vector<4x256xf32>
    %c0_36 = arith.constant 0 : index
    %c16 = arith.constant 16 : index
    %c0_37 = arith.constant 0 : index
    %99 = vector.load %arg4[%c0_36, %c16, %c0_37] : memref<1x32x256xf32, #tpu.memory_space<vmem>>, vector<1x4x256xf32>
    %100 = vector.shape_cast %99 : vector<1x4x256xf32> to vector<4x256xf32>
    %101 = vector.shape_cast %98 : vector<4x256xf32> to vector<1x4x256xf32>
    tpu.vector_store %arg4[%c0_36, %c16, %c0_37], %101 {strides = array<i32>} : memref<1x32x256xf32, #tpu.memory_space<vmem>>, vector<1x4x256xf32>,
    %102 = vector.extract_strided_slice %9 {offsets = [20, 0], sizes = [4, 256], strides = [1, 1]} : vector<32x256xf32> to vector<4x256xf32>
    %103 = vector.extract_strided_slice %10 {offsets = [20, 0], sizes = [4, 256], strides = [1, 1]} : vector<32x256xf32> to vector<4x256xf32>
    %104 = vector.extract_strided_slice %11 {offsets = [20, 0], sizes = [4, 256], strides = [1, 1]} : vector<32x256xf32> to vector<4x256xf32>
    %cst_38 = arith.constant dense<0.000000e+00> : vector<256x256xf32>
    %105 = tpu.matmul %102, %103, %cst_38 {dimension_numbers = #tpu.dot_dimension_numbers<[0], [0], [1], [1], [0, 1, 1, 1], [], []>} : vector<4x256xf32>, vector<4x256xf32>, vector<256x256xf32> -> vector<256x256xf32>
    %cst_39 = arith.constant dense<0xFF800000> : vector<256xf32>
    %106 = vector.multi_reduction <maximumf>, %105, %cst_39 [1] : vector<256x256xf32> to vector<256xf32>
    %107 = vector.shape_cast %106 : vector<256xf32> to vector<256x1xf32>
    %108 = vector.broadcast %107 : vector<256x1xf32> to vector<256x256xf32>
    %109 = arith.subf %105, %108 : vector<256x256xf32>
    %110 = math.exp %109 : vector<256x256xf32>
    %cst_40 = arith.constant dense<0.000000e+00> : vector<256xf32>
    %111 = vector.multi_reduction <add>, %110, %cst_40 [1] : vector<256x256xf32> to vector<256xf32>
    %112 = vector.shape_cast %111 : vector<256xf32> to vector<256x1xf32>
    %113 = tpu.reciprocal %112 {approx = true} : vector<256x1xf32> -> vector<256x1xf32>
    %114 = vector.broadcast %113 : vector<256x1xf32> to vector<256x256xf32>
    %115 = arith.mulf %110, %114 : vector<256x256xf32>
    %cst_41 = arith.constant dense<0.000000e+00> : vector<4x256xf32>
    %116 = tpu.matmul %104, %115, %cst_41 {dimension_numbers = #tpu.dot_dimension_numbers<[1], [1], [0], [0], [0, 0, 1, 0], [], []>} : vector<4x256xf32>, vector<256x256xf32>, vector<4x256xf32> -> vector<4x256xf32>
    %c0_42 = arith.constant 0 : index
    %c20 = arith.constant 20 : index
    %c0_43 = arith.constant 0 : index
    %117 = vector.load %arg4[%c0_42, %c20, %c0_43] : memref<1x32x256xf32, #tpu.memory_space<vmem>>, vector<1x4x256xf32>
    %118 = vector.shape_cast %117 : vector<1x4x256xf32> to vector<4x256xf32>
    %119 = vector.shape_cast %116 : vector<4x256xf32> to vector<1x4x256xf32>
    tpu.vector_store %arg4[%c0_42, %c20, %c0_43], %119 {strides = array<i32>} : memref<1x32x256xf32, #tpu.memory_space<vmem>>, vector<1x4x256xf32>,
    %120 = vector.extract_strided_slice %9 {offsets = [24, 0], sizes = [4, 256], strides = [1, 1]} : vector<32x256xf32> to vector<4x256xf32>
    %121 = vector.extract_strided_slice %10 {offsets = [24, 0], sizes = [4, 256], strides = [1, 1]} : vector<32x256xf32> to vector<4x256xf32>
    %122 = vector.extract_strided_slice %11 {offsets = [24, 0], sizes = [4, 256], strides = [1, 1]} : vector<32x256xf32> to vector<4x256xf32>
    %cst_44 = arith.constant dense<0.000000e+00> : vector<256x256xf32>
    %123 = tpu.matmul %120, %121, %cst_44 {dimension_numbers = #tpu.dot_dimension_numbers<[0], [0], [1], [1], [0, 1, 1, 1], [], []>} : vector<4x256xf32>, vector<4x256xf32>, vector<256x256xf32> -> vector<256x256xf32>
    %cst_45 = arith.constant dense<0xFF800000> : vector<256xf32>
    %124 = vector.multi_reduction <maximumf>, %123, %cst_45 [1] : vector<256x256xf32> to vector<256xf32>
    %125 = vector.shape_cast %124 : vector<256xf32> to vector<256x1xf32>
    %126 = vector.broadcast %125 : vector<256x1xf32> to vector<256x256xf32>
    %127 = arith.subf %123, %126 : vector<256x256xf32>
    %128 = math.exp %127 : vector<256x256xf32>
    %cst_46 = arith.constant dense<0.000000e+00> : vector<256xf32>
    %129 = vector.multi_reduction <add>, %128, %cst_46 [1] : vector<256x256xf32> to vector<256xf32>
    %130 = vector.shape_cast %129 : vector<256xf32> to vector<256x1xf32>
    %131 = tpu.reciprocal %130 {approx = true} : vector<256x1xf32> -> vector<256x1xf32>
    %132 = vector.broadcast %131 : vector<256x1xf32> to vector<256x256xf32>
    %133 = arith.mulf %128, %132 : vector<256x256xf32>
    %cst_47 = arith.constant dense<0.000000e+00> : vector<4x256xf32>
    %134 = tpu.matmul %122, %133, %cst_47 {dimension_numbers = #tpu.dot_dimension_numbers<[1], [1], [0], [0], [0, 0, 1, 0], [], []>} : vector<4x256xf32>, vector<256x256xf32>, vector<4x256xf32> -> vector<4x256xf32>
    %c0_48 = arith.constant 0 : index
    %c24 = arith.constant 24 : index
    %c0_49 = arith.constant 0 : index
    %135 = vector.load %arg4[%c0_48, %c24, %c0_49] : memref<1x32x256xf32, #tpu.memory_space<vmem>>, vector<1x4x256xf32>
    %136 = vector.shape_cast %135 : vector<1x4x256xf32> to vector<4x256xf32>
    %137 = vector.shape_cast %134 : vector<4x256xf32> to vector<1x4x256xf32>
    tpu.vector_store %arg4[%c0_48, %c24, %c0_49], %137 {strides = array<i32>} : memref<1x32x256xf32, #tpu.memory_space<vmem>>, vector<1x4x256xf32>,
    %138 = vector.extract_strided_slice %9 {offsets = [28, 0], sizes = [4, 256], strides = [1, 1]} : vector<32x256xf32> to vector<4x256xf32>
    %139 = vector.extract_strided_slice %10 {offsets = [28, 0], sizes = [4, 256], strides = [1, 1]} : vector<32x256xf32> to vector<4x256xf32>
    %140 = vector.extract_strided_slice %11 {offsets = [28, 0], sizes = [4, 256], strides = [1, 1]} : vector<32x256xf32> to vector<4x256xf32>
    %cst_50 = arith.constant dense<0.000000e+00> : vector<256x256xf32>
    %141 = tpu.matmul %138, %139, %cst_50 {dimension_numbers = #tpu.dot_dimension_numbers<[0], [0], [1], [1], [0, 1, 1, 1], [], []>} : vector<4x256xf32>, vector<4x256xf32>, vector<256x256xf32> -> vector<256x256xf32>
    %cst_51 = arith.constant dense<0xFF800000> : vector<256xf32>
    %142 = vector.multi_reduction <maximumf>, %141, %cst_51 [1] : vector<256x256xf32> to vector<256xf32>
    %143 = vector.shape_cast %142 : vector<256xf32> to vector<256x1xf32>
    %144 = vector.broadcast %143 : vector<256x1xf32> to vector<256x256xf32>
    %145 = arith.subf %141, %144 : vector<256x256xf32>
    %146 = math.exp %145 : vector<256x256xf32>
    %cst_52 = arith.constant dense<0.000000e+00> : vector<256xf32>
    %147 = vector.multi_reduction <add>, %146, %cst_52 [1] : vector<256x256xf32> to vector<256xf32>
    %148 = vector.shape_cast %147 : vector<256xf32> to vector<256x1xf32>
    %149 = tpu.reciprocal %148 {approx = true} : vector<256x1xf32> -> vector<256x1xf32>
    %150 = vector.broadcast %149 : vector<256x1xf32> to vector<256x256xf32>
    %151 = arith.mulf %146, %150 : vector<256x256xf32>
    %cst_53 = arith.constant dense<0.000000e+00> : vector<4x256xf32>
    %152 = tpu.matmul %140, %151, %cst_53 {dimension_numbers = #tpu.dot_dimension_numbers<[1], [1], [0], [0], [0, 0, 1, 0], [], []>} : vector<4x256xf32>, vector<256x256xf32>, vector<4x256xf32> -> vector<4x256xf32>
    %c0_54 = arith.constant 0 : index
    %c28 = arith.constant 28 : index
    %c0_55 = arith.constant 0 : index
    %153 = vector.load %arg4[%c0_54, %c28, %c0_55] : memref<1x32x256xf32, #tpu.memory_space<vmem>>, vector<1x4x256xf32>
    %154 = vector.shape_cast %153 : vector<1x4x256xf32> to vector<4x256xf32>
    %155 = vector.shape_cast %152 : vector<4x256xf32> to vector<1x4x256xf32>
    tpu.vector_store %arg4[%c0_54, %c28, %c0_55], %155 {strides = array<i32>} : memref<1x32x256xf32, #tpu.memory_space<vmem>>, vector<1x4x256xf32>,
    return
  }
  func.func @transform_0(%arg0: i32) -> (i32, i32, i32) {
    %c0_i32 = arith.constant 0 : i32
    %c0_i32_0 = arith.constant 0 : i32
    %c0_i32_1 = arith.constant 0 : i32
    return %arg0, %c0_i32, %c0_i32_0 : i32, i32, i32
  }
  func.func @transform_1(%arg0: i32) -> (i32, i32) {
    %c0_i32 = arith.constant 0 : i32
    %c0_i32_0 = arith.constant 0 : i32
    %c0_i32_1 = arith.constant 0 : i32
    return %c0_i32, %c0_i32_0 : i32, i32
  }
  func.func @transform_2(%arg0: i32) -> (i32, i32) {
    %c0_i32 = arith.constant 0 : i32
    %c0_i32_0 = arith.constant 0 : i32
    %c0_i32_1 = arith.constant 0 : i32
    return %c0_i32, %c0_i32_0 : i32, i32
  }
  func.func @transform_3(%arg0: i32) -> (i32, i32, i32) {
    %c0_i32 = arith.constant 0 : i32
    %c0_i32_0 = arith.constant 0 : i32
    %c0_i32_1 = arith.constant 0 : i32
    return %arg0, %c0_i32, %c0_i32_0 : i32, i32, i32
  }
}

</mosaic_0001>

<llo_original>
// kernel: tpu_custom_call.1
$region0: #{tpu_custom_call.1}
  #allocation0 [shape = 'u32[]', space=smem, size = 0x4, offset = 0x4, fixed_abs, tag = 'smem constant byte address 0x4 - core index']
  #allocation1 [shape = 'u32[144,128]{1,0:T(1,128)}', space=vmem, size = 0x12000, scoped, tag = 'internal scratch']
  %s0 = inlined_call_operand.vmem [shape: f32[2,4,256], index: 0, kind: input, shape index: {}]
  %s1 = inlined_call_operand.vmem [shape: f32[96,4], index: 1, kind: input, shape index: {}]
  %s2 = inlined_call_operand.vmem [shape: f32[96,1], index: 2, kind: input, shape index: {}]
  %s3 = inlined_call_operand.hbm [shape: f32[2,32,256], index: 3, kind: output, shape index: {}]
  %s4 = sld [smem:[#allocation0]]
  $region45: #{tpu_custom_call.1} parent=0
    _
  %s6 = ssub.s32 1, %s4
  %s7 = scalar_select 0, %s6, %s4
  $region1: #{tpu_custom_call.1} parent=0
    #allocation2 [shape = 'u8[65536]{0}', space=vmem, size = 0x10000, scoped, tag = 'output window, operand 0']
    #allocation3 [shape = 's32[2]{0}', space=sflag, size = 0x8, scoped, tag = 'scoped memory for tpu_custom_call.1']
    %8 = vsyncpa [#allocation3], 0
    %s9 = scalar_lea.sflag [#allocation3], 1
    %10 = vsyncpa %s9, 0
    loop: start=0, step=1, limit=4
    $region2: #{tpu_custom_call.1} parent=1 // loop_pre_header
      _
    $region3: #{tpu_custom_call.1} parent=1 // loop_header
      %s12 = sphi 0, %s16
      %p13 = scmp.ge.s32.totalorder %s12, 4
      %s22 = sphi 0, %s24
      %s25 = sphi 0, %s22
      %s26 = sphi 0, %s25
      %s42 = sphi 0, %s26
      %s46 = sphi 0, %s46
      %s48 = sphi 0, %s46
      %s49 = sphi 0, %s48
      %s63 = sphi 0, %s49
      %s67 = sphi 0, %s67
      %s69 = sphi 0, %s67
      %s70 = sphi 0, %s69
      %s84 = sphi 0, %s70
      %s90 = sphi 0, %s92
      %s93 = sphi 0, %s90
      %s94 = sphi 0, %s93
      %s110 = sphi 0, %s94
    $region4: #{tpu_custom_call.1} parent=1 // loop_header_branch
      %15 = sbr.rel (%p13) target = $region8
    $region5: #{tpu_custom_call.1} parent=1 // loop_body
      %s17 = ssub.s32 %s12, 1
      %s18 = ssub.s32 %s12, 2
      %s19 = sadd.s32 %s12, 1
      %s20 = ssub.s32 %s12, %s19
      %p21 = scmp.eq.s32.totalorder %s20, 0
      %s23 = sadd.s32 %s22, 1
      %s24 = scalar_select %p21, %s22, %s23
      %p27 = pneg %p21
      %p28 = scmp.eq.s32.totalorder %s12, 1
      %p29 = por %p27, %p28
      %p30 = scmp.ne.s32.totalorder %s22, %s25
      %p31 = scmp.eq.s32.totalorder %s12, 0
      %p32 = por %p30, %p31
      %p33 = scmp.ne.s32.totalorder %s22, %s25
      %p34 = scmp.eq.s32.totalorder %s17, 1
      %p35 = por %p33, %p34
      %p36 = scmp.ne.s32.totalorder %s25, %s26
      %p37 = scmp.eq.s32.totalorder %s17, 0
      %p38 = por %p36, %p37
      %p39 = scmp.ne.s32.totalorder %s25, %s26
      %p40 = scmp.eq.s32.totalorder %s18, 1
      %p41 = por %p39, %p40
      %p43 = scmp.ne.s32.totalorder %s26, %s42
      %p44 = scmp.eq.s32.totalorder %s18, 0
      %p45 = por %p43, %p44
      %s47 = sadd.s32 %s46, 1
      %p50 = scmp.eq.s32.totalorder %s12, 1
      %p51 = scmp.ne.s32.totalorder %s46, %s48
      %p52 = scmp.eq.s32.totalorder %s12, 0
      %p53 = por %p51, %p52
      %p54 = scmp.ne.s32.totalorder %s46, %s48
      %p55 = scmp.eq.s32.totalorder %s17, 1
      %p56 = por %p54, %p55
      %p57 = scmp.ne.s32.totalorder %s48, %s49
      %p58 = scmp.eq.s32.totalorder %s17, 0
      %p59 = por %p57, %p58
      %p60 = scmp.ne.s32.totalorder %s48, %s49
      %p61 = scmp.eq.s32.totalorder %s18, 1
      %p62 = por %p60, %p61
      %p64 = scmp.ne.s32.totalorder %s49, %s63
      %p65 = scmp.eq.s32.totalorder %s18, 0
      %p66 = por %p64, %p65
      %s68 = sadd.s32 %s67, 1
      %p71 = scmp.eq.s32.totalorder %s12, 1
      %p72 = scmp.ne.s32.totalorder %s67, %s69
      %p73 = scmp.eq.s32.totalorder %s12, 0
      %p74 = por %p72, %p73
      %p75 = scmp.ne.s32.totalorder %s67, %s69
      %p76 = scmp.eq.s32.totalorder %s17, 1
      %p77 = por %p75, %p76
      %p78 = scmp.ne.s32.totalorder %s69, %s70
      %p79 = scmp.eq.s32.totalorder %s17, 0
      %p80 = por %p78, %p79
      %p81 = scmp.ne.s32.totalorder %s69, %s70
      %p82 = scmp.eq.s32.totalorder %s18, 1
      %p83 = por %p81, %p82
      %p85 = scmp.ne.s32.totalorder %s70, %s84
      %p86 = scmp.eq.s32.totalorder %s18, 0
      %p87 = por %p85, %p86
      %s88 = ssub.s32 %s12, %s19
      %p89 = scmp.eq.s32.totalorder %s88, 0
      %s91 = sadd.s32 %s90, 1
      %s92 = scalar_select %p89, %s90, %s91
      %p95 = pneg %p89
      %p96 = scmp.eq.s32.totalorder %s12, 1
      %p97 = por %p95, %p96
      %p98 = scmp.ne.s32.totalorder %s90, %s93
      %p99 = scmp.eq.s32.totalorder %s12, 0
      %p100 = por %p98, %p99
      %p101 = scmp.ne.s32.totalorder %s90, %s93
      %p102 = scmp.eq.s32.totalorder %s17, 1
      %p103 = por %p101, %p102
      %p104 = scmp.ne.s32.totalorder %s93, %s94
      %p105 = scmp.eq.s32.totalorder %s17, 0
      %p106 = por %p104, %p105
      %p107 = scmp.ne.s32.totalorder %s93, %s94
      %p108 = scmp.eq.s32.totalorder %s18, 1
      %p109 = por %p107, %p108
      %p111 = scmp.ne.s32.totalorder %s94, %s110
      %p112 = scmp.eq.s32.totalorder %s18, 0
      %p113 = por %p111, %p112
      %p114 = scmp.le.s32.totalorder 1, %s12
      %p115 = scmp.lt.s32.totalorder %s12, 3
      %p116 = pnand %p114, %p115
      %p117 = pneg %p116
      // Predicated region
      $region9: #{tpu_custom_call.1} parent=5 // pred_check
        _
      $region10: #{tpu_custom_call.1} parent=5 // pred_check_branch
        %119 = sbr.rel (%p116) target = $region12
      $region11: #{tpu_custom_call.1} parent=5 // pred_region
        %s120 = ssub.s32 %s12, 1
        // Predicated region
        $region13: #{tpu_custom_call.1} parent=11 // pred_check
          %p121 = pneg %p59
        $region14: #{tpu_custom_call.1} parent=11 // pred_check_branch
          %123 = sbr.rel (%p121) target = $region16
        $region15: #{tpu_custom_call.1} parent=11 // pred_region
          _
        $region16: #{tpu_custom_call.1} parent=11 // pred_fallthru
          _
        // Predicated region
        $region17: #{tpu_custom_call.1} parent=11 // pred_check
          %p124 = pneg %p80
        $region18: #{tpu_custom_call.1} parent=11 // pred_check_branch
          %126 = sbr.rel (%p124) target = $region20
        $region19: #{tpu_custom_call.1} parent=11 // pred_region
          _
        $region20: #{tpu_custom_call.1} parent=11 // pred_fallthru
          _
      $region12: #{tpu_custom_call.1} parent=5 // pred_fallthru
        _
      %p127 = scmp.lt.s32.totalorder %s12, 2
      // Predicated region
      $region21: #{tpu_custom_call.1} parent=5 // pred_check
        %p128 = pneg %p127
      $region22: #{tpu_custom_call.1} parent=5 // pred_check_branch
        %130 = sbr.rel (%p128) target = $region24
      $region23: #{tpu_custom_call.1} parent=5 // pred_region
        // Predicated region
        $region25: #{tpu_custom_call.1} parent=23 // pred_check
          %p131 = pneg %p32
        $region26: #{tpu_custom_call.1} parent=23 // pred_check_branch
          %133 = sbr.rel (%p131) target = $region28
        $region27: #{tpu_custom_call.1} parent=23 // pred_region
          %p134 = scmp.lt.s32.totalorder %s12, 1
          %s135 = scalar_select %p134, %s12, 1
          %s136 = smul.addr %s135, 2
          %s137 = smul.addr %s136, 4
          %s138 = scalar_lea.vmem %s0, %s137
        $region28: #{tpu_custom_call.1} parent=23 // pred_fallthru
          _
      $region24: #{tpu_custom_call.1} parent=5 // pred_fallthru
        _
      %p139 = scmp.le.s32.totalorder 1, %s12
      %p140 = scmp.lt.s32.totalorder %s12, 3
      %p141 = pnand %p139, %p140
      %p142 = pneg %p141
      // Predicated region
      $region29: #{tpu_custom_call.1} parent=5 // pred_check
        _
      $region30: #{tpu_custom_call.1} parent=5 // pred_check_branch
        %144 = sbr.rel (%p141) target = $region32
      $region31: #{tpu_custom_call.1} parent=5 // pred_region
        %s145 = ssub.s32 %s12, 1
        %p146 = scmp.lt.s32.totalorder %s17, 1
        %s147 = scalar_select %p146, %s17, 1
        %s148 = smul.addr %s147, 2
        %s149 = smul.addr %s148, 4
        %s150 = scalar_lea.vmem %s0, %s149
        %p151 = pneg %p38
        %p152 = pneg %p35
        %p153 = pneg %p59
        %p154 = pneg %p56
        %p155 = pneg %p80
        %p156 = pneg %p77
        %p157 = pneg %p106
        %p158 = pneg %p103
        %s159 = sand.u32 %s93, 1
        %s160 = scalar_lea.sflag [#allocation3], %s159
        %s161 = sand.u32 %s93, 1
        %s162 = smul.addr %s161, 64
        %s163 = scalar_lea.vmem [#allocation2], %s162
        %p164 = scmp.lt.s32.totalorder %s17, 1
        %s165 = scalar_select %p164, %s17, 1
        %s166 = smul.addr %s165, 2
        %s167 = smul.addr %s166, 4
        %s168 = scalar_lea.vmem %s0, %s167
        %v169 = vld [vmem:[%s168] sm:$0xff]
        %v170 = vld [vmem:[%s1] sm:$0xff]
        %v171 = vld [vmem:[%s1 + $0x8] sm:$0xff]
        %v172 = vld [vmem:[%s1 + $0x10] sm:$0xff]
        %v173 = vld [vmem:[%s1 + $0x18] sm:$0xff]
        %v174 = vld [vmem:[%s1 + $0x20] sm:$0xff]
        %v175 = vld [vmem:[%s1 + $0x28] sm:$0xff]
        %v176 = vld [vmem:[%s1 + $0x30] sm:$0xff]
        %v177 = vld [vmem:[%s1 + $0x38] sm:$0xff]
        %v178 = vld [vmem:[%s1 + $0x40] sm:$0xff]
        %v179 = vld [vmem:[%s1 + $0x48] sm:$0xff]
        %v180 = vld [vmem:[%s1 + $0x50] sm:$0xff]
        %v181 = vld [vmem:[%s1 + $0x58] sm:$0xff]
        %v182 = vld [vmem:[%s2] sm:$0xff]
        %v183 = vld [vmem:[%s2 + $0x8] sm:$0xff]
        %v184 = vld [vmem:[%s2 + $0x10] sm:$0xff]
        %v185 = vld [vmem:[%s2 + $0x18] sm:$0xff]
        %v186 = vld [vmem:[%s2 + $0x20] sm:$0xff]
        %v187 = vld [vmem:[%s2 + $0x28] sm:$0xff]
        %v188 = vld [vmem:[%s2 + $0x30] sm:$0xff]
        %v189 = vld [vmem:[%s2 + $0x38] sm:$0xff]
        %v190 = vld [vmem:[%s2 + $0x40] sm:$0xff]
        %v191 = vld [vmem:[%s2 + $0x48] sm:$0xff]
        %v192 = vld [vmem:[%s2 + $0x50] sm:$0xff]
        %v193 = vld [vmem:[%s2 + $0x58] sm:$0xff]
        %195 = vset.pattern.permute.xlu0 0
        %196 = vperm.xlu0 %195, %v182
        %v197 = vpop.permute.xlu0 %196
        %200 = vset.pattern.permute.xlu0 0
        %201 = vperm.xlu0 %200, %v183
        %v202 = vpop.permute.xlu0 %201
        %205 = vset.pattern.permute.xlu0 0
        %206 = vperm.xlu0 %205, %v184
        %v207 = vpop.permute.xlu0 %206
        %210 = vset.pattern.permute.xlu0 0
        %211 = vperm.xlu0 %210, %v185
        %v212 = vpop.permute.xlu0 %211
        %215 = vset.pattern.permute.xlu0 0
        %216 = vperm.xlu0 %215, %v186
        %v217 = vpop.permute.xlu0 %216
        %220 = vset.pattern.permute.xlu0 0
        %221 = vperm.xlu0 %220, %v187
        %v222 = vpop.permute.xlu0 %221
        %225 = vset.pattern.permute.xlu0 0
        %226 = vperm.xlu0 %225, %v188
        %v227 = vpop.permute.xlu0 %226
        %230 = vset.pattern.permute.xlu0 0
        %231 = vperm.xlu0 %230, %v189
        %v232 = vpop.permute.xlu0 %231
        %235 = vset.pattern.permute.xlu0 0
        %236 = vperm.xlu0 %235, %v190
        %v237 = vpop.permute.xlu0 %236
        %240 = vset.pattern.permute.xlu0 0
        %241 = vperm.xlu0 %240, %v191
        %v242 = vpop.permute.xlu0 %241
        %245 = vset.pattern.permute.xlu0 0
        %246 = vperm.xlu0 %245, %v192
        %v247 = vpop.permute.xlu0 %246
        %250 = vset.pattern.permute.xlu0 0
        %251 = vperm.xlu0 %250, %v193
        %v252 = vpop.permute.xlu0 %251
        %v255 = vcombine.high %v169, %v169
        %vm256 = vcmask 31744
        %v258 = vsel %vm256, %v170, 0
        %v261 = vsel %vm256, %v171, 0
        %v264 = vsel %vm256, %v172, 0
        %v267 = vsel %vm256, %v173, 0
        %v270 = vsel %vm256, %v174, 0
        %v273 = vsel %vm256, %v175, 0
        %v276 = vsel %vm256, %v176, 0
        %v279 = vsel %vm256, %v177, 0
        %v282 = vsel %vm256, %v178, 0
        %v285 = vsel %vm256, %v179, 0
        %v288 = vsel %vm256, %v180, 0
        %v291 = vsel %vm256, %v181, 0
        %vm293 = vcmask 1043456
        %v294 = vsel %vm293, %v169, 0
        %v296 = vsel %vm293, %v255, 0
        %298 = vmatprep.subr.mxu0 %v296
        %299 = vmatpush1.msra.mxu0 %v294
        %300 = vmatprep.subr.mxu0 0.0
        %301 = vmatpush1.msra.mxu0 0.0
        %302 = vmatprep.subr.mxu0 0.0
        %303 = vmatpush1.msra.mxu0 0.0
        %304 = vmatprep.subr.mxu0 0.0
        %305 = vmatpush1.msra.mxu0 0.0
        %306 = vmatprep.subr.mxu0 0.0
        %307 = vmatpush1.msra.mxu0 0.0
        %308 = vmatprep.subr.mxu0 0.0
        %309 = vmatpush1.msra.mxu0 0.0
        %310 = vmatprep.subr.mxu0 0.0
        %311 = vmatpush1.msra.mxu0 0.0
        %312 = vmatprep.subr.mxu0 0.0
        %313 = vmatpush1.msra.mxu0 0.0
        %314 = vmatprep.subr.mxu0 0.0
        %315 = vmatpush1.msra.mxu0 0.0
        %316 = vmatprep.subr.mxu0 0.0
        %317 = vmatpush1.msra.mxu0 0.0
        %318 = vmatprep.subr.mxu0 0.0
        %319 = vmatpush1.msra.mxu0 0.0
        %320 = vmatprep.subr.mxu0 0.0
        %321 = vmatpush1.msra.mxu0 0.0
        %322 = vmatprep.subr.mxu0 0.0
        %323 = vmatpush1.msra.mxu0 0.0
        %324 = vmatprep.subr.mxu0 0.0
        %325 = vmatpush1.msra.mxu0 0.0
        %326 = vmatprep.subr.mxu0 0.0
        %327 = vmatpush1.msra.mxu0 0.0
        %328 = vmatprep.subr.mxu0 0.0
        %329 = vmatpush1.msra.mxu0 0.0
        %330 = vmatprep.subr.mxu0 0.0
        %331 = vmatpush1.msra.mxu0 0.0
        %332 = vmatprep.subr.mxu0 0.0
        %333 = vmatpush1.msra.mxu0 0.0
        %334 = vmatprep.subr.mxu0 0.0
        %335 = vmatpush1.msra.mxu0 0.0
        %336 = vmatprep.subr.mxu0 0.0
        %337 = vmatpush1.msra.mxu0 0.0
        %338 = vmatprep.subr.mxu0 0.0
        %339 = vmatpush1.msra.mxu0 0.0
        %340 = vmatprep.subr.mxu0 0.0
        %341 = vmatpush1.msra.mxu0 0.0
        %342 = vmatprep.subr.mxu0 0.0
        %343 = vmatpush1.msra.mxu0 0.0
        %344 = vmatprep.subr.mxu0 0.0
        %345 = vmatpush1.msra.mxu0 0.0
        %346 = vmatprep.subr.mxu0 0.0
        %347 = vmatpush1.msra.mxu0 0.0
        %348 = vmatprep.subr.mxu0 0.0
        %349 = vmatpush1.msra.mxu0 0.0
        %350 = vmatprep.subr.mxu0 0.0
        %351 = vmatpush1.msra.mxu0 0.0
        %352 = vmatprep.subr.mxu0 0.0
        %353 = vmatpush1.msra.mxu0 0.0
        %354 = vmatprep.subr.mxu0 0.0
        %355 = vmatpush1.msra.mxu0 0.0
        %356 = vmatprep.subr.mxu0 0.0
        %357 = vmatpush1.msra.mxu0 0.0
        %358 = vmatprep.subr.mxu0 0.0
        %359 = vmatpush1.msra.mxu0 0.0
        %360 = vmatprep.subr.mxu0 0.0
        %361 = vmatpush1.msra.mxu0 0.0
        %362 = vmatprep.mubr.f32.mxu0 0.0
        %363 = vmatmul.mubr.f32.gmra.mrb[0].mxu0 %v258
        %v364 = vpop.f32.mrb[0].mxu0
        %v365 = vadd.f32 %v197, %v364
        %v366 = vpop.f32.mrb[0].mxu0
        %v367 = vadd.f32 %v197, %v366
        %368 = vmatprep.mubr.f32.mxu0 0.0
        %369 = vmatmul.mubr.f32.gmra.mrb[0].mxu0 %v261
        %v370 = vpop.f32.mrb[0].mxu0
        %v371 = vadd.f32 %v202, %v370
        %v372 = vpop.f32.mrb[0].mxu0
        %v373 = vadd.f32 %v202, %v372
        %374 = vmatprep.mubr.f32.mxu0 0.0
        %375 = vmatmul.mubr.f32.gmra.mrb[0].mxu0 %v264
        %v376 = vpop.f32.mrb[0].mxu0
        %v377 = vadd.f32 %v207, %v376
        %v378 = vpop.f32.mrb[0].mxu0
        %v379 = vadd.f32 %v207, %v378
        %380 = vmatprep.mubr.f32.mxu0 0.0
        %381 = vmatmul.mubr.f32.gmra.mrb[0].mxu0 %v267
        %v382 = vpop.f32.mrb[0].mxu0
        %v383 = vadd.f32 %v212, %v382
        %v384 = vpop.f32.mrb[0].mxu0
        %v385 = vadd.f32 %v212, %v384
        %386 = vmatprep.mubr.f32.mxu0 0.0
        %387 = vmatmul.mubr.f32.gmra.mrb[0].mxu0 %v270
        %v388 = vpop.f32.mrb[0].mxu0
        %v389 = vadd.f32 %v217, %v388
        %v390 = vpop.f32.mrb[0].mxu0
        %v391 = vadd.f32 %v217, %v390
        %392 = vmatprep.mubr.f32.mxu0 0.0
        %393 = vmatmul.mubr.f32.gmra.mrb[0].mxu0 %v273
        %v394 = vpop.f32.mrb[0].mxu0
        %v395 = vadd.f32 %v222, %v394
        %v396 = vpop.f32.mrb[0].mxu0
        %v397 = vadd.f32 %v222, %v396
        %398 = vmatprep.mubr.f32.mxu0 0.0
        %399 = vmatmul.mubr.f32.gmra.mrb[0].mxu0 %v276
        %v400 = vpop.f32.mrb[0].mxu0
        %v401 = vadd.f32 %v227, %v400
        %v402 = vpop.f32.mrb[0].mxu0
        %v403 = vadd.f32 %v227, %v402
        %404 = vmatprep.mubr.f32.mxu0 0.0
        %405 = vmatmul.mubr.f32.gmra.mrb[0].mxu0 %v279
        %v406 = vpop.f32.mrb[0].mxu0
        %v407 = vadd.f32 %v232, %v406
        %v408 = vpop.f32.mrb[0].mxu0
        %v409 = vadd.f32 %v232, %v408
        %410 = vmatprep.mubr.f32.mxu0 0.0
        %411 = vmatmul.mubr.f32.gmra.mrb[0].mxu0 %v282
        %v412 = vpop.f32.mrb[0].mxu0
        %v413 = vadd.f32 %v237, %v412
        %v414 = vpop.f32.mrb[0].mxu0
        %v415 = vadd.f32 %v237, %v414
        %416 = vmatprep.mubr.f32.mxu0 0.0
        %417 = vmatmul.mubr.f32.gmra.mrb[0].mxu0 %v285
        %v418 = vpop.f32.mrb[0].mxu0
        %v419 = vadd.f32 %v242, %v418
        %v420 = vpop.f32.mrb[0].mxu0
        %v421 = vadd.f32 %v242, %v420
        %422 = vmatprep.mubr.f32.mxu0 0.0
        %423 = vmatmul.mubr.f32.gmra.mrb[0].mxu0 %v288
        %v424 = vpop.f32.mrb[0].mxu0
        %v425 = vadd.f32 %v247, %v424
        %v426 = vpop.f32.mrb[0].mxu0
        %v427 = vadd.f32 %v247, %v426
        %428 = vmatprep.mubr.f32.mxu0 0.0
        %429 = vmatmul.mubr.f32.gmra.mrb[0].mxu0 %v291
        %v430 = vpop.f32.mrb[0].mxu0
        %v431 = vadd.f32 %v252, %v430
        %v432 = vpop.f32.mrb[0].mxu0
        %v433 = vadd.f32 %v252, %v432
        %434 = vdwg.mxu0
        %v435 = vmul.f32 %v365, 0.5
        %v436 = vmul.f32 %v367, 0.5
        %v437 = vmul.f32 %v371, 0.5
        %v438 = vmul.f32 %v373, 0.5
        %v439 = vmul.f32 %v377, 0.5
        %v440 = vmul.f32 %v379, 0.5
        %v441 = vmul.f32 %v383, 0.5
        %v442 = vmul.f32 %v385, 0.5
        %443 = vxpose.xlu0.b32.start [1/16] %v435, 128
        %444 = vxpose.xlu0.b32.cont [2/16] 0.0, 128
        %445 = vxpose.xlu0.b32.cont [3/16] 0.0, 128
        %446 = vxpose.xlu0.b32.cont [4/16] 0.0, 128
        %447 = vxpose.xlu0.b32.cont [5/16] 0.0, 128
        %448 = vxpose.xlu0.b32.cont [6/16] 0.0, 128
        %449 = vxpose.xlu0.b32.cont [7/16] 0.0, 128
        %450 = vxpose.xlu0.b32.cont [8/16] 0.0, 128
        %451 = vxpose.xlu0.b32.cont [9/16] 0.0, 128
        %452 = vxpose.xlu0.b32.cont [10/16] 0.0, 128
        %453 = vxpose.xlu0.b32.cont [11/16] 0.0, 128
        %454 = vxpose.xlu0.b32.cont [12/16] 0.0, 128
        %455 = vxpose.xlu0.b32.cont [13/16] 0.0, 128
        %456 = vxpose.xlu0.b32.cont [14/16] 0.0, 128
        %457 = vxpose.xlu0.b32.cont [15/16] 0.0, 128
        %458 = vxpose.xlu0.b32.end [16/16] 0.0, 128
        %v459 = vpop.trf.xlu0
        %v460 = vpop.trf.xlu0
        %v461 = vpop.trf.xlu0
        %v462 = vpop.trf.xlu0
        %v463 = vpop.trf.xlu0
        %v464 = vpop.trf.xlu0
        %v465 = vpop.trf.xlu0
        %v466 = vpop.trf.xlu0
        %v467 = vpop.trf.xlu0
        %v468 = vpop.trf.xlu0
        %v469 = vpop.trf.xlu0
        %v470 = vpop.trf.xlu0
        %v471 = vpop.trf.xlu0
        %v472 = vpop.trf.xlu0
        %v473 = vpop.trf.xlu0
        %v474 = vpop.trf.xlu0
        %475 = vxpose.xlu0.b32.start [1/16] %v436, 128
        %476 = vxpose.xlu0.b32.cont [2/16] 0.0, 128
        %477 = vxpose.xlu0.b32.cont [3/16] 0.0, 128
        %478 = vxpose.xlu0.b32.cont [4/16] 0.0, 128
        %479 = vxpose.xlu0.b32.cont [5/16] 0.0, 128
        %480 = vxpose.xlu0.b32.cont [6/16] 0.0, 128
        %481 = vxpose.xlu0.b32.cont [7/16] 0.0, 128
        %482 = vxpose.xlu0.b32.cont [8/16] 0.0, 128
        %483 = vxpose.xlu0.b32.cont [9/16] 0.0, 128
        %484 = vxpose.xlu0.b32.cont [10/16] 0.0, 128
        %485 = vxpose.xlu0.b32.cont [11/16] 0.0, 128
        %486 = vxpose.xlu0.b32.cont [12/16] 0.0, 128
        %487 = vxpose.xlu0.b32.cont [13/16] 0.0, 128
        %488 = vxpose.xlu0.b32.cont [14/16] 0.0, 128
        %489 = vxpose.xlu0.b32.cont [15/16] 0.0, 128
        %490 = vxpose.xlu0.b32.end [16/16] 0.0, 128
        %v491 = vpop.trf.xlu0
        %v492 = vpop.trf.xlu0
        %v493 = vpop.trf.xlu0
        %v494 = vpop.trf.xlu0
        %v495 = vpop.trf.xlu0
        %v496 = vpop.trf.xlu0
        %v497 = vpop.trf.xlu0
        %v498 = vpop.trf.xlu0
        %v499 = vpop.trf.xlu0
        %v500 = vpop.trf.xlu0
        %v501 = vpop.trf.xlu0
        %v502 = vpop.trf.xlu0
        %v503 = vpop.trf.xlu0
        %v504 = vpop.trf.xlu0
        %v505 = vpop.trf.xlu0
        %v506 = vpop.trf.xlu0
        %v508 = vsel %vm256, %v459, 0
        %v511 = vsel %vm256, %v460, 0
        %v514 = vsel %vm256, %v461, 0
        %v517 = vsel %vm256, %v462, 0
        %v520 = vsel %vm256, %v463, 0
        %v523 = vsel %vm256, %v464, 0
        %v526 = vsel %vm256, %v465, 0
        %v529 = vsel %vm256, %v466, 0
        %v532 = vsel %vm256, %v467, 0
        %v535 = vsel %vm256, %v468, 0
        %v538 = vsel %vm256, %v469, 0
        %v541 = vsel %vm256, %v470, 0
        %v544 = vsel %vm256, %v471, 0
        %v547 = vsel %vm256, %v472, 0
        %v550 = vsel %vm256, %v473, 0
        %v553 = vsel %vm256, %v474, 0
        %v556 = vsel %vm256, %v491, 0
        %v559 = vsel %vm256, %v492, 0
        %v562 = vsel %vm256, %v493, 0
        %v565 = vsel %vm256, %v494, 0
        %v568 = vsel %vm256, %v495, 0
        %v571 = vsel %vm256, %v496, 0
        %v574 = vsel %vm256, %v497, 0
        %v577 = vsel %vm256, %v498, 0
        %v580 = vsel %vm256, %v499, 0
        %v583 = vsel %vm256, %v500, 0
        %v586 = vsel %vm256, %v501, 0
        %v589 = vsel %vm256, %v502, 0
        %v592 = vsel %vm256, %v503, 0
        %v595 = vsel %vm256, %v504, 0
        %v598 = vsel %vm256, %v505, 0
        %v601 = vsel %vm256, %v506, 0
        %v604 = vsel %vm293, %v389, 0
        %v607 = vsel %vm293, %v391, 0
        %609 = vmatprep.subr.mxu0 %v607
        %610 = vmatpush1.msra.mxu0 %v604
        %611 = vmatprep.subr.mxu0 0.0
        %612 = vmatpush1.msra.mxu0 0.0
        %613 = vmatprep.subr.mxu0 0.0
        %614 = vmatpush1.msra.mxu0 0.0
        %615 = vmatprep.subr.mxu0 0.0
        %616 = vmatpush1.msra.mxu0 0.0
        %617 = vmatprep.subr.mxu0 0.0
        %618 = vmatpush1.msra.mxu0 0.0
        %619 = vmatprep.subr.mxu0 0.0
        %620 = vmatpush1.msra.mxu0 0.0
        %621 = vmatprep.subr.mxu0 0.0
        %622 = vmatpush1.msra.mxu0 0.0
        %623 = vmatprep.subr.mxu0 0.0
        %624 = vmatpush1.msra.mxu0 0.0
        %625 = vmatprep.subr.mxu0 0.0
        %626 = vmatpush1.msra.mxu0 0.0
        %627 = vmatprep.subr.mxu0 0.0
        %628 = vmatpush1.msra.mxu0 0.0
        %629 = vmatprep.subr.mxu0 0.0
        %630 = vmatpush1.msra.mxu0 0.0
        %631 = vmatprep.subr.mxu0 0.0
        %632 = vmatpush1.msra.mxu0 0.0
        %633 = vmatprep.subr.mxu0 0.0
        %634 = vmatpush1.msra.mxu0 0.0
        %635 = vmatprep.subr.mxu0 0.0
        %636 = vmatpush1.msra.mxu0 0.0
        %637 = vmatprep.subr.mxu0 0.0
        %638 = vmatpush1.msra.mxu0 0.0
        %639 = vmatprep.subr.mxu0 0.0
        %640 = vmatpush1.msra.mxu0 0.0
        %641 = vmatprep.subr.mxu0 0.0
        %642 = vmatpush1.msra.mxu0 0.0
        %643 = vmatprep.subr.mxu0 0.0
        %644 = vmatpush1.msra.mxu0 0.0
        %645 = vmatprep.subr.mxu0 0.0
        %646 = vmatpush1.msra.mxu0 0.0
        %647 = vmatprep.subr.mxu0 0.0
        %648 = vmatpush1.msra.mxu0 0.0
        %649 = vmatprep.subr.mxu0 0.0
        %650 = vmatpush1.msra.mxu0 0.0
        %651 = vmatprep.subr.mxu0 0.0
        %652 = vmatpush1.msra.mxu0 0.0
        %653 = vmatprep.subr.mxu0 0.0
        %654 = vmatpush1.msra.mxu0 0.0
        %655 = vmatprep.subr.mxu0 0.0
        %656 = vmatpush1.msra.mxu0 0.0
        %657 = vmatprep.subr.mxu0 0.0
        %658 = vmatpush1.msra.mxu0 0.0
        %659 = vmatprep.subr.mxu0 0.0
        %660 = vmatpush1.msra.mxu0 0.0
        %661 = vmatprep.subr.mxu0 0.0
        %662 = vmatpush1.msra.mxu0 0.0
        %663 = vmatprep.subr.mxu0 0.0
        %664 = vmatpush1.msra.mxu0 0.0
        %665 = vmatprep.subr.mxu0 0.0
        %666 = vmatpush1.msra.mxu0 0.0
        %667 = vmatprep.subr.mxu0 0.0
        %668 = vmatpush1.msra.mxu0 0.0
        %669 = vmatprep.subr.mxu0 0.0
        %670 = vmatpush1.msra.mxu0 0.0
        %671 = vmatprep.subr.mxu0 0.0
        %672 = vmatpush1.msra.mxu0 0.0
        %673 = vmatprep.mubr.f32.mxu0 0.0
        %674 = vmatmul.mubr.f32.gmra.mrb[0].mxu0 %v508
        %v675 = vpop.f32.mrb[0].mxu0
        %v676 = vadd.f32 0.0, %v675
        %v677 = vpop.f32.mrb[0].mxu0
        %v678 = vadd.f32 0.0, %v677
        %679 = vmatprep.mubr.f32.mxu0 0.0
        %680 = vmatmul.mubr.f32.gmra.mrb[0].mxu0 %v511
        %v681 = vpop.f32.mrb[0].mxu0
        %v682 = vadd.f32 0.0, %v681
        %v683 = vpop.f32.mrb[0].mxu0
        %v684 = vadd.f32 0.0, %v683
        %685 = vmatprep.mubr.f32.mxu0 0.0
        %686 = vmatmul.mubr.f32.gmra.mrb[0].mxu0 %v514
        %v687 = vpop.f32.mrb[0].mxu0
        %v688 = vadd.f32 0.0, %v687
        %v689 = vpop.f32.mrb[0].mxu0
        %v690 = vadd.f32 0.0, %v689
        %691 = vmatprep.mubr.f32.mxu0 0.0
        %692 = vmatmul.mubr.f32.gmra.mrb[0].mxu0 %v517
        %v693 = vpop.f32.mrb[0].mxu0
        %v694 = vadd.f32 0.0, %v693
        %v695 = vpop.f32.mrb[0].mxu0
        %v696 = vadd.f32 0.0, %v695
        %697 = vmatprep.mubr.f32.mxu0 0.0
        %698 = vmatmul.mubr.f32.gmra.mrb[0].mxu0 %v520
        %v699 = vpop.f32.mrb[0].mxu0
        %v700 = vadd.f32 0.0, %v699
        %v701 = vpop.f32.mrb[0].mxu0
        %v702 = vadd.f32 0.0, %v701
        %703 = vmatprep.mubr.f32.mxu0 0.0
        %704 = vmatmul.mubr.f32.gmra.mrb[0].mxu0 %v523
        %v705 = vpop.f32.mrb[0].mxu0
        %v706 = vadd.f32 0.0, %v705
        %v707 = vpop.f32.mrb[0].mxu0
        %v708 = vadd.f32 0.0, %v707
        %709 = vmatprep.mubr.f32.mxu0 0.0
        %710 = vmatmul.mubr.f32.gmra.mrb[0].mxu0 %v526
        %v711 = vpop.f32.mrb[0].mxu0
        %v712 = vadd.f32 0.0, %v711
        %v713 = vpop.f32.mrb[0].mxu0
        %v714 = vadd.f32 0.0, %v713
        %715 = vmatprep.mubr.f32.mxu0 0.0
        %716 = vmatmul.mubr.f32.gmra.mrb[0].mxu0 %v529
        %v717 = vpop.f32.mrb[0].mxu0
        %v718 = vadd.f32 0.0, %v717
        %v719 = vpop.f32.mrb[0].mxu0
        %v720 = vadd.f32 0.0, %v719
        %721 = vmatprep.mubr.f32.mxu0 0.0
        %722 = vmatmul.mubr.f32.gmra.mrb[0].mxu0 %v532
        %v723 = vpop.f32.mrb[0].mxu0
        %v724 = vadd.f32 0.0, %v723
        %v725 = vpop.f32.mrb[0].mxu0
        %v726 = vadd.f32 0.0, %v725
        %727 = vmatprep.mubr.f32.mxu0 0.0
        %728 = vmatmul.mubr.f32.gmra.mrb[0].mxu0 %v535
        %v729 = vpop.f32.mrb[0].mxu0
        %v730 = vadd.f32 0.0, %v729
        %v731 = vpop.f32.mrb[0].mxu0
        %v732 = vadd.f32 0.0, %v731
        %733 = vmatprep.mubr.f32.mxu0 0.0
        %734 = vmatmul.mubr.f32.gmra.mrb[0].mxu0 %v538
        %v735 = vpop.f32.mrb[0].mxu0
        %v736 = vadd.f32 0.0, %v735
        %v737 = vpop.f32.mrb[0].mxu0
        %v738 = vadd.f32 0.0, %v737
        %739 = vmatprep.mubr.f32.mxu0 0.0
        %740 = vmatmul.mubr.f32.gmra.mrb[0].mxu0 %v541
        %v741 = vpop.f32.mrb[0].mxu0
        %v742 = vadd.f32 0.0, %v741
        %v743 = vpop.f32.mrb[0].mxu0
        %v744 = vadd.f32 0.0, %v743
        %745 = vmatprep.mubr.f32.mxu0 0.0
        %746 = vmatmul.mubr.f32.gmra.mrb[0].mxu0 %v544
        %v747 = vpop.f32.mrb[0].mxu0
        %v748 = vadd.f32 0.0, %v747
        %v749 = vpop.f32.mrb[0].mxu0
        %v750 = vadd.f32 0.0, %v749
        %751 = vmatprep.mubr.f32.mxu0 0.0
        %752 = vmatmul.mubr.f32.gmra.mrb[0].mxu0 %v547
        %v753 = vpop.f32.mrb[0].mxu0
        %v754 = vadd.f32 0.0, %v753
        %v755 = vpop.f32.mrb[0].mxu0
        %v756 = vadd.f32 0.0, %v755
        %757 = vmatprep.mubr.f32.mxu0 0.0
        %758 = vmatmul.mubr.f32.gmra.mrb[0].mxu0 %v550
        %v759 = vpop.f32.mrb[0].mxu0
        %v760 = vadd.f32 0.0, %v759
        %v761 = vpop.f32.mrb[0].mxu0
        %v762 = vadd.f32 0.0, %v761
        %763 = vmatprep.mubr.f32.mxu0 0.0
        %764 = vmatmul.mubr.f32.gmra.mrb[0].mxu0 %v553
        %v765 = vpop.f32.mrb[0].mxu0
        %v766 = vadd.f32 0.0, %v765
        %v767 = vpop.f32.mrb[0].mxu0
        %v768 = vadd.f32 0.0, %v767
        %769 = vmatprep.mubr.f32.mxu0 0.0
        %770 = vmatmul.mubr.f32.gmra.mrb[0].mxu0 %v556
        %v771 = vpop.f32.mrb[0].mxu0
        %v772 = vadd.f32 0.0, %v771
        %v773 = vpop.f32.mrb[0].mxu0
        %v774 = vadd.f32 0.0, %v773
        %775 = vmatprep.mubr.f32.mxu0 0.0
        %776 = vmatmul.mubr.f32.gmra.mrb[0].mxu0 %v559
        %v777 = vpop.f32.mrb[0].mxu0
        %v778 = vadd.f32 0.0, %v777
        %v779 = vpop.f32.mrb[0].mxu0
        %v780 = vadd.f32 0.0, %v779
        %781 = vmatprep.mubr.f32.mxu0 0.0
        %782 = vmatmul.mubr.f32.gmra.mrb[0].mxu0 %v562
        %v783 = vpop.f32.mrb[0].mxu0
        %v784 = vadd.f32 0.0, %v783
        %v785 = vpop.f32.mrb[0].mxu0
        %v786 = vadd.f32 0.0, %v785
        %787 = vmatprep.mubr.f32.mxu0 0.0
        %788 = vmatmul.mubr.f32.gmra.mrb[0].mxu0 %v565
        %v789 = vpop.f32.mrb[0].mxu0
        %v790 = vadd.f32 0.0, %v789
        %v791 = vpop.f32.mrb[0].mxu0
        %v792 = vadd.f32 0.0, %v791
        %793 = vmatprep.mubr.f32.mxu0 0.0
        %794 = vmatmul.mubr.f32.gmra.mrb[0].mxu0 %v568
        %v795 = vpop.f32.mrb[0].mxu0
        %v796 = vadd.f32 0.0, %v795
        %v797 = vpop.f32.mrb[0].mxu0
        %v798 = vadd.f32 0.0, %v797
        %799 = vmatprep.mubr.f32.mxu0 0.0
        %800 = vmatmul.mubr.f32.gmra.mrb[0].mxu0 %v571
        %v801 = vpop.f32.mrb[0].mxu0
        %v802 = vadd.f32 0.0, %v801
        %v803 = vpop.f32.mrb[0].mxu0
        %v804 = vadd.f32 0.0, %v803
        %805 = vmatprep.mubr.f32.mxu0 0.0
        %806 = vmatmul.mubr.f32.gmra.mrb[0].mxu0 %v574
        %v807 = vpop.f32.mrb[0].mxu0
        %v808 = vadd.f32 0.0, %v807
        %v809 = vpop.f32.mrb[0].mxu0
        %v810 = vadd.f32 0.0, %v809
        %811 = vmatprep.mubr.f32.mxu0 0.0
        %812 = vmatmul.mubr.f32.gmra.mrb[0].mxu0 %v577
        %v813 = vpop.f32.mrb[0].mxu0
        %v814 = vadd.f32 0.0, %v813
        %v815 = vpop.f32.mrb[0].mxu0
        %v816 = vadd.f32 0.0, %v815
        %817 = vmatprep.mubr.f32.mxu0 0.0
        %818 = vmatmul.mubr.f32.gmra.mrb[0].mxu0 %v580
        %v819 = vpop.f32.mrb[0].mxu0
        %v820 = vadd.f32 0.0, %v819
        %v821 = vpop.f32.mrb[0].mxu0
        %v822 = vadd.f32 0.0, %v821
        %823 = vmatprep.mubr.f32.mxu0 0.0
        %824 = vmatmul.mubr.f32.gmra.mrb[0].mxu0 %v583
        %v825 = vpop.f32.mrb[0].mxu0
        %v826 = vadd.f32 0.0, %v825
        %v827 = vpop.f32.mrb[0].mxu0
        %v828 = vadd.f32 0.0, %v827
        %829 = vmatprep.mubr.f32.mxu0 0.0
        %830 = vmatmul.mubr.f32.gmra.mrb[0].mxu0 %v586
        %v831 = vpop.f32.mrb[0].mxu0
        %v832 = vadd.f32 0.0, %v831
        %v833 = vpop.f32.mrb[0].mxu0
        %v834 = vadd.f32 0.0, %v833
        %835 = vmatprep.mubr.f32.mxu0 0.0
        %836 = vmatmul.mubr.f32.gmra.mrb[0].mxu0 %v589
        %v837 = vpop.f32.mrb[0].mxu0
        %v838 = vadd.f32 0.0, %v837
        %v839 = vpop.f32.mrb[0].mxu0
        %v840 = vadd.f32 0.0, %v839
        %841 = vmatprep.mubr.f32.mxu0 0.0
        %842 = vmatmul.mubr.f32.gmra.mrb[0].mxu0 %v592
        %v843 = vpop.f32.mrb[0].mxu0
        %v844 = vadd.f32 0.0, %v843
        %v845 = vpop.f32.mrb[0].mxu0
        %v846 = vadd.f32 0.0, %v845
        %847 = vmatprep.mubr.f32.mxu0 0.0
        %848 = vmatmul.mubr.f32.gmra.mrb[0].mxu0 %v595
        %v849 = vpop.f32.mrb[0].mxu0
        %v850 = vadd.f32 0.0, %v849
        %v851 = vpop.f32.mrb[0].mxu0
        %v852 = vadd.f32 0.0, %v851
        %853 = vmatprep.mubr.f32.mxu0 0.0
        %854 = vmatmul.mubr.f32.gmra.mrb[0].mxu0 %v598
        %v855 = vpop.f32.mrb[0].mxu0
        %v856 = vadd.f32 0.0, %v855
        %v857 = vpop.f32.mrb[0].mxu0
        %v858 = vadd.f32 0.0, %v857
        %859 = vmatprep.mubr.f32.mxu0 0.0
        %860 = vmatmul.mubr.f32.gmra.mrb[0].mxu0 %v601
        %v861 = vpop.f32.mrb[0].mxu0
        %v862 = vadd.f32 0.0, %v861
        %v863 = vpop.f32.mrb[0].mxu0
        %v864 = vadd.f32 0.0, %v863
        %865 = vdwg.mxu0
        %v866 = vmax.f32 %v676, %v678
        %867 = vmax.xlane.f32.xlu0 %v866
        %v868 = vpop.xlane.xlu0 %867
        %v869 = vmax.f32 %v682, %v684
        %870 = vmax.xlane.f32.xlu0 %v869
        %v871 = vpop.xlane.xlu0 %870
        %v872 = vmax.f32 %v688, %v690
        %873 = vmax.xlane.f32.xlu0 %v872
        %v874 = vpop.xlane.xlu0 %873
        %v875 = vmax.f32 %v694, %v696
        %876 = vmax.xlane.f32.xlu0 %v875
        %v877 = vpop.xlane.xlu0 %876
        %v878 = vmax.f32 %v700, %v702
        %879 = vmax.xlane.f32.xlu0 %v878
        %v880 = vpop.xlane.xlu0 %879
        %v881 = vmax.f32 %v706, %v708
        %882 = vmax.xlane.f32.xlu0 %v881
        %v883 = vpop.xlane.xlu0 %882
        %v884 = vmax.f32 %v712, %v714
        %885 = vmax.xlane.f32.xlu0 %v884
        %v886 = vpop.xlane.xlu0 %885
        %v887 = vmax.f32 %v718, %v720
        %888 = vmax.xlane.f32.xlu0 %v887
        %v889 = vpop.xlane.xlu0 %888
        %v890 = vmax.f32 %v724, %v726
        %891 = vmax.xlane.f32.xlu0 %v890
        %v892 = vpop.xlane.xlu0 %891
        %v893 = vmax.f32 %v730, %v732
        %894 = vmax.xlane.f32.xlu0 %v893
        %v895 = vpop.xlane.xlu0 %894
        %v896 = vmax.f32 %v736, %v738
        %897 = vmax.xlane.f32.xlu0 %v896
        %v898 = vpop.xlane.xlu0 %897
        %v899 = vmax.f32 %v742, %v744
        %900 = vmax.xlane.f32.xlu0 %v899
        %v901 = vpop.xlane.xlu0 %900
        %v902 = vmax.f32 %v748, %v750
        %903 = vmax.xlane.f32.xlu0 %v902
        %v904 = vpop.xlane.xlu0 %903
        %v905 = vmax.f32 %v754, %v756
        %906 = vmax.xlane.f32.xlu0 %v905
        %v907 = vpop.xlane.xlu0 %906
        %v908 = vmax.f32 %v760, %v762
        %909 = vmax.xlane.f32.xlu0 %v908
        %v910 = vpop.xlane.xlu0 %909
        %v911 = vmax.f32 %v766, %v768
        %912 = vmax.xlane.f32.xlu0 %v911
        %v913 = vpop.xlane.xlu0 %912
        %v914 = vmax.f32 %v772, %v774
        %915 = vmax.xlane.f32.xlu0 %v914
        %v916 = vpop.xlane.xlu0 %915
        %v917 = vmax.f32 %v778, %v780
        %918 = vmax.xlane.f32.xlu0 %v917
        %v919 = vpop.xlane.xlu0 %918
        %v920 = vmax.f32 %v784, %v786
        %921 = vmax.xlane.f32.xlu0 %v920
        %v922 = vpop.xlane.xlu0 %921
        %v923 = vmax.f32 %v790, %v792
        %924 = vmax.xlane.f32.xlu0 %v923
        %v925 = vpop.xlane.xlu0 %924
        %v926 = vmax.f32 %v796, %v798
        %927 = vmax.xlane.f32.xlu0 %v926
        %v928 = vpop.xlane.xlu0 %927
        %v929 = vmax.f32 %v802, %v804
        %930 = vmax.xlane.f32.xlu0 %v929
        %v931 = vpop.xlane.xlu0 %930
        %v932 = vmax.f32 %v808, %v810
        %933 = vmax.xlane.f32.xlu0 %v932
        %v934 = vpop.xlane.xlu0 %933
        %v935 = vmax.f32 %v814, %v816
        %936 = vmax.xlane.f32.xlu0 %v935
        %v937 = vpop.xlane.xlu0 %936
        %v938 = vmax.f32 %v820, %v822
        %939 = vmax.xlane.f32.xlu0 %v938
        %v940 = vpop.xlane.xlu0 %939
        %v941 = vmax.f32 %v826, %v828
        %942 = vmax.xlane.f32.xlu0 %v941
        %v943 = vpop.xlane.xlu0 %942
        %v944 = vmax.f32 %v832, %v834
        %945 = vmax.xlane.f32.xlu0 %v944
        %v946 = vpop.xlane.xlu0 %945
        %v947 = vmax.f32 %v838, %v840
        %948 = vmax.xlane.f32.xlu0 %v947
        %v949 = vpop.xlane.xlu0 %948
        %v950 = vmax.f32 %v844, %v846
        %951 = vmax.xlane.f32.xlu0 %v950
        %v952 = vpop.xlane.xlu0 %951
        %v953 = vmax.f32 %v850, %v852
        %954 = vmax.xlane.f32.xlu0 %v953
        %v955 = vpop.xlane.xlu0 %954
        %v956 = vmax.f32 %v856, %v858
        %957 = vmax.xlane.f32.xlu0 %v956
        %v958 = vpop.xlane.xlu0 %957
        %v959 = vmax.f32 %v862, %v864
        %960 = vmax.xlane.f32.xlu0 %v959
        %v961 = vpop.xlane.xlu0 %960
        %v962 = vsub.f32 %v676, %v868
        %v963 = vsub.f32 %v678, %v868
        %v964 = vsub.f32 %v682, %v871
        %v965 = vsub.f32 %v684, %v871
        %v966 = vsub.f32 %v688, %v874
        %v967 = vsub.f32 %v690, %v874
        %v968 = vsub.f32 %v694, %v877
        %v969 = vsub.f32 %v696, %v877
        %v970 = vsub.f32 %v700, %v880
        %v971 = vsub.f32 %v702, %v880
        %v972 = vsub.f32 %v706, %v883
        %v973 = vsub.f32 %v708, %v883
        %v974 = vsub.f32 %v712, %v886
        %v975 = vsub.f32 %v714, %v886
        %v976 = vsub.f32 %v718, %v889
        %v977 = vsub.f32 %v720, %v889
        %v978 = vsub.f32 %v724, %v892
        %v979 = vsub.f32 %v726, %v892
        %v980 = vsub.f32 %v730, %v895
        %v981 = vsub.f32 %v732, %v895
        %v982 = vsub.f32 %v736, %v898
        %v983 = vsub.f32 %v738, %v898
        %v984 = vsub.f32 %v742, %v901
        %v985 = vsub.f32 %v744, %v901
        %v986 = vsub.f32 %v748, %v904
        %v987 = vsub.f32 %v750, %v904
        %v988 = vsub.f32 %v754, %v907
        %v989 = vsub.f32 %v756, %v907
        %v990 = vsub.f32 %v760, %v910
        %v991 = vsub.f32 %v762, %v910
        %v992 = vsub.f32 %v766, %v913
        %v993 = vsub.f32 %v768, %v913
        %v994 = vsub.f32 %v772, %v916
        %v995 = vsub.f32 %v774, %v916
        %v996 = vsub.f32 %v778, %v919
        %v997 = vsub.f32 %v780, %v919
        %v998 = vsub.f32 %v784, %v922
        %v999 = vsub.f32 %v786, %v922
        %v1000 = vsub.f32 %v790, %v925
        %v1001 = vsub.f32 %v792, %v925
        %v1002 = vsub.f32 %v796, %v928
        %v1003 = vsub.f32 %v798, %v928
        %v1004 = vsub.f32 %v802, %v931
        %v1005 = vsub.f32 %v804, %v931
        %v1006 = vsub.f32 %v808, %v934
        %v1007 = vsub.f32 %v810, %v934
        %v1008 = vsub.f32 %v814, %v937
        %v1009 = vsub.f32 %v816, %v937
        %v1010 = vsub.f32 %v820, %v940
        %v1011 = vsub.f32 %v822, %v940
        %v1012 = vsub.f32 %v826, %v943
        %v1013 = vsub.f32 %v828, %v943
        %v1014 = vsub.f32 %v832, %v946
        %v1015 = vsub.f32 %v834, %v946
        %v1016 = vsub.f32 %v838, %v949
        %v1017 = vsub.f32 %v840, %v949
        %v1018 = vsub.f32 %v844, %v952
        %v1019 = vsub.f32 %v846, %v952
        %v1020 = vsub.f32 %v850, %v955
        %v1021 = vsub.f32 %v852, %v955
        %v1022 = vsub.f32 %v856, %v958
        %v1023 = vsub.f32 %v858, %v958
        %v1024 = vsub.f32 %v862, %v961
        %v1025 = vsub.f32 %v864, %v961
        %v1026 = vmul.f32 %v962, 1.442695
        %v1027 = vpow.pop %v1026
        %v1028 = vmul.f32 %v963, 1.442695
        %v1029 = vpow.pop %v1028
        %v1030 = vmul.f32 %v964, 1.442695
        %v1031 = vpow.pop %v1030
        %v1032 = vmul.f32 %v965, 1.442695
        %v1033 = vpow.pop %v1032
        %v1034 = vmul.f32 %v966, 1.442695
        %v1035 = vpow.pop %v1034
        %v1036 = vmul.f32 %v967, 1.442695
        %v1037 = vpow.pop %v1036
        %v1038 = vmul.f32 %v968, 1.442695
        %v1039 = vpow.pop %v1038
        %v1040 = vmul.f32 %v969, 1.442695
        %v1041 = vpow.pop %v1040
        %v1042 = vmul.f32 %v970, 1.442695
        %v1043 = vpow.pop %v1042
        %v1044 = vmul.f32 %v971, 1.442695
        %v1045 = vpow.pop %v1044
        %v1046 = vmul.f32 %v972, 1.442695
        %v1047 = vpow.pop %v1046
        %v1048 = vmul.f32 %v973, 1.442695
        %v1049 = vpow.pop %v1048
        %v1050 = vmul.f32 %v974, 1.442695
        %v1051 = vpow.pop %v1050
        %v1052 = vmul.f32 %v975, 1.442695
        %v1053 = vpow.pop %v1052
        %v1054 = vmul.f32 %v976, 1.442695
        %v1055 = vpow.pop %v1054
        %v1056 = vmul.f32 %v977, 1.442695
        %v1057 = vpow.pop %v1056
        %v1058 = vmul.f32 %v978, 1.442695
        %v1059 = vpow.pop %v1058
        %v1060 = vmul.f32 %v979, 1.442695
        %v1061 = vpow.pop %v1060
        %v1062 = vmul.f32 %v980, 1.442695
        %v1063 = vpow.pop %v1062
        %v1064 = vmul.f32 %v981, 1.442695
        %v1065 = vpow.pop %v1064
        %v1066 = vmul.f32 %v982, 1.442695
        %v1067 = vpow.pop %v1066
        %v1068 = vmul.f32 %v983, 1.442695
        %v1069 = vpow.pop %v1068
        %v1070 = vmul.f32 %v984, 1.442695
        %v1071 = vpow.pop %v1070
        %v1072 = vmul.f32 %v985, 1.442695
        %v1073 = vpow.pop %v1072
        %v1074 = vmul.f32 %v986, 1.442695
        %v1075 = vpow.pop %v1074
        %v1076 = vmul.f32 %v987, 1.442695
        %v1077 = vpow.pop %v1076
        %v1078 = vmul.f32 %v988, 1.442695
        %v1079 = vpow.pop %v1078
        %v1080 = vmul.f32 %v989, 1.442695
        %v1081 = vpow.pop %v1080
        %v1082 = vmul.f32 %v990, 1.442695
        %v1083 = vpow.pop %v1082
        %v1084 = vmul.f32 %v991, 1.442695
        %v1085 = vpow.pop %v1084
        %v1086 = vmul.f32 %v992, 1.442695
        %v1087 = vpow.pop %v1086
        %v1088 = vmul.f32 %v993, 1.442695
        %v1089 = vpow.pop %v1088
        %v1090 = vmul.f32 %v994, 1.442695
        %v1091 = vpow.pop %v1090
        %v1092 = vmul.f32 %v995, 1.442695
        %v1093 = vpow.pop %v1092
        %v1094 = vmul.f32 %v996, 1.442695
        %v1095 = vpow.pop %v1094
        %v1096 = vmul.f32 %v997, 1.442695
        %v1097 = vpow.pop %v1096
        %v1098 = vmul.f32 %v998, 1.442695
        %v1099 = vpow.pop %v1098
        %v1100 = vmul.f32 %v999, 1.442695
        %v1101 = vpow.pop %v1100
        %v1102 = vmul.f32 %v1000, 1.442695
        %v1103 = vpow.pop %v1102
        %v1104 = vmul.f32 %v1001, 1.442695
        %v1105 = vpow.pop %v1104
        %v1106 = vmul.f32 %v1002, 1.442695
        %v1107 = vpow.pop %v1106
        %v1108 = vmul.f32 %v1003, 1.442695
        %v1109 = vpow.pop %v1108
        %v1110 = vmul.f32 %v1004, 1.442695
        %v1111 = vpow.pop %v1110
        %v1112 = vmul.f32 %v1005, 1.442695
        %v1113 = vpow.pop %v1112
        %v1114 = vmul.f32 %v1006, 1.442695
        %v1115 = vpow.pop %v1114
        %v1116 = vmul.f32 %v1007, 1.442695
        %v1117 = vpow.pop %v1116
        %v1118 = vmul.f32 %v1008, 1.442695
        %v1119 = vpow.pop %v1118
        %v1120 = vmul.f32 %v1009, 1.442695
        %v1121 = vpow.pop %v1120
        %v1122 = vmul.f32 %v1010, 1.442695
        %v1123 = vpow.pop %v1122
        %v1124 = vmul.f32 %v1011, 1.442695
        %v1125 = vpow.pop %v1124
        %v1126 = vmul.f32 %v1012, 1.442695
        %v1127 = vpow.pop %v1126
        %v1128 = vmul.f32 %v1013, 1.442695
        %v1129 = vpow.pop %v1128
        %v1130 = vmul.f32 %v1014, 1.442695
        %v1131 = vpow.pop %v1130
        %v1132 = vmul.f32 %v1015, 1.442695
        %v1133 = vpow.pop %v1132
        %v1134 = vmul.f32 %v1016, 1.442695
        %v1135 = vpow.pop %v1134
        %v1136 = vmul.f32 %v1017, 1.442695
        %v1137 = vpow.pop %v1136
        %v1138 = vmul.f32 %v1018, 1.442695
        %v1139 = vpow.pop %v1138
        %v1140 = vmul.f32 %v1019, 1.442695
        %v1141 = vpow.pop %v1140
        %v1142 = vmul.f32 %v1020, 1.442695
        %v1143 = vpow.pop %v1142
        %v1144 = vmul.f32 %v1021, 1.442695
        %v1145 = vpow.pop %v1144
        %v1146 = vmul.f32 %v1022, 1.442695
        %v1147 = vpow.pop %v1146
        %v1148 = vmul.f32 %v1023, 1.442695
        %v1149 = vpow.pop %v1148
        %v1150 = vmul.f32 %v1024, 1.442695
        %v1151 = vpow.pop %v1150
        %v1152 = vmul.f32 %v1025, 1.442695
        %v1153 = vpow.pop %v1152
        %v1154 = vadd.f32 %v1027, %v1029
        %1155 = vadd.xlane.f32.xlu0 %v1154
        %v1156 = vpop.xlane.xlu0 %1155
        %v1157 = vadd.f32 %v1031, %v1033
        %1158 = vadd.xlane.f32.xlu0 %v1157
        %v1159 = vpop.xlane.xlu0 %1158
        %v1160 = vadd.f32 %v1035, %v1037
        %1161 = vadd.xlane.f32.xlu0 %v1160
        %v1162 = vpop.xlane.xlu0 %1161
        %v1163 = vadd.f32 %v1039, %v1041
        %1164 = vadd.xlane.f32.xlu0 %v1163
        %v1165 = vpop.xlane.xlu0 %1164
        %v1166 = vadd.f32 %v1043, %v1045
        %1167 = vadd.xlane.f32.xlu0 %v1166
        %v1168 = vpop.xlane.xlu0 %1167
        %v1169 = vadd.f32 %v1047, %v1049
        %1170 = vadd.xlane.f32.xlu0 %v1169
        %v1171 = vpop.xlane.xlu0 %1170
        %v1172 = vadd.f32 %v1051, %v1053
        %1173 = vadd.xlane.f32.xlu0 %v1172
        %v1174 = vpop.xlane.xlu0 %1173
        %v1175 = vadd.f32 %v1055, %v1057
        %1176 = vadd.xlane.f32.xlu0 %v1175
        %v1177 = vpop.xlane.xlu0 %1176
        %v1178 = vadd.f32 %v1059, %v1061
        %1179 = vadd.xlane.f32.xlu0 %v1178
        %v1180 = vpop.xlane.xlu0 %1179
        %v1181 = vadd.f32 %v1063, %v1065
        %1182 = vadd.xlane.f32.xlu0 %v1181
        %v1183 = vpop.xlane.xlu0 %1182
        %v1184 = vadd.f32 %v1067, %v1069
        %1185 = vadd.xlane.f32.xlu0 %v1184
        %v1186 = vpop.xlane.xlu0 %1185
        %v1187 = vadd.f32 %v1071, %v1073
        %1188 = vadd.xlane.f32.xlu0 %v1187
        %v1189 = vpop.xlane.xlu0 %1188
        %v1190 = vadd.f32 %v1075, %v1077
        %1191 = vadd.xlane.f32.xlu0 %v1190
        %v1192 = vpop.xlane.xlu0 %1191
        %v1193 = vadd.f32 %v1079, %v1081
        %1194 = vadd.xlane.f32.xlu0 %v1193
        %v1195 = vpop.xlane.xlu0 %1194
        %v1196 = vadd.f32 %v1083, %v1085
        %1197 = vadd.xlane.f32.xlu0 %v1196
        %v1198 = vpop.xlane.xlu0 %1197
        %v1199 = vadd.f32 %v1087, %v1089
        %1200 = vadd.xlane.f32.xlu0 %v1199
        %v1201 = vpop.xlane.xlu0 %1200
        %v1202 = vadd.f32 %v1091, %v1093
        %1203 = vadd.xlane.f32.xlu0 %v1202
        %v1204 = vpop.xlane.xlu0 %1203
        %v1205 = vadd.f32 %v1095, %v1097
        %1206 = vadd.xlane.f32.xlu0 %v1205
        %v1207 = vpop.xlane.xlu0 %1206
        %v1208 = vadd.f32 %v1099, %v1101
        %1209 = vadd.xlane.f32.xlu0 %v1208
        %v1210 = vpop.xlane.xlu0 %1209
        %v1211 = vadd.f32 %v1103, %v1105
        %1212 = vadd.xlane.f32.xlu0 %v1211
        %v1213 = vpop.xlane.xlu0 %1212
        %v1214 = vadd.f32 %v1107, %v1109
        %1215 = vadd.xlane.f32.xlu0 %v1214
        %v1216 = vpop.xlane.xlu0 %1215
        %v1217 = vadd.f32 %v1111, %v1113
        %1218 = vadd.xlane.f32.xlu0 %v1217
        %v1219 = vpop.xlane.xlu0 %1218
        %v1220 = vadd.f32 %v1115, %v1117
        %1221 = vadd.xlane.f32.xlu0 %v1220
        %v1222 = vpop.xlane.xlu0 %1221
        %v1223 = vadd.f32 %v1119, %v1121
        %1224 = vadd.xlane.f32.xlu0 %v1223
        %v1225 = vpop.xlane.xlu0 %1224
        %v1226 = vadd.f32 %v1123, %v1125
        %1227 = vadd.xlane.f32.xlu0 %v1226
        %v1228 = vpop.xlane.xlu0 %1227
        %v1229 = vadd.f32 %v1127, %v1129
        %1230 = vadd.xlane.f32.xlu0 %v1229
        %v1231 = vpop.xlane.xlu0 %1230
        %v1232 = vadd.f32 %v1131, %v1133
        %1233 = vadd.xlane.f32.xlu0 %v1232
        %v1234 = vpop.xlane.xlu0 %1233
        %v1235 = vadd.f32 %v1135, %v1137
        %1236 = vadd.xlane.f32.xlu0 %v1235
        %v1237 = vpop.xlane.xlu0 %1236
        %v1238 = vadd.f32 %v1139, %v1141
        %1239 = vadd.xlane.f32.xlu0 %v1238
        %v1240 = vpop.xlane.xlu0 %1239
        %v1241 = vadd.f32 %v1143, %v1145
        %1242 = vadd.xlane.f32.xlu0 %v1241
        %v1243 = vpop.xlane.xlu0 %1242
        %v1244 = vadd.f32 %v1147, %v1149
        %1245 = vadd.xlane.f32.xlu0 %v1244
        %v1246 = vpop.xlane.xlu0 %1245
        %v1247 = vadd.f32 %v1151, %v1153
        %1248 = vadd.xlane.f32.xlu0 %v1247
        %v1249 = vpop.xlane.xlu0 %1248
        %v1250 = vrcp.pop %v1156
        %v1251 = vrcp.pop %v1159
        %v1252 = vrcp.pop %v1162
        %v1253 = vrcp.pop %v1165
        %v1254 = vrcp.pop %v1168
        %v1255 = vrcp.pop %v1171
        %v1256 = vrcp.pop %v1174
        %v1257 = vrcp.pop %v1177
        %v1258 = vrcp.pop %v1180
        %v1259 = vrcp.pop %v1183
        %v1260 = vrcp.pop %v1186
        %v1261 = vrcp.pop %v1189
        %v1262 = vrcp.pop %v1192
        %v1263 = vrcp.pop %v1195
        %v1264 = vrcp.pop %v1198
        %v1265 = vrcp.pop %v1201
        %v1266 = vrcp.pop %v1204
        %v1267 = vrcp.pop %v1207
        %v1268 = vrcp.pop %v1210
        %v1269 = vrcp.pop %v1213
        %v1270 = vrcp.pop %v1216
        %v1271 = vrcp.pop %v1219
        %v1272 = vrcp.pop %v1222
        %v1273 = vrcp.pop %v1225
        %v1274 = vrcp.pop %v1228
        %v1275 = vrcp.pop %v1231
        %v1276 = vrcp.pop %v1234
        %v1277 = vrcp.pop %v1237
        %v1278 = vrcp.pop %v1240
        %v1279 = vrcp.pop %v1243
        %v1280 = vrcp.pop %v1246
        %v1281 = vrcp.pop %v1249
        %v1282 = vmul.f32 %v1027, %v1250
        %v1283 = vmul.f32 %v1029, %v1250
        %v1284 = vmul.f32 %v1031, %v1251
        %v1285 = vmul.f32 %v1033, %v1251
        %v1286 = vmul.f32 %v1035, %v1252
        %v1287 = vmul.f32 %v1037, %v1252
        %v1288 = vmul.f32 %v1039, %v1253
        %v1289 = vmul.f32 %v1041, %v1253
        %v1290 = vmul.f32 %v1043, %v1254
        %v1291 = vmul.f32 %v1045, %v1254
        %v1292 = vmul.f32 %v1047, %v1255
        %v1293 = vmul.f32 %v1049, %v1255
        %v1294 = vmul.f32 %v1051, %v1256
        %v1295 = vmul.f32 %v1053, %v1256
        %v1296 = vmul.f32 %v1055, %v1257
        %v1297 = vmul.f32 %v1057, %v1257
        %v1298 = vmul.f32 %v1059, %v1258
        %v1299 = vmul.f32 %v1061, %v1258
        %v1300 = vmul.f32 %v1063, %v1259
        %v1301 = vmul.f32 %v1065, %v1259
        %v1302 = vmul.f32 %v1067, %v1260
        %v1303 = vmul.f32 %v1069, %v1260
        %v1304 = vmul.f32 %v1071, %v1261
        %v1305 = vmul.f32 %v1073, %v1261
        %v1306 = vmul.f32 %v1075, %v1262
        %v1307 = vmul.f32 %v1077, %v1262
        %v1308 = vmul.f32 %v1079, %v1263
        %v1309 = vmul.f32 %v1081, %v1263
        %v1310 = vmul.f32 %v1083, %v1264
        %v1311 = vmul.f32 %v1085, %v1264
        %v1312 = vmul.f32 %v1087, %v1265
        %v1313 = vmul.f32 %v1089, %v1265
        %v1314 = vmul.f32 %v1091, %v1266
        %v1315 = vmul.f32 %v1093, %v1266
        %v1316 = vmul.f32 %v1095, %v1267
        %v1317 = vmul.f32 %v1097, %v1267
        %v1318 = vmul.f32 %v1099, %v1268
        %v1319 = vmul.f32 %v1101, %v1268
        %v1320 = vmul.f32 %v1103, %v1269
        %v1321 = vmul.f32 %v1105, %v1269
        %v1322 = vmul.f32 %v1107, %v1270
        %v1323 = vmul.f32 %v1109, %v1270
        %v1324 = vmul.f32 %v1111, %v1271
        %v1325 = vmul.f32 %v1113, %v1271
        %v1326 = vmul.f32 %v1115, %v1272
        %v1327 = vmul.f32 %v1117, %v1272
        %v1328 = vmul.f32 %v1119, %v1273
        %v1329 = vmul.f32 %v1121, %v1273
        %v1330 = vmul.f32 %v1123, %v1274
        %v1331 = vmul.f32 %v1125, %v1274
        %v1332 = vmul.f32 %v1127, %v1275
        %v1333 = vmul.f32 %v1129, %v1275
        %v1334 = vmul.f32 %v1131, %v1276
        %v1335 = vmul.f32 %v1133, %v1276
        %v1336 = vmul.f32 %v1135, %v1277
        %v1337 = vmul.f32 %v1137, %v1277
        %v1338 = vmul.f32 %v1139, %v1278
        %v1339 = vmul.f32 %v1141, %v1278
        %v1340 = vmul.f32 %v1143, %v1279
        %v1341 = vmul.f32 %v1145, %v1279
        %v1342 = vmul.f32 %v1147, %v1280
        %v1343 = vmul.f32 %v1149, %v1280
        %v1344 = vmul.f32 %v1151, %v1281
        %v1345 = vmul.f32 %v1153, %v1281
        %1346 = vmatprep.subr.mxu0 %v1283
        %1347 = vmatpush1.xpose.msra.mxu0 %v1282
        %1348 = vmatprep.subr.mxu0 %v1285
        %1349 = vmatpush1.xpose.msra.mxu0 %v1284
        %1350 = vmatprep.subr.mxu0 %v1287
        %1351 = vmatpush1.xpose.msra.mxu0 %v1286
        %1352 = vmatprep.subr.mxu0 %v1289
        %1353 = vmatpush1.xpose.msra.mxu0 %v1288
        %1354 = vmatprep.subr.mxu0 %v1291
        %1355 = vmatpush1.xpose.msra.mxu0 %v1290
        %1356 = vmatprep.subr.mxu0 %v1293
        %1357 = vmatpush1.xpose.msra.mxu0 %v1292
        %1358 = vmatprep.subr.mxu0 %v1295
        %1359 = vmatpush1.xpose.msra.mxu0 %v1294
        %1360 = vmatprep.subr.mxu0 %v1297
        %1361 = vmatpush1.xpose.msra.mxu0 %v1296
        %1362 = vmatprep.subr.mxu0 %v1299
        %1363 = vmatpush1.xpose.msra.mxu0 %v1298
        %1364 = vmatprep.subr.mxu0 %v1301
        %1365 = vmatpush1.xpose.msra.mxu0 %v1300
        %1366 = vmatprep.subr.mxu0 %v1303
        %1367 = vmatpush1.xpose.msra.mxu0 %v1302
        %1368 = vmatprep.subr.mxu0 %v1305
        %1369 = vmatpush1.xpose.msra.mxu0 %v1304
        %1370 = vmatprep.subr.mxu0 %v1307
        %1371 = vmatpush1.xpose.msra.mxu0 %v1306
        %1372 = vmatprep.subr.mxu0 %v1309
        %1373 = vmatpush1.xpose.msra.mxu0 %v1308
        %1374 = vmatprep.subr.mxu0 %v1311
        %1375 = vmatpush1.xpose.msra.mxu0 %v1310
        %1376 = vmatprep.subr.mxu0 %v1313
        %1377 = vmatpush1.xpose.msra.mxu0 %v1312
        %1378 = vmatprep.subr.mxu0 %v1315
        %1379 = vmatpush1.xpose.msra.mxu0 %v1314
        %1380 = vmatprep.subr.mxu0 %v1317
        %1381 = vmatpush1.xpose.msra.mxu0 %v1316
        %1382 = vmatprep.subr.mxu0 %v1319
        %1383 = vmatpush1.xpose.msra.mxu0 %v1318
        %1384 = vmatprep.subr.mxu0 %v1321
        %1385 = vmatpush1.xpose.msra.mxu0 %v1320
        %1386 = vmatprep.subr.mxu0 %v1323
        %1387 = vmatpush1.xpose.msra.mxu0 %v1322
        %1388 = vmatprep.subr.mxu0 %v1325
        %1389 = vmatpush1.xpose.msra.mxu0 %v1324
        %1390 = vmatprep.subr.mxu0 %v1327
        %1391 = vmatpush1.xpose.msra.mxu0 %v1326
        %1392 = vmatprep.subr.mxu0 %v1329
        %1393 = vmatpush1.xpose.msra.mxu0 %v1328
        %1394 = vmatprep.subr.mxu0 %v1331
        %1395 = vmatpush1.xpose.msra.mxu0 %v1330
        %1396 = vmatprep.subr.mxu0 %v1333
        %1397 = vmatpush1.xpose.msra.mxu0 %v1332
        %1398 = vmatprep.subr.mxu0 %v1335
        %1399 = vmatpush1.xpose.msra.mxu0 %v1334
        %1400 = vmatprep.subr.mxu0 %v1337
        %1401 = vmatpush1.xpose.msra.mxu0 %v1336
        %1402 = vmatprep.subr.mxu0 %v1339
        %1403 = vmatpush1.xpose.msra.mxu0 %v1338
        %1404 = vmatprep.subr.mxu0 %v1341
        %1405 = vmatpush1.xpose.msra.mxu0 %v1340
        %1406 = vmatprep.subr.mxu0 %v1343
        %1407 = vmatpush1.xpose.msra.mxu0 %v1342
        %1408 = vmatprep.subr.mxu0 %v1345
        %1409 = vmatpush1.xpose.msra.mxu0 %v1344
        %1410 = vmatprep.mubr.f32.mxu0 %v415
        %1411 = vmatmul.mubr.f32.gmra.mrb[0].mxu0 %v413
        %v1412 = vpop.f32.mrb[0].mxu0
        %v1413 = vadd.f32 0.0, %v1412
        %v1414 = vpop.f32.mrb[0].mxu0
        %v1415 = vadd.f32 0.0, %v1414
        %1416 = vdwg.mxu0
        %1417 = vst [vmem:[%s163] sm:$0xf] %v1413
        %1418 = vst [vmem:[%s163 + $0x8] sm:$0xf] %v1415
        %v1421 = vrot.slane %v435, 4
        %v1422 = vrot.slane %v436, 4
        %1425 = vxpose.xlu0.b32.start [1/16] %v1421, 128
        %1426 = vxpose.xlu0.b32.cont [2/16] 0.0, 128
        %1427 = vxpose.xlu0.b32.cont [3/16] 0.0, 128
        %1428 = vxpose.xlu0.b32.cont [4/16] 0.0, 128
        %1429 = vxpose.xlu0.b32.cont [5/16] 0.0, 128
        %1430 = vxpose.xlu0.b32.cont [6/16] 0.0, 128
        %1431 = vxpose.xlu0.b32.cont [7/16] 0.0, 128
        %1432 = vxpose.xlu0.b32.cont [8/16] 0.0, 128
        %1433 = vxpose.xlu0.b32.cont [9/16] 0.0, 128
        %1434 = vxpose.xlu0.b32.cont [10/16] 0.0, 128
        %1435 = vxpose.xlu0.b32.cont [11/16] 0.0, 128
        %1436 = vxpose.xlu0.b32.cont [12/16] 0.0, 128
        %1437 = vxpose.xlu0.b32.cont [13/16] 0.0, 128
        %1438 = vxpose.xlu0.b32.cont [14/16] 0.0, 128
        %1439 = vxpose.xlu0.b32.cont [15/16] 0.0, 128
        %1440 = vxpose.xlu0.b32.end [16/16] 0.0, 128
        %v1441 = vpop.trf.xlu0
        %v1442 = vpop.trf.xlu0
        %v1443 = vpop.trf.xlu0
        %v1444 = vpop.trf.xlu0
        %v1445 = vpop.trf.xlu0
        %v1446 = vpop.trf.xlu0
        %v1447 = vpop.trf.xlu0
        %v1448 = vpop.trf.xlu0
        %v1449 = vpop.trf.xlu0
        %v1450 = vpop.trf.xlu0
        %v1451 = vpop.trf.xlu0
        %v1452 = vpop.trf.xlu0
        %v1453 = vpop.trf.xlu0
        %v1454 = vpop.trf.xlu0
        %v1455 = vpop.trf.xlu0
        %v1456 = vpop.trf.xlu0
        %1457 = vxpose.xlu0.b32.start [1/16] %v1422, 128
        %1458 = vxpose.xlu0.b32.cont [2/16] 0.0, 128
        %1459 = vxpose.xlu0.b32.cont [3/16] 0.0, 128
        %1460 = vxpose.xlu0.b32.cont [4/16] 0.0, 128
        %1461 = vxpose.xlu0.b32.cont [5/16] 0.0, 128
        %1462 = vxpose.xlu0.b32.cont [6/16] 0.0, 128
        %1463 = vxpose.xlu0.b32.cont [7/16] 0.0, 128
        %1464 = vxpose.xlu0.b32.cont [8/16] 0.0, 128
        %1465 = vxpose.xlu0.b32.cont [9/16] 0.0, 128
        %1466 = vxpose.xlu0.b32.cont [10/16] 0.0, 128
        %1467 = vxpose.xlu0.b32.cont [11/16] 0.0, 128
        %1468 = vxpose.xlu0.b32.cont [12/16] 0.0, 128
        %1469 = vxpose.xlu0.b32.cont [13/16] 0.0, 128
        %1470 = vxpose.xlu0.b32.cont [14/16] 0.0, 128
        %1471 = vxpose.xlu0.b32.cont [15/16] 0.0, 128
        %1472 = vxpose.xlu0.b32.end [16/16] 0.0, 128
        %v1473 = vpop.trf.xlu0
        %v1474 = vpop.trf.xlu0
        %v1475 = vpop.trf.xlu0
        %v1476 = vpop.trf.xlu0
        %v1477 = vpop.trf.xlu0
        %v1478 = vpop.trf.xlu0
        %v1479 = vpop.trf.xlu0
        %v1480 = vpop.trf.xlu0
        %v1481 = vpop.trf.xlu0
        %v1482 = vpop.trf.xlu0
        %v1483 = vpop.trf.xlu0
        %v1484 = vpop.trf.xlu0
        %v1485 = vpop.trf.xlu0
        %v1486 = vpop.trf.xlu0
        %v1487 = vpop.trf.xlu0
        %v1488 = vpop.trf.xlu0
        %v1489 = vrot.slane %v389, 4
        %v1490 = vrot.slane %v391, 4
        %v1492 = vsel %vm256, %v1441, 0
        %v1495 = vsel %vm256, %v1442, 0
        %v1498 = vsel %vm256, %v1443, 0
        %v1501 = vsel %vm256, %v1444, 0
        %v1504 = vsel %vm256, %v1445, 0
        %v1507 = vsel %vm256, %v1446, 0
        %v1510 = vsel %vm256, %v1447, 0
        %v1513 = vsel %vm256, %v1448, 0
        %v1516 = vsel %vm256, %v1449, 0
        %v1519 = vsel %vm256, %v1450, 0
        %v1522 = vsel %vm256, %v1451, 0
        %v1525 = vsel %vm256, %v1452, 0
        %v1528 = vsel %vm256, %v1453, 0
        %v1531 = vsel %vm256, %v1454, 0
        %v1534 = vsel %vm256, %v1455, 0
        %v1537 = vsel %vm256, %v1456, 0
        %v1540 = vsel %vm256, %v1473, 0
        %v1543 = vsel %vm256, %v1474, 0
        %v1546 = vsel %vm256, %v1475, 0
        %v1549 = vsel %vm256, %v1476, 0
        %v1552 = vsel %vm256, %v1477, 0
        %v1555 = vsel %vm256, %v1478, 0
        %v1558 = vsel %vm256, %v1479, 0
        %v1561 = vsel %vm256, %v1480, 0
        %v1564 = vsel %vm256, %v1481, 0
        %v1567 = vsel %vm256, %v1482, 0
        %v1570 = vsel %vm256, %v1483, 0
        %v1573 = vsel %vm256, %v1484, 0
        %v1576 = vsel %vm256, %v1485, 0
        %v1579 = vsel %vm256, %v1486, 0
        %v1582 = vsel %vm256, %v1487, 0
        %v1585 = vsel %vm256, %v1488, 0
        %v1587 = vsel %vm293, %v1489, 0
        %v1589 = vsel %vm293, %v1490, 0
        %1591 = vmatprep.subr.mxu0 %v1589
        %1592 = vmatpush1.msra.mxu0 %v1587
        %1593 = vmatprep.subr.mxu0 0.0
        %1594 = vmatpush1.msra.mxu0 0.0
        %1595 = vmatprep.subr.mxu0 0.0
        %1596 = vmatpush1.msra.mxu0 0.0
        %1597 = vmatprep.subr.mxu0 0.0
        %1598 = vmatpush1.msra.mxu0 0.0
        %1599 = vmatprep.subr.mxu0 0.0
        %1600 = vmatpush1.msra.mxu0 0.0
        %1601 = vmatprep.subr.mxu0 0.0
        %1602 = vmatpush1.msra.mxu0 0.0
        %1603 = vmatprep.subr.mxu0 0.0
        %1604 = vmatpush1.msra.mxu0 0.0
        %1605 = vmatprep.subr.mxu0 0.0
        %1606 = vmatpush1.msra.mxu0 0.0
        %1607 = vmatprep.subr.mxu0 0.0
        %1608 = vmatpush1.msra.mxu0 0.0
        %1609 = vmatprep.subr.mxu0 0.0
        %1610 = vmatpush1.msra.mxu0 0.0
        %1611 = vmatprep.subr.mxu0 0.0
        %1612 = vmatpush1.msra.mxu0 0.0
        %1613 = vmatprep.subr.mxu0 0.0
        %1614 = vmatpush1.msra.mxu0 0.0
        %1615 = vmatprep.subr.mxu0 0.0
        %1616 = vmatpush1.msra.mxu0 0.0
        %1617 = vmatprep.subr.mxu0 0.0
        %1618 = vmatpush1.msra.mxu0 0.0
        %1619 = vmatprep.subr.mxu0 0.0
        %1620 = vmatpush1.msra.mxu0 0.0
        %1621 = vmatprep.subr.mxu0 0.0
        %1622 = vmatpush1.msra.mxu0 0.0
        %1623 = vmatprep.subr.mxu0 0.0
        %1624 = vmatpush1.msra.mxu0 0.0
        %1625 = vmatprep.subr.mxu0 0.0
        %1626 = vmatpush1.msra.mxu0 0.0
        %1627 = vmatprep.subr.mxu0 0.0
        %1628 = vmatpush1.msra.mxu0 0.0
        %1629 = vmatprep.subr.mxu0 0.0
        %1630 = vmatpush1.msra.mxu0 0.0
        %1631 = vmatprep.subr.mxu0 0.0
        %1632 = vmatpush1.msra.mxu0 0.0
        %1633 = vmatprep.subr.mxu0 0.0
        %1634 = vmatpush1.msra.mxu0 0.0
        %1635 = vmatprep.subr.mxu0 0.0
        %1636 = vmatpush1.msra.mxu0 0.0
        %1637 = vmatprep.subr.mxu0 0.0
        %1638 = vmatpush1.msra.mxu0 0.0
        %1639 = vmatprep.subr.mxu0 0.0
        %1640 = vmatpush1.msra.mxu0 0.0
        %1641 = vmatprep.subr.mxu0 0.0
        %1642 = vmatpush1.msra.mxu0 0.0
        %1643 = vmatprep.subr.mxu0 0.0
        %1644 = vmatpush1.msra.mxu0 0.0
        %1645 = vmatprep.subr.mxu0 0.0
        %1646 = vmatpush1.msra.mxu0 0.0
        %1647 = vmatprep.subr.mxu0 0.0
        %1648 = vmatpush1.msra.mxu0 0.0
        %1649 = vmatprep.subr.mxu0 0.0
        %1650 = vmatpush1.msra.mxu0 0.0
        %1651 = vmatprep.subr.mxu0 0.0
        %1652 = vmatpush1.msra.mxu0 0.0
        %1653 = vmatprep.subr.mxu0 0.0
        %1654 = vmatpush1.msra.mxu0 0.0
        %1655 = vmatprep.mubr.f32.mxu0 0.0
        %1656 = vmatmul.mubr.f32.gmra.mrb[0].mxu0 %v1492
        %v1657 = vpop.f32.mrb[0].mxu0
        %v1658 = vadd.f32 0.0, %v1657
        %v1659 = vpop.f32.mrb[0].mxu0
        %v1660 = vadd.f32 0.0, %v1659
        %1661 = vmatprep.mubr.f32.mxu0 0.0
        %1662 = vmatmul.mubr.f32.gmra.mrb[0].mxu0 %v1495
        %v1663 = vpop.f32.mrb[0].mxu0
        %v1664 = vadd.f32 0.0, %v1663
        %v1665 = vpop.f32.mrb[0].mxu0
        %v1666 = vadd.f32 0.0, %v1665
        %1667 = vmatprep.mubr.f32.mxu0 0.0
        %1668 = vmatmul.mubr.f32.gmra.mrb[0].mxu0 %v1498
        %v1669 = vpop.f32.mrb[0].mxu0
        %v1670 = vadd.f32 0.0, %v1669
        %v1671 = vpop.f32.mrb[0].mxu0
        %v1672 = vadd.f32 0.0, %v1671
        %1673 = vmatprep.mubr.f32.mxu0 0.0
        %1674 = vmatmul.mubr.f32.gmra.mrb[0].mxu0 %v1501
        %v1675 = vpop.f32.mrb[0].mxu0
        %v1676 = vadd.f32 0.0, %v1675
        %v1677 = vpop.f32.mrb[0].mxu0
        %v1678 = vadd.f32 0.0, %v1677
        %1679 = vmatprep.mubr.f32.mxu0 0.0
        %1680 = vmatmul.mubr.f32.gmra.mrb[0].mxu0 %v1504
        %v1681 = vpop.f32.mrb[0].mxu0
        %v1682 = vadd.f32 0.0, %v1681
        %v1683 = vpop.f32.mrb[0].mxu0
        %v1684 = vadd.f32 0.0, %v1683
        %1685 = vmatprep.mubr.f32.mxu0 0.0
        %1686 = vmatmul.mubr.f32.gmra.mrb[0].mxu0 %v1507
        %v1687 = vpop.f32.mrb[0].mxu0
        %v1688 = vadd.f32 0.0, %v1687
        %v1689 = vpop.f32.mrb[0].mxu0
        %v1690 = vadd.f32 0.0, %v1689
        %1691 = vmatprep.mubr.f32.mxu0 0.0
        %1692 = vmatmul.mubr.f32.gmra.mrb[0].mxu0 %v1510
        %v1693 = vpop.f32.mrb[0].mxu0
        %v1694 = vadd.f32 0.0, %v1693
        %v1695 = vpop.f32.mrb[0].mxu0
        %v1696 = vadd.f32 0.0, %v1695
        %1697 = vmatprep.mubr.f32.mxu0 0.0
        %1698 = vmatmul.mubr.f32.gmra.mrb[0].mxu0 %v1513
        %v1699 = vpop.f32.mrb[0].mxu0
        %v1700 = vadd.f32 0.0, %v1699
        %v1701 = vpop.f32.mrb[0].mxu0
        %v1702 = vadd.f32 0.0, %v1701
        %1703 = vmatprep.mubr.f32.mxu0 0.0
        %1704 = vmatmul.mubr.f32.gmra.mrb[0].mxu0 %v1516
        %v1705 = vpop.f32.mrb[0].mxu0
        %v1706 = vadd.f32 0.0, %v1705
        %v1707 = vpop.f32.mrb[0].mxu0
        %v1708 = vadd.f32 0.0, %v1707
        %1709 = vmatprep.mubr.f32.mxu0 0.0
        %1710 = vmatmul.mubr.f32.gmra.mrb[0].mxu0 %v1519
        %v1711 = vpop.f32.mrb[0].mxu0
        %v1712 = vadd.f32 0.0, %v1711
        %v1713 = vpop.f32.mrb[0].mxu0
        %v1714 = vadd.f32 0.0, %v1713
        %1715 = vmatprep.mubr.f32.mxu0 0.0
        %1716 = vmatmul.mubr.f32.gmra.mrb[0].mxu0 %v1522
        %v1717 = vpop.f32.mrb[0].mxu0
        %v1718 = vadd.f32 0.0, %v1717
        %v1719 = vpop.f32.mrb[0].mxu0
        %v1720 = vadd.f32 0.0, %v1719
        %1721 = vmatprep.mubr.f32.mxu0 0.0
        %1722 = vmatmul.mubr.f32.gmra.mrb[0].mxu0 %v1525
        %v1723 = vpop.f32.mrb[0].mxu0
        %v1724 = vadd.f32 0.0, %v1723
        %v1725 = vpop.f32.mrb[0].mxu0
        %v1726 = vadd.f32 0.0, %v1725
        %1727 = vmatprep.mubr.f32.mxu0 0.0
        %1728 = vmatmul.mubr.f32.gmra.mrb[0].mxu0 %v1528
        %v1729 = vpop.f32.mrb[0].mxu0
        %v1730 = vadd.f32 0.0, %v1729
        %v1731 = vpop.f32.mrb[0].mxu0
        %v1732 = vadd.f32 0.0, %v1731
        %1733 = vmatprep.mubr.f32.mxu0 0.0
        %1734 = vmatmul.mubr.f32.gmra.mrb[0].mxu0 %v1531
        %v1735 = vpop.f32.mrb[0].mxu0
        %v1736 = vadd.f32 0.0, %v1735
        %v1737 = vpop.f32.mrb[0].mxu0
        %v1738 = vadd.f32 0.0, %v1737
        %1739 = vmatprep.mubr.f32.mxu0 0.0
        %1740 = vmatmul.mubr.f32.gmra.mrb[0].mxu0 %v1534
        %v1741 = vpop.f32.mrb[0].mxu0
        %v1742 = vadd.f32 0.0, %v1741
        %v1743 = vpop.f32.mrb[0].mxu0
        %v1744 = vadd.f32 0.0, %v1743
        %1745 = vmatprep.mubr.f32.mxu0 0.0
        %1746 = vmatmul.mubr.f32.gmra.mrb[0].mxu0 %v1537
        %v1747 = vpop.f32.mrb[0].mxu0
        %v1748 = vadd.f32 0.0, %v1747
        %v1749 = vpop.f32.mrb[0].mxu0
        %v1750 = vadd.f32 0.0, %v1749
        %1751 = vmatprep.mubr.f32.mxu0 0.0
        %1752 = vmatmul.mubr.f32.gmra.mrb[0].mxu0 %v1540
        %v1753 = vpop.f32.mrb[0].mxu0
        %v1754 = vadd.f32 0.0, %v1753
        %v1755 = vpop.f32.mrb[0].mxu0
        %v1756 = vadd.f32 0.0, %v1755
        %1757 = vmatprep.mubr.f32.mxu0 0.0
        %1758 = vmatmul.mubr.f32.gmra.mrb[0].mxu0 %v1543
        %v1759 = vpop.f32.mrb[0].mxu0
        %v1760 = vadd.f32 0.0, %v1759
        %v1761 = vpop.f32.mrb[0].mxu0
        %v1762 = vadd.f32 0.0, %v1761
        %1763 = vmatprep.mubr.f32.mxu0 0.0
        %1764 = vmatmul.mubr.f32.gmra.mrb[0].mxu0 %v1546
        %v1765 = vpop.f32.mrb[0].mxu0
        %v1766 = vadd.f32 0.0, %v1765
        %v1767 = vpop.f32.mrb[0].mxu0
        %v1768 = vadd.f32 0.0, %v1767
        %1769 = vmatprep.mubr.f32.mxu0 0.0
        %1770 = vmatmul.mubr.f32.gmra.mrb[0].mxu0 %v1549
        %v1771 = vpop.f32.mrb[0].mxu0
        %v1772 = vadd.f32 0.0, %v1771
        %v1773 = vpop.f32.mrb[0].mxu0
        %v1774 = vadd.f32 0.0, %v1773
        %1775 = vmatprep.mubr.f32.mxu0 0.0
        %1776 = vmatmul.mubr.f32.gmra.mrb[0].mxu0 %v1552
        %v1777 = vpop.f32.mrb[0].mxu0
        %v1778 = vadd.f32 0.0, %v1777
        %v1779 = vpop.f32.mrb[0].mxu0
        %v1780 = vadd.f32 0.0, %v1779
        %1781 = vmatprep.mubr.f32.mxu0 0.0
        %1782 = vmatmul.mubr.f32.gmra.mrb[0].mxu0 %v1555
        %v1783 = vpop.f32.mrb[0].mxu0
        %v1784 = vadd.f32 0.0, %v1783
        %v1785 = vpop.f32.mrb[0].mxu0
        %v1786 = vadd.f32 0.0, %v1785
        %1787 = vmatprep.mubr.f32.mxu0 0.0
        %1788 = vmatmul.mubr.f32.gmra.mrb[0].mxu0 %v1558
        %v1789 = vpop.f32.mrb[0].mxu0
        %v1790 = vadd.f32 0.0, %v1789
        %v1791 = vpop.f32.mrb[0].mxu0
        %v1792 = vadd.f32 0.0, %v1791
        %1793 = vmatprep.mubr.f32.mxu0 0.0
        %1794 = vmatmul.mubr.f32.gmra.mrb[0].mxu0 %v1561
        %v1795 = vpop.f32.mrb[0].mxu0
        %v1796 = vadd.f32 0.0, %v1795
        %v1797 = vpop.f32.mrb[0].mxu0
        %v1798 = vadd.f32 0.0, %v1797
        %1799 = vmatprep.mubr.f32.mxu0 0.0
        %1800 = vmatmul.mubr.f32.gmra.mrb[0].mxu0 %v1564
        %v1801 = vpop.f32.mrb[0].mxu0
        %v1802 = vadd.f32 0.0, %v1801
        %v1803 = vpop.f32.mrb[0].mxu0
        %v1804 = vadd.f32 0.0, %v1803
        %1805 = vmatprep.mubr.f32.mxu0 0.0
        %1806 = vmatmul.mubr.f32.gmra.mrb[0].mxu0 %v1567
        %v1807 = vpop.f32.mrb[0].mxu0
        %v1808 = vadd.f32 0.0, %v1807
        %v1809 = vpop.f32.mrb[0].mxu0
        %v1810 = vadd.f32 0.0, %v1809
        %1811 = vmatprep.mubr.f32.mxu0 0.0
        %1812 = vmatmul.mubr.f32.gmra.mrb[0].mxu0 %v1570
        %v1813 = vpop.f32.mrb[0].mxu0
        %v1814 = vadd.f32 0.0, %v1813
        %v1815 = vpop.f32.mrb[0].mxu0
        %v1816 = vadd.f32 0.0, %v1815
        %1817 = vmatprep.mubr.f32.mxu0 0.0
        %1818 = vmatmul.mubr.f32.gmra.mrb[0].mxu0 %v1573
        %v1819 = vpop.f32.mrb[0].mxu0
        %v1820 = vadd.f32 0.0, %v1819
        %v1821 = vpop.f32.mrb[0].mxu0
        %v1822 = vadd.f32 0.0, %v1821
        %1823 = vmatprep.mubr.f32.mxu0 0.0
        %1824 = vmatmul.mubr.f32.gmra.mrb[0].mxu0 %v1576
        %v1825 = vpop.f32.mrb[0].mxu0
        %v1826 = vadd.f32 0.0, %v1825
        %v1827 = vpop.f32.mrb[0].mxu0
        %v1828 = vadd.f32 0.0, %v1827
        %1829 = vmatprep.mubr.f32.mxu0 0.0
        %1830 = vmatmul.mubr.f32.gmra.mrb[0].mxu0 %v1579
        %v1831 = vpop.f32.mrb[0].mxu0
        %v1832 = vadd.f32 0.0, %v1831
        %v1833 = vpop.f32.mrb[0].mxu0
        %v1834 = vadd.f32 0.0, %v1833
        %1835 = vmatprep.mubr.f32.mxu0 0.0
        %1836 = vmatmul.mubr.f32.gmra.mrb[0].mxu0 %v1582
        %v1837 = vpop.f32.mrb[0].mxu0
        %v1838 = vadd.f32 0.0, %v1837
        %v1839 = vpop.f32.mrb[0].mxu0
        %v1840 = vadd.f32 0.0, %v1839
        %1841 = vmatprep.mubr.f32.mxu0 0.0
        %1842 = vmatmul.mubr.f32.gmra.mrb[0].mxu0 %v1585
        %v1843 = vpop.f32.mrb[0].mxu0
        %v1844 = vadd.f32 0.0, %v1843
        %v1845 = vpop.f32.mrb[0].mxu0
        %v1846 = vadd.f32 0.0, %v1845
        %1847 = vdwg.mxu0
        %v1848 = vmax.f32 %v1658, %v1660
        %1849 = vmax.xlane.f32.xlu0 %v1848
        %v1850 = vpop.xlane.xlu0 %1849
        %v1851 = vmax.f32 %v1664, %v1666
        %1852 = vmax.xlane.f32.xlu0 %v1851
        %v1853 = vpop.xlane.xlu0 %1852
        %v1854 = vmax.f32 %v1670, %v1672
        %1855 = vmax.xlane.f32.xlu0 %v1854
        %v1856 = vpop.xlane.xlu0 %1855
        %v1857 = vmax.f32 %v1676, %v1678
        %1858 = vmax.xlane.f32.xlu0 %v1857
        %v1859 = vpop.xlane.xlu0 %1858
        %v1860 = vmax.f32 %v1682, %v1684
        %1861 = vmax.xlane.f32.xlu0 %v1860
        %v1862 = vpop.xlane.xlu0 %1861
        %v1863 = vmax.f32 %v1688, %v1690
        %1864 = vmax.xlane.f32.xlu0 %v1863
        %v1865 = vpop.xlane.xlu0 %1864
        %v1866 = vmax.f32 %v1694, %v1696
        %1867 = vmax.xlane.f32.xlu0 %v1866
        %v1868 = vpop.xlane.xlu0 %1867
        %v1869 = vmax.f32 %v1700, %v1702
        %1870 = vmax.xlane.f32.xlu0 %v1869
        %v1871 = vpop.xlane.xlu0 %1870
        %v1872 = vmax.f32 %v1706, %v1708
        %1873 = vmax.xlane.f32.xlu0 %v1872
        %v1874 = vpop.xlane.xlu0 %1873
        %v1875 = vmax.f32 %v1712, %v1714
        %1876 = vmax.xlane.f32.xlu0 %v1875
        %v1877 = vpop.xlane.xlu0 %1876
        %v1878 = vmax.f32 %v1718, %v1720
        %1879 = vmax.xlane.f32.xlu0 %v1878
        %v1880 = vpop.xlane.xlu0 %1879
        %v1881 = vmax.f32 %v1724, %v1726
        %1882 = vmax.xlane.f32.xlu0 %v1881
        %v1883 = vpop.xlane.xlu0 %1882
        %v1884 = vmax.f32 %v1730, %v1732
        %1885 = vmax.xlane.f32.xlu0 %v1884
        %v1886 = vpop.xlane.xlu0 %1885
        %v1887 = vmax.f32 %v1736, %v1738
        %1888 = vmax.xlane.f32.xlu0 %v1887
        %v1889 = vpop.xlane.xlu0 %1888
        %v1890 = vmax.f32 %v1742, %v1744
        %1891 = vmax.xlane.f32.xlu0 %v1890
        %v1892 = vpop.xlane.xlu0 %1891
        %v1893 = vmax.f32 %v1748, %v1750
        %1894 = vmax.xlane.f32.xlu0 %v1893
        %v1895 = vpop.xlane.xlu0 %1894
        %v1896 = vmax.f32 %v1754, %v1756
        %1897 = vmax.xlane.f32.xlu0 %v1896
        %v1898 = vpop.xlane.xlu0 %1897
        %v1899 = vmax.f32 %v1760, %v1762
        %1900 = vmax.xlane.f32.xlu0 %v1899
        %v1901 = vpop.xlane.xlu0 %1900
        %v1902 = vmax.f32 %v1766, %v1768
        %1903 = vmax.xlane.f32.xlu0 %v1902
        %v1904 = vpop.xlane.xlu0 %1903
        %v1905 = vmax.f32 %v1772, %v1774
        %1906 = vmax.xlane.f32.xlu0 %v1905
        %v1907 = vpop.xlane.xlu0 %1906
        %v1908 = vmax.f32 %v1778, %v1780
        %1909 = vmax.xlane.f32.xlu0 %v1908
        %v1910 = vpop.xlane.xlu0 %1909
        %v1911 = vmax.f32 %v1784, %v1786
        %1912 = vmax.xlane.f32.xlu0 %v1911
        %v1913 = vpop.xlane.xlu0 %1912
        %v1914 = vmax.f32 %v1790, %v1792
        %1915 = vmax.xlane.f32.xlu0 %v1914
        %v1916 = vpop.xlane.xlu0 %1915
        %v1917 = vmax.f32 %v1796, %v1798
        %1918 = vmax.xlane.f32.xlu0 %v1917
        %v1919 = vpop.xlane.xlu0 %1918
        %v1920 = vmax.f32 %v1802, %v1804
        %1921 = vmax.xlane.f32.xlu0 %v1920
        %v1922 = vpop.xlane.xlu0 %1921
        %v1923 = vmax.f32 %v1808, %v1810
        %1924 = vmax.xlane.f32.xlu0 %v1923
        %v1925 = vpop.xlane.xlu0 %1924
        %v1926 = vmax.f32 %v1814, %v1816
        %1927 = vmax.xlane.f32.xlu0 %v1926
        %v1928 = vpop.xlane.xlu0 %1927
        %v1929 = vmax.f32 %v1820, %v1822
        %1930 = vmax.xlane.f32.xlu0 %v1929
        %v1931 = vpop.xlane.xlu0 %1930
        %v1932 = vmax.f32 %v1826, %v1828
        %1933 = vmax.xlane.f32.xlu0 %v1932
        %v1934 = vpop.xlane.xlu0 %1933
        %v1935 = vmax.f32 %v1832, %v1834
        %1936 = vmax.xlane.f32.xlu0 %v1935
        %v1937 = vpop.xlane.xlu0 %1936
        %v1938 = vmax.f32 %v1838, %v1840
        %1939 = vmax.xlane.f32.xlu0 %v1938
        %v1940 = vpop.xlane.xlu0 %1939
        %v1941 = vmax.f32 %v1844, %v1846
        %1942 = vmax.xlane.f32.xlu0 %v1941
        %v1943 = vpop.xlane.xlu0 %1942
        %v1944 = vsub.f32 %v1658, %v1850
        %v1945 = vsub.f32 %v1660, %v1850
        %v1946 = vsub.f32 %v1664, %v1853
        %v1947 = vsub.f32 %v1666, %v1853
        %v1948 = vsub.f32 %v1670, %v1856
        %v1949 = vsub.f32 %v1672, %v1856
        %v1950 = vsub.f32 %v1676, %v1859
        %v1951 = vsub.f32 %v1678, %v1859
        %v1952 = vsub.f32 %v1682, %v1862
        %v1953 = vsub.f32 %v1684, %v1862
        %v1954 = vsub.f32 %v1688, %v1865
        %v1955 = vsub.f32 %v1690, %v1865
        %v1956 = vsub.f32 %v1694, %v1868
        %v1957 = vsub.f32 %v1696, %v1868
        %v1958 = vsub.f32 %v1700, %v1871
        %v1959 = vsub.f32 %v1702, %v1871
        %v1960 = vsub.f32 %v1706, %v1874
        %v1961 = vsub.f32 %v1708, %v1874
        %v1962 = vsub.f32 %v1712, %v1877
        %v1963 = vsub.f32 %v1714, %v1877
        %v1964 = vsub.f32 %v1718, %v1880
        %v1965 = vsub.f32 %v1720, %v1880
        %v1966 = vsub.f32 %v1724, %v1883
        %v1967 = vsub.f32 %v1726, %v1883
        %v1968 = vsub.f32 %v1730, %v1886
        %v1969 = vsub.f32 %v1732, %v1886
        %v1970 = vsub.f32 %v1736, %v1889
        %v1971 = vsub.f32 %v1738, %v1889
        %v1972 = vsub.f32 %v1742, %v1892
        %v1973 = vsub.f32 %v1744, %v1892
        %v1974 = vsub.f32 %v1748, %v1895
        %v1975 = vsub.f32 %v1750, %v1895
        %v1976 = vsub.f32 %v1754, %v1898
        %v1977 = vsub.f32 %v1756, %v1898
        %v1978 = vsub.f32 %v1760, %v1901
        %v1979 = vsub.f32 %v1762, %v1901
        %v1980 = vsub.f32 %v1766, %v1904
        %v1981 = vsub.f32 %v1768, %v1904
        %v1982 = vsub.f32 %v1772, %v1907
        %v1983 = vsub.f32 %v1774, %v1907
        %v1984 = vsub.f32 %v1778, %v1910
        %v1985 = vsub.f32 %v1780, %v1910
        %v1986 = vsub.f32 %v1784, %v1913
        %v1987 = vsub.f32 %v1786, %v1913
        %v1988 = vsub.f32 %v1790, %v1916
        %v1989 = vsub.f32 %v1792, %v1916
        %v1990 = vsub.f32 %v1796, %v1919
        %v1991 = vsub.f32 %v1798, %v1919
        %v1992 = vsub.f32 %v1802, %v1922
        %v1993 = vsub.f32 %v1804, %v1922
        %v1994 = vsub.f32 %v1808, %v1925
        %v1995 = vsub.f32 %v1810, %v1925
        %v1996 = vsub.f32 %v1814, %v1928
        %v1997 = vsub.f32 %v1816, %v1928
        %v1998 = vsub.f32 %v1820, %v1931
        %v1999 = vsub.f32 %v1822, %v1931
        %v2000 = vsub.f32 %v1826, %v1934
        %v2001 = vsub.f32 %v1828, %v1934
        %v2002 = vsub.f32 %v1832, %v1937
        %v2003 = vsub.f32 %v1834, %v1937
        %v2004 = vsub.f32 %v1838, %v1940
        %v2005 = vsub.f32 %v1840, %v1940
        %v2006 = vsub.f32 %v1844, %v1943
        %v2007 = vsub.f32 %v1846, %v1943
        %v2008 = vmul.f32 %v1944, 1.442695
        %v2009 = vpow.pop %v2008
        %v2010 = vmul.f32 %v1945, 1.442695
        %v2011 = vpow.pop %v2010
        %v2012 = vmul.f32 %v1946, 1.442695
        %v2013 = vpow.pop %v2012
        %v2014 = vmul.f32 %v1947, 1.442695
        %v2015 = vpow.pop %v2014
        %v2016 = vmul.f32 %v1948, 1.442695
        %v2017 = vpow.pop %v2016
        %v2018 = vmul.f32 %v1949, 1.442695
        %v2019 = vpow.pop %v2018
        %v2020 = vmul.f32 %v1950, 1.442695
        %v2021 = vpow.pop %v2020
        %v2022 = vmul.f32 %v1951, 1.442695
        %v2023 = vpow.pop %v2022
        %v2024 = vmul.f32 %v1952, 1.442695
        %v2025 = vpow.pop %v2024
        %v2026 = vmul.f32 %v1953, 1.442695
        %v2027 = vpow.pop %v2026
        %v2028 = vmul.f32 %v1954, 1.442695
        %v2029 = vpow.pop %v2028
        %v2030 = vmul.f32 %v1955, 1.442695
        %v2031 = vpow.pop %v2030
        %v2032 = vmul.f32 %v1956, 1.442695
        %v2033 = vpow.pop %v2032
        %v2034 = vmul.f32 %v1957, 1.442695
        %v2035 = vpow.pop %v2034
        %v2036 = vmul.f32 %v1958, 1.442695
        %v2037 = vpow.pop %v2036
        %v2038 = vmul.f32 %v1959, 1.442695
        %v2039 = vpow.pop %v2038
        %v2040 = vmul.f32 %v1960, 1.442695
        %v2041 = vpow.pop %v2040
        %v2042 = vmul.f32 %v1961, 1.442695
        %v2043 = vpow.pop %v2042
        %v2044 = vmul.f32 %v1962, 1.442695
        %v2045 = vpow.pop %v2044
        %v2046 = vmul.f32 %v1963, 1.442695
        %v2047 = vpow.pop %v2046
        %v2048 = vmul.f32 %v1964, 1.442695
        %v2049 = vpow.pop %v2048
        %v2050 = vmul.f32 %v1965, 1.442695
        %v2051 = vpow.pop %v2050
        %v2052 = vmul.f32 %v1966, 1.442695
        %v2053 = vpow.pop %v2052
        %v2054 = vmul.f32 %v1967, 1.442695
        %v2055 = vpow.pop %v2054
        %v2056 = vmul.f32 %v1968, 1.442695
        %v2057 = vpow.pop %v2056
        %v2058 = vmul.f32 %v1969, 1.442695
        %v2059 = vpow.pop %v2058
        %v2060 = vmul.f32 %v1970, 1.442695
        %v2061 = vpow.pop %v2060
        %v2062 = vmul.f32 %v1971, 1.442695
        %v2063 = vpow.pop %v2062
        %v2064 = vmul.f32 %v1972, 1.442695
        %v2065 = vpow.pop %v2064
        %v2066 = vmul.f32 %v1973, 1.442695
        %v2067 = vpow.pop %v2066
        %v2068 = vmul.f32 %v1974, 1.442695
        %v2069 = vpow.pop %v2068
        %v2070 = vmul.f32 %v1975, 1.442695
        %v2071 = vpow.pop %v2070
        %v2072 = vmul.f32 %v1976, 1.442695
        %v2073 = vpow.pop %v2072
        %v2074 = vmul.f32 %v1977, 1.442695
        %v2075 = vpow.pop %v2074
        %v2076 = vmul.f32 %v1978, 1.442695
        %v2077 = vpow.pop %v2076
        %v2078 = vmul.f32 %v1979, 1.442695
        %v2079 = vpow.pop %v2078
        %v2080 = vmul.f32 %v1980, 1.442695
        %v2081 = vpow.pop %v2080
        %v2082 = vmul.f32 %v1981, 1.442695
        %v2083 = vpow.pop %v2082
        %v2084 = vmul.f32 %v1982, 1.442695
        %v2085 = vpow.pop %v2084
        %v2086 = vmul.f32 %v1983, 1.442695
        %v2087 = vpow.pop %v2086
        %v2088 = vmul.f32 %v1984, 1.442695
        %v2089 = vpow.pop %v2088
        %v2090 = vmul.f32 %v1985, 1.442695
        %v2091 = vpow.pop %v2090
        %v2092 = vmul.f32 %v1986, 1.442695
        %v2093 = vpow.pop %v2092
        %v2094 = vmul.f32 %v1987, 1.442695
        %v2095 = vpow.pop %v2094
        %v2096 = vmul.f32 %v1988, 1.442695
        %v2097 = vpow.pop %v2096
        %v2098 = vmul.f32 %v1989, 1.442695
        %v2099 = vpow.pop %v2098
        %v2100 = vmul.f32 %v1990, 1.442695
        %v2101 = vpow.pop %v2100
        %v2102 = vmul.f32 %v1991, 1.442695
        %v2103 = vpow.pop %v2102
        %v2104 = vmul.f32 %v1992, 1.442695
        %v2105 = vpow.pop %v2104
        %v2106 = vmul.f32 %v1993, 1.442695
        %v2107 = vpow.pop %v2106
        %v2108 = vmul.f32 %v1994, 1.442695
        %v2109 = vpow.pop %v2108
        %v2110 = vmul.f32 %v1995, 1.442695
        %v2111 = vpow.pop %v2110
        %v2112 = vmul.f32 %v1996, 1.442695
        %v2113 = vpow.pop %v2112
        %v2114 = vmul.f32 %v1997, 1.442695
        %v2115 = vpow.pop %v2114
        %v2116 = vmul.f32 %v1998, 1.442695
        %v2117 = vpow.pop %v2116
        %v2118 = vmul.f32 %v1999, 1.442695
        %v2119 = vpow.pop %v2118
        %v2120 = vmul.f32 %v2000, 1.442695
        %v2121 = vpow.pop %v2120
        %v2122 = vmul.f32 %v2001, 1.442695
        %v2123 = vpow.pop %v2122
        %v2124 = vmul.f32 %v2002, 1.442695
        %v2125 = vpow.pop %v2124
        %v2126 = vmul.f32 %v2003, 1.442695
        %v2127 = vpow.pop %v2126
        %v2128 = vmul.f32 %v2004, 1.442695
        %v2129 = vpow.pop %v2128
        %v2130 = vmul.f32 %v2005, 1.442695
        %v2131 = vpow.pop %v2130
        %v2132 = vmul.f32 %v2006, 1.442695
        %v2133 = vpow.pop %v2132
        %v2134 = vmul.f32 %v2007, 1.442695
        %v2135 = vpow.pop %v2134
        %v2136 = vadd.f32 %v2009, %v2011
        %2137 = vadd.xlane.f32.xlu0 %v2136
        %v2138 = vpop.xlane.xlu0 %2137
        %v2139 = vadd.f32 %v2013, %v2015
        %2140 = vadd.xlane.f32.xlu0 %v2139
        %v2141 = vpop.xlane.xlu0 %2140
        %v2142 = vadd.f32 %v2017, %v2019
        %2143 = vadd.xlane.f32.xlu0 %v2142
        %v2144 = vpop.xlane.xlu0 %2143
        %v2145 = vadd.f32 %v2021, %v2023
        %2146 = vadd.xlane.f32.xlu0 %v2145
        %v2147 = vpop.xlane.xlu0 %2146
        %v2148 = vadd.f32 %v2025, %v2027
        %2149 = vadd.xlane.f32.xlu0 %v2148
        %v2150 = vpop.xlane.xlu0 %2149
        %v2151 = vadd.f32 %v2029, %v2031
        %2152 = vadd.xlane.f32.xlu0 %v2151
        %v2153 = vpop.xlane.xlu0 %2152
        %v2154 = vadd.f32 %v2033, %v2035
        %2155 = vadd.xlane.f32.xlu0 %v2154
        %v2156 = vpop.xlane.xlu0 %2155
        %v2157 = vadd.f32 %v2037, %v2039
        %2158 = vadd.xlane.f32.xlu0 %v2157
        %v2159 = vpop.xlane.xlu0 %2158
        %v2160 = vadd.f32 %v2041, %v2043
        %2161 = vadd.xlane.f32.xlu0 %v2160
        %v2162 = vpop.xlane.xlu0 %2161
        %v2163 = vadd.f32 %v2045, %v2047
        %2164 = vadd.xlane.f32.xlu0 %v2163
        %v2165 = vpop.xlane.xlu0 %2164
        %v2166 = vadd.f32 %v2049, %v2051
        %2167 = vadd.xlane.f32.xlu0 %v2166
        %v2168 = vpop.xlane.xlu0 %2167
        %v2169 = vadd.f32 %v2053, %v2055
        %2170 = vadd.xlane.f32.xlu0 %v2169
        %v2171 = vpop.xlane.xlu0 %2170
        %v2172 = vadd.f32 %v2057, %v2059
        %2173 = vadd.xlane.f32.xlu0 %v2172
        %v2174 = vpop.xlane.xlu0 %2173
        %v2175 = vadd.f32 %v2061, %v2063
        %2176 = vadd.xlane.f32.xlu0 %v2175
        %v2177 = vpop.xlane.xlu0 %2176
        %v2178 = vadd.f32 %v2065, %v2067
        %2179 = vadd.xlane.f32.xlu0 %v2178
        %v2180 = vpop.xlane.xlu0 %2179
        %v2181 = vadd.f32 %v2069, %v2071
        %2182 = vadd.xlane.f32.xlu0 %v2181
        %v2183 = vpop.xlane.xlu0 %2182
        %v2184 = vadd.f32 %v2073, %v2075
        %2185 = vadd.xlane.f32.xlu0 %v2184
        %v2186 = vpop.xlane.xlu0 %2185
        %v2187 = vadd.f32 %v2077, %v2079
        %2188 = vadd.xlane.f32.xlu0 %v2187
        %v2189 = vpop.xlane.xlu0 %2188
        %v2190 = vadd.f32 %v2081, %v2083
        %2191 = vadd.xlane.f32.xlu0 %v2190
        %v2192 = vpop.xlane.xlu0 %2191
        %v2193 = vadd.f32 %v2085, %v2087
        %2194 = vadd.xlane.f32.xlu0 %v2193
        %v2195 = vpop.xlane.xlu0 %2194
        %v2196 = vadd.f32 %v2089, %v2091
        %2197 = vadd.xlane.f32.xlu0 %v2196
        %v2198 = vpop.xlane.xlu0 %2197
        %v2199 = vadd.f32 %v2093, %v2095
        %2200 = vadd.xlane.f32.xlu0 %v2199
        %v2201 = vpop.xlane.xlu0 %2200
        %v2202 = vadd.f32 %v2097, %v2099
        %2203 = vadd.xlane.f32.xlu0 %v2202
        %v2204 = vpop.xlane.xlu0 %2203
        %v2205 = vadd.f32 %v2101, %v2103
        %2206 = vadd.xlane.f32.xlu0 %v2205
        %v2207 = vpop.xlane.xlu0 %2206
        %v2208 = vadd.f32 %v2105, %v2107
        %2209 = vadd.xlane.f32.xlu0 %v2208
        %v2210 = vpop.xlane.xlu0 %2209
        %v2211 = vadd.f32 %v2109, %v2111
        %2212 = vadd.xlane.f32.xlu0 %v2211
        %v2213 = vpop.xlane.xlu0 %2212
        %v2214 = vadd.f32 %v2113, %v2115
        %2215 = vadd.xlane.f32.xlu0 %v2214
        %v2216 = vpop.xlane.xlu0 %2215
        %v2217 = vadd.f32 %v2117, %v2119
        %2218 = vadd.xlane.f32.xlu0 %v2217
        %v2219 = vpop.xlane.xlu0 %2218
        %v2220 = vadd.f32 %v2121, %v2123
        %2221 = vadd.xlane.f32.xlu0 %v2220
        %v2222 = vpop.xlane.xlu0 %2221
        %v2223 = vadd.f32 %v2125, %v2127
        %2224 = vadd.xlane.f32.xlu0 %v2223
        %v2225 = vpop.xlane.xlu0 %2224
        %v2226 = vadd.f32 %v2129, %v2131
        %2227 = vadd.xlane.f32.xlu0 %v2226
        %v2228 = vpop.xlane.xlu0 %2227
        %v2229 = vadd.f32 %v2133, %v2135
        %2230 = vadd.xlane.f32.xlu0 %v2229
        %v2231 = vpop.xlane.xlu0 %2230
        %v2232 = vrcp.pop %v2138
        %v2233 = vrcp.pop %v2141
        %v2234 = vrcp.pop %v2144
        %v2235 = vrcp.pop %v2147
        %v2236 = vrcp.pop %v2150
        %v2237 = vrcp.pop %v2153
        %v2238 = vrcp.pop %v2156
        %v2239 = vrcp.pop %v2159
        %v2240 = vrcp.pop %v2162
        %v2241 = vrcp.pop %v2165
        %v2242 = vrcp.pop %v2168
        %v2243 = vrcp.pop %v2171
        %v2244 = vrcp.pop %v2174
        %v2245 = vrcp.pop %v2177
        %v2246 = vrcp.pop %v2180
        %v2247 = vrcp.pop %v2183
        %v2248 = vrcp.pop %v2186
        %v2249 = vrcp.pop %v2189
        %v2250 = vrcp.pop %v2192
        %v2251 = vrcp.pop %v2195
        %v2252 = vrcp.pop %v2198
        %v2253 = vrcp.pop %v2201
        %v2254 = vrcp.pop %v2204
        %v2255 = vrcp.pop %v2207
        %v2256 = vrcp.pop %v2210
        %v2257 = vrcp.pop %v2213
        %v2258 = vrcp.pop %v2216
        %v2259 = vrcp.pop %v2219
        %v2260 = vrcp.pop %v2222
        %v2261 = vrcp.pop %v2225
        %v2262 = vrcp.pop %v2228
        %v2263 = vrcp.pop %v2231
        %v2264 = vmul.f32 %v2009, %v2232
        %v2265 = vmul.f32 %v2011, %v2232
        %v2266 = vmul.f32 %v2013, %v2233
        %v2267 = vmul.f32 %v2015, %v2233
        %v2268 = vmul.f32 %v2017, %v2234
        %v2269 = vmul.f32 %v2019, %v2234
        %v2270 = vmul.f32 %v2021, %v2235
        %v2271 = vmul.f32 %v2023, %v2235
        %v2272 = vmul.f32 %v2025, %v2236
        %v2273 = vmul.f32 %v2027, %v2236
        %v2274 = vmul.f32 %v2029, %v2237
        %v2275 = vmul.f32 %v2031, %v2237
        %v2276 = vmul.f32 %v2033, %v2238
        %v2277 = vmul.f32 %v2035, %v2238
        %v2278 = vmul.f32 %v2037, %v2239
        %v2279 = vmul.f32 %v2039, %v2239
        %v2280 = vmul.f32 %v2041, %v2240
        %v2281 = vmul.f32 %v2043, %v2240
        %v2282 = vmul.f32 %v2045, %v2241
        %v2283 = vmul.f32 %v2047, %v2241
        %v2284 = vmul.f32 %v2049, %v2242
        %v2285 = vmul.f32 %v2051, %v2242
        %v2286 = vmul.f32 %v2053, %v2243
        %v2287 = vmul.f32 %v2055, %v2243
        %v2288 = vmul.f32 %v2057, %v2244
        %v2289 = vmul.f32 %v2059, %v2244
        %v2290 = vmul.f32 %v2061, %v2245
        %v2291 = vmul.f32 %v2063, %v2245
        %v2292 = vmul.f32 %v2065, %v2246
        %v2293 = vmul.f32 %v2067, %v2246
        %v2294 = vmul.f32 %v2069, %v2247
        %v2295 = vmul.f32 %v2071, %v2247
        %v2296 = vmul.f32 %v2073, %v2248
        %v2297 = vmul.f32 %v2075, %v2248
        %v2298 = vmul.f32 %v2077, %v2249
        %v2299 = vmul.f32 %v2079, %v2249
        %v2300 = vmul.f32 %v2081, %v2250
        %v2301 = vmul.f32 %v2083, %v2250
        %v2302 = vmul.f32 %v2085, %v2251
        %v2303 = vmul.f32 %v2087, %v2251
        %v2304 = vmul.f32 %v2089, %v2252
        %v2305 = vmul.f32 %v2091, %v2252
        %v2306 = vmul.f32 %v2093, %v2253
        %v2307 = vmul.f32 %v2095, %v2253
        %v2308 = vmul.f32 %v2097, %v2254
        %v2309 = vmul.f32 %v2099, %v2254
        %v2310 = vmul.f32 %v2101, %v2255
        %v2311 = vmul.f32 %v2103, %v2255
        %v2312 = vmul.f32 %v2105, %v2256
        %v2313 = vmul.f32 %v2107, %v2256
        %v2314 = vmul.f32 %v2109, %v2257
        %v2315 = vmul.f32 %v2111, %v2257
        %v2316 = vmul.f32 %v2113, %v2258
        %v2317 = vmul.f32 %v2115, %v2258
        %v2318 = vmul.f32 %v2117, %v2259
        %v2319 = vmul.f32 %v2119, %v2259
        %v2320 = vmul.f32 %v2121, %v2260
        %v2321 = vmul.f32 %v2123, %v2260
        %v2322 = vmul.f32 %v2125, %v2261
        %v2323 = vmul.f32 %v2127, %v2261
        %v2324 = vmul.f32 %v2129, %v2262
        %v2325 = vmul.f32 %v2131, %v2262
        %v2326 = vmul.f32 %v2133, %v2263
        %v2327 = vmul.f32 %v2135, %v2263
        %v2330 = vrot.slane %v413, 4
        %v2331 = vrot.slane %v415, 4
        %2334 = vmatprep.subr.mxu0 %v2265
        %2335 = vmatpush1.xpose.msra.mxu0 %v2264
        %2336 = vmatprep.subr.mxu0 %v2267
        %2337 = vmatpush1.xpose.msra.mxu0 %v2266
        %2338 = vmatprep.subr.mxu0 %v2269
        %2339 = vmatpush1.xpose.msra.mxu0 %v2268
        %2340 = vmatprep.subr.mxu0 %v2271
        %2341 = vmatpush1.xpose.msra.mxu0 %v2270
        %2342 = vmatprep.subr.mxu0 %v2273
        %2343 = vmatpush1.xpose.msra.mxu0 %v2272
        %2344 = vmatprep.subr.mxu0 %v2275
        %2345 = vmatpush1.xpose.msra.mxu0 %v2274
        %2346 = vmatprep.subr.mxu0 %v2277
        %2347 = vmatpush1.xpose.msra.mxu0 %v2276
        %2348 = vmatprep.subr.mxu0 %v2279
        %2349 = vmatpush1.xpose.msra.mxu0 %v2278
        %2350 = vmatprep.subr.mxu0 %v2281
        %2351 = vmatpush1.xpose.msra.mxu0 %v2280
        %2352 = vmatprep.subr.mxu0 %v2283
        %2353 = vmatpush1.xpose.msra.mxu0 %v2282
        %2354 = vmatprep.subr.mxu0 %v2285
        %2355 = vmatpush1.xpose.msra.mxu0 %v2284
        %2356 = vmatprep.subr.mxu0 %v2287
        %2357 = vmatpush1.xpose.msra.mxu0 %v2286
        %2358 = vmatprep.subr.mxu0 %v2289
        %2359 = vmatpush1.xpose.msra.mxu0 %v2288
        %2360 = vmatprep.subr.mxu0 %v2291
        %2361 = vmatpush1.xpose.msra.mxu0 %v2290
        %2362 = vmatprep.subr.mxu0 %v2293
        %2363 = vmatpush1.xpose.msra.mxu0 %v2292
        %2364 = vmatprep.subr.mxu0 %v2295
        %2365 = vmatpush1.xpose.msra.mxu0 %v2294
        %2366 = vmatprep.subr.mxu0 %v2297
        %2367 = vmatpush1.xpose.msra.mxu0 %v2296
        %2368 = vmatprep.subr.mxu0 %v2299
        %2369 = vmatpush1.xpose.msra.mxu0 %v2298
        %2370 = vmatprep.subr.mxu0 %v2301
        %2371 = vmatpush1.xpose.msra.mxu0 %v2300
        %2372 = vmatprep.subr.mxu0 %v2303
        %2373 = vmatpush1.xpose.msra.mxu0 %v2302
        %2374 = vmatprep.subr.mxu0 %v2305
        %2375 = vmatpush1.xpose.msra.mxu0 %v2304
        %2376 = vmatprep.subr.mxu0 %v2307
        %2377 = vmatpush1.xpose.msra.mxu0 %v2306
        %2378 = vmatprep.subr.mxu0 %v2309
        %2379 = vmatpush1.xpose.msra.mxu0 %v2308
        %2380 = vmatprep.subr.mxu0 %v2311
        %2381 = vmatpush1.xpose.msra.mxu0 %v2310
        %2382 = vmatprep.subr.mxu0 %v2313
        %2383 = vmatpush1.xpose.msra.mxu0 %v2312
        %2384 = vmatprep.subr.mxu0 %v2315
        %2385 = vmatpush1.xpose.msra.mxu0 %v2314
        %2386 = vmatprep.subr.mxu0 %v2317
        %2387 = vmatpush1.xpose.msra.mxu0 %v2316
        %2388 = vmatprep.subr.mxu0 %v2319
        %2389 = vmatpush1.xpose.msra.mxu0 %v2318
        %2390 = vmatprep.subr.mxu0 %v2321
        %2391 = vmatpush1.xpose.msra.mxu0 %v2320
        %2392 = vmatprep.subr.mxu0 %v2323
        %2393 = vmatpush1.xpose.msra.mxu0 %v2322
        %2394 = vmatprep.subr.mxu0 %v2325
        %2395 = vmatpush1.xpose.msra.mxu0 %v2324
        %2396 = vmatprep.subr.mxu0 %v2327
        %2397 = vmatpush1.xpose.msra.mxu0 %v2326
        %2398 = vmatprep.mubr.f32.mxu0 %v2331
        %2399 = vmatmul.mubr.f32.gmra.mrb[0].mxu0 %v2330
        %v2400 = vpop.f32.mrb[0].mxu0
        %v2401 = vadd.f32 0.0, %v2400
        %v2402 = vpop.f32.mrb[0].mxu0
        %v2403 = vadd.f32 0.0, %v2402
        %2404 = vdwg.mxu0
        %v2407 = vrot.slane %v2401, 4
        %v2408 = vrot.slane %v2403, 4
        %2411 = vst [vmem:[%s163] sm:$0xf0] %v2407
        %2412 = vst [vmem:[%s163 + $0x8] sm:$0xf0] %v2408
        %2413 = vxpose.xlu0.b32.start [1/16] %v437, 128
        %2414 = vxpose.xlu0.b32.cont [2/16] 0.0, 128
        %2415 = vxpose.xlu0.b32.cont [3/16] 0.0, 128
        %2416 = vxpose.xlu0.b32.cont [4/16] 0.0, 128
        %2417 = vxpose.xlu0.b32.cont [5/16] 0.0, 128
        %2418 = vxpose.xlu0.b32.cont [6/16] 0.0, 128
        %2419 = vxpose.xlu0.b32.cont [7/16] 0.0, 128
        %2420 = vxpose.xlu0.b32.cont [8/16] 0.0, 128
        %2421 = vxpose.xlu0.b32.cont [9/16] 0.0, 128
        %2422 = vxpose.xlu0.b32.cont [10/16] 0.0, 128
        %2423 = vxpose.xlu0.b32.cont [11/16] 0.0, 128
        %2424 = vxpose.xlu0.b32.cont [12/16] 0.0, 128
        %2425 = vxpose.xlu0.b32.cont [13/16] 0.0, 128
        %2426 = vxpose.xlu0.b32.cont [14/16] 0.0, 128
        %2427 = vxpose.xlu0.b32.cont [15/16] 0.0, 128
        %2428 = vxpose.xlu0.b32.end [16/16] 0.0, 128
        %v2429 = vpop.trf.xlu0
        %v2430 = vpop.trf.xlu0
        %v2431 = vpop.trf.xlu0
        %v2432 = vpop.trf.xlu0
        %v2433 = vpop.trf.xlu0
        %v2434 = vpop.trf.xlu0
        %v2435 = vpop.trf.xlu0
        %v2436 = vpop.trf.xlu0
        %v2437 = vpop.trf.xlu0
        %v2438 = vpop.trf.xlu0
        %v2439 = vpop.trf.xlu0
        %v2440 = vpop.trf.xlu0
        %v2441 = vpop.trf.xlu0
        %v2442 = vpop.trf.xlu0
        %v2443 = vpop.trf.xlu0
        %v2444 = vpop.trf.xlu0
        %2445 = vxpose.xlu0.b32.start [1/16] %v438, 128
        %2446 = vxpose.xlu0.b32.cont [2/16] 0.0, 128
        %2447 = vxpose.xlu0.b32.cont [3/16] 0.0, 128
        %2448 = vxpose.xlu0.b32.cont [4/16] 0.0, 128
        %2449 = vxpose.xlu0.b32.cont [5/16] 0.0, 128
        %2450 = vxpose.xlu0.b32.cont [6/16] 0.0, 128
        %2451 = vxpose.xlu0.b32.cont [7/16] 0.0, 128
        %2452 = vxpose.xlu0.b32.cont [8/16] 0.0, 128
        %2453 = vxpose.xlu0.b32.cont [9/16] 0.0, 128
        %2454 = vxpose.xlu0.b32.cont [10/16] 0.0, 128
        %2455 = vxpose.xlu0.b32.cont [11/16] 0.0, 128
        %2456 = vxpose.xlu0.b32.cont [12/16] 0.0, 128
        %2457 = vxpose.xlu0.b32.cont [13/16] 0.0, 128
        %2458 = vxpose.xlu0.b32.cont [14/16] 0.0, 128
        %2459 = vxpose.xlu0.b32.cont [15/16] 0.0, 128
        %2460 = vxpose.xlu0.b32.end [16/16] 0.0, 128
        %v2461 = vpop.trf.xlu0
        %v2462 = vpop.trf.xlu0
        %v2463 = vpop.trf.xlu0
        %v2464 = vpop.trf.xlu0
        %v2465 = vpop.trf.xlu0
        %v2466 = vpop.trf.xlu0
        %v2467 = vpop.trf.xlu0
        %v2468 = vpop.trf.xlu0
        %v2469 = vpop.trf.xlu0
        %v2470 = vpop.trf.xlu0
        %v2471 = vpop.trf.xlu0
        %v2472 = vpop.trf.xlu0
        %v2473 = vpop.trf.xlu0
        %v2474 = vpop.trf.xlu0
        %v2475 = vpop.trf.xlu0
        %v2476 = vpop.trf.xlu0
        %v2478 = vsel %vm256, %v2429, 0
        %v2481 = vsel %vm256, %v2430, 0
        %v2484 = vsel %vm256, %v2431, 0
        %v2487 = vsel %vm256, %v2432, 0
        %v2490 = vsel %vm256, %v2433, 0
        %v2493 = vsel %vm256, %v2434, 0
        %v2496 = vsel %vm256, %v2435, 0
        %v2499 = vsel %vm256, %v2436, 0
        %v2502 = vsel %vm256, %v2437, 0
        %v2505 = vsel %vm256, %v2438, 0
        %v2508 = vsel %vm256, %v2439, 0
        %v2511 = vsel %vm256, %v2440, 0
        %v2514 = vsel %vm256, %v2441, 0
        %v2517 = vsel %vm256, %v2442, 0
        %v2520 = vsel %vm256, %v2443, 0
        %v2523 = vsel %vm256, %v2444, 0
        %v2526 = vsel %vm256, %v2461, 0
        %v2529 = vsel %vm256, %v2462, 0
        %v2532 = vsel %vm256, %v2463, 0
        %v2535 = vsel %vm256, %v2464, 0
        %v2538 = vsel %vm256, %v2465, 0
        %v2541 = vsel %vm256, %v2466, 0
        %v2544 = vsel %vm256, %v2467, 0
        %v2547 = vsel %vm256, %v2468, 0
        %v2550 = vsel %vm256, %v2469, 0
        %v2553 = vsel %vm256, %v2470, 0
        %v2556 = vsel %vm256, %v2471, 0
        %v2559 = vsel %vm256, %v2472, 0
        %v2562 = vsel %vm256, %v2473, 0
        %v2565 = vsel %vm256, %v2474, 0
        %v2568 = vsel %vm256, %v2475, 0
        %v2571 = vsel %vm256, %v2476, 0
        %v2574 = vsel %vm293, %v395, 0
        %v2577 = vsel %vm293, %v397, 0
        %2579 = vmatprep.subr.mxu0 %v2577
        %2580 = vmatpush1.msra.mxu0 %v2574
        %2581 = vmatprep.subr.mxu0 0.0
        %2582 = vmatpush1.msra.mxu0 0.0
        %2583 = vmatprep.subr.mxu0 0.0
        %2584 = vmatpush1.msra.mxu0 0.0
        %2585 = vmatprep.subr.mxu0 0.0
        %2586 = vmatpush1.msra.mxu0 0.0
        %2587 = vmatprep.subr.mxu0 0.0
        %2588 = vmatpush1.msra.mxu0 0.0
        %2589 = vmatprep.subr.mxu0 0.0
        %2590 = vmatpush1.msra.mxu0 0.0
        %2591 = vmatprep.subr.mxu0 0.0
        %2592 = vmatpush1.msra.mxu0 0.0
        %2593 = vmatprep.subr.mxu0 0.0
        %2594 = vmatpush1.msra.mxu0 0.0
        %2595 = vmatprep.subr.mxu0 0.0
        %2596 = vmatpush1.msra.mxu0 0.0
        %2597 = vmatprep.subr.mxu0 0.0
        %2598 = vmatpush1.msra.mxu0 0.0
        %2599 = vmatprep.subr.mxu0 0.0
        %2600 = vmatpush1.msra.mxu0 0.0
        %2601 = vmatprep.subr.mxu0 0.0
        %2602 = vmatpush1.msra.mxu0 0.0
        %2603 = vmatprep.subr.mxu0 0.0
        %2604 = vmatpush1.msra.mxu0 0.0
        %2605 = vmatprep.subr.mxu0 0.0
        %2606 = vmatpush1.msra.mxu0 0.0
        %2607 = vmatprep.subr.mxu0 0.0
        %2608 = vmatpush1.msra.mxu0 0.0
        %2609 = vmatprep.subr.mxu0 0.0
        %2610 = vmatpush1.msra.mxu0 0.0
        %2611 = vmatprep.subr.mxu0 0.0
        %2612 = vmatpush1.msra.mxu0 0.0
        %2613 = vmatprep.subr.mxu0 0.0
        %2614 = vmatpush1.msra.mxu0 0.0
        %2615 = vmatprep.subr.mxu0 0.0
        %2616 = vmatpush1.msra.mxu0 0.0
        %2617 = vmatprep.subr.mxu0 0.0
        %2618 = vmatpush1.msra.mxu0 0.0
        %2619 = vmatprep.subr.mxu0 0.0
        %2620 = vmatpush1.msra.mxu0 0.0
        %2621 = vmatprep.subr.mxu0 0.0
        %2622 = vmatpush1.msra.mxu0 0.0
        %2623 = vmatprep.subr.mxu0 0.0
        %2624 = vmatpush1.msra.mxu0 0.0
        %2625 = vmatprep.subr.mxu0 0.0
        %2626 = vmatpush1.msra.mxu0 0.0
        %2627 = vmatprep.subr.mxu0 0.0
        %2628 = vmatpush1.msra.mxu0 0.0
        %2629 = vmatprep.subr.mxu0 0.0
        %2630 = vmatpush1.msra.mxu0 0.0
        %2631 = vmatprep.subr.mxu0 0.0
        %2632 = vmatpush1.msra.mxu0 0.0
        %2633 = vmatprep.subr.mxu0 0.0
        %2634 = vmatpush1.msra.mxu0 0.0
        %2635 = vmatprep.subr.mxu0 0.0
        %2636 = vmatpush1.msra.mxu0 0.0
        %2637 = vmatprep.subr.mxu0 0.0
        %2638 = vmatpush1.msra.mxu0 0.0
        %2639 = vmatprep.subr.mxu0 0.0
        %2640 = vmatpush1.msra.mxu0 0.0
        %2641 = vmatprep.subr.mxu0 0.0
        %2642 = vmatpush1.msra.mxu0 0.0
        %2643 = vmatprep.mubr.f32.mxu0 0.0
        %2644 = vmatmul.mubr.f32.gmra.mrb[0].mxu0 %v2478
        %v2645 = vpop.f32.mrb[0].mxu0
        %v2646 = vadd.f32 0.0, %v2645
        %v2647 = vpop.f32.mrb[0].mxu0
        %v2648 = vadd.f32 0.0, %v2647
        %2649 = vmatprep.mubr.f32.mxu0 0.0
        %2650 = vmatmul.mubr.f32.gmra.mrb[0].mxu0 %v2481
        %v2651 = vpop.f32.mrb[0].mxu0
        %v2652 = vadd.f32 0.0, %v2651
        %v2653 = vpop.f32.mrb[0].mxu0
        %v2654 = vadd.f32 0.0, %v2653
        %2655 = vmatprep.mubr.f32.mxu0 0.0
        %2656 = vmatmul.mubr.f32.gmra.mrb[0].mxu0 %v2484
        %v2657 = vpop.f32.mrb[0].mxu0
        %v2658 = vadd.f32 0.0, %v2657
        %v2659 = vpop.f32.mrb[0].mxu0
        %v2660 = vadd.f32 0.0, %v2659
        %2661 = vmatprep.mubr.f32.mxu0 0.0
        %2662 = vmatmul.mubr.f32.gmra.mrb[0].mxu0 %v2487
        %v2663 = vpop.f32.mrb[0].mxu0
        %v2664 = vadd.f32 0.0, %v2663
        %v2665 = vpop.f32.mrb[0].mxu0
        %v2666 = vadd.f32 0.0, %v2665
        %2667 = vmatprep.mubr.f32.mxu0 0.0
        %2668 = vmatmul.mubr.f32.gmra.mrb[0].mxu0 %v2490
        %v2669 = vpop.f32.mrb[0].mxu0
        %v2670 = vadd.f32 0.0, %v2669
        %v2671 = vpop.f32.mrb[0].mxu0
        %v2672 = vadd.f32 0.0, %v2671
        %2673 = vmatprep.mubr.f32.mxu0 0.0
        %2674 = vmatmul.mubr.f32.gmra.mrb[0].mxu0 %v2493
        %v2675 = vpop.f32.mrb[0].mxu0
        %v2676 = vadd.f32 0.0, %v2675
        %v2677 = vpop.f32.mrb[0].mxu0
        %v2678 = vadd.f32 0.0, %v2677
        %2679 = vmatprep.mubr.f32.mxu0 0.0
        %2680 = vmatmul.mubr.f32.gmra.mrb[0].mxu0 %v2496
        %v2681 = vpop.f32.mrb[0].mxu0
        %v2682 = vadd.f32 0.0, %v2681
        %v2683 = vpop.f32.mrb[0].mxu0
        %v2684 = vadd.f32 0.0, %v2683
        %2685 = vmatprep.mubr.f32.mxu0 0.0
        %2686 = vmatmul.mubr.f32.gmra.mrb[0].mxu0 %v2499
        %v2687 = vpop.f32.mrb[0].mxu0
        %v2688 = vadd.f32 0.0, %v2687
        %v2689 = vpop.f32.mrb[0].mxu0
        %v2690 = vadd.f32 0.0, %v2689
        %2691 = vmatprep.mubr.f32.mxu0 0.0
        %2692 = vmatmul.mubr.f32.gmra.mrb[0].mxu0 %v2502
        %v2693 = vpop.f32.mrb[0].mxu0
        %v2694 = vadd.f32 0.0, %v2693
        %v2695 = vpop.f32.mrb[0].mxu0
        %v2696 = vadd.f32 0.0, %v2695
        %2697 = vmatprep.mubr.f32.mxu0 0.0
        %2698 = vmatmul.mubr.f32.gmra.mrb[0].mxu0 %v2505
        %v2699 = vpop.f32.mrb[0].mxu0
        %v2700 = vadd.f32 0.0, %v2699
        %v2701 = vpop.f32.mrb[0].mxu0
        %v2702 = vadd.f32 0.0, %v2701
        %2703 = vmatprep.mubr.f32.mxu0 0.0
        %2704 = vmatmul.mubr.f32.gmra.mrb[0].mxu0 %v2508
        %v2705 = vpop.f32.mrb[0].mxu0
        %v2706 = vadd.f32 0.0, %v2705
        %v2707 = vpop.f32.mrb[0].mxu0
        %v2708 = vadd.f32 0.0, %v2707
        %2709 = vmatprep.mubr.f32.mxu0 0.0
        %2710 = vmatmul.mubr.f32.gmra.mrb[0].mxu0 %v2511
        %v2711 = vpop.f32.mrb[0].mxu0
        %v2712 = vadd.f32 0.0, %v2711
        %v2713 = vpop.f32.mrb[0].mxu0
        %v2714 = vadd.f32 0.0, %v2713
        %2715 = vmatprep.mubr.f32.mxu0 0.0
        %2716 = vmatmul.mubr.f32.gmra.mrb[0].mxu0 %v2514
        %v2717 = vpop.f32.mrb[0].mxu0
        %v2718 = vadd.f32 0.0, %v2717
        %v2719 = vpop.f32.mrb[0].mxu0
        %v2720 = vadd.f32 0.0, %v2719
        %2721 = vmatprep.mubr.f32.mxu0 0.0
        %2722 = vmatmul.mubr.f32.gmra.mrb[0].mxu0 %v2517
        %v2723 = vpop.f32.mrb[0].mxu0
        %v2724 = vadd.f32 0.0, %v2723
        %v2725 = vpop.f32.mrb[0].mxu0
        %v2726 = vadd.f32 0.0, %v2725
        %2727 = vmatprep.mubr.f32.mxu0 0.0
        %2728 = vmatmul.mubr.f32.gmra.mrb[0].mxu0 %v2520
        %v2729 = vpop.f32.mrb[0].mxu0
        %v2730 = vadd.f32 0.0, %v2729
        %v2731 = vpop.f32.mrb[0].mxu0
        %v2732 = vadd.f32 0.0, %v2731
        %2733 = vmatprep.mubr.f32.mxu0 0.0
        %2734 = vmatmul.mubr.f32.gmra.mrb[0].mxu0 %v2523
        %v2735 = vpop.f32.mrb[0].mxu0
        %v2736 = vadd.f32 0.0, %v2735
        %v2737 = vpop.f32.mrb[0].mxu0
        %v2738 = vadd.f32 0.0, %v2737
        %2739 = vmatprep.mubr.f32.mxu0 0.0
        %2740 = vmatmul.mubr.f32.gmra.mrb[0].mxu0 %v2526
        %v2741 = vpop.f32.mrb[0].mxu0
        %v2742 = vadd.f32 0.0, %v2741
        %v2743 = vpop.f32.mrb[0].mxu0
        %v2744 = vadd.f32 0.0, %v2743
        %2745 = vmatprep.mubr.f32.mxu0 0.0
        %2746 = vmatmul.mubr.f32.gmra.mrb[0].mxu0 %v2529
        %v2747 = vpop.f32.mrb[0].mxu0
        %v2748 = vadd.f32 0.0, %v2747
        %v2749 = vpop.f32.mrb[0].mxu0
        %v2750 = vadd.f32 0.0, %v2749
        %2751 = vmatprep.mubr.f32.mxu0 0.0
        %2752 = vmatmul.mubr.f32.gmra.mrb[0].mxu0 %v2532
        %v2753 = vpop.f32.mrb[0].mxu0
        %v2754 = vadd.f32 0.0, %v2753
        %v2755 = vpop.f32.mrb[0].mxu0
        %v2756 = vadd.f32 0.0, %v2755
        %2757 = vmatprep.mubr.f32.mxu0 0.0
        %2758 = vmatmul.mubr.f32.gmra.mrb[0].mxu0 %v2535
        %v2759 = vpop.f32.mrb[0].mxu0
        %v2760 = vadd.f32 0.0, %v2759
        %v2761 = vpop.f32.mrb[0].mxu0
        %v2762 = vadd.f32 0.0, %v2761
        %2763 = vmatprep.mubr.f32.mxu0 0.0
        %2764 = vmatmul.mubr.f32.gmra.mrb[0].mxu0 %v2538
        %v2765 = vpop.f32.mrb[0].mxu0
        %v2766 = vadd.f32 0.0, %v2765
        %v2767 = vpop.f32.mrb[0].mxu0
        %v2768 = vadd.f32 0.0, %v2767
        %2769 = vmatprep.mubr.f32.mxu0 0.0
        %2770 = vmatmul.mubr.f32.gmra.mrb[0].mxu0 %v2541
        %v2771 = vpop.f32.mrb[0].mxu0
        %v2772 = vadd.f32 0.0, %v2771
        %v2773 = vpop.f32.mrb[0].mxu0
        %v2774 = vadd.f32 0.0, %v2773
        %2775 = vmatprep.mubr.f32.mxu0 0.0
        %2776 = vmatmul.mubr.f32.gmra.mrb[0].mxu0 %v2544
        %v2777 = vpop.f32.mrb[0].mxu0
        %v2778 = vadd.f32 0.0, %v2777
        %v2779 = vpop.f32.mrb[0].mxu0
        %v2780 = vadd.f32 0.0, %v2779
        %2781 = vmatprep.mubr.f32.mxu0 0.0
        %2782 = vmatmul.mubr.f32.gmra.mrb[0].mxu0 %v2547
        %v2783 = vpop.f32.mrb[0].mxu0
        %v2784 = vadd.f32 0.0, %v2783
        %v2785 = vpop.f32.mrb[0].mxu0
        %v2786 = vadd.f32 0.0, %v2785
        %2787 = vmatprep.mubr.f32.mxu0 0.0
        %2788 = vmatmul.mubr.f32.gmra.mrb[0].mxu0 %v2550
        %v2789 = vpop.f32.mrb[0].mxu0
        %v2790 = vadd.f32 0.0, %v2789
        %v2791 = vpop.f32.mrb[0].mxu0
        %v2792 = vadd.f32 0.0, %v2791
        %2793 = vmatprep.mubr.f32.mxu0 0.0
        %2794 = vmatmul.mubr.f32.gmra.mrb[0].mxu0 %v2553
        %v2795 = vpop.f32.mrb[0].mxu0
        %v2796 = vadd.f32 0.0, %v2795
        %v2797 = vpop.f32.mrb[0].mxu0
        %v2798 = vadd.f32 0.0, %v2797
        %2799 = vmatprep.mubr.f32.mxu0 0.0
        %2800 = vmatmul.mubr.f32.gmra.mrb[0].mxu0 %v2556
        %v2801 = vpop.f32.mrb[0].mxu0
        %v2802 = vadd.f32 0.0, %v2801
        %v2803 = vpop.f32.mrb[0].mxu0
        %v2804 = vadd.f32 0.0, %v2803
        %2805 = vmatprep.mubr.f32.mxu0 0.0
        %2806 = vmatmul.mubr.f32.gmra.mrb[0].mxu0 %v2559
        %v2807 = vpop.f32.mrb[0].mxu0
        %v2808 = vadd.f32 0.0, %v2807
        %v2809 = vpop.f32.mrb[0].mxu0
        %v2810 = vadd.f32 0.0, %v2809
        %2811 = vmatprep.mubr.f32.mxu0 0.0
        %2812 = vmatmul.mubr.f32.gmra.mrb[0].mxu0 %v2562
        %v2813 = vpop.f32.mrb[0].mxu0
        %v2814 = vadd.f32 0.0, %v2813
        %v2815 = vpop.f32.mrb[0].mxu0
        %v2816 = vadd.f32 0.0, %v2815
        %2817 = vmatprep.mubr.f32.mxu0 0.0
        %2818 = vmatmul.mubr.f32.gmra.mrb[0].mxu0 %v2565
        %v2819 = vpop.f32.mrb[0].mxu0
        %v2820 = vadd.f32 0.0, %v2819
        %v2821 = vpop.f32.mrb[0].mxu0
        %v2822 = vadd.f32 0.0, %v2821
        %2823 = vmatprep.mubr.f32.mxu0 0.0
        %2824 = vmatmul.mubr.f32.gmra.mrb[0].mxu0 %v2568
        %v2825 = vpop.f32.mrb[0].mxu0
        %v2826 = vadd.f32 0.0, %v2825
        %v2827 = vpop.f32.mrb[0].mxu0
        %v2828 = vadd.f32 0.0, %v2827
        %2829 = vmatprep.mubr.f32.mxu0 0.0
        %2830 = vmatmul.mubr.f32.gmra.mrb[0].mxu0 %v2571
        %v2831 = vpop.f32.mrb[0].mxu0
        %v2832 = vadd.f32 0.0, %v2831
        %v2833 = vpop.f32.mrb[0].mxu0
        %v2834 = vadd.f32 0.0, %v2833
        %2835 = vdwg.mxu0
        %v2836 = vmax.f32 %v2646, %v2648
        %2837 = vmax.xlane.f32.xlu0 %v2836
        %v2838 = vpop.xlane.xlu0 %2837
        %v2839 = vmax.f32 %v2652, %v2654
        %2840 = vmax.xlane.f32.xlu0 %v2839
        %v2841 = vpop.xlane.xlu0 %2840
        %v2842 = vmax.f32 %v2658, %v2660
        %2843 = vmax.xlane.f32.xlu0 %v2842
        %v2844 = vpop.xlane.xlu0 %2843
        %v2845 = vmax.f32 %v2664, %v2666
        %2846 = vmax.xlane.f32.xlu0 %v2845
        %v2847 = vpop.xlane.xlu0 %2846
        %v2848 = vmax.f32 %v2670, %v2672
        %2849 = vmax.xlane.f32.xlu0 %v2848
        %v2850 = vpop.xlane.xlu0 %2849
        %v2851 = vmax.f32 %v2676, %v2678
        %2852 = vmax.xlane.f32.xlu0 %v2851
        %v2853 = vpop.xlane.xlu0 %2852
        %v2854 = vmax.f32 %v2682, %v2684
        %2855 = vmax.xlane.f32.xlu0 %v2854
        %v2856 = vpop.xlane.xlu0 %2855
        %v2857 = vmax.f32 %v2688, %v2690
        %2858 = vmax.xlane.f32.xlu0 %v2857
        %v2859 = vpop.xlane.xlu0 %2858
        %v2860 = vmax.f32 %v2694, %v2696
        %2861 = vmax.xlane.f32.xlu0 %v2860
        %v2862 = vpop.xlane.xlu0 %2861
        %v2863 = vmax.f32 %v2700, %v2702
        %2864 = vmax.xlane.f32.xlu0 %v2863
        %v2865 = vpop.xlane.xlu0 %2864
        %v2866 = vmax.f32 %v2706, %v2708
        %2867 = vmax.xlane.f32.xlu0 %v2866
        %v2868 = vpop.xlane.xlu0 %2867
        %v2869 = vmax.f32 %v2712, %v2714
        %2870 = vmax.xlane.f32.xlu0 %v2869
        %v2871 = vpop.xlane.xlu0 %2870
        %v2872 = vmax.f32 %v2718, %v2720
        %2873 = vmax.xlane.f32.xlu0 %v2872
        %v2874 = vpop.xlane.xlu0 %2873
        %v2875 = vmax.f32 %v2724, %v2726
        %2876 = vmax.xlane.f32.xlu0 %v2875
        %v2877 = vpop.xlane.xlu0 %2876
        %v2878 = vmax.f32 %v2730, %v2732
        %2879 = vmax.xlane.f32.xlu0 %v2878
        %v2880 = vpop.xlane.xlu0 %2879
        %v2881 = vmax.f32 %v2736, %v2738
        %2882 = vmax.xlane.f32.xlu0 %v2881
        %v2883 = vpop.xlane.xlu0 %2882
        %v2884 = vmax.f32 %v2742, %v2744
        %2885 = vmax.xlane.f32.xlu0 %v2884
        %v2886 = vpop.xlane.xlu0 %2885
        %v2887 = vmax.f32 %v2748, %v2750
        %2888 = vmax.xlane.f32.xlu0 %v2887
        %v2889 = vpop.xlane.xlu0 %2888
        %v2890 = vmax.f32 %v2754, %v2756
        %2891 = vmax.xlane.f32.xlu0 %v2890
        %v2892 = vpop.xlane.xlu0 %2891
        %v2893 = vmax.f32 %v2760, %v2762
        %2894 = vmax.xlane.f32.xlu0 %v2893
        %v2895 = vpop.xlane.xlu0 %2894
        %v2896 = vmax.f32 %v2766, %v2768
        %2897 = vmax.xlane.f32.xlu0 %v2896
        %v2898 = vpop.xlane.xlu0 %2897
        %v2899 = vmax.f32 %v2772, %v2774
        %2900 = vmax.xlane.f32.xlu0 %v2899
        %v2901 = vpop.xlane.xlu0 %2900
        %v2902 = vmax.f32 %v2778, %v2780
        %2903 = vmax.xlane.f32.xlu0 %v2902
        %v2904 = vpop.xlane.xlu0 %2903
        %v2905 = vmax.f32 %v2784, %v2786
        %2906 = vmax.xlane.f32.xlu0 %v2905
        %v2907 = vpop.xlane.xlu0 %2906
        %v2908 = vmax.f32 %v2790, %v2792
        %2909 = vmax.xlane.f32.xlu0 %v2908
        %v2910 = vpop.xlane.xlu0 %2909
        %v2911 = vmax.f32 %v2796, %v2798
        %2912 = vmax.xlane.f32.xlu0 %v2911
        %v2913 = vpop.xlane.xlu0 %2912
        %v2914 = vmax.f32 %v2802, %v2804
        %2915 = vmax.xlane.f32.xlu0 %v2914
        %v2916 = vpop.xlane.xlu0 %2915
        %v2917 = vmax.f32 %v2808, %v2810
        %2918 = vmax.xlane.f32.xlu0 %v2917
        %v2919 = vpop.xlane.xlu0 %2918
        %v2920 = vmax.f32 %v2814, %v2816
        %2921 = vmax.xlane.f32.xlu0 %v2920
        %v2922 = vpop.xlane.xlu0 %2921
        %v2923 = vmax.f32 %v2820, %v2822
        %2924 = vmax.xlane.f32.xlu0 %v2923
        %v2925 = vpop.xlane.xlu0 %2924
        %v2926 = vmax.f32 %v2826, %v2828
        %2927 = vmax.xlane.f32.xlu0 %v2926
        %v2928 = vpop.xlane.xlu0 %2927
        %v2929 = vmax.f32 %v2832, %v2834
        %2930 = vmax.xlane.f32.xlu0 %v2929
        %v2931 = vpop.xlane.xlu0 %2930
        %v2932 = vsub.f32 %v2646, %v2838
        %v2933 = vsub.f32 %v2648, %v2838
        %v2934 = vsub.f32 %v2652, %v2841
        %v2935 = vsub.f32 %v2654, %v2841
        %v2936 = vsub.f32 %v2658, %v2844
        %v2937 = vsub.f32 %v2660, %v2844
        %v2938 = vsub.f32 %v2664, %v2847
        %v2939 = vsub.f32 %v2666, %v2847
        %v2940 = vsub.f32 %v2670, %v2850
        %v2941 = vsub.f32 %v2672, %v2850
        %v2942 = vsub.f32 %v2676, %v2853
        %v2943 = vsub.f32 %v2678, %v2853
        %v2944 = vsub.f32 %v2682, %v2856
        %v2945 = vsub.f32 %v2684, %v2856
        %v2946 = vsub.f32 %v2688, %v2859
        %v2947 = vsub.f32 %v2690, %v2859
        %v2948 = vsub.f32 %v2694, %v2862
        %v2949 = vsub.f32 %v2696, %v2862
        %v2950 = vsub.f32 %v2700, %v2865
        %v2951 = vsub.f32 %v2702, %v2865
        %v2952 = vsub.f32 %v2706, %v2868
        %v2953 = vsub.f32 %v2708, %v2868
        %v2954 = vsub.f32 %v2712, %v2871
        %v2955 = vsub.f32 %v2714, %v2871
        %v2956 = vsub.f32 %v2718, %v2874
        %v2957 = vsub.f32 %v2720, %v2874
        %v2958 = vsub.f32 %v2724, %v2877
        %v2959 = vsub.f32 %v2726, %v2877
        %v2960 = vsub.f32 %v2730, %v2880
        %v2961 = vsub.f32 %v2732, %v2880
        %v2962 = vsub.f32 %v2736, %v2883
        %v2963 = vsub.f32 %v2738, %v2883
        %v2964 = vsub.f32 %v2742, %v2886
        %v2965 = vsub.f32 %v2744, %v2886
        %v2966 = vsub.f32 %v2748, %v2889
        %v2967 = vsub.f32 %v2750, %v2889
        %v2968 = vsub.f32 %v2754, %v2892
        %v2969 = vsub.f32 %v2756, %v2892
        %v2970 = vsub.f32 %v2760, %v2895
        %v2971 = vsub.f32 %v2762, %v2895
        %v2972 = vsub.f32 %v2766, %v2898
        %v2973 = vsub.f32 %v2768, %v2898
        %v2974 = vsub.f32 %v2772, %v2901
        %v2975 = vsub.f32 %v2774, %v2901
        %v2976 = vsub.f32 %v2778, %v2904
        %v2977 = vsub.f32 %v2780, %v2904
        %v2978 = vsub.f32 %v2784, %v2907
        %v2979 = vsub.f32 %v2786, %v2907
        %v2980 = vsub.f32 %v2790, %v2910
        %v2981 = vsub.f32 %v2792, %v2910
        %v2982 = vsub.f32 %v2796, %v2913
        %v2983 = vsub.f32 %v2798, %v2913
        %v2984 = vsub.f32 %v2802, %v2916
        %v2985 = vsub.f32 %v2804, %v2916
        %v2986 = vsub.f32 %v2808, %v2919
        %v2987 = vsub.f32 %v2810, %v2919
        %v2988 = vsub.f32 %v2814, %v2922
        %v2989 = vsub.f32 %v2816, %v2922
        %v2990 = vsub.f32 %v2820, %v2925
        %v2991 = vsub.f32 %v2822, %v2925
        %v2992 = vsub.f32 %v2826, %v2928
        %v2993 = vsub.f32 %v2828, %v2928
        %v2994 = vsub.f32 %v2832, %v2931
        %v2995 = vsub.f32 %v2834, %v2931
        %v2996 = vmul.f32 %v2932, 1.442695
        %v2997 = vpow.pop %v2996
        %v2998 = vmul.f32 %v2933, 1.442695
        %v2999 = vpow.pop %v2998
        %v3000 = vmul.f32 %v2934, 1.442695
        %v3001 = vpow.pop %v3000
        %v3002 = vmul.f32 %v2935, 1.442695
        %v3003 = vpow.pop %v3002
        %v3004 = vmul.f32 %v2936, 1.442695
        %v3005 = vpow.pop %v3004
        %v3006 = vmul.f32 %v2937, 1.442695
        %v3007 = vpow.pop %v3006
        %v3008 = vmul.f32 %v2938, 1.442695
        %v3009 = vpow.pop %v3008
        %v3010 = vmul.f32 %v2939, 1.442695
        %v3011 = vpow.pop %v3010
        %v3012 = vmul.f32 %v2940, 1.442695
        %v3013 = vpow.pop %v3012
        %v3014 = vmul.f32 %v2941, 1.442695
        %v3015 = vpow.pop %v3014
        %v3016 = vmul.f32 %v2942, 1.442695
        %v3017 = vpow.pop %v3016
        %v3018 = vmul.f32 %v2943, 1.442695
        %v3019 = vpow.pop %v3018
        %v3020 = vmul.f32 %v2944, 1.442695
        %v3021 = vpow.pop %v3020
        %v3022 = vmul.f32 %v2945, 1.442695
        %v3023 = vpow.pop %v3022
        %v3024 = vmul.f32 %v2946, 1.442695
        %v3025 = vpow.pop %v3024
        %v3026 = vmul.f32 %v2947, 1.442695
        %v3027 = vpow.pop %v3026
        %v3028 = vmul.f32 %v2948, 1.442695
        %v3029 = vpow.pop %v3028
        %v3030 = vmul.f32 %v2949, 1.442695
        %v3031 = vpow.pop %v3030
        %v3032 = vmul.f32 %v2950, 1.442695
        %v3033 = vpow.pop %v3032
        %v3034 = vmul.f32 %v2951, 1.442695
        %v3035 = vpow.pop %v3034
        %v3036 = vmul.f32 %v2952, 1.442695
        %v3037 = vpow.pop %v3036
        %v3038 = vmul.f32 %v2953, 1.442695
        %v3039 = vpow.pop %v3038
        %v3040 = vmul.f32 %v2954, 1.442695
        %v3041 = vpow.pop %v3040
        %v3042 = vmul.f32 %v2955, 1.442695
        %v3043 = vpow.pop %v3042
        %v3044 = vmul.f32 %v2956, 1.442695
        %v3045 = vpow.pop %v3044
        %v3046 = vmul.f32 %v2957, 1.442695
        %v3047 = vpow.pop %v3046
        %v3048 = vmul.f32 %v2958, 1.442695
        %v3049 = vpow.pop %v3048
        %v3050 = vmul.f32 %v2959, 1.442695
        %v3051 = vpow.pop %v3050
        %v3052 = vmul.f32 %v2960, 1.442695
        %v3053 = vpow.pop %v3052
        %v3054 = vmul.f32 %v2961, 1.442695
        %v3055 = vpow.pop %v3054
        %v3056 = vmul.f32 %v2962, 1.442695
        %v3057 = vpow.pop %v3056
        %v3058 = vmul.f32 %v2963, 1.442695
        %v3059 = vpow.pop %v3058
        %v3060 = vmul.f32 %v2964, 1.442695
        %v3061 = vpow.pop %v3060
        %v3062 = vmul.f32 %v2965, 1.442695
        %v3063 = vpow.pop %v3062
        %v3064 = vmul.f32 %v2966, 1.442695
        %v3065 = vpow.pop %v3064
        %v3066 = vmul.f32 %v2967, 1.442695
        %v3067 = vpow.pop %v3066
        %v3068 = vmul.f32 %v2968, 1.442695
        %v3069 = vpow.pop %v3068
        %v3070 = vmul.f32 %v2969, 1.442695
        %v3071 = vpow.pop %v3070
        %v3072 = vmul.f32 %v2970, 1.442695
        %v3073 = vpow.pop %v3072
        %v3074 = vmul.f32 %v2971, 1.442695
        %v3075 = vpow.pop %v3074
        %v3076 = vmul.f32 %v2972, 1.442695
        %v3077 = vpow.pop %v3076
        %v3078 = vmul.f32 %v2973, 1.442695
        %v3079 = vpow.pop %v3078
        %v3080 = vmul.f32 %v2974, 1.442695
        %v3081 = vpow.pop %v3080
        %v3082 = vmul.f32 %v2975, 1.442695
        %v3083 = vpow.pop %v3082
        %v3084 = vmul.f32 %v2976, 1.442695
        %v3085 = vpow.pop %v3084
        %v3086 = vmul.f32 %v2977, 1.442695
        %v3087 = vpow.pop %v3086
        %v3088 = vmul.f32 %v2978, 1.442695
        %v3089 = vpow.pop %v3088
        %v3090 = vmul.f32 %v2979, 1.442695
        %v3091 = vpow.pop %v3090
        %v3092 = vmul.f32 %v2980, 1.442695
        %v3093 = vpow.pop %v3092
        %v3094 = vmul.f32 %v2981, 1.442695
        %v3095 = vpow.pop %v3094
        %v3096 = vmul.f32 %v2982, 1.442695
        %v3097 = vpow.pop %v3096
        %v3098 = vmul.f32 %v2983, 1.442695
        %v3099 = vpow.pop %v3098
        %v3100 = vmul.f32 %v2984, 1.442695
        %v3101 = vpow.pop %v3100
        %v3102 = vmul.f32 %v2985, 1.442695
        %v3103 = vpow.pop %v3102
        %v3104 = vmul.f32 %v2986, 1.442695
        %v3105 = vpow.pop %v3104
        %v3106 = vmul.f32 %v2987, 1.442695
        %v3107 = vpow.pop %v3106
        %v3108 = vmul.f32 %v2988, 1.442695
        %v3109 = vpow.pop %v3108
        %v3110 = vmul.f32 %v2989, 1.442695
        %v3111 = vpow.pop %v3110
        %v3112 = vmul.f32 %v2990, 1.442695
        %v3113 = vpow.pop %v3112
        %v3114 = vmul.f32 %v2991, 1.442695
        %v3115 = vpow.pop %v3114
        %v3116 = vmul.f32 %v2992, 1.442695
        %v3117 = vpow.pop %v3116
        %v3118 = vmul.f32 %v2993, 1.442695
        %v3119 = vpow.pop %v3118
        %v3120 = vmul.f32 %v2994, 1.442695
        %v3121 = vpow.pop %v3120
        %v3122 = vmul.f32 %v2995, 1.442695
        %v3123 = vpow.pop %v3122
        %v3124 = vadd.f32 %v2997, %v2999
        %3125 = vadd.xlane.f32.xlu0 %v3124
        %v3126 = vpop.xlane.xlu0 %3125
        %v3127 = vadd.f32 %v3001, %v3003
        %3128 = vadd.xlane.f32.xlu0 %v3127
        %v3129 = vpop.xlane.xlu0 %3128
        %v3130 = vadd.f32 %v3005, %v3007
        %3131 = vadd.xlane.f32.xlu0 %v3130
        %v3132 = vpop.xlane.xlu0 %3131
        %v3133 = vadd.f32 %v3009, %v3011
        %3134 = vadd.xlane.f32.xlu0 %v3133
        %v3135 = vpop.xlane.xlu0 %3134
        %v3136 = vadd.f32 %v3013, %v3015
        %3137 = vadd.xlane.f32.xlu0 %v3136
        %v3138 = vpop.xlane.xlu0 %3137
        %v3139 = vadd.f32 %v3017, %v3019
        %3140 = vadd.xlane.f32.xlu0 %v3139
        %v3141 = vpop.xlane.xlu0 %3140
        %v3142 = vadd.f32 %v3021, %v3023
        %3143 = vadd.xlane.f32.xlu0 %v3142
        %v3144 = vpop.xlane.xlu0 %3143
        %v3145 = vadd.f32 %v3025, %v3027
        %3146 = vadd.xlane.f32.xlu0 %v3145
        %v3147 = vpop.xlane.xlu0 %3146
        %v3148 = vadd.f32 %v3029, %v3031
        %3149 = vadd.xlane.f32.xlu0 %v3148
        %v3150 = vpop.xlane.xlu0 %3149
        %v3151 = vadd.f32 %v3033, %v3035
        %3152 = vadd.xlane.f32.xlu0 %v3151
        %v3153 = vpop.xlane.xlu0 %3152
        %v3154 = vadd.f32 %v3037, %v3039
        %3155 = vadd.xlane.f32.xlu0 %v3154
        %v3156 = vpop.xlane.xlu0 %3155
        %v3157 = vadd.f32 %v3041, %v3043
        %3158 = vadd.xlane.f32.xlu0 %v3157
        %v3159 = vpop.xlane.xlu0 %3158
        %v3160 = vadd.f32 %v3045, %v3047
        %3161 = vadd.xlane.f32.xlu0 %v3160
        %v3162 = vpop.xlane.xlu0 %3161
        %v3163 = vadd.f32 %v3049, %v3051
        %3164 = vadd.xlane.f32.xlu0 %v3163
        %v3165 = vpop.xlane.xlu0 %3164
        %v3166 = vadd.f32 %v3053, %v3055
        %3167 = vadd.xlane.f32.xlu0 %v3166
        %v3168 = vpop.xlane.xlu0 %3167
        %v3169 = vadd.f32 %v3057, %v3059
        %3170 = vadd.xlane.f32.xlu0 %v3169
        %v3171 = vpop.xlane.xlu0 %3170
        %v3172 = vadd.f32 %v3061, %v3063
        %3173 = vadd.xlane.f32.xlu0 %v3172
        %v3174 = vpop.xlane.xlu0 %3173
        %v3175 = vadd.f32 %v3065, %v3067
        %3176 = vadd.xlane.f32.xlu0 %v3175
        %v3177 = vpop.xlane.xlu0 %3176
        %v3178 = vadd.f32 %v3069, %v3071
        %3179 = vadd.xlane.f32.xlu0 %v3178
        %v3180 = vpop.xlane.xlu0 %3179
        %v3181 = vadd.f32 %v3073, %v3075
        %3182 = vadd.xlane.f32.xlu0 %v3181
        %v3183 = vpop.xlane.xlu0 %3182
        %v3184 = vadd.f32 %v3077, %v3079
        %3185 = vadd.xlane.f32.xlu0 %v3184
        %v3186 = vpop.xlane.xlu0 %3185
        %v3187 = vadd.f32 %v3081, %v3083
        %3188 = vadd.xlane.f32.xlu0 %v3187
        %v3189 = vpop.xlane.xlu0 %3188
        %v3190 = vadd.f32 %v3085, %v3087
        %3191 = vadd.xlane.f32.xlu0 %v3190
        %v3192 = vpop.xlane.xlu0 %3191
        %v3193 = vadd.f32 %v3089, %v3091
        %3194 = vadd.xlane.f32.xlu0 %v3193
        %v3195 = vpop.xlane.xlu0 %3194
        %v3196 = vadd.f32 %v3093, %v3095
        %3197 = vadd.xlane.f32.xlu0 %v3196
        %v3198 = vpop.xlane.xlu0 %3197
        %v3199 = vadd.f32 %v3097, %v3099
        %3200 = vadd.xlane.f32.xlu0 %v3199
        %v3201 = vpop.xlane.xlu0 %3200
        %v3202 = vadd.f32 %v3101, %v3103
        %3203 = vadd.xlane.f32.xlu0 %v3202
        %v3204 = vpop.xlane.xlu0 %3203
        %v3205 = vadd.f32 %v3105, %v3107
        %3206 = vadd.xlane.f32.xlu0 %v3205
        %v3207 = vpop.xlane.xlu0 %3206
        %v3208 = vadd.f32 %v3109, %v3111
        %3209 = vadd.xlane.f32.xlu0 %v3208
        %v3210 = vpop.xlane.xlu0 %3209
        %v3211 = vadd.f32 %v3113, %v3115
        %3212 = vadd.xlane.f32.xlu0 %v3211
        %v3213 = vpop.xlane.xlu0 %3212
        %v3214 = vadd.f32 %v3117, %v3119
        %3215 = vadd.xlane.f32.xlu0 %v3214
        %v3216 = vpop.xlane.xlu0 %3215
        %v3217 = vadd.f32 %v3121, %v3123
        %3218 = vadd.xlane.f32.xlu0 %v3217
        %v3219 = vpop.xlane.xlu0 %3218
        %v3220 = vrcp.pop %v3126
        %v3221 = vrcp.pop %v3129
        %v3222 = vrcp.pop %v3132
        %v3223 = vrcp.pop %v3135
        %v3224 = vrcp.pop %v3138
        %v3225 = vrcp.pop %v3141
        %v3226 = vrcp.pop %v3144
        %v3227 = vrcp.pop %v3147
        %v3228 = vrcp.pop %v3150
        %v3229 = vrcp.pop %v3153
        %v3230 = vrcp.pop %v3156
        %v3231 = vrcp.pop %v3159
        %v3232 = vrcp.pop %v3162
        %v3233 = vrcp.pop %v3165
        %v3234 = vrcp.pop %v3168
        %v3235 = vrcp.pop %v3171
        %v3236 = vrcp.pop %v3174
        %v3237 = vrcp.pop %v3177
        %v3238 = vrcp.pop %v3180
        %v3239 = vrcp.pop %v3183
        %v3240 = vrcp.pop %v3186
        %v3241 = vrcp.pop %v3189
        %v3242 = vrcp.pop %v3192
        %v3243 = vrcp.pop %v3195
        %v3244 = vrcp.pop %v3198
        %v3245 = vrcp.pop %v3201
        %v3246 = vrcp.pop %v3204
        %v3247 = vrcp.pop %v3207
        %v3248 = vrcp.pop %v3210
        %v3249 = vrcp.pop %v3213
        %v3250 = vrcp.pop %v3216
        %v3251 = vrcp.pop %v3219
        %v3252 = vmul.f32 %v2997, %v3220
        %v3253 = vmul.f32 %v2999, %v3220
        %v3254 = vmul.f32 %v3001, %v3221
        %v3255 = vmul.f32 %v3003, %v3221
        %v3256 = vmul.f32 %v3005, %v3222
        %v3257 = vmul.f32 %v3007, %v3222
        %v3258 = vmul.f32 %v3009, %v3223
        %v3259 = vmul.f32 %v3011, %v3223
        %v3260 = vmul.f32 %v3013, %v3224
        %v3261 = vmul.f32 %v3015, %v3224
        %v3262 = vmul.f32 %v3017, %v3225
        %v3263 = vmul.f32 %v3019, %v3225
        %v3264 = vmul.f32 %v3021, %v3226
        %v3265 = vmul.f32 %v3023, %v3226
        %v3266 = vmul.f32 %v3025, %v3227
        %v3267 = vmul.f32 %v3027, %v3227
        %v3268 = vmul.f32 %v3029, %v3228
        %v3269 = vmul.f32 %v3031, %v3228
        %v3270 = vmul.f32 %v3033, %v3229
        %v3271 = vmul.f32 %v3035, %v3229
        %v3272 = vmul.f32 %v3037, %v3230
        %v3273 = vmul.f32 %v3039, %v3230
        %v3274 = vmul.f32 %v3041, %v3231
        %v3275 = vmul.f32 %v3043, %v3231
        %v3276 = vmul.f32 %v3045, %v3232
        %v3277 = vmul.f32 %v3047, %v3232
        %v3278 = vmul.f32 %v3049, %v3233
        %v3279 = vmul.f32 %v3051, %v3233
        %v3280 = vmul.f32 %v3053, %v3234
        %v3281 = vmul.f32 %v3055, %v3234
        %v3282 = vmul.f32 %v3057, %v3235
        %v3283 = vmul.f32 %v3059, %v3235
        %v3284 = vmul.f32 %v3061, %v3236
        %v3285 = vmul.f32 %v3063, %v3236
        %v3286 = vmul.f32 %v3065, %v3237
        %v3287 = vmul.f32 %v3067, %v3237
        %v3288 = vmul.f32 %v3069, %v3238
        %v3289 = vmul.f32 %v3071, %v3238
        %v3290 = vmul.f32 %v3073, %v3239
        %v3291 = vmul.f32 %v3075, %v3239
        %v3292 = vmul.f32 %v3077, %v3240
        %v3293 = vmul.f32 %v3079, %v3240
        %v3294 = vmul.f32 %v3081, %v3241
        %v3295 = vmul.f32 %v3083, %v3241
        %v3296 = vmul.f32 %v3085, %v3242
        %v3297 = vmul.f32 %v3087, %v3242
        %v3298 = vmul.f32 %v3089, %v3243
        %v3299 = vmul.f32 %v3091, %v3243
        %v3300 = vmul.f32 %v3093, %v3244
        %v3301 = vmul.f32 %v3095, %v3244
        %v3302 = vmul.f32 %v3097, %v3245
        %v3303 = vmul.f32 %v3099, %v3245
        %v3304 = vmul.f32 %v3101, %v3246
        %v3305 = vmul.f32 %v3103, %v3246
        %v3306 = vmul.f32 %v3105, %v3247
        %v3307 = vmul.f32 %v3107, %v3247
        %v3308 = vmul.f32 %v3109, %v3248
        %v3309 = vmul.f32 %v3111, %v3248
        %v3310 = vmul.f32 %v3113, %v3249
        %v3311 = vmul.f32 %v3115, %v3249
        %v3312 = vmul.f32 %v3117, %v3250
        %v3313 = vmul.f32 %v3119, %v3250
        %v3314 = vmul.f32 %v3121, %v3251
        %v3315 = vmul.f32 %v3123, %v3251
        %3316 = vmatprep.subr.mxu0 %v3253
        %3317 = vmatpush1.xpose.msra.mxu0 %v3252
        %3318 = vmatprep.subr.mxu0 %v3255
        %3319 = vmatpush1.xpose.msra.mxu0 %v3254
        %3320 = vmatprep.subr.mxu0 %v3257
        %3321 = vmatpush1.xpose.msra.mxu0 %v3256
        %3322 = vmatprep.subr.mxu0 %v3259
        %3323 = vmatpush1.xpose.msra.mxu0 %v3258
        %3324 = vmatprep.subr.mxu0 %v3261
        %3325 = vmatpush1.xpose.msra.mxu0 %v3260
        %3326 = vmatprep.subr.mxu0 %v3263
        %3327 = vmatpush1.xpose.msra.mxu0 %v3262
        %3328 = vmatprep.subr.mxu0 %v3265
        %3329 = vmatpush1.xpose.msra.mxu0 %v3264
        %3330 = vmatprep.subr.mxu0 %v3267
        %3331 = vmatpush1.xpose.msra.mxu0 %v3266
        %3332 = vmatprep.subr.mxu0 %v3269
        %3333 = vmatpush1.xpose.msra.mxu0 %v3268
        %3334 = vmatprep.subr.mxu0 %v3271
        %3335 = vmatpush1.xpose.msra.mxu0 %v3270
        %3336 = vmatprep.subr.mxu0 %v3273
        %3337 = vmatpush1.xpose.msra.mxu0 %v3272
        %3338 = vmatprep.subr.mxu0 %v3275
        %3339 = vmatpush1.xpose.msra.mxu0 %v3274
        %3340 = vmatprep.subr.mxu0 %v3277
        %3341 = vmatpush1.xpose.msra.mxu0 %v3276
        %3342 = vmatprep.subr.mxu0 %v3279
        %3343 = vmatpush1.xpose.msra.mxu0 %v3278
        %3344 = vmatprep.subr.mxu0 %v3281
        %3345 = vmatpush1.xpose.msra.mxu0 %v3280
        %3346 = vmatprep.subr.mxu0 %v3283
        %3347 = vmatpush1.xpose.msra.mxu0 %v3282
        %3348 = vmatprep.subr.mxu0 %v3285
        %3349 = vmatpush1.xpose.msra.mxu0 %v3284
        %3350 = vmatprep.subr.mxu0 %v3287
        %3351 = vmatpush1.xpose.msra.mxu0 %v3286
        %3352 = vmatprep.subr.mxu0 %v3289
        %3353 = vmatpush1.xpose.msra.mxu0 %v3288
        %3354 = vmatprep.subr.mxu0 %v3291
        %3355 = vmatpush1.xpose.msra.mxu0 %v3290
        %3356 = vmatprep.subr.mxu0 %v3293
        %3357 = vmatpush1.xpose.msra.mxu0 %v3292
        %3358 = vmatprep.subr.mxu0 %v3295
        %3359 = vmatpush1.xpose.msra.mxu0 %v3294
        %3360 = vmatprep.subr.mxu0 %v3297
        %3361 = vmatpush1.xpose.msra.mxu0 %v3296
        %3362 = vmatprep.subr.mxu0 %v3299
        %3363 = vmatpush1.xpose.msra.mxu0 %v3298
        %3364 = vmatprep.subr.mxu0 %v3301
        %3365 = vmatpush1.xpose.msra.mxu0 %v3300
        %3366 = vmatprep.subr.mxu0 %v3303
        %3367 = vmatpush1.xpose.msra.mxu0 %v3302
        %3368 = vmatprep.subr.mxu0 %v3305
        %3369 = vmatpush1.xpose.msra.mxu0 %v3304
        %3370 = vmatprep.subr.mxu0 %v3307
        %3371 = vmatpush1.xpose.msra.mxu0 %v3306
        %3372 = vmatprep.subr.mxu0 %v3309
        %3373 = vmatpush1.xpose.msra.mxu0 %v3308
        %3374 = vmatprep.subr.mxu0 %v3311
        %3375 = vmatpush1.xpose.msra.mxu0 %v3310
        %3376 = vmatprep.subr.mxu0 %v3313
        %3377 = vmatpush1.xpose.msra.mxu0 %v3312
        %3378 = vmatprep.subr.mxu0 %v3315
        %3379 = vmatpush1.xpose.msra.mxu0 %v3314
        %3380 = vmatprep.mubr.f32.mxu0 %v421
        %3381 = vmatmul.mubr.f32.gmra.mrb[0].mxu0 %v419
        %v3382 = vpop.f32.mrb[0].mxu0
        %v3383 = vadd.f32 0.0, %v3382
        %v3384 = vpop.f32.mrb[0].mxu0
        %v3385 = vadd.f32 0.0, %v3384
        %3386 = vdwg.mxu0
        %3387 = vst [vmem:[%s163 + $0x10] sm:$0xf] %v3383
        %3388 = vst [vmem:[%s163 + $0x18] sm:$0xf] %v3385
        %v3391 = vrot.slane %v437, 4
        %v3392 = vrot.slane %v438, 4
        %3395 = vxpose.xlu0.b32.start [1/16] %v3391, 128
        %3396 = vxpose.xlu0.b32.cont [2/16] 0.0, 128
        %3397 = vxpose.xlu0.b32.cont [3/16] 0.0, 128
        %3398 = vxpose.xlu0.b32.cont [4/16] 0.0, 128
        %3399 = vxpose.xlu0.b32.cont [5/16] 0.0, 128
        %3400 = vxpose.xlu0.b32.cont [6/16] 0.0, 128
        %3401 = vxpose.xlu0.b32.cont [7/16] 0.0, 128
        %3402 = vxpose.xlu0.b32.cont [8/16] 0.0, 128
        %3403 = vxpose.xlu0.b32.cont [9/16] 0.0, 128
        %3404 = vxpose.xlu0.b32.cont [10/16] 0.0, 128
        %3405 = vxpose.xlu0.b32.cont [11/16] 0.0, 128
        %3406 = vxpose.xlu0.b32.cont [12/16] 0.0, 128
        %3407 = vxpose.xlu0.b32.cont [13/16] 0.0, 128
        %3408 = vxpose.xlu0.b32.cont [14/16] 0.0, 128
        %3409 = vxpose.xlu0.b32.cont [15/16] 0.0, 128
        %3410 = vxpose.xlu0.b32.end [16/16] 0.0, 128
        %v3411 = vpop.trf.xlu0
        %v3412 = vpop.trf.xlu0
        %v3413 = vpop.trf.xlu0
        %v3414 = vpop.trf.xlu0
        %v3415 = vpop.trf.xlu0
        %v3416 = vpop.trf.xlu0
        %v3417 = vpop.trf.xlu0
        %v3418 = vpop.trf.xlu0
        %v3419 = vpop.trf.xlu0
        %v3420 = vpop.trf.xlu0
        %v3421 = vpop.trf.xlu0
        %v3422 = vpop.trf.xlu0
        %v3423 = vpop.trf.xlu0
        %v3424 = vpop.trf.xlu0
        %v3425 = vpop.trf.xlu0
        %v3426 = vpop.trf.xlu0
        %3427 = vxpose.xlu0.b32.start [1/16] %v3392, 128
        %3428 = vxpose.xlu0.b32.cont [2/16] 0.0, 128
        %3429 = vxpose.xlu0.b32.cont [3/16] 0.0, 128
        %3430 = vxpose.xlu0.b32.cont [4/16] 0.0, 128
        %3431 = vxpose.xlu0.b32.cont [5/16] 0.0, 128
        %3432 = vxpose.xlu0.b32.cont [6/16] 0.0, 128
        %3433 = vxpose.xlu0.b32.cont [7/16] 0.0, 128
        %3434 = vxpose.xlu0.b32.cont [8/16] 0.0, 128
        %3435 = vxpose.xlu0.b32.cont [9/16] 0.0, 128
        %3436 = vxpose.xlu0.b32.cont [10/16] 0.0, 128
        %3437 = vxpose.xlu0.b32.cont [11/16] 0.0, 128
        %3438 = vxpose.xlu0.b32.cont [12/16] 0.0, 128
        %3439 = vxpose.xlu0.b32.cont [13/16] 0.0, 128
        %3440 = vxpose.xlu0.b32.cont [14/16] 0.0, 128
        %3441 = vxpose.xlu0.b32.cont [15/16] 0.0, 128
        %3442 = vxpose.xlu0.b32.end [16/16] 0.0, 128
        %v3443 = vpop.trf.xlu0
        %v3444 = vpop.trf.xlu0
        %v3445 = vpop.trf.xlu0
        %v3446 = vpop.trf.xlu0
        %v3447 = vpop.trf.xlu0
        %v3448 = vpop.trf.xlu0
        %v3449 = vpop.trf.xlu0
        %v3450 = vpop.trf.xlu0
        %v3451 = vpop.trf.xlu0
        %v3452 = vpop.trf.xlu0
        %v3453 = vpop.trf.xlu0
        %v3454 = vpop.trf.xlu0
        %v3455 = vpop.trf.xlu0
        %v3456 = vpop.trf.xlu0
        %v3457 = vpop.trf.xlu0
        %v3458 = vpop.trf.xlu0
        %v3459 = vrot.slane %v395, 4
        %v3460 = vrot.slane %v397, 4
        %v3462 = vsel %vm256, %v3411, 0
        %v3465 = vsel %vm256, %v3412, 0
        %v3468 = vsel %vm256, %v3413, 0
        %v3471 = vsel %vm256, %v3414, 0
        %v3474 = vsel %vm256, %v3415, 0
        %v3477 = vsel %vm256, %v3416, 0
        %v3480 = vsel %vm256, %v3417, 0
        %v3483 = vsel %vm256, %v3418, 0
        %v3486 = vsel %vm256, %v3419, 0
        %v3489 = vsel %vm256, %v3420, 0
        %v3492 = vsel %vm256, %v3421, 0
        %v3495 = vsel %vm256, %v3422, 0
        %v3498 = vsel %vm256, %v3423, 0
        %v3501 = vsel %vm256, %v3424, 0
        %v3504 = vsel %vm256, %v3425, 0
        %v3507 = vsel %vm256, %v3426, 0
        %v3510 = vsel %vm256, %v3443, 0
        %v3513 = vsel %vm256, %v3444, 0
        %v3516 = vsel %vm256, %v3445, 0
        %v3519 = vsel %vm256, %v3446, 0
        %v3522 = vsel %vm256, %v3447, 0
        %v3525 = vsel %vm256, %v3448, 0
        %v3528 = vsel %vm256, %v3449, 0
        %v3531 = vsel %vm256, %v3450, 0
        %v3534 = vsel %vm256, %v3451, 0
        %v3537 = vsel %vm256, %v3452, 0
        %v3540 = vsel %vm256, %v3453, 0
        %v3543 = vsel %vm256, %v3454, 0
        %v3546 = vsel %vm256, %v3455, 0
        %v3549 = vsel %vm256, %v3456, 0
        %v3552 = vsel %vm256, %v3457, 0
        %v3555 = vsel %vm256, %v3458, 0
        %v3557 = vsel %vm293, %v3459, 0
        %v3559 = vsel %vm293, %v3460, 0
        %3561 = vmatprep.subr.mxu0 %v3559
        %3562 = vmatpush1.msra.mxu0 %v3557
        %3563 = vmatprep.subr.mxu0 0.0
        %3564 = vmatpush1.msra.mxu0 0.0
        %3565 = vmatprep.subr.mxu0 0.0
        %3566 = vmatpush1.msra.mxu0 0.0
        %3567 = vmatprep.subr.mxu0 0.0
        %3568 = vmatpush1.msra.mxu0 0.0
        %3569 = vmatprep.subr.mxu0 0.0
        %3570 = vmatpush1.msra.mxu0 0.0
        %3571 = vmatprep.subr.mxu0 0.0
        %3572 = vmatpush1.msra.mxu0 0.0
        %3573 = vmatprep.subr.mxu0 0.0
        %3574 = vmatpush1.msra.mxu0 0.0
        %3575 = vmatprep.subr.mxu0 0.0
        %3576 = vmatpush1.msra.mxu0 0.0
        %3577 = vmatprep.subr.mxu0 0.0
        %3578 = vmatpush1.msra.mxu0 0.0
        %3579 = vmatprep.subr.mxu0 0.0
        %3580 = vmatpush1.msra.mxu0 0.0
        %3581 = vmatprep.subr.mxu0 0.0
        %3582 = vmatpush1.msra.mxu0 0.0
        %3583 = vmatprep.subr.mxu0 0.0
        %3584 = vmatpush1.msra.mxu0 0.0
        %3585 = vmatprep.subr.mxu0 0.0
        %3586 = vmatpush1.msra.mxu0 0.0
        %3587 = vmatprep.subr.mxu0 0.0
        %3588 = vmatpush1.msra.mxu0 0.0
        %3589 = vmatprep.subr.mxu0 0.0
        %3590 = vmatpush1.msra.mxu0 0.0
        %3591 = vmatprep.subr.mxu0 0.0
        %3592 = vmatpush1.msra.mxu0 0.0
        %3593 = vmatprep.subr.mxu0 0.0
        %3594 = vmatpush1.msra.mxu0 0.0
        %3595 = vmatprep.subr.mxu0 0.0
        %3596 = vmatpush1.msra.mxu0 0.0
        %3597 = vmatprep.subr.mxu0 0.0
        %3598 = vmatpush1.msra.mxu0 0.0
        %3599 = vmatprep.subr.mxu0 0.0
        %3600 = vmatpush1.msra.mxu0 0.0
        %3601 = vmatprep.subr.mxu0 0.0
        %3602 = vmatpush1.msra.mxu0 0.0
        %3603 = vmatprep.subr.mxu0 0.0
        %3604 = vmatpush1.msra.mxu0 0.0
        %3605 = vmatprep.subr.mxu0 0.0
        %3606 = vmatpush1.msra.mxu0 0.0
        %3607 = vmatprep.subr.mxu0 0.0
        %3608 = vmatpush1.msra.mxu0 0.0
        %3609 = vmatprep.subr.mxu0 0.0
        %3610 = vmatpush1.msra.mxu0 0.0
        %3611 = vmatprep.subr.mxu0 0.0
        %3612 = vmatpush1.msra.mxu0 0.0
        %3613 = vmatprep.subr.mxu0 0.0
        %3614 = vmatpush1.msra.mxu0 0.0
        %3615 = vmatprep.subr.mxu0 0.0
        %3616 = vmatpush1.msra.mxu0 0.0
        %3617 = vmatprep.subr.mxu0 0.0
        %3618 = vmatpush1.msra.mxu0 0.0
        %3619 = vmatprep.subr.mxu0 0.0
        %3620 = vmatpush1.msra.mxu0 0.0
        %3621 = vmatprep.subr.mxu0 0.0
        %3622 = vmatpush1.msra.mxu0 0.0
        %3623 = vmatprep.subr.mxu0 0.0
        %3624 = vmatpush1.msra.mxu0 0.0
        %3625 = vmatprep.mubr.f32.mxu0 0.0
        %3626 = vmatmul.mubr.f32.gmra.mrb[0].mxu0 %v3462
        %v3627 = vpop.f32.mrb[0].mxu0
        %v3628 = vadd.f32 0.0, %v3627
        %v3629 = vpop.f32.mrb[0].mxu0
        %v3630 = vadd.f32 0.0, %v3629
        %3631 = vmatprep.mubr.f32.mxu0 0.0
        %3632 = vmatmul.mubr.f32.gmra.mrb[0].mxu0 %v3465
        %v3633 = vpop.f32.mrb[0].mxu0
        %v3634 = vadd.f32 0.0, %v3633
        %v3635 = vpop.f32.mrb[0].mxu0
        %v3636 = vadd.f32 0.0, %v3635
        %3637 = vmatprep.mubr.f32.mxu0 0.0
        %3638 = vmatmul.mubr.f32.gmra.mrb[0].mxu0 %v3468
        %v3639 = vpop.f32.mrb[0].mxu0
        %v3640 = vadd.f32 0.0, %v3639
        %v3641 = vpop.f32.mrb[0].mxu0
        %v3642 = vadd.f32 0.0, %v3641
        %3643 = vmatprep.mubr.f32.mxu0 0.0
        %3644 = vmatmul.mubr.f32.gmra.mrb[0].mxu0 %v3471
        %v3645 = vpop.f32.mrb[0].mxu0
        %v3646 = vadd.f32 0.0, %v3645
        %v3647 = vpop.f32.mrb[0].mxu0
        %v3648 = vadd.f32 0.0, %v3647
        %3649 = vmatprep.mubr.f32.mxu0 0.0
        %3650 = vmatmul.mubr.f32.gmra.mrb[0].mxu0 %v3474
        %v3651 = vpop.f32.mrb[0].mxu0
        %v3652 = vadd.f32 0.0, %v3651
        %v3653 = vpop.f32.mrb[0].mxu0
        %v3654 = vadd.f32 0.0, %v3653
        %3655 = vmatprep.mubr.f32.mxu0 0.0
        %3656 = vmatmul.mubr.f32.gmra.mrb[0].mxu0 %v3477
        %v3657 = vpop.f32.mrb[0].mxu0
        %v3658 = vadd.f32 0.0, %v3657
        %v3659 = vpop.f32.mrb[0].mxu0
        %v3660 = vadd.f32 0.0, %v3659
        %3661 = vmatprep.mubr.f32.mxu0 0.0
        %3662 = vmatmul.mubr.f32.gmra.mrb[0].mxu0 %v3480
        %v3663 = vpop.f32.mrb[0].mxu0
        %v3664 = vadd.f32 0.0, %v3663
        %v3665 = vpop.f32.mrb[0].mxu0
        %v3666 = vadd.f32 0.0, %v3665
        %3667 = vmatprep.mubr.f32.mxu0 0.0
        %3668 = vmatmul.mubr.f32.gmra.mrb[0].mxu0 %v3483
        %v3669 = vpop.f32.mrb[0].mxu0
        %v3670 = vadd.f32 0.0, %v3669
        %v3671 = vpop.f32.mrb[0].mxu0
        %v3672 = vadd.f32 0.0, %v3671
        %3673 = vmatprep.mubr.f32.mxu0 0.0
        %3674 = vmatmul.mubr.f32.gmra.mrb[0].mxu0 %v3486
        %v3675 = vpop.f32.mrb[0].mxu0
        %v3676 = vadd.f32 0.0, %v3675
        %v3677 = vpop.f32.mrb[0].mxu0
        %v3678 = vadd.f32 0.0, %v3677
        %3679 = vmatprep.mubr.f32.mxu0 0.0
        %3680 = vmatmul.mubr.f32.gmra.mrb[0].mxu0 %v3489
        %v3681 = vpop.f32.mrb[0].mxu0
        %v3682 = vadd.f32 0.0, %v3681
        %v3683 = vpop.f32.mrb[0].mxu0
        %v3684 = vadd.f32 0.0, %v3683
        %3685 = vmatprep.mubr.f32.mxu0 0.0
        %3686 = vmatmul.mubr.f32.gmra.mrb[0].mxu0 %v3492
        %v3687 = vpop.f32.mrb[0].mxu0
        %v3688 = vadd.f32 0.0, %v3687
        %v3689 = vpop.f32.mrb[0].mxu0
        %v3690 = vadd.f32 0.0, %v3689
        %3691 = vmatprep.mubr.f32.mxu0 0.0
        %3692 = vmatmul.mubr.f32.gmra.mrb[0].mxu0 %v3495
        %v3693 = vpop.f32.mrb[0].mxu0
        %v3694 = vadd.f32 0.0, %v3693
        %v3695 = vpop.f32.mrb[0].mxu0
        %v3696 = vadd.f32 0.0, %v3695
        %3697 = vmatprep.mubr.f32.mxu0 0.0
        %3698 = vmatmul.mubr.f32.gmra.mrb[0].mxu0 %v3498
        %v3699 = vpop.f32.mrb[0].mxu0
        %v3700 = vadd.f32 0.0, %v3699
        %v3701 = vpop.f32.mrb[0].mxu0
        %v3702 = vadd.f32 0.0, %v3701
        %3703 = vmatprep.mubr.f32.mxu0 0.0
        %3704 = vmatmul.mubr.f32.gmra.mrb[0].mxu0 %v3501
        %v3705 = vpop.f32.mrb[0].mxu0
        %v3706 = vadd.f32 0.0, %v3705
        %v3707 = vpop.f32.mrb[0].mxu0
        %v3708 = vadd.f32 0.0, %v3707
        %3709 = vmatprep.mubr.f32.mxu0 0.0
        %3710 = vmatmul.mubr.f32.gmra.mrb[0].mxu0 %v3504
        %v3711 = vpop.f32.mrb[0].mxu0
        %v3712 = vadd.f32 0.0, %v3711
        %v3713 = vpop.f32.mrb[0].mxu0
        %v3714 = vadd.f32 0.0, %v3713
        %3715 = vmatprep.mubr.f32.mxu0 0.0
        %3716 = vmatmul.mubr.f32.gmra.mrb[0].mxu0 %v3507
        %v3717 = vpop.f32.mrb[0].mxu0
        %v3718 = vadd.f32 0.0, %v3717
        %v3719 = vpop.f32.mrb[0].mxu0
        %v3720 = vadd.f32 0.0, %v3719
        %3721 = vmatprep.mubr.f32.mxu0 0.0
        %3722 = vmatmul.mubr.f32.gmra.mrb[0].mxu0 %v3510
        %v3723 = vpop.f32.mrb[0].mxu0
        %v3724 = vadd.f32 0.0, %v3723
        %v3725 = vpop.f32.mrb[0].mxu0
        %v3726 = vadd.f32 0.0, %v3725
        %3727 = vmatprep.mubr.f32.mxu0 0.0
        %3728 = vmatmul.mubr.f32.gmra.mrb[0].mxu0 %v3513
        %v3729 = vpop.f32.mrb[0].mxu0
        %v3730 = vadd.f32 0.0, %v3729
        %v3731 = vpop.f32.mrb[0].mxu0
        %v3732 = vadd.f32 0.0, %v3731
        %3733 = vmatprep.mubr.f32.mxu0 0.0
        %3734 = vmatmul.mubr.f32.gmra.mrb[0].mxu0 %v3516
        %v3735 = vpop.f32.mrb[0].mxu0
        %v3736 = vadd.f32 0.0, %v3735
        %v3737 = vpop.f32.mrb[0].mxu0
        %v3738 = vadd.f32 0.0, %v3737
        %3739 = vmatprep.mubr.f32.mxu0 0.0
        %3740 = vmatmul.mubr.f32.gmra.mrb[0].mxu0 %v3519
        %v3741 = vpop.f32.mrb[0].mxu0
        %v3742 = vadd.f32 0.0, %v3741
        %v3743 = vpop.f32.mrb[0].mxu0
        %v3744 = vadd.f32 0.0, %v3743
        %3745 = vmatprep.mubr.f32.mxu0 0.0
        %3746 = vmatmul.mubr.f32.gmra.mrb[0].mxu0 %v3522
        %v3747 = vpop.f32.mrb[0].mxu0
        %v3748 = vadd.f32 0.0, %v3747
        %v3749 = vpop.f32.mrb[0].mxu0
        %v3750 = vadd.f32 0.0, %v3749
        %3751 = vmatprep.mubr.f32.mxu0 0.0
        %3752 = vmatmul.mubr.f32.gmra.mrb[0].mxu0 %v3525
        %v3753 = vpop.f32.mrb[0].mxu0
        %v3754 = vadd.f32 0.0, %v3753
        %v3755 = vpop.f32.mrb[0].mxu0
        %v3756 = vadd.f32 0.0, %v3755
        %3757 = vmatprep.mubr.f32.mxu0 0.0
        %3758 = vmatmul.mubr.f32.gmra.mrb[0].mxu0 %v3528
        %v3759 = vpop.f32.mrb[0].mxu0
        %v3760 = vadd.f32 0.0, %v3759
        %v3761 = vpop.f32.mrb[0].mxu0
        %v3762 = vadd.f32 0.0, %v3761
        %3763 = vmatprep.mubr.f32.mxu0 0.0
        %3764 = vmatmul.mubr.f32.gmra.mrb[0].mxu0 %v3531
        %v3765 = vpop.f32.mrb[0].mxu0
        %v3766 = vadd.f32 0.0, %v3765
        %v3767 = vpop.f32.mrb[0].mxu0
        %v3768 = vadd.f32 0.0, %v3767
        %3769 = vmatprep.mubr.f32.mxu0 0.0
        %3770 = vmatmul.mubr.f32.gmra.mrb[0].mxu0 %v3534
        %v3771 = vpop.f32.mrb[0].mxu0
        %v3772 = vadd.f32 0.0, %v3771
        %v3773 = vpop.f32.mrb[0].mxu0
        %v3774 = vadd.f32 0.0, %v3773
        %3775 = vmatprep.mubr.f32.mxu0 0.0
        %3776 = vmatmul.mubr.f32.gmra.mrb[0].mxu0 %v3537
        %v3777 = vpop.f32.mrb[0].mxu0
        %v3778 = vadd.f32 0.0, %v3777
        %v3779 = vpop.f32.mrb[0].mxu0
        %v3780 = vadd.f32 0.0, %v3779
        %3781 = vmatprep.mubr.f32.mxu0 0.0
        %3782 = vmatmul.mubr.f32.gmra.mrb[0].mxu0 %v3540
        %v3783 = vpop.f32.mrb[0].mxu0
        %v3784 = vadd.f32 0.0, %v3783
        %v3785 = vpop.f32.mrb[0].mxu0
        %v3786 = vadd.f32 0.0, %v3785
        %3787 = vmatprep.mubr.f32.mxu0 0.0
        %3788 = vmatmul.mubr.f32.gmra.mrb[0].mxu0 %v3543
        %v3789 = vpop.f32.mrb[0].mxu0
        %v3790 = vadd.f32 0.0, %v3789
        %v3791 = vpop.f32.mrb[0].mxu0
        %v3792 = vadd.f32 0.0, %v3791
        %3793 = vmatprep.mubr.f32.mxu0 0.0
        %3794 = vmatmul.mubr.f32.gmra.mrb[0].mxu0 %v3546
        %v3795 = vpop.f32.mrb[0].mxu0
        %v3796 = vadd.f32 0.0, %v3795
        %v3797 = vpop.f32.mrb[0].mxu0
        %v3798 = vadd.f32 0.0, %v3797
        %3799 = vmatprep.mubr.f32.mxu0 0.0
        %3800 = vmatmul.mubr.f32.gmra.mrb[0].mxu0 %v3549
        %v3801 = vpop.f32.mrb[0].mxu0
        %v3802 = vadd.f32 0.0, %v3801
        %v3803 = vpop.f32.mrb[0].mxu0
        %v3804 = vadd.f32 0.0, %v3803
        %3805 = vmatprep.mubr.f32.mxu0 0.0
        %3806 = vmatmul.mubr.f32.gmra.mrb[0].mxu0 %v3552
        %v3807 = vpop.f32.mrb[0].mxu0
        %v3808 = vadd.f32 0.0, %v3807
        %v3809 = vpop.f32.mrb[0].mxu0
        %v3810 = vadd.f32 0.0, %v3809
        %3811 = vmatprep.mubr.f32.mxu0 0.0
        %3812 = vmatmul.mubr.f32.gmra.mrb[0].mxu0 %v3555
        %v3813 = vpop.f32.mrb[0].mxu0
        %v3814 = vadd.f32 0.0, %v3813
        %v3815 = vpop.f32.mrb[0].mxu0
        %v3816 = vadd.f32 0.0, %v3815
        %3817 = vdwg.mxu0
        %v3818 = vmax.f32 %v3628, %v3630
        %3819 = vmax.xlane.f32.xlu0 %v3818
        %v3820 = vpop.xlane.xlu0 %3819
        %v3821 = vmax.f32 %v3634, %v3636
        %3822 = vmax.xlane.f32.xlu0 %v3821
        %v3823 = vpop.xlane.xlu0 %3822
        %v3824 = vmax.f32 %v3640, %v3642
        %3825 = vmax.xlane.f32.xlu0 %v3824
        %v3826 = vpop.xlane.xlu0 %3825
        %v3827 = vmax.f32 %v3646, %v3648
        %3828 = vmax.xlane.f32.xlu0 %v3827
        %v3829 = vpop.xlane.xlu0 %3828
        %v3830 = vmax.f32 %v3652, %v3654
        %3831 = vmax.xlane.f32.xlu0 %v3830
        %v3832 = vpop.xlane.xlu0 %3831
        %v3833 = vmax.f32 %v3658, %v3660
        %3834 = vmax.xlane.f32.xlu0 %v3833
        %v3835 = vpop.xlane.xlu0 %3834
        %v3836 = vmax.f32 %v3664, %v3666
        %3837 = vmax.xlane.f32.xlu0 %v3836
        %v3838 = vpop.xlane.xlu0 %3837
        %v3839 = vmax.f32 %v3670, %v3672
        %3840 = vmax.xlane.f32.xlu0 %v3839
        %v3841 = vpop.xlane.xlu0 %3840
        %v3842 = vmax.f32 %v3676, %v3678
        %3843 = vmax.xlane.f32.xlu0 %v3842
        %v3844 = vpop.xlane.xlu0 %3843
        %v3845 = vmax.f32 %v3682, %v3684
        %3846 = vmax.xlane.f32.xlu0 %v3845
        %v3847 = vpop.xlane.xlu0 %3846
        %v3848 = vmax.f32 %v3688, %v3690
        %3849 = vmax.xlane.f32.xlu0 %v3848
        %v3850 = vpop.xlane.xlu0 %3849
        %v3851 = vmax.f32 %v3694, %v3696
        %3852 = vmax.xlane.f32.xlu0 %v3851
        %v3853 = vpop.xlane.xlu0 %3852
        %v3854 = vmax.f32 %v3700, %v3702
        %3855 = vmax.xlane.f32.xlu0 %v3854
        %v3856 = vpop.xlane.xlu0 %3855
        %v3857 = vmax.f32 %v3706, %v3708
        %3858 = vmax.xlane.f32.xlu0 %v3857
        %v3859 = vpop.xlane.xlu0 %3858
        %v3860 = vmax.f32 %v3712, %v3714
        %3861 = vmax.xlane.f32.xlu0 %v3860
        %v3862 = vpop.xlane.xlu0 %3861
        %v3863 = vmax.f32 %v3718, %v3720
        %3864 = vmax.xlane.f32.xlu0 %v3863
        %v3865 = vpop.xlane.xlu0 %3864
        %v3866 = vmax.f32 %v3724, %v3726
        %3867 = vmax.xlane.f32.xlu0 %v3866
        %v3868 = vpop.xlane.xlu0 %3867
        %v3869 = vmax.f32 %v3730, %v3732
        %3870 = vmax.xlane.f32.xlu0 %v3869
        %v3871 = vpop.xlane.xlu0 %3870
        %v3872 = vmax.f32 %v3736, %v3738
        %3873 = vmax.xlane.f32.xlu0 %v3872
        %v3874 = vpop.xlane.xlu0 %3873
        %v3875 = vmax.f32 %v3742, %v3744
        %3876 = vmax.xlane.f32.xlu0 %v3875
        %v3877 = vpop.xlane.xlu0 %3876
        %v3878 = vmax.f32 %v3748, %v3750
        %3879 = vmax.xlane.f32.xlu0 %v3878
        %v3880 = vpop.xlane.xlu0 %3879
        %v3881 = vmax.f32 %v3754, %v3756
        %3882 = vmax.xlane.f32.xlu0 %v3881
        %v3883 = vpop.xlane.xlu0 %3882
        %v3884 = vmax.f32 %v3760, %v3762
        %3885 = vmax.xlane.f32.xlu0 %v3884
        %v3886 = vpop.xlane.xlu0 %3885
        %v3887 = vmax.f32 %v3766, %v3768
        %3888 = vmax.xlane.f32.xlu0 %v3887
        %v3889 = vpop.xlane.xlu0 %3888
        %v3890 = vmax.f32 %v3772, %v3774
        %3891 = vmax.xlane.f32.xlu0 %v3890
        %v3892 = vpop.xlane.xlu0 %3891
        %v3893 = vmax.f32 %v3778, %v3780
        %3894 = vmax.xlane.f32.xlu0 %v3893
        %v3895 = vpop.xlane.xlu0 %3894
        %v3896 = vmax.f32 %v3784, %v3786
        %3897 = vmax.xlane.f32.xlu0 %v3896
        %v3898 = vpop.xlane.xlu0 %3897
        %v3899 = vmax.f32 %v3790, %v3792
        %3900 = vmax.xlane.f32.xlu0 %v3899
        %v3901 = vpop.xlane.xlu0 %3900
        %v3902 = vmax.f32 %v3796, %v3798
        %3903 = vmax.xlane.f32.xlu0 %v3902
        %v3904 = vpop.xlane.xlu0 %3903
        %v3905 = vmax.f32 %v3802, %v3804
        %3906 = vmax.xlane.f32.xlu0 %v3905
        %v3907 = vpop.xlane.xlu0 %3906
        %v3908 = vmax.f32 %v3808, %v3810
        %3909 = vmax.xlane.f32.xlu0 %v3908
        %v3910 = vpop.xlane.xlu0 %3909
        %v3911 = vmax.f32 %v3814, %v3816
        %3912 = vmax.xlane.f32.xlu0 %v3911
        %v3913 = vpop.xlane.xlu0 %3912
        %v3914 = vsub.f32 %v3628, %v3820
        %v3915 = vsub.f32 %v3630, %v3820
        %v3916 = vsub.f32 %v3634, %v3823
        %v3917 = vsub.f32 %v3636, %v3823
        %v3918 = vsub.f32 %v3640, %v3826
        %v3919 = vsub.f32 %v3642, %v3826
        %v3920 = vsub.f32 %v3646, %v3829
        %v3921 = vsub.f32 %v3648, %v3829
        %v3922 = vsub.f32 %v3652, %v3832
        %v3923 = vsub.f32 %v3654, %v3832
        %v3924 = vsub.f32 %v3658, %v3835
        %v3925 = vsub.f32 %v3660, %v3835
        %v3926 = vsub.f32 %v3664, %v3838
        %v3927 = vsub.f32 %v3666, %v3838
        %v3928 = vsub.f32 %v3670, %v3841
        %v3929 = vsub.f32 %v3672, %v3841
        %v3930 = vsub.f32 %v3676, %v3844
        %v3931 = vsub.f32 %v3678, %v3844
        %v3932 = vsub.f32 %v3682, %v3847
        %v3933 = vsub.f32 %v3684, %v3847
        %v3934 = vsub.f32 %v3688, %v3850
        %v3935 = vsub.f32 %v3690, %v3850
        %v3936 = vsub.f32 %v3694, %v3853
        %v3937 = vsub.f32 %v3696, %v3853
        %v3938 = vsub.f32 %v3700, %v3856
        %v3939 = vsub.f32 %v3702, %v3856
        %v3940 = vsub.f32 %v3706, %v3859
        %v3941 = vsub.f32 %v3708, %v3859
        %v3942 = vsub.f32 %v3712, %v3862
        %v3943 = vsub.f32 %v3714, %v3862
        %v3944 = vsub.f32 %v3718, %v3865
        %v3945 = vsub.f32 %v3720, %v3865
        %v3946 = vsub.f32 %v3724, %v3868
        %v3947 = vsub.f32 %v3726, %v3868
        %v3948 = vsub.f32 %v3730, %v3871
        %v3949 = vsub.f32 %v3732, %v3871
        %v3950 = vsub.f32 %v3736, %v3874
        %v3951 = vsub.f32 %v3738, %v3874
        %v3952 = vsub.f32 %v3742, %v3877
        %v3953 = vsub.f32 %v3744, %v3877
        %v3954 = vsub.f32 %v3748, %v3880
        %v3955 = vsub.f32 %v3750, %v3880
        %v3956 = vsub.f32 %v3754, %v3883
        %v3957 = vsub.f32 %v3756, %v3883
        %v3958 = vsub.f32 %v3760, %v3886
        %v3959 = vsub.f32 %v3762, %v3886
        %v3960 = vsub.f32 %v3766, %v3889
        %v3961 = vsub.f32 %v3768, %v3889
        %v3962 = vsub.f32 %v3772, %v3892
        %v3963 = vsub.f32 %v3774, %v3892
        %v3964 = vsub.f32 %v3778, %v3895
        %v3965 = vsub.f32 %v3780, %v3895
        %v3966 = vsub.f32 %v3784, %v3898
        %v3967 = vsub.f32 %v3786, %v3898
        %v3968 = vsub.f32 %v3790, %v3901
        %v3969 = vsub.f32 %v3792, %v3901
        %v3970 = vsub.f32 %v3796, %v3904
        %v3971 = vsub.f32 %v3798, %v3904
        %v3972 = vsub.f32 %v3802, %v3907
        %v3973 = vsub.f32 %v3804, %v3907
        %v3974 = vsub.f32 %v3808, %v3910
        %v3975 = vsub.f32 %v3810, %v3910
        %v3976 = vsub.f32 %v3814, %v3913
        %v3977 = vsub.f32 %v3816, %v3913
        %v3978 = vmul.f32 %v3914, 1.442695
        %v3979 = vpow.pop %v3978
        %v3980 = vmul.f32 %v3915, 1.442695
        %v3981 = vpow.pop %v3980
        %v3982 = vmul.f32 %v3916, 1.442695
        %v3983 = vpow.pop %v3982
        %v3984 = vmul.f32 %v3917, 1.442695
        %v3985 = vpow.pop %v3984
        %v3986 = vmul.f32 %v3918, 1.442695
        %v3987 = vpow.pop %v3986
        %v3988 = vmul.f32 %v3919, 1.442695
        %v3989 = vpow.pop %v3988
        %v3990 = vmul.f32 %v3920, 1.442695
        %v3991 = vpow.pop %v3990
        %v3992 = vmul.f32 %v3921, 1.442695
        %v3993 = vpow.pop %v3992
        %v3994 = vmul.f32 %v3922, 1.442695
        %v3995 = vpow.pop %v3994
        %v3996 = vmul.f32 %v3923, 1.442695
        %v3997 = vpow.pop %v3996
        %v3998 = vmul.f32 %v3924, 1.442695
        %v3999 = vpow.pop %v3998
        %v4000 = vmul.f32 %v3925, 1.442695
        %v4001 = vpow.pop %v4000
        %v4002 = vmul.f32 %v3926, 1.442695
        %v4003 = vpow.pop %v4002
        %v4004 = vmul.f32 %v3927, 1.442695
        %v4005 = vpow.pop %v4004
        %v4006 = vmul.f32 %v3928, 1.442695
        %v4007 = vpow.pop %v4006
        %v4008 = vmul.f32 %v3929, 1.442695
        %v4009 = vpow.pop %v4008
        %v4010 = vmul.f32 %v3930, 1.442695
        %v4011 = vpow.pop %v4010
        %v4012 = vmul.f32 %v3931, 1.442695
        %v4013 = vpow.pop %v4012
        %v4014 = vmul.f32 %v3932, 1.442695
        %v4015 = vpow.pop %v4014
        %v4016 = vmul.f32 %v3933, 1.442695
        %v4017 = vpow.pop %v4016
        %v4018 = vmul.f32 %v3934, 1.442695
        %v4019 = vpow.pop %v4018
        %v4020 = vmul.f32 %v3935, 1.442695
        %v4021 = vpow.pop %v4020
        %v4022 = vmul.f32 %v3936, 1.442695
        %v4023 = vpow.pop %v4022
        %v4024 = vmul.f32 %v3937, 1.442695
        %v4025 = vpow.pop %v4024
        %v4026 = vmul.f32 %v3938, 1.442695
        %v4027 = vpow.pop %v4026
        %v4028 = vmul.f32 %v3939, 1.442695
        %v4029 = vpow.pop %v4028
        %v4030 = vmul.f32 %v3940, 1.442695
        %v4031 = vpow.pop %v4030
        %v4032 = vmul.f32 %v3941, 1.442695
        %v4033 = vpow.pop %v4032
        %v4034 = vmul.f32 %v3942, 1.442695
        %v4035 = vpow.pop %v4034
        %v4036 = vmul.f32 %v3943, 1.442695
        %v4037 = vpow.pop %v4036
        %v4038 = vmul.f32 %v3944, 1.442695
        %v4039 = vpow.pop %v4038
        %v4040 = vmul.f32 %v3945, 1.442695
        %v4041 = vpow.pop %v4040
        %v4042 = vmul.f32 %v3946, 1.442695
        %v4043 = vpow.pop %v4042
        %v4044 = vmul.f32 %v3947, 1.442695
        %v4045 = vpow.pop %v4044
        %v4046 = vmul.f32 %v3948, 1.442695
        %v4047 = vpow.pop %v4046
        %v4048 = vmul.f32 %v3949, 1.442695
        %v4049 = vpow.pop %v4048
        %v4050 = vmul.f32 %v3950, 1.442695
        %v4051 = vpow.pop %v4050
        %v4052 = vmul.f32 %v3951, 1.442695
        %v4053 = vpow.pop %v4052
        %v4054 = vmul.f32 %v3952, 1.442695
        %v4055 = vpow.pop %v4054
        %v4056 = vmul.f32 %v3953, 1.442695
        %v4057 = vpow.pop %v4056
        %v4058 = vmul.f32 %v3954, 1.442695
        %v4059 = vpow.pop %v4058
        %v4060 = vmul.f32 %v3955, 1.442695
        %v4061 = vpow.pop %v4060
        %v4062 = vmul.f32 %v3956, 1.442695
        %v4063 = vpow.pop %v4062
        %v4064 = vmul.f32 %v3957, 1.442695
        %v4065 = vpow.pop %v4064
        %v4066 = vmul.f32 %v3958, 1.442695
        %v4067 = vpow.pop %v4066
        %v4068 = vmul.f32 %v3959, 1.442695
        %v4069 = vpow.pop %v4068
        %v4070 = vmul.f32 %v3960, 1.442695
        %v4071 = vpow.pop %v4070
        %v4072 = vmul.f32 %v3961, 1.442695
        %v4073 = vpow.pop %v4072
        %v4074 = vmul.f32 %v3962, 1.442695
        %v4075 = vpow.pop %v4074
        %v4076 = vmul.f32 %v3963, 1.442695
        %v4077 = vpow.pop %v4076
        %v4078 = vmul.f32 %v3964, 1.442695
        %v4079 = vpow.pop %v4078
        %v4080 = vmul.f32 %v3965, 1.442695
        %v4081 = vpow.pop %v4080
        %v4082 = vmul.f32 %v3966, 1.442695
        %v4083 = vpow.pop %v4082
        %v4084 = vmul.f32 %v3967, 1.442695
        %v4085 = vpow.pop %v4084
        %v4086 = vmul.f32 %v3968, 1.442695
        %v4087 = vpow.pop %v4086
        %v4088 = vmul.f32 %v3969, 1.442695
        %v4089 = vpow.pop %v4088
        %v4090 = vmul.f32 %v3970, 1.442695
        %v4091 = vpow.pop %v4090
        %v4092 = vmul.f32 %v3971, 1.442695
        %v4093 = vpow.pop %v4092
        %v4094 = vmul.f32 %v3972, 1.442695
        %v4095 = vpow.pop %v4094
        %v4096 = vmul.f32 %v3973, 1.442695
        %v4097 = vpow.pop %v4096
        %v4098 = vmul.f32 %v3974, 1.442695
        %v4099 = vpow.pop %v4098
        %v4100 = vmul.f32 %v3975, 1.442695
        %v4101 = vpow.pop %v4100
        %v4102 = vmul.f32 %v3976, 1.442695
        %v4103 = vpow.pop %v4102
        %v4104 = vmul.f32 %v3977, 1.442695
        %v4105 = vpow.pop %v4104
        %v4106 = vadd.f32 %v3979, %v3981
        %4107 = vadd.xlane.f32.xlu0 %v4106
        %v4108 = vpop.xlane.xlu0 %4107
        %v4109 = vadd.f32 %v3983, %v3985
        %4110 = vadd.xlane.f32.xlu0 %v4109
        %v4111 = vpop.xlane.xlu0 %4110
        %v4112 = vadd.f32 %v3987, %v3989
        %4113 = vadd.xlane.f32.xlu0 %v4112
        %v4114 = vpop.xlane.xlu0 %4113
        %v4115 = vadd.f32 %v3991, %v3993
        %4116 = vadd.xlane.f32.xlu0 %v4115
        %v4117 = vpop.xlane.xlu0 %4116
        %v4118 = vadd.f32 %v3995, %v3997
        %4119 = vadd.xlane.f32.xlu0 %v4118
        %v4120 = vpop.xlane.xlu0 %4119
        %v4121 = vadd.f32 %v3999, %v4001
        %4122 = vadd.xlane.f32.xlu0 %v4121
        %v4123 = vpop.xlane.xlu0 %4122
        %v4124 = vadd.f32 %v4003, %v4005
        %4125 = vadd.xlane.f32.xlu0 %v4124
        %v4126 = vpop.xlane.xlu0 %4125
        %v4127 = vadd.f32 %v4007, %v4009
        %4128 = vadd.xlane.f32.xlu0 %v4127
        %v4129 = vpop.xlane.xlu0 %4128
        %v4130 = vadd.f32 %v4011, %v4013
        %4131 = vadd.xlane.f32.xlu0 %v4130
        %v4132 = vpop.xlane.xlu0 %4131
        %v4133 = vadd.f32 %v4015, %v4017
        %4134 = vadd.xlane.f32.xlu0 %v4133
        %v4135 = vpop.xlane.xlu0 %4134
        %v4136 = vadd.f32 %v4019, %v4021
        %4137 = vadd.xlane.f32.xlu0 %v4136
        %v4138 = vpop.xlane.xlu0 %4137
        %v4139 = vadd.f32 %v4023, %v4025
        %4140 = vadd.xlane.f32.xlu0 %v4139
        %v4141 = vpop.xlane.xlu0 %4140
        %v4142 = vadd.f32 %v4027, %v4029
        %4143 = vadd.xlane.f32.xlu0 %v4142
        %v4144 = vpop.xlane.xlu0 %4143
        %v4145 = vadd.f32 %v4031, %v4033
        %4146 = vadd.xlane.f32.xlu0 %v4145
        %v4147 = vpop.xlane.xlu0 %4146
        %v4148 = vadd.f32 %v4035, %v4037
        %4149 = vadd.xlane.f32.xlu0 %v4148
        %v4150 = vpop.xlane.xlu0 %4149
        %v4151 = vadd.f32 %v4039, %v4041
        %4152 = vadd.xlane.f32.xlu0 %v4151
        %v4153 = vpop.xlane.xlu0 %4152
        %v4154 = vadd.f32 %v4043, %v4045
        %4155 = vadd.xlane.f32.xlu0 %v4154
        %v4156 = vpop.xlane.xlu0 %4155
        %v4157 = vadd.f32 %v4047, %v4049
        %4158 = vadd.xlane.f32.xlu0 %v4157
        %v4159 = vpop.xlane.xlu0 %4158
        %v4160 = vadd.f32 %v4051, %v4053
        %4161 = vadd.xlane.f32.xlu0 %v4160
        %v4162 = vpop.xlane.xlu0 %4161
        %v4163 = vadd.f32 %v4055, %v4057
        %4164 = vadd.xlane.f32.xlu0 %v4163
        %v4165 = vpop.xlane.xlu0 %4164
        %v4166 = vadd.f32 %v4059, %v4061
        %4167 = vadd.xlane.f32.xlu0 %v4166
        %v4168 = vpop.xlane.xlu0 %4167
        %v4169 = vadd.f32 %v4063, %v4065
        %4170 = vadd.xlane.f32.xlu0 %v4169
        %v4171 = vpop.xlane.xlu0 %4170
        %v4172 = vadd.f32 %v4067, %v4069
        %4173 = vadd.xlane.f32.xlu0 %v4172
        %v4174 = vpop.xlane.xlu0 %4173
        %v4175 = vadd.f32 %v4071, %v4073
        %4176 = vadd.xlane.f32.xlu0 %v4175
        %v4177 = vpop.xlane.xlu0 %4176
        %v4178 = vadd.f32 %v4075, %v4077
        %4179 = vadd.xlane.f32.xlu0 %v4178
        %v4180 = vpop.xlane.xlu0 %4179
        %v4181 = vadd.f32 %v4079, %v4081
        %4182 = vadd.xlane.f32.xlu0 %v4181
        %v4183 = vpop.xlane.xlu0 %4182
        %v4184 = vadd.f32 %v4083, %v4085
        %4185 = vadd.xlane.f32.xlu0 %v4184
        %v4186 = vpop.xlane.xlu0 %4185
        %v4187 = vadd.f32 %v4087, %v4089
        %4188 = vadd.xlane.f32.xlu0 %v4187
        %v4189 = vpop.xlane.xlu0 %4188
        %v4190 = vadd.f32 %v4091, %v4093
        %4191 = vadd.xlane.f32.xlu0 %v4190
        %v4192 = vpop.xlane.xlu0 %4191
        %v4193 = vadd.f32 %v4095, %v4097
        %4194 = vadd.xlane.f32.xlu0 %v4193
        %v4195 = vpop.xlane.xlu0 %4194
        %v4196 = vadd.f32 %v4099, %v4101
        %4197 = vadd.xlane.f32.xlu0 %v4196
        %v4198 = vpop.xlane.xlu0 %4197
        %v4199 = vadd.f32 %v4103, %v4105
        %4200 = vadd.xlane.f32.xlu0 %v4199
        %v4201 = vpop.xlane.xlu0 %4200
        %v4202 = vrcp.pop %v4108
        %v4203 = vrcp.pop %v4111
        %v4204 = vrcp.pop %v4114
        %v4205 = vrcp.pop %v4117
        %v4206 = vrcp.pop %v4120
        %v4207 = vrcp.pop %v4123
        %v4208 = vrcp.pop %v4126
        %v4209 = vrcp.pop %v4129
        %v4210 = vrcp.pop %v4132
        %v4211 = vrcp.pop %v4135
        %v4212 = vrcp.pop %v4138
        %v4213 = vrcp.pop %v4141
        %v4214 = vrcp.pop %v4144
        %v4215 = vrcp.pop %v4147
        %v4216 = vrcp.pop %v4150
        %v4217 = vrcp.pop %v4153
        %v4218 = vrcp.pop %v4156
        %v4219 = vrcp.pop %v4159
        %v4220 = vrcp.pop %v4162
        %v4221 = vrcp.pop %v4165
        %v4222 = vrcp.pop %v4168
        %v4223 = vrcp.pop %v4171
        %v4224 = vrcp.pop %v4174
        %v4225 = vrcp.pop %v4177
        %v4226 = vrcp.pop %v4180
        %v4227 = vrcp.pop %v4183
        %v4228 = vrcp.pop %v4186
        %v4229 = vrcp.pop %v4189
        %v4230 = vrcp.pop %v4192
        %v4231 = vrcp.pop %v4195
        %v4232 = vrcp.pop %v4198
        %v4233 = vrcp.pop %v4201
        %v4234 = vmul.f32 %v3979, %v4202
        %v4235 = vmul.f32 %v3981, %v4202
        %v4236 = vmul.f32 %v3983, %v4203
        %v4237 = vmul.f32 %v3985, %v4203
        %v4238 = vmul.f32 %v3987, %v4204
        %v4239 = vmul.f32 %v3989, %v4204
        %v4240 = vmul.f32 %v3991, %v4205
        %v4241 = vmul.f32 %v3993, %v4205
        %v4242 = vmul.f32 %v3995, %v4206
        %v4243 = vmul.f32 %v3997, %v4206
        %v4244 = vmul.f32 %v3999, %v4207
        %v4245 = vmul.f32 %v4001, %v4207
        %v4246 = vmul.f32 %v4003, %v4208
        %v4247 = vmul.f32 %v4005, %v4208
        %v4248 = vmul.f32 %v4007, %v4209
        %v4249 = vmul.f32 %v4009, %v4209
        %v4250 = vmul.f32 %v4011, %v4210
        %v4251 = vmul.f32 %v4013, %v4210
        %v4252 = vmul.f32 %v4015, %v4211
        %v4253 = vmul.f32 %v4017, %v4211
        %v4254 = vmul.f32 %v4019, %v4212
        %v4255 = vmul.f32 %v4021, %v4212
        %v4256 = vmul.f32 %v4023, %v4213
        %v4257 = vmul.f32 %v4025, %v4213
        %v4258 = vmul.f32 %v4027, %v4214
        %v4259 = vmul.f32 %v4029, %v4214
        %v4260 = vmul.f32 %v4031, %v4215
        %v4261 = vmul.f32 %v4033, %v4215
        %v4262 = vmul.f32 %v4035, %v4216
        %v4263 = vmul.f32 %v4037, %v4216
        %v4264 = vmul.f32 %v4039, %v4217
        %v4265 = vmul.f32 %v4041, %v4217
        %v4266 = vmul.f32 %v4043, %v4218
        %v4267 = vmul.f32 %v4045, %v4218
        %v4268 = vmul.f32 %v4047, %v4219
        %v4269 = vmul.f32 %v4049, %v4219
        %v4270 = vmul.f32 %v4051, %v4220
        %v4271 = vmul.f32 %v4053, %v4220
        %v4272 = vmul.f32 %v4055, %v4221
        %v4273 = vmul.f32 %v4057, %v4221
        %v4274 = vmul.f32 %v4059, %v4222
        %v4275 = vmul.f32 %v4061, %v4222
        %v4276 = vmul.f32 %v4063, %v4223
        %v4277 = vmul.f32 %v4065, %v4223
        %v4278 = vmul.f32 %v4067, %v4224
        %v4279 = vmul.f32 %v4069, %v4224
        %v4280 = vmul.f32 %v4071, %v4225
        %v4281 = vmul.f32 %v4073, %v4225
        %v4282 = vmul.f32 %v4075, %v4226
        %v4283 = vmul.f32 %v4077, %v4226
        %v4284 = vmul.f32 %v4079, %v4227
        %v4285 = vmul.f32 %v4081, %v4227
        %v4286 = vmul.f32 %v4083, %v4228
        %v4287 = vmul.f32 %v4085, %v4228
        %v4288 = vmul.f32 %v4087, %v4229
        %v4289 = vmul.f32 %v4089, %v4229
        %v4290 = vmul.f32 %v4091, %v4230
        %v4291 = vmul.f32 %v4093, %v4230
        %v4292 = vmul.f32 %v4095, %v4231
        %v4293 = vmul.f32 %v4097, %v4231
        %v4294 = vmul.f32 %v4099, %v4232
        %v4295 = vmul.f32 %v4101, %v4232
        %v4296 = vmul.f32 %v4103, %v4233
        %v4297 = vmul.f32 %v4105, %v4233
        %v4300 = vrot.slane %v419, 4
        %v4301 = vrot.slane %v421, 4
        %4304 = vmatprep.subr.mxu0 %v4235
        %4305 = vmatpush1.xpose.msra.mxu0 %v4234
        %4306 = vmatprep.subr.mxu0 %v4237
        %4307 = vmatpush1.xpose.msra.mxu0 %v4236
        %4308 = vmatprep.subr.mxu0 %v4239
        %4309 = vmatpush1.xpose.msra.mxu0 %v4238
        %4310 = vmatprep.subr.mxu0 %v4241
        %4311 = vmatpush1.xpose.msra.mxu0 %v4240
        %4312 = vmatprep.subr.mxu0 %v4243
        %4313 = vmatpush1.xpose.msra.mxu0 %v4242
        %4314 = vmatprep.subr.mxu0 %v4245
        %4315 = vmatpush1.xpose.msra.mxu0 %v4244
        %4316 = vmatprep.subr.mxu0 %v4247
        %4317 = vmatpush1.xpose.msra.mxu0 %v4246
        %4318 = vmatprep.subr.mxu0 %v4249
        %4319 = vmatpush1.xpose.msra.mxu0 %v4248
        %4320 = vmatprep.subr.mxu0 %v4251
        %4321 = vmatpush1.xpose.msra.mxu0 %v4250
        %4322 = vmatprep.subr.mxu0 %v4253
        %4323 = vmatpush1.xpose.msra.mxu0 %v4252
        %4324 = vmatprep.subr.mxu0 %v4255
        %4325 = vmatpush1.xpose.msra.mxu0 %v4254
        %4326 = vmatprep.subr.mxu0 %v4257
        %4327 = vmatpush1.xpose.msra.mxu0 %v4256
        %4328 = vmatprep.subr.mxu0 %v4259
        %4329 = vmatpush1.xpose.msra.mxu0 %v4258
        %4330 = vmatprep.subr.mxu0 %v4261
        %4331 = vmatpush1.xpose.msra.mxu0 %v4260
        %4332 = vmatprep.subr.mxu0 %v4263
        %4333 = vmatpush1.xpose.msra.mxu0 %v4262
        %4334 = vmatprep.subr.mxu0 %v4265
        %4335 = vmatpush1.xpose.msra.mxu0 %v4264
        %4336 = vmatprep.subr.mxu0 %v4267
        %4337 = vmatpush1.xpose.msra.mxu0 %v4266
        %4338 = vmatprep.subr.mxu0 %v4269
        %4339 = vmatpush1.xpose.msra.mxu0 %v4268
        %4340 = vmatprep.subr.mxu0 %v4271
        %4341 = vmatpush1.xpose.msra.mxu0 %v4270
        %4342 = vmatprep.subr.mxu0 %v4273
        %4343 = vmatpush1.xpose.msra.mxu0 %v4272
        %4344 = vmatprep.subr.mxu0 %v4275
        %4345 = vmatpush1.xpose.msra.mxu0 %v4274
        %4346 = vmatprep.subr.mxu0 %v4277
        %4347 = vmatpush1.xpose.msra.mxu0 %v4276
        %4348 = vmatprep.subr.mxu0 %v4279
        %4349 = vmatpush1.xpose.msra.mxu0 %v4278
        %4350 = vmatprep.subr.mxu0 %v4281
        %4351 = vmatpush1.xpose.msra.mxu0 %v4280
        %4352 = vmatprep.subr.mxu0 %v4283
        %4353 = vmatpush1.xpose.msra.mxu0 %v4282
        %4354 = vmatprep.subr.mxu0 %v4285
        %4355 = vmatpush1.xpose.msra.mxu0 %v4284
        %4356 = vmatprep.subr.mxu0 %v4287
        %4357 = vmatpush1.xpose.msra.mxu0 %v4286
        %4358 = vmatprep.subr.mxu0 %v4289
        %4359 = vmatpush1.xpose.msra.mxu0 %v4288
        %4360 = vmatprep.subr.mxu0 %v4291
        %4361 = vmatpush1.xpose.msra.mxu0 %v4290
        %4362 = vmatprep.subr.mxu0 %v4293
        %4363 = vmatpush1.xpose.msra.mxu0 %v4292
        %4364 = vmatprep.subr.mxu0 %v4295
        %4365 = vmatpush1.xpose.msra.mxu0 %v4294
        %4366 = vmatprep.subr.mxu0 %v4297
        %4367 = vmatpush1.xpose.msra.mxu0 %v4296
        %4368 = vmatprep.mubr.f32.mxu0 %v4301
        %4369 = vmatmul.mubr.f32.gmra.mrb[0].mxu0 %v4300
        %v4370 = vpop.f32.mrb[0].mxu0
        %v4371 = vadd.f32 0.0, %v4370
        %v4372 = vpop.f32.mrb[0].mxu0
        %v4373 = vadd.f32 0.0, %v4372
        %4374 = vdwg.mxu0
        %v4377 = vrot.slane %v4371, 4
        %v4378 = vrot.slane %v4373, 4
        %4381 = vst [vmem:[%s163 + $0x10] sm:$0xf0] %v4377
        %4382 = vst [vmem:[%s163 + $0x18] sm:$0xf0] %v4378
        %4383 = vxpose.xlu0.b32.start [1/16] %v439, 128
        %4384 = vxpose.xlu0.b32.cont [2/16] 0.0, 128
        %4385 = vxpose.xlu0.b32.cont [3/16] 0.0, 128
        %4386 = vxpose.xlu0.b32.cont [4/16] 0.0, 128
        %4387 = vxpose.xlu0.b32.cont [5/16] 0.0, 128
        %4388 = vxpose.xlu0.b32.cont [6/16] 0.0, 128
        %4389 = vxpose.xlu0.b32.cont [7/16] 0.0, 128
        %4390 = vxpose.xlu0.b32.cont [8/16] 0.0, 128
        %4391 = vxpose.xlu0.b32.cont [9/16] 0.0, 128
        %4392 = vxpose.xlu0.b32.cont [10/16] 0.0, 128
        %4393 = vxpose.xlu0.b32.cont [11/16] 0.0, 128
        %4394 = vxpose.xlu0.b32.cont [12/16] 0.0, 128
        %4395 = vxpose.xlu0.b32.cont [13/16] 0.0, 128
        %4396 = vxpose.xlu0.b32.cont [14/16] 0.0, 128
        %4397 = vxpose.xlu0.b32.cont [15/16] 0.0, 128
        %4398 = vxpose.xlu0.b32.end [16/16] 0.0, 128
        %v4399 = vpop.trf.xlu0
        %v4400 = vpop.trf.xlu0
        %v4401 = vpop.trf.xlu0
        %v4402 = vpop.trf.xlu0
        %v4403 = vpop.trf.xlu0
        %v4404 = vpop.trf.xlu0
        %v4405 = vpop.trf.xlu0
        %v4406 = vpop.trf.xlu0
        %v4407 = vpop.trf.xlu0
        %v4408 = vpop.trf.xlu0
        %v4409 = vpop.trf.xlu0
        %v4410 = vpop.trf.xlu0
        %v4411 = vpop.trf.xlu0
        %v4412 = vpop.trf.xlu0
        %v4413 = vpop.trf.xlu0
        %v4414 = vpop.trf.xlu0
        %4415 = vxpose.xlu0.b32.start [1/16] %v440, 128
        %4416 = vxpose.xlu0.b32.cont [2/16] 0.0, 128
        %4417 = vxpose.xlu0.b32.cont [3/16] 0.0, 128
        %4418 = vxpose.xlu0.b32.cont [4/16] 0.0, 128
        %4419 = vxpose.xlu0.b32.cont [5/16] 0.0, 128
        %4420 = vxpose.xlu0.b32.cont [6/16] 0.0, 128
        %4421 = vxpose.xlu0.b32.cont [7/16] 0.0, 128
        %4422 = vxpose.xlu0.b32.cont [8/16] 0.0, 128
        %4423 = vxpose.xlu0.b32.cont [9/16] 0.0, 128
        %4424 = vxpose.xlu0.b32.cont [10/16] 0.0, 128
        %4425 = vxpose.xlu0.b32.cont [11/16] 0.0, 128
        %4426 = vxpose.xlu0.b32.cont [12/16] 0.0, 128
        %4427 = vxpose.xlu0.b32.cont [13/16] 0.0, 128
        %4428 = vxpose.xlu0.b32.cont [14/16] 0.0, 128
        %4429 = vxpose.xlu0.b32.cont [15/16] 0.0, 128
        %4430 = vxpose.xlu0.b32.end [16/16] 0.0, 128
        %v4431 = vpop.trf.xlu0
        %v4432 = vpop.trf.xlu0
        %v4433 = vpop.trf.xlu0
        %v4434 = vpop.trf.xlu0
        %v4435 = vpop.trf.xlu0
        %v4436 = vpop.trf.xlu0
        %v4437 = vpop.trf.xlu0
        %v4438 = vpop.trf.xlu0
        %v4439 = vpop.trf.xlu0
        %v4440 = vpop.trf.xlu0
        %v4441 = vpop.trf.xlu0
        %v4442 = vpop.trf.xlu0
        %v4443 = vpop.trf.xlu0
        %v4444 = vpop.trf.xlu0
        %v4445 = vpop.trf.xlu0
        %v4446 = vpop.trf.xlu0
        %v4448 = vsel %vm256, %v4399, 0
        %v4451 = vsel %vm256, %v4400, 0
        %v4454 = vsel %vm256, %v4401, 0
        %v4457 = vsel %vm256, %v4402, 0
        %v4460 = vsel %vm256, %v4403, 0
        %v4463 = vsel %vm256, %v4404, 0
        %v4466 = vsel %vm256, %v4405, 0
        %v4469 = vsel %vm256, %v4406, 0
        %v4472 = vsel %vm256, %v4407, 0
        %v4475 = vsel %vm256, %v4408, 0
        %v4478 = vsel %vm256, %v4409, 0
        %v4481 = vsel %vm256, %v4410, 0
        %v4484 = vsel %vm256, %v4411, 0
        %v4487 = vsel %vm256, %v4412, 0
        %v4490 = vsel %vm256, %v4413, 0
        %v4493 = vsel %vm256, %v4414, 0
        %v4496 = vsel %vm256, %v4431, 0
        %v4499 = vsel %vm256, %v4432, 0
        %v4502 = vsel %vm256, %v4433, 0
        %v4505 = vsel %vm256, %v4434, 0
        %v4508 = vsel %vm256, %v4435, 0
        %v4511 = vsel %vm256, %v4436, 0
        %v4514 = vsel %vm256, %v4437, 0
        %v4517 = vsel %vm256, %v4438, 0
        %v4520 = vsel %vm256, %v4439, 0
        %v4523 = vsel %vm256, %v4440, 0
        %v4526 = vsel %vm256, %v4441, 0
        %v4529 = vsel %vm256, %v4442, 0
        %v4532 = vsel %vm256, %v4443, 0
        %v4535 = vsel %vm256, %v4444, 0
        %v4538 = vsel %vm256, %v4445, 0
        %v4541 = vsel %vm256, %v4446, 0
        %v4544 = vsel %vm293, %v401, 0
        %v4547 = vsel %vm293, %v403, 0
        %4549 = vmatprep.subr.mxu0 %v4547
        %4550 = vmatpush1.msra.mxu0 %v4544
        %4551 = vmatprep.subr.mxu0 0.0
        %4552 = vmatpush1.msra.mxu0 0.0
        %4553 = vmatprep.subr.mxu0 0.0
        %4554 = vmatpush1.msra.mxu0 0.0
        %4555 = vmatprep.subr.mxu0 0.0
        %4556 = vmatpush1.msra.mxu0 0.0
        %4557 = vmatprep.subr.mxu0 0.0
        %4558 = vmatpush1.msra.mxu0 0.0
        %4559 = vmatprep.subr.mxu0 0.0
        %4560 = vmatpush1.msra.mxu0 0.0
        %4561 = vmatprep.subr.mxu0 0.0
        %4562 = vmatpush1.msra.mxu0 0.0
        %4563 = vmatprep.subr.mxu0 0.0
        %4564 = vmatpush1.msra.mxu0 0.0
        %4565 = vmatprep.subr.mxu0 0.0
        %4566 = vmatpush1.msra.mxu0 0.0
        %4567 = vmatprep.subr.mxu0 0.0
        %4568 = vmatpush1.msra.mxu0 0.0
        %4569 = vmatprep.subr.mxu0 0.0
        %4570 = vmatpush1.msra.mxu0 0.0
        %4571 = vmatprep.subr.mxu0 0.0
        %4572 = vmatpush1.msra.mxu0 0.0
        %4573 = vmatprep.subr.mxu0 0.0
        %4574 = vmatpush1.msra.mxu0 0.0
        %4575 = vmatprep.subr.mxu0 0.0
        %4576 = vmatpush1.msra.mxu0 0.0
        %4577 = vmatprep.subr.mxu0 0.0
        %4578 = vmatpush1.msra.mxu0 0.0
        %4579 = vmatprep.subr.mxu0 0.0
        %4580 = vmatpush1.msra.mxu0 0.0
        %4581 = vmatprep.subr.mxu0 0.0
        %4582 = vmatpush1.msra.mxu0 0.0
        %4583 = vmatprep.subr.mxu0 0.0
        %4584 = vmatpush1.msra.mxu0 0.0
        %4585 = vmatprep.subr.mxu0 0.0
        %4586 = vmatpush1.msra.mxu0 0.0
        %4587 = vmatprep.subr.mxu0 0.0
        %4588 = vmatpush1.msra.mxu0 0.0
        %4589 = vmatprep.subr.mxu0 0.0
        %4590 = vmatpush1.msra.mxu0 0.0
        %4591 = vmatprep.subr.mxu0 0.0
        %4592 = vmatpush1.msra.mxu0 0.0
        %4593 = vmatprep.subr.mxu0 0.0
        %4594 = vmatpush1.msra.mxu0 0.0
        %4595 = vmatprep.subr.mxu0 0.0
        %4596 = vmatpush1.msra.mxu0 0.0
        %4597 = vmatprep.subr.mxu0 0.0
        %4598 = vmatpush1.msra.mxu0 0.0
        %4599 = vmatprep.subr.mxu0 0.0
        %4600 = vmatpush1.msra.mxu0 0.0
        %4601 = vmatprep.subr.mxu0 0.0
        %4602 = vmatpush1.msra.mxu0 0.0
        %4603 = vmatprep.subr.mxu0 0.0
        %4604 = vmatpush1.msra.mxu0 0.0
        %4605 = vmatprep.subr.mxu0 0.0
        %4606 = vmatpush1.msra.mxu0 0.0
        %4607 = vmatprep.subr.mxu0 0.0
        %4608 = vmatpush1.msra.mxu0 0.0
        %4609 = vmatprep.subr.mxu0 0.0
        %4610 = vmatpush1.msra.mxu0 0.0
        %4611 = vmatprep.subr.mxu0 0.0
        %4612 = vmatpush1.msra.mxu0 0.0
        %4613 = vmatprep.mubr.f32.mxu0 0.0
        %4614 = vmatmul.mubr.f32.gmra.mrb[0].mxu0 %v4448
        %v4615 = vpop.f32.mrb[0].mxu0
        %v4616 = vadd.f32 0.0, %v4615
        %v4617 = vpop.f32.mrb[0].mxu0
        %v4618 = vadd.f32 0.0, %v4617
        %4619 = vmatprep.mubr.f32.mxu0 0.0
        %4620 = vmatmul.mubr.f32.gmra.mrb[0].mxu0 %v4451
        %v4621 = vpop.f32.mrb[0].mxu0
        %v4622 = vadd.f32 0.0, %v4621
        %v4623 = vpop.f32.mrb[0].mxu0
        %v4624 = vadd.f32 0.0, %v4623
        %4625 = vmatprep.mubr.f32.mxu0 0.0
        %4626 = vmatmul.mubr.f32.gmra.mrb[0].mxu0 %v4454
        %v4627 = vpop.f32.mrb[0].mxu0
        %v4628 = vadd.f32 0.0, %v4627
        %v4629 = vpop.f32.mrb[0].mxu0
        %v4630 = vadd.f32 0.0, %v4629
        %4631 = vmatprep.mubr.f32.mxu0 0.0
        %4632 = vmatmul.mubr.f32.gmra.mrb[0].mxu0 %v4457
        %v4633 = vpop.f32.mrb[0].mxu0
        %v4634 = vadd.f32 0.0, %v4633
        %v4635 = vpop.f32.mrb[0].mxu0
        %v4636 = vadd.f32 0.0, %v4635
        %4637 = vmatprep.mubr.f32.mxu0 0.0
        %4638 = vmatmul.mubr.f32.gmra.mrb[0].mxu0 %v4460
        %v4639 = vpop.f32.mrb[0].mxu0
        %v4640 = vadd.f32 0.0, %v4639
        %v4641 = vpop.f32.mrb[0].mxu0
        %v4642 = vadd.f32 0.0, %v4641
        %4643 = vmatprep.mubr.f32.mxu0 0.0
        %4644 = vmatmul.mubr.f32.gmra.mrb[0].mxu0 %v4463
        %v4645 = vpop.f32.mrb[0].mxu0
        %v4646 = vadd.f32 0.0, %v4645
        %v4647 = vpop.f32.mrb[0].mxu0
        %v4648 = vadd.f32 0.0, %v4647
        %4649 = vmatprep.mubr.f32.mxu0 0.0
        %4650 = vmatmul.mubr.f32.gmra.mrb[0].mxu0 %v4466
        %v4651 = vpop.f32.mrb[0].mxu0
        %v4652 = vadd.f32 0.0, %v4651
        %v4653 = vpop.f32.mrb[0].mxu0
        %v4654 = vadd.f32 0.0, %v4653
        %4655 = vmatprep.mubr.f32.mxu0 0.0
        %4656 = vmatmul.mubr.f32.gmra.mrb[0].mxu0 %v4469
        %v4657 = vpop.f32.mrb[0].mxu0
        %v4658 = vadd.f32 0.0, %v4657
        %v4659 = vpop.f32.mrb[0].mxu0
        %v4660 = vadd.f32 0.0, %v4659
        %4661 = vmatprep.mubr.f32.mxu0 0.0
        %4662 = vmatmul.mubr.f32.gmra.mrb[0].mxu0 %v4472
        %v4663 = vpop.f32.mrb[0].mxu0
        %v4664 = vadd.f32 0.0, %v4663
        %v4665 = vpop.f32.mrb[0].mxu0
        %v4666 = vadd.f32 0.0, %v4665
        %4667 = vmatprep.mubr.f32.mxu0 0.0
        %4668 = vmatmul.mubr.f32.gmra.mrb[0].mxu0 %v4475
        %v4669 = vpop.f32.mrb[0].mxu0
        %v4670 = vadd.f32 0.0, %v4669
        %v4671 = vpop.f32.mrb[0].mxu0
        %v4672 = vadd.f32 0.0, %v4671
        %4673 = vmatprep.mubr.f32.mxu0 0.0
        %4674 = vmatmul.mubr.f32.gmra.mrb[0].mxu0 %v4478
        %v4675 = vpop.f32.mrb[0].mxu0
        %v4676 = vadd.f32 0.0, %v4675
        %v4677 = vpop.f32.mrb[0].mxu0
        %v4678 = vadd.f32 0.0, %v4677
        %4679 = vmatprep.mubr.f32.mxu0 0.0
        %4680 = vmatmul.mubr.f32.gmra.mrb[0].mxu0 %v4481
        %v4681 = vpop.f32.mrb[0].mxu0
        %v4682 = vadd.f32 0.0, %v4681
        %v4683 = vpop.f32.mrb[0].mxu0
        %v4684 = vadd.f32 0.0, %v4683
        %4685 = vmatprep.mubr.f32.mxu0 0.0
        %4686 = vmatmul.mubr.f32.gmra.mrb[0].mxu0 %v4484
        %v4687 = vpop.f32.mrb[0].mxu0
        %v4688 = vadd.f32 0.0, %v4687
        %v4689 = vpop.f32.mrb[0].mxu0
        %v4690 = vadd.f32 0.0, %v4689
        %4691 = vmatprep.mubr.f32.mxu0 0.0
        %4692 = vmatmul.mubr.f32.gmra.mrb[0].mxu0 %v4487
        %v4693 = vpop.f32.mrb[0].mxu0
        %v4694 = vadd.f32 0.0, %v4693
        %v4695 = vpop.f32.mrb[0].mxu0
        %v4696 = vadd.f32 0.0, %v4695
        %4697 = vmatprep.mubr.f32.mxu0 0.0
        %4698 = vmatmul.mubr.f32.gmra.mrb[0].mxu0 %v4490
        %v4699 = vpop.f32.mrb[0].mxu0
        %v4700 = vadd.f32 0.0, %v4699
        %v4701 = vpop.f32.mrb[0].mxu0
        %v4702 = vadd.f32 0.0, %v4701
        %4703 = vmatprep.mubr.f32.mxu0 0.0
        %4704 = vmatmul.mubr.f32.gmra.mrb[0].mxu0 %v4493
        %v4705 = vpop.f32.mrb[0].mxu0
        %v4706 = vadd.f32 0.0, %v4705
        %v4707 = vpop.f32.mrb[0].mxu0
        %v4708 = vadd.f32 0.0, %v4707
        %4709 = vmatprep.mubr.f32.mxu0 0.0
        %4710 = vmatmul.mubr.f32.gmra.mrb[0].mxu0 %v4496
        %v4711 = vpop.f32.mrb[0].mxu0
        %v4712 = vadd.f32 0.0, %v4711
        %v4713 = vpop.f32.mrb[0].mxu0
        %v4714 = vadd.f32 0.0, %v4713
        %4715 = vmatprep.mubr.f32.mxu0 0.0
        %4716 = vmatmul.mubr.f32.gmra.mrb[0].mxu0 %v4499
        %v4717 = vpop.f32.mrb[0].mxu0
        %v4718 = vadd.f32 0.0, %v4717
        %v4719 = vpop.f32.mrb[0].mxu0
        %v4720 = vadd.f32 0.0, %v4719
        %4721 = vmatprep.mubr.f32.mxu0 0.0
        %4722 = vmatmul.mubr.f32.gmra.mrb[0].mxu0 %v4502
        %v4723 = vpop.f32.mrb[0].mxu0
        %v4724 = vadd.f32 0.0, %v4723
        %v4725 = vpop.f32.mrb[0].mxu0
        %v4726 = vadd.f32 0.0, %v4725
        %4727 = vmatprep.mubr.f32.mxu0 0.0
        %4728 = vmatmul.mubr.f32.gmra.mrb[0].mxu0 %v4505
        %v4729 = vpop.f32.mrb[0].mxu0
        %v4730 = vadd.f32 0.0, %v4729
        %v4731 = vpop.f32.mrb[0].mxu0
        %v4732 = vadd.f32 0.0, %v4731
        %4733 = vmatprep.mubr.f32.mxu0 0.0
        %4734 = vmatmul.mubr.f32.gmra.mrb[0].mxu0 %v4508
        %v4735 = vpop.f32.mrb[0].mxu0
        %v4736 = vadd.f32 0.0, %v4735
        %v4737 = vpop.f32.mrb[0].mxu0
        %v4738 = vadd.f32 0.0, %v4737
        %4739 = vmatprep.mubr.f32.mxu0 0.0
        %4740 = vmatmul.mubr.f32.gmra.mrb[0].mxu0 %v4511
        %v4741 = vpop.f32.mrb[0].mxu0
        %v4742 = vadd.f32 0.0, %v4741
        %v4743 = vpop.f32.mrb[0].mxu0
        %v4744 = vadd.f32 0.0, %v4743
        %4745 = vmatprep.mubr.f32.mxu0 0.0
        %4746 = vmatmul.mubr.f32.gmra.mrb[0].mxu0 %v4514
        %v4747 = vpop.f32.mrb[0].mxu0
        %v4748 = vadd.f32 0.0, %v4747
        %v4749 = vpop.f32.mrb[0].mxu0
        %v4750 = vadd.f32 0.0, %v4749
        %4751 = vmatprep.mubr.f32.mxu0 0.0
        %4752 = vmatmul.mubr.f32.gmra.mrb[0].mxu0 %v4517
        %v4753 = vpop.f32.mrb[0].mxu0
        %v4754 = vadd.f32 0.0, %v4753
        %v4755 = vpop.f32.mrb[0].mxu0
        %v4756 = vadd.f32 0.0, %v4755
        %4757 = vmatprep.mubr.f32.mxu0 0.0
        %4758 = vmatmul.mubr.f32.gmra.mrb[0].mxu0 %v4520
        %v4759 = vpop.f32.mrb[0].mxu0
        %v4760 = vadd.f32 0.0, %v4759
        %v4761 = vpop.f32.mrb[0].mxu0
        %v4762 = vadd.f32 0.0, %v4761
        %4763 = vmatprep.mubr.f32.mxu0 0.0
        %4764 = vmatmul.mubr.f32.gmra.mrb[0].mxu0 %v4523
        %v4765 = vpop.f32.mrb[0].mxu0
        %v4766 = vadd.f32 0.0, %v4765
        %v4767 = vpop.f32.mrb[0].mxu0
        %v4768 = vadd.f32 0.0, %v4767
        %4769 = vmatprep.mubr.f32.mxu0 0.0
        %4770 = vmatmul.mubr.f32.gmra.mrb[0].mxu0 %v4526
        %v4771 = vpop.f32.mrb[0].mxu0
        %v4772 = vadd.f32 0.0, %v4771
        %v4773 = vpop.f32.mrb[0].mxu0
        %v4774 = vadd.f32 0.0, %v4773
        %4775 = vmatprep.mubr.f32.mxu0 0.0
        %4776 = vmatmul.mubr.f32.gmra.mrb[0].mxu0 %v4529
        %v4777 = vpop.f32.mrb[0].mxu0
        %v4778 = vadd.f32 0.0, %v4777
        %v4779 = vpop.f32.mrb[0].mxu0
        %v4780 = vadd.f32 0.0, %v4779
        %4781 = vmatprep.mubr.f32.mxu0 0.0
        %4782 = vmatmul.mubr.f32.gmra.mrb[0].mxu0 %v4532
        %v4783 = vpop.f32.mrb[0].mxu0
        %v4784 = vadd.f32 0.0, %v4783
        %v4785 = vpop.f32.mrb[0].mxu0
        %v4786 = vadd.f32 0.0, %v4785
        %4787 = vmatprep.mubr.f32.mxu0 0.0
        %4788 = vmatmul.mubr.f32.gmra.mrb[0].mxu0 %v4535
        %v4789 = vpop.f32.mrb[0].mxu0
        %v4790 = vadd.f32 0.0, %v4789
        %v4791 = vpop.f32.mrb[0].mxu0
        %v4792 = vadd.f32 0.0, %v4791
        %4793 = vmatprep.mubr.f32.mxu0 0.0
        %4794 = vmatmul.mubr.f32.gmra.mrb[0].mxu0 %v4538
        %v4795 = vpop.f32.mrb[0].mxu0
        %v4796 = vadd.f32 0.0, %v4795
        %v4797 = vpop.f32.mrb[0].mxu0
        %v4798 = vadd.f32 0.0, %v4797
        %4799 = vmatprep.mubr.f32.mxu0 0.0
        %4800 = vmatmul.mubr.f32.gmra.mrb[0].mxu0 %v4541
        %v4801 = vpop.f32.mrb[0].mxu0
        %v4802 = vadd.f32 0.0, %v4801
        %v4803 = vpop.f32.mrb[0].mxu0
        %v4804 = vadd.f32 0.0, %v4803
        %4805 = vdwg.mxu0
        %v4806 = vmax.f32 %v4616, %v4618
        %4807 = vmax.xlane.f32.xlu0 %v4806
        %v4808 = vpop.xlane.xlu0 %4807
        %v4809 = vmax.f32 %v4622, %v4624
        %4810 = vmax.xlane.f32.xlu0 %v4809
        %v4811 = vpop.xlane.xlu0 %4810
        %v4812 = vmax.f32 %v4628, %v4630
        %4813 = vmax.xlane.f32.xlu0 %v4812
        %v4814 = vpop.xlane.xlu0 %4813
        %v4815 = vmax.f32 %v4634, %v4636
        %4816 = vmax.xlane.f32.xlu0 %v4815
        %v4817 = vpop.xlane.xlu0 %4816
        %v4818 = vmax.f32 %v4640, %v4642
        %4819 = vmax.xlane.f32.xlu0 %v4818
        %v4820 = vpop.xlane.xlu0 %4819
        %v4821 = vmax.f32 %v4646, %v4648
        %4822 = vmax.xlane.f32.xlu0 %v4821
        %v4823 = vpop.xlane.xlu0 %4822
        %v4824 = vmax.f32 %v4652, %v4654
        %4825 = vmax.xlane.f32.xlu0 %v4824
        %v4826 = vpop.xlane.xlu0 %4825
        %v4827 = vmax.f32 %v4658, %v4660
        %4828 = vmax.xlane.f32.xlu0 %v4827
        %v4829 = vpop.xlane.xlu0 %4828
        %v4830 = vmax.f32 %v4664, %v4666
        %4831 = vmax.xlane.f32.xlu0 %v4830
        %v4832 = vpop.xlane.xlu0 %4831
        %v4833 = vmax.f32 %v4670, %v4672
        %4834 = vmax.xlane.f32.xlu0 %v4833
        %v4835 = vpop.xlane.xlu0 %4834
        %v4836 = vmax.f32 %v4676, %v4678
        %4837 = vmax.xlane.f32.xlu0 %v4836
        %v4838 = vpop.xlane.xlu0 %4837
        %v4839 = vmax.f32 %v4682, %v4684
        %4840 = vmax.xlane.f32.xlu0 %v4839
        %v4841 = vpop.xlane.xlu0 %4840
        %v4842 = vmax.f32 %v4688, %v4690
        %4843 = vmax.xlane.f32.xlu0 %v4842
        %v4844 = vpop.xlane.xlu0 %4843
        %v4845 = vmax.f32 %v4694, %v4696
        %4846 = vmax.xlane.f32.xlu0 %v4845
        %v4847 = vpop.xlane.xlu0 %4846
        %v4848 = vmax.f32 %v4700, %v4702
        %4849 = vmax.xlane.f32.xlu0 %v4848
        %v4850 = vpop.xlane.xlu0 %4849
        %v4851 = vmax.f32 %v4706, %v4708
        %4852 = vmax.xlane.f32.xlu0 %v4851
        %v4853 = vpop.xlane.xlu0 %4852
        %v4854 = vmax.f32 %v4712, %v4714
        %4855 = vmax.xlane.f32.xlu0 %v4854
        %v4856 = vpop.xlane.xlu0 %4855
        %v4857 = vmax.f32 %v4718, %v4720
        %4858 = vmax.xlane.f32.xlu0 %v4857
        %v4859 = vpop.xlane.xlu0 %4858
        %v4860 = vmax.f32 %v4724, %v4726
        %4861 = vmax.xlane.f32.xlu0 %v4860
        %v4862 = vpop.xlane.xlu0 %4861
        %v4863 = vmax.f32 %v4730, %v4732
        %4864 = vmax.xlane.f32.xlu0 %v4863
        %v4865 = vpop.xlane.xlu0 %4864
        %v4866 = vmax.f32 %v4736, %v4738
        %4867 = vmax.xlane.f32.xlu0 %v4866
        %v4868 = vpop.xlane.xlu0 %4867
        %v4869 = vmax.f32 %v4742, %v4744
        %4870 = vmax.xlane.f32.xlu0 %v4869
        %v4871 = vpop.xlane.xlu0 %4870
        %v4872 = vmax.f32 %v4748, %v4750
        %4873 = vmax.xlane.f32.xlu0 %v4872
        %v4874 = vpop.xlane.xlu0 %4873
        %v4875 = vmax.f32 %v4754, %v4756
        %4876 = vmax.xlane.f32.xlu0 %v4875
        %v4877 = vpop.xlane.xlu0 %4876
        %v4878 = vmax.f32 %v4760, %v4762
        %4879 = vmax.xlane.f32.xlu0 %v4878
        %v4880 = vpop.xlane.xlu0 %4879
        %v4881 = vmax.f32 %v4766, %v4768
        %4882 = vmax.xlane.f32.xlu0 %v4881
        %v4883 = vpop.xlane.xlu0 %4882
        %v4884 = vmax.f32 %v4772, %v4774
        %4885 = vmax.xlane.f32.xlu0 %v4884
        %v4886 = vpop.xlane.xlu0 %4885
        %v4887 = vmax.f32 %v4778, %v4780
        %4888 = vmax.xlane.f32.xlu0 %v4887
        %v4889 = vpop.xlane.xlu0 %4888
        %v4890 = vmax.f32 %v4784, %v4786
        %4891 = vmax.xlane.f32.xlu0 %v4890
        %v4892 = vpop.xlane.xlu0 %4891
        %v4893 = vmax.f32 %v4790, %v4792
        %4894 = vmax.xlane.f32.xlu0 %v4893
        %v4895 = vpop.xlane.xlu0 %4894
        %v4896 = vmax.f32 %v4796, %v4798
        %4897 = vmax.xlane.f32.xlu0 %v4896
        %v4898 = vpop.xlane.xlu0 %4897
        %v4899 = vmax.f32 %v4802, %v4804
        %4900 = vmax.xlane.f32.xlu0 %v4899
        %v4901 = vpop.xlane.xlu0 %4900
        %v4902 = vsub.f32 %v4616, %v4808
        %v4903 = vsub.f32 %v4618, %v4808
        %v4904 = vsub.f32 %v4622, %v4811
        %v4905 = vsub.f32 %v4624, %v4811
        %v4906 = vsub.f32 %v4628, %v4814
        %v4907 = vsub.f32 %v4630, %v4814
        %v4908 = vsub.f32 %v4634, %v4817
        %v4909 = vsub.f32 %v4636, %v4817
        %v4910 = vsub.f32 %v4640, %v4820
        %v4911 = vsub.f32 %v4642, %v4820
        %v4912 = vsub.f32 %v4646, %v4823
        %v4913 = vsub.f32 %v4648, %v4823
        %v4914 = vsub.f32 %v4652, %v4826
        %v4915 = vsub.f32 %v4654, %v4826
        %v4916 = vsub.f32 %v4658, %v4829
        %v4917 = vsub.f32 %v4660, %v4829
        %v4918 = vsub.f32 %v4664, %v4832
        %v4919 = vsub.f32 %v4666, %v4832
        %v4920 = vsub.f32 %v4670, %v4835
        %v4921 = vsub.f32 %v4672, %v4835
        %v4922 = vsub.f32 %v4676, %v4838
        %v4923 = vsub.f32 %v4678, %v4838
        %v4924 = vsub.f32 %v4682, %v4841
        %v4925 = vsub.f32 %v4684, %v4841
        %v4926 = vsub.f32 %v4688, %v4844
        %v4927 = vsub.f32 %v4690, %v4844
        %v4928 = vsub.f32 %v4694, %v4847
        %v4929 = vsub.f32 %v4696, %v4847
        %v4930 = vsub.f32 %v4700, %v4850
        %v4931 = vsub.f32 %v4702, %v4850
        %v4932 = vsub.f32 %v4706, %v4853
        %v4933 = vsub.f32 %v4708, %v4853
        %v4934 = vsub.f32 %v4712, %v4856
        %v4935 = vsub.f32 %v4714, %v4856
        %v4936 = vsub.f32 %v4718, %v4859
        %v4937 = vsub.f32 %v4720, %v4859
        %v4938 = vsub.f32 %v4724, %v4862
        %v4939 = vsub.f32 %v4726, %v4862
        %v4940 = vsub.f32 %v4730, %v4865
        %v4941 = vsub.f32 %v4732, %v4865
        %v4942 = vsub.f32 %v4736, %v4868
        %v4943 = vsub.f32 %v4738, %v4868
        %v4944 = vsub.f32 %v4742, %v4871
        %v4945 = vsub.f32 %v4744, %v4871
        %v4946 = vsub.f32 %v4748, %v4874
        %v4947 = vsub.f32 %v4750, %v4874
        %v4948 = vsub.f32 %v4754, %v4877
        %v4949 = vsub.f32 %v4756, %v4877
        %v4950 = vsub.f32 %v4760, %v4880
        %v4951 = vsub.f32 %v4762, %v4880
        %v4952 = vsub.f32 %v4766, %v4883
        %v4953 = vsub.f32 %v4768, %v4883
        %v4954 = vsub.f32 %v4772, %v4886
        %v4955 = vsub.f32 %v4774, %v4886
        %v4956 = vsub.f32 %v4778, %v4889
        %v4957 = vsub.f32 %v4780, %v4889
        %v4958 = vsub.f32 %v4784, %v4892
        %v4959 = vsub.f32 %v4786, %v4892
        %v4960 = vsub.f32 %v4790, %v4895
        %v4961 = vsub.f32 %v4792, %v4895
        %v4962 = vsub.f32 %v4796, %v4898
        %v4963 = vsub.f32 %v4798, %v4898
        %v4964 = vsub.f32 %v4802, %v4901
        %v4965 = vsub.f32 %v4804, %v4901
        %v4966 = vmul.f32 %v4902, 1.442695
        %v4967 = vpow.pop %v4966
        %v4968 = vmul.f32 %v4903, 1.442695
        %v4969 = vpow.pop %v4968
        %v4970 = vmul.f32 %v4904, 1.442695
        %v4971 = vpow.pop %v4970
        %v4972 = vmul.f32 %v4905, 1.442695
        %v4973 = vpow.pop %v4972
        %v4974 = vmul.f32 %v4906, 1.442695
        %v4975 = vpow.pop %v4974
        %v4976 = vmul.f32 %v4907, 1.442695
        %v4977 = vpow.pop %v4976
        %v4978 = vmul.f32 %v4908, 1.442695
        %v4979 = vpow.pop %v4978
        %v4980 = vmul.f32 %v4909, 1.442695
        %v4981 = vpow.pop %v4980
        %v4982 = vmul.f32 %v4910, 1.442695
        %v4983 = vpow.pop %v4982
        %v4984 = vmul.f32 %v4911, 1.442695
        %v4985 = vpow.pop %v4984
        %v4986 = vmul.f32 %v4912, 1.442695
        %v4987 = vpow.pop %v4986
        %v4988 = vmul.f32 %v4913, 1.442695
        %v4989 = vpow.pop %v4988
        %v4990 = vmul.f32 %v4914, 1.442695
        %v4991 = vpow.pop %v4990
        %v4992 = vmul.f32 %v4915, 1.442695
        %v4993 = vpow.pop %v4992
        %v4994 = vmul.f32 %v4916, 1.442695
        %v4995 = vpow.pop %v4994
        %v4996 = vmul.f32 %v4917, 1.442695
        %v4997 = vpow.pop %v4996
        %v4998 = vmul.f32 %v4918, 1.442695
        %v4999 = vpow.pop %v4998
        %v5000 = vmul.f32 %v4919, 1.442695
        %v5001 = vpow.pop %v5000
        %v5002 = vmul.f32 %v4920, 1.442695
        %v5003 = vpow.pop %v5002
        %v5004 = vmul.f32 %v4921, 1.442695
        %v5005 = vpow.pop %v5004
        %v5006 = vmul.f32 %v4922, 1.442695
        %v5007 = vpow.pop %v5006
        %v5008 = vmul.f32 %v4923, 1.442695
        %v5009 = vpow.pop %v5008
        %v5010 = vmul.f32 %v4924, 1.442695
        %v5011 = vpow.pop %v5010
        %v5012 = vmul.f32 %v4925, 1.442695
        %v5013 = vpow.pop %v5012
        %v5014 = vmul.f32 %v4926, 1.442695
        %v5015 = vpow.pop %v5014
        %v5016 = vmul.f32 %v4927, 1.442695
        %v5017 = vpow.pop %v5016
        %v5018 = vmul.f32 %v4928, 1.442695
        %v5019 = vpow.pop %v5018
        %v5020 = vmul.f32 %v4929, 1.442695
        %v5021 = vpow.pop %v5020
        %v5022 = vmul.f32 %v4930, 1.442695
        %v5023 = vpow.pop %v5022
        %v5024 = vmul.f32 %v4931, 1.442695
        %v5025 = vpow.pop %v5024
        %v5026 = vmul.f32 %v4932, 1.442695
        %v5027 = vpow.pop %v5026
        %v5028 = vmul.f32 %v4933, 1.442695
        %v5029 = vpow.pop %v5028
        %v5030 = vmul.f32 %v4934, 1.442695
        %v5031 = vpow.pop %v5030
        %v5032 = vmul.f32 %v4935, 1.442695
        %v5033 = vpow.pop %v5032
        %v5034 = vmul.f32 %v4936, 1.442695
        %v5035 = vpow.pop %v5034
        %v5036 = vmul.f32 %v4937, 1.442695
        %v5037 = vpow.pop %v5036
        %v5038 = vmul.f32 %v4938, 1.442695
        %v5039 = vpow.pop %v5038
        %v5040 = vmul.f32 %v4939, 1.442695
        %v5041 = vpow.pop %v5040
        %v5042 = vmul.f32 %v4940, 1.442695
        %v5043 = vpow.pop %v5042
        %v5044 = vmul.f32 %v4941, 1.442695
        %v5045 = vpow.pop %v5044
        %v5046 = vmul.f32 %v4942, 1.442695
        %v5047 = vpow.pop %v5046
        %v5048 = vmul.f32 %v4943, 1.442695
        %v5049 = vpow.pop %v5048
        %v5050 = vmul.f32 %v4944, 1.442695
        %v5051 = vpow.pop %v5050
        %v5052 = vmul.f32 %v4945, 1.442695
        %v5053 = vpow.pop %v5052
        %v5054 = vmul.f32 %v4946, 1.442695
        %v5055 = vpow.pop %v5054
        %v5056 = vmul.f32 %v4947, 1.442695
        %v5057 = vpow.pop %v5056
        %v5058 = vmul.f32 %v4948, 1.442695
        %v5059 = vpow.pop %v5058
        %v5060 = vmul.f32 %v4949, 1.442695
        %v5061 = vpow.pop %v5060
        %v5062 = vmul.f32 %v4950, 1.442695
        %v5063 = vpow.pop %v5062
        %v5064 = vmul.f32 %v4951, 1.442695
        %v5065 = vpow.pop %v5064
        %v5066 = vmul.f32 %v4952, 1.442695
        %v5067 = vpow.pop %v5066
        %v5068 = vmul.f32 %v4953, 1.442695
        %v5069 = vpow.pop %v5068
        %v5070 = vmul.f32 %v4954, 1.442695
        %v5071 = vpow.pop %v5070
        %v5072 = vmul.f32 %v4955, 1.442695
        %v5073 = vpow.pop %v5072
        %v5074 = vmul.f32 %v4956, 1.442695
        %v5075 = vpow.pop %v5074
        %v5076 = vmul.f32 %v4957, 1.442695
        %v5077 = vpow.pop %v5076
        %v5078 = vmul.f32 %v4958, 1.442695
        %v5079 = vpow.pop %v5078
        %v5080 = vmul.f32 %v4959, 1.442695
        %v5081 = vpow.pop %v5080
        %v5082 = vmul.f32 %v4960, 1.442695
        %v5083 = vpow.pop %v5082
        %v5084 = vmul.f32 %v4961, 1.442695
        %v5085 = vpow.pop %v5084
        %v5086 = vmul.f32 %v4962, 1.442695
        %v5087 = vpow.pop %v5086
        %v5088 = vmul.f32 %v4963, 1.442695
        %v5089 = vpow.pop %v5088
        %v5090 = vmul.f32 %v4964, 1.442695
        %v5091 = vpow.pop %v5090
        %v5092 = vmul.f32 %v4965, 1.442695
        %v5093 = vpow.pop %v5092
        %v5094 = vadd.f32 %v4967, %v4969
        %5095 = vadd.xlane.f32.xlu0 %v5094
        %v5096 = vpop.xlane.xlu0 %5095
        %v5097 = vadd.f32 %v4971, %v4973
        %5098 = vadd.xlane.f32.xlu0 %v5097
        %v5099 = vpop.xlane.xlu0 %5098
        %v5100 = vadd.f32 %v4975, %v4977
        %5101 = vadd.xlane.f32.xlu0 %v5100
        %v5102 = vpop.xlane.xlu0 %5101
        %v5103 = vadd.f32 %v4979, %v4981
        %5104 = vadd.xlane.f32.xlu0 %v5103
        %v5105 = vpop.xlane.xlu0 %5104
        %v5106 = vadd.f32 %v4983, %v4985
        %5107 = vadd.xlane.f32.xlu0 %v5106
        %v5108 = vpop.xlane.xlu0 %5107
        %v5109 = vadd.f32 %v4987, %v4989
        %5110 = vadd.xlane.f32.xlu0 %v5109
        %v5111 = vpop.xlane.xlu0 %5110
        %v5112 = vadd.f32 %v4991, %v4993
        %5113 = vadd.xlane.f32.xlu0 %v5112
        %v5114 = vpop.xlane.xlu0 %5113
        %v5115 = vadd.f32 %v4995, %v4997
        %5116 = vadd.xlane.f32.xlu0 %v5115
        %v5117 = vpop.xlane.xlu0 %5116
        %v5118 = vadd.f32 %v4999, %v5001
        %5119 = vadd.xlane.f32.xlu0 %v5118
        %v5120 = vpop.xlane.xlu0 %5119
        %v5121 = vadd.f32 %v5003, %v5005
        %5122 = vadd.xlane.f32.xlu0 %v5121
        %v5123 = vpop.xlane.xlu0 %5122
        %v5124 = vadd.f32 %v5007, %v5009
        %5125 = vadd.xlane.f32.xlu0 %v5124
        %v5126 = vpop.xlane.xlu0 %5125
        %v5127 = vadd.f32 %v5011, %v5013
        %5128 = vadd.xlane.f32.xlu0 %v5127
        %v5129 = vpop.xlane.xlu0 %5128
        %v5130 = vadd.f32 %v5015, %v5017
        %5131 = vadd.xlane.f32.xlu0 %v5130
        %v5132 = vpop.xlane.xlu0 %5131
        %v5133 = vadd.f32 %v5019, %v5021
        %5134 = vadd.xlane.f32.xlu0 %v5133
        %v5135 = vpop.xlane.xlu0 %5134
        %v5136 = vadd.f32 %v5023, %v5025
        %5137 = vadd.xlane.f32.xlu0 %v5136
        %v5138 = vpop.xlane.xlu0 %5137
        %v5139 = vadd.f32 %v5027, %v5029
        %5140 = vadd.xlane.f32.xlu0 %v5139
        %v5141 = vpop.xlane.xlu0 %5140
        %v5142 = vadd.f32 %v5031, %v5033
        %5143 = vadd.xlane.f32.xlu0 %v5142
        %v5144 = vpop.xlane.xlu0 %5143
        %v5145 = vadd.f32 %v5035, %v5037
        %5146 = vadd.xlane.f32.xlu0 %v5145
        %v5147 = vpop.xlane.xlu0 %5146
        %v5148 = vadd.f32 %v5039, %v5041
        %5149 = vadd.xlane.f32.xlu0 %v5148
        %v5150 = vpop.xlane.xlu0 %5149
        %v5151 = vadd.f32 %v5043, %v5045
        %5152 = vadd.xlane.f32.xlu0 %v5151
        %v5153 = vpop.xlane.xlu0 %5152
        %v5154 = vadd.f32 %v5047, %v5049
        %5155 = vadd.xlane.f32.xlu0 %v5154
        %v5156 = vpop.xlane.xlu0 %5155
        %v5157 = vadd.f32 %v5051, %v5053
        %5158 = vadd.xlane.f32.xlu0 %v5157
        %v5159 = vpop.xlane.xlu0 %5158
        %v5160 = vadd.f32 %v5055, %v5057
        %5161 = vadd.xlane.f32.xlu0 %v5160
        %v5162 = vpop.xlane.xlu0 %5161
        %v5163 = vadd.f32 %v5059, %v5061
        %5164 = vadd.xlane.f32.xlu0 %v5163
        %v5165 = vpop.xlane.xlu0 %5164
        %v5166 = vadd.f32 %v5063, %v5065
        %5167 = vadd.xlane.f32.xlu0 %v5166
        %v5168 = vpop.xlane.xlu0 %5167
        %v5169 = vadd.f32 %v5067, %v5069
        %5170 = vadd.xlane.f32.xlu0 %v5169
        %v5171 = vpop.xlane.xlu0 %5170
        %v5172 = vadd.f32 %v5071, %v5073
        %5173 = vadd.xlane.f32.xlu0 %v5172
        %v5174 = vpop.xlane.xlu0 %5173
        %v5175 = vadd.f32 %v5075, %v5077
        %5176 = vadd.xlane.f32.xlu0 %v5175
        %v5177 = vpop.xlane.xlu0 %5176
        %v5178 = vadd.f32 %v5079, %v5081
        %5179 = vadd.xlane.f32.xlu0 %v5178
        %v5180 = vpop.xlane.xlu0 %5179
        %v5181 = vadd.f32 %v5083, %v5085
        %5182 = vadd.xlane.f32.xlu0 %v5181
        %v5183 = vpop.xlane.xlu0 %5182
        %v5184 = vadd.f32 %v5087, %v5089
        %5185 = vadd.xlane.f32.xlu0 %v5184
        %v5186 = vpop.xlane.xlu0 %5185
        %v5187 = vadd.f32 %v5091, %v5093
        %5188 = vadd.xlane.f32.xlu0 %v5187
        %v5189 = vpop.xlane.xlu0 %5188
        %v5190 = vrcp.pop %v5096
        %v5191 = vrcp.pop %v5099
        %v5192 = vrcp.pop %v5102
        %v5193 = vrcp.pop %v5105
        %v5194 = vrcp.pop %v5108
        %v5195 = vrcp.pop %v5111
        %v5196 = vrcp.pop %v5114
        %v5197 = vrcp.pop %v5117
        %v5198 = vrcp.pop %v5120
        %v5199 = vrcp.pop %v5123
        %v5200 = vrcp.pop %v5126
        %v5201 = vrcp.pop %v5129
        %v5202 = vrcp.pop %v5132
        %v5203 = vrcp.pop %v5135
        %v5204 = vrcp.pop %v5138
        %v5205 = vrcp.pop %v5141
        %v5206 = vrcp.pop %v5144
        %v5207 = vrcp.pop %v5147
        %v5208 = vrcp.pop %v5150
        %v5209 = vrcp.pop %v5153
        %v5210 = vrcp.pop %v5156
        %v5211 = vrcp.pop %v5159
        %v5212 = vrcp.pop %v5162
        %v5213 = vrcp.pop %v5165
        %v5214 = vrcp.pop %v5168
        %v5215 = vrcp.pop %v5171
        %v5216 = vrcp.pop %v5174
        %v5217 = vrcp.pop %v5177
        %v5218 = vrcp.pop %v5180
        %v5219 = vrcp.pop %v5183
        %v5220 = vrcp.pop %v5186
        %v5221 = vrcp.pop %v5189
        %v5222 = vmul.f32 %v4967, %v5190
        %v5223 = vmul.f32 %v4969, %v5190
        %v5224 = vmul.f32 %v4971, %v5191
        %v5225 = vmul.f32 %v4973, %v5191
        %v5226 = vmul.f32 %v4975, %v5192
        %v5227 = vmul.f32 %v4977, %v5192
        %v5228 = vmul.f32 %v4979, %v5193
        %v5229 = vmul.f32 %v4981, %v5193
        %v5230 = vmul.f32 %v4983, %v5194
        %v5231 = vmul.f32 %v4985, %v5194
        %v5232 = vmul.f32 %v4987, %v5195
        %v5233 = vmul.f32 %v4989, %v5195
        %v5234 = vmul.f32 %v4991, %v5196
        %v5235 = vmul.f32 %v4993, %v5196
        %v5236 = vmul.f32 %v4995, %v5197
        %v5237 = vmul.f32 %v4997, %v5197
        %v5238 = vmul.f32 %v4999, %v5198
        %v5239 = vmul.f32 %v5001, %v5198
        %v5240 = vmul.f32 %v5003, %v5199
        %v5241 = vmul.f32 %v5005, %v5199
        %v5242 = vmul.f32 %v5007, %v5200
        %v5243 = vmul.f32 %v5009, %v5200
        %v5244 = vmul.f32 %v5011, %v5201
        %v5245 = vmul.f32 %v5013, %v5201
        %v5246 = vmul.f32 %v5015, %v5202
        %v5247 = vmul.f32 %v5017, %v5202
        %v5248 = vmul.f32 %v5019, %v5203
        %v5249 = vmul.f32 %v5021, %v5203
        %v5250 = vmul.f32 %v5023, %v5204
        %v5251 = vmul.f32 %v5025, %v5204
        %v5252 = vmul.f32 %v5027, %v5205
        %v5253 = vmul.f32 %v5029, %v5205
        %v5254 = vmul.f32 %v5031, %v5206
        %v5255 = vmul.f32 %v5033, %v5206
        %v5256 = vmul.f32 %v5035, %v5207
        %v5257 = vmul.f32 %v5037, %v5207
        %v5258 = vmul.f32 %v5039, %v5208
        %v5259 = vmul.f32 %v5041, %v5208
        %v5260 = vmul.f32 %v5043, %v5209
        %v5261 = vmul.f32 %v5045, %v5209
        %v5262 = vmul.f32 %v5047, %v5210
        %v5263 = vmul.f32 %v5049, %v5210
        %v5264 = vmul.f32 %v5051, %v5211
        %v5265 = vmul.f32 %v5053, %v5211
        %v5266 = vmul.f32 %v5055, %v5212
        %v5267 = vmul.f32 %v5057, %v5212
        %v5268 = vmul.f32 %v5059, %v5213
        %v5269 = vmul.f32 %v5061, %v5213
        %v5270 = vmul.f32 %v5063, %v5214
        %v5271 = vmul.f32 %v5065, %v5214
        %v5272 = vmul.f32 %v5067, %v5215
        %v5273 = vmul.f32 %v5069, %v5215
        %v5274 = vmul.f32 %v5071, %v5216
        %v5275 = vmul.f32 %v5073, %v5216
        %v5276 = vmul.f32 %v5075, %v5217
        %v5277 = vmul.f32 %v5077, %v5217
        %v5278 = vmul.f32 %v5079, %v5218
        %v5279 = vmul.f32 %v5081, %v5218
        %v5280 = vmul.f32 %v5083, %v5219
        %v5281 = vmul.f32 %v5085, %v5219
        %v5282 = vmul.f32 %v5087, %v5220
        %v5283 = vmul.f32 %v5089, %v5220
        %v5284 = vmul.f32 %v5091, %v5221
        %v5285 = vmul.f32 %v5093, %v5221
        %5286 = vmatprep.subr.mxu0 %v5223
        %5287 = vmatpush1.xpose.msra.mxu0 %v5222
        %5288 = vmatprep.subr.mxu0 %v5225
        %5289 = vmatpush1.xpose.msra.mxu0 %v5224
        %5290 = vmatprep.subr.mxu0 %v5227
        %5291 = vmatpush1.xpose.msra.mxu0 %v5226
        %5292 = vmatprep.subr.mxu0 %v5229
        %5293 = vmatpush1.xpose.msra.mxu0 %v5228
        %5294 = vmatprep.subr.mxu0 %v5231
        %5295 = vmatpush1.xpose.msra.mxu0 %v5230
        %5296 = vmatprep.subr.mxu0 %v5233
        %5297 = vmatpush1.xpose.msra.mxu0 %v5232
        %5298 = vmatprep.subr.mxu0 %v5235
        %5299 = vmatpush1.xpose.msra.mxu0 %v5234
        %5300 = vmatprep.subr.mxu0 %v5237
        %5301 = vmatpush1.xpose.msra.mxu0 %v5236
        %5302 = vmatprep.subr.mxu0 %v5239
        %5303 = vmatpush1.xpose.msra.mxu0 %v5238
        %5304 = vmatprep.subr.mxu0 %v5241
        %5305 = vmatpush1.xpose.msra.mxu0 %v5240
        %5306 = vmatprep.subr.mxu0 %v5243
        %5307 = vmatpush1.xpose.msra.mxu0 %v5242
        %5308 = vmatprep.subr.mxu0 %v5245
        %5309 = vmatpush1.xpose.msra.mxu0 %v5244
        %5310 = vmatprep.subr.mxu0 %v5247
        %5311 = vmatpush1.xpose.msra.mxu0 %v5246
        %5312 = vmatprep.subr.mxu0 %v5249
        %5313 = vmatpush1.xpose.msra.mxu0 %v5248
        %5314 = vmatprep.subr.mxu0 %v5251
        %5315 = vmatpush1.xpose.msra.mxu0 %v5250
        %5316 = vmatprep.subr.mxu0 %v5253
        %5317 = vmatpush1.xpose.msra.mxu0 %v5252
        %5318 = vmatprep.subr.mxu0 %v5255
        %5319 = vmatpush1.xpose.msra.mxu0 %v5254
        %5320 = vmatprep.subr.mxu0 %v5257
        %5321 = vmatpush1.xpose.msra.mxu0 %v5256
        %5322 = vmatprep.subr.mxu0 %v5259
        %5323 = vmatpush1.xpose.msra.mxu0 %v5258
        %5324 = vmatprep.subr.mxu0 %v5261
        %5325 = vmatpush1.xpose.msra.mxu0 %v5260
        %5326 = vmatprep.subr.mxu0 %v5263
        %5327 = vmatpush1.xpose.msra.mxu0 %v5262
        %5328 = vmatprep.subr.mxu0 %v5265
        %5329 = vmatpush1.xpose.msra.mxu0 %v5264
        %5330 = vmatprep.subr.mxu0 %v5267
        %5331 = vmatpush1.xpose.msra.mxu0 %v5266
        %5332 = vmatprep.subr.mxu0 %v5269
        %5333 = vmatpush1.xpose.msra.mxu0 %v5268
        %5334 = vmatprep.subr.mxu0 %v5271
        %5335 = vmatpush1.xpose.msra.mxu0 %v5270
        %5336 = vmatprep.subr.mxu0 %v5273
        %5337 = vmatpush1.xpose.msra.mxu0 %v5272
        %5338 = vmatprep.subr.mxu0 %v5275
        %5339 = vmatpush1.xpose.msra.mxu0 %v5274
        %5340 = vmatprep.subr.mxu0 %v5277
        %5341 = vmatpush1.xpose.msra.mxu0 %v5276
        %5342 = vmatprep.subr.mxu0 %v5279
        %5343 = vmatpush1.xpose.msra.mxu0 %v5278
        %5344 = vmatprep.subr.mxu0 %v5281
        %5345 = vmatpush1.xpose.msra.mxu0 %v5280
        %5346 = vmatprep.subr.mxu0 %v5283
        %5347 = vmatpush1.xpose.msra.mxu0 %v5282
        %5348 = vmatprep.subr.mxu0 %v5285
        %5349 = vmatpush1.xpose.msra.mxu0 %v5284
        %5350 = vmatprep.mubr.f32.mxu0 %v427
        %5351 = vmatmul.mubr.f32.gmra.mrb[0].mxu0 %v425
        %v5352 = vpop.f32.mrb[0].mxu0
        %v5353 = vadd.f32 0.0, %v5352
        %v5354 = vpop.f32.mrb[0].mxu0
        %v5355 = vadd.f32 0.0, %v5354
        %5356 = vdwg.mxu0
        %5357 = vst [vmem:[%s163 + $0x20] sm:$0xf] %v5353
        %5358 = vst [vmem:[%s163 + $0x28] sm:$0xf] %v5355
        %v5361 = vrot.slane %v439, 4
        %v5362 = vrot.slane %v440, 4
        %5365 = vxpose.xlu0.b32.start [1/16] %v5361, 128
        %5366 = vxpose.xlu0.b32.cont [2/16] 0.0, 128
        %5367 = vxpose.xlu0.b32.cont [3/16] 0.0, 128
        %5368 = vxpose.xlu0.b32.cont [4/16] 0.0, 128
        %5369 = vxpose.xlu0.b32.cont [5/16] 0.0, 128
        %5370 = vxpose.xlu0.b32.cont [6/16] 0.0, 128
        %5371 = vxpose.xlu0.b32.cont [7/16] 0.0, 128
        %5372 = vxpose.xlu0.b32.cont [8/16] 0.0, 128
        %5373 = vxpose.xlu0.b32.cont [9/16] 0.0, 128
        %5374 = vxpose.xlu0.b32.cont [10/16] 0.0, 128
        %5375 = vxpose.xlu0.b32.cont [11/16] 0.0, 128
        %5376 = vxpose.xlu0.b32.cont [12/16] 0.0, 128
        %5377 = vxpose.xlu0.b32.cont [13/16] 0.0, 128
        %5378 = vxpose.xlu0.b32.cont [14/16] 0.0, 128
        %5379 = vxpose.xlu0.b32.cont [15/16] 0.0, 128
        %5380 = vxpose.xlu0.b32.end [16/16] 0.0, 128
        %v5381 = vpop.trf.xlu0
        %v5382 = vpop.trf.xlu0
        %v5383 = vpop.trf.xlu0
        %v5384 = vpop.trf.xlu0
        %v5385 = vpop.trf.xlu0
        %v5386 = vpop.trf.xlu0
        %v5387 = vpop.trf.xlu0
        %v5388 = vpop.trf.xlu0
        %v5389 = vpop.trf.xlu0
        %v5390 = vpop.trf.xlu0
        %v5391 = vpop.trf.xlu0
        %v5392 = vpop.trf.xlu0
        %v5393 = vpop.trf.xlu0
        %v5394 = vpop.trf.xlu0
        %v5395 = vpop.trf.xlu0
        %v5396 = vpop.trf.xlu0
        %5397 = vxpose.xlu0.b32.start [1/16] %v5362, 128
        %5398 = vxpose.xlu0.b32.cont [2/16] 0.0, 128
        %5399 = vxpose.xlu0.b32.cont [3/16] 0.0, 128
        %5400 = vxpose.xlu0.b32.cont [4/16] 0.0, 128
        %5401 = vxpose.xlu0.b32.cont [5/16] 0.0, 128
        %5402 = vxpose.xlu0.b32.cont [6/16] 0.0, 128
        %5403 = vxpose.xlu0.b32.cont [7/16] 0.0, 128
        %5404 = vxpose.xlu0.b32.cont [8/16] 0.0, 128
        %5405 = vxpose.xlu0.b32.cont [9/16] 0.0, 128
        %5406 = vxpose.xlu0.b32.cont [10/16] 0.0, 128
        %5407 = vxpose.xlu0.b32.cont [11/16] 0.0, 128
        %5408 = vxpose.xlu0.b32.cont [12/16] 0.0, 128
        %5409 = vxpose.xlu0.b32.cont [13/16] 0.0, 128
        %5410 = vxpose.xlu0.b32.cont [14/16] 0.0, 128
        %5411 = vxpose.xlu0.b32.cont [15/16] 0.0, 128
        %5412 = vxpose.xlu0.b32.end [16/16] 0.0, 128
        %v5413 = vpop.trf.xlu0
        %v5414 = vpop.trf.xlu0
        %v5415 = vpop.trf.xlu0
        %v5416 = vpop.trf.xlu0
        %v5417 = vpop.trf.xlu0
        %v5418 = vpop.trf.xlu0
        %v5419 = vpop.trf.xlu0
        %v5420 = vpop.trf.xlu0
        %v5421 = vpop.trf.xlu0
        %v5422 = vpop.trf.xlu0
        %v5423 = vpop.trf.xlu0
        %v5424 = vpop.trf.xlu0
        %v5425 = vpop.trf.xlu0
        %v5426 = vpop.trf.xlu0
        %v5427 = vpop.trf.xlu0
        %v5428 = vpop.trf.xlu0
        %v5429 = vrot.slane %v401, 4
        %v5430 = vrot.slane %v403, 4
        %v5432 = vsel %vm256, %v5381, 0
        %v5435 = vsel %vm256, %v5382, 0
        %v5438 = vsel %vm256, %v5383, 0
        %v5441 = vsel %vm256, %v5384, 0
        %v5444 = vsel %vm256, %v5385, 0
        %v5447 = vsel %vm256, %v5386, 0
        %v5450 = vsel %vm256, %v5387, 0
        %v5453 = vsel %vm256, %v5388, 0
        %v5456 = vsel %vm256, %v5389, 0
        %v5459 = vsel %vm256, %v5390, 0
        %v5462 = vsel %vm256, %v5391, 0
        %v5465 = vsel %vm256, %v5392, 0
        %v5468 = vsel %vm256, %v5393, 0
        %v5471 = vsel %vm256, %v5394, 0
        %v5474 = vsel %vm256, %v5395, 0
        %v5477 = vsel %vm256, %v5396, 0
        %v5480 = vsel %vm256, %v5413, 0
        %v5483 = vsel %vm256, %v5414, 0
        %v5486 = vsel %vm256, %v5415, 0
        %v5489 = vsel %vm256, %v5416, 0
        %v5492 = vsel %vm256, %v5417, 0
        %v5495 = vsel %vm256, %v5418, 0
        %v5498 = vsel %vm256, %v5419, 0
        %v5501 = vsel %vm256, %v5420, 0
        %v5504 = vsel %vm256, %v5421, 0
        %v5507 = vsel %vm256, %v5422, 0
        %v5510 = vsel %vm256, %v5423, 0
        %v5513 = vsel %vm256, %v5424, 0
        %v5516 = vsel %vm256, %v5425, 0
        %v5519 = vsel %vm256, %v5426, 0
        %v5522 = vsel %vm256, %v5427, 0
        %v5525 = vsel %vm256, %v5428, 0
        %v5527 = vsel %vm293, %v5429, 0
        %v5529 = vsel %vm293, %v5430, 0
        %5531 = vmatprep.subr.mxu0 %v5529
        %5532 = vmatpush1.msra.mxu0 %v5527
        %5533 = vmatprep.subr.mxu0 0.0
        %5534 = vmatpush1.msra.mxu0 0.0
        %5535 = vmatprep.subr.mxu0 0.0
        %5536 = vmatpush1.msra.mxu0 0.0
        %5537 = vmatprep.subr.mxu0 0.0
        %5538 = vmatpush1.msra.mxu0 0.0
        %5539 = vmatprep.subr.mxu0 0.0
        %5540 = vmatpush1.msra.mxu0 0.0
        %5541 = vmatprep.subr.mxu0 0.0
        %5542 = vmatpush1.msra.mxu0 0.0
        %5543 = vmatprep.subr.mxu0 0.0
        %5544 = vmatpush1.msra.mxu0 0.0
        %5545 = vmatprep.subr.mxu0 0.0
        %5546 = vmatpush1.msra.mxu0 0.0
        %5547 = vmatprep.subr.mxu0 0.0
        %5548 = vmatpush1.msra.mxu0 0.0
        %5549 = vmatprep.subr.mxu0 0.0
        %5550 = vmatpush1.msra.mxu0 0.0
        %5551 = vmatprep.subr.mxu0 0.0
        %5552 = vmatpush1.msra.mxu0 0.0
        %5553 = vmatprep.subr.mxu0 0.0
        %5554 = vmatpush1.msra.mxu0 0.0
        %5555 = vmatprep.subr.mxu0 0.0
        %5556 = vmatpush1.msra.mxu0 0.0
        %5557 = vmatprep.subr.mxu0 0.0
        %5558 = vmatpush1.msra.mxu0 0.0
        %5559 = vmatprep.subr.mxu0 0.0
        %5560 = vmatpush1.msra.mxu0 0.0
        %5561 = vmatprep.subr.mxu0 0.0
        %5562 = vmatpush1.msra.mxu0 0.0
        %5563 = vmatprep.subr.mxu0 0.0
        %5564 = vmatpush1.msra.mxu0 0.0
        %5565 = vmatprep.subr.mxu0 0.0
        %5566 = vmatpush1.msra.mxu0 0.0
        %5567 = vmatprep.subr.mxu0 0.0
        %5568 = vmatpush1.msra.mxu0 0.0
        %5569 = vmatprep.subr.mxu0 0.0
        %5570 = vmatpush1.msra.mxu0 0.0
        %5571 = vmatprep.subr.mxu0 0.0
        %5572 = vmatpush1.msra.mxu0 0.0
        %5573 = vmatprep.subr.mxu0 0.0
        %5574 = vmatpush1.msra.mxu0 0.0
        %5575 = vmatprep.subr.mxu0 0.0
        %5576 = vmatpush1.msra.mxu0 0.0
        %5577 = vmatprep.subr.mxu0 0.0
        %5578 = vmatpush1.msra.mxu0 0.0
        %5579 = vmatprep.subr.mxu0 0.0
        %5580 = vmatpush1.msra.mxu0 0.0
        %5581 = vmatprep.subr.mxu0 0.0
        %5582 = vmatpush1.msra.mxu0 0.0
        %5583 = vmatprep.subr.mxu0 0.0
        %5584 = vmatpush1.msra.mxu0 0.0
        %5585 = vmatprep.subr.mxu0 0.0
        %5586 = vmatpush1.msra.mxu0 0.0
        %5587 = vmatprep.subr.mxu0 0.0
        %5588 = vmatpush1.msra.mxu0 0.0
        %5589 = vmatprep.subr.mxu0 0.0
        %5590 = vmatpush1.msra.mxu0 0.0
        %5591 = vmatprep.subr.mxu0 0.0
        %5592 = vmatpush1.msra.mxu0 0.0
        %5593 = vmatprep.subr.mxu0 0.0
        %5594 = vmatpush1.msra.mxu0 0.0
        %5595 = vmatprep.mubr.f32.mxu0 0.0
        %5596 = vmatmul.mubr.f32.gmra.mrb[0].mxu0 %v5432
        %v5597 = vpop.f32.mrb[0].mxu0
        %v5598 = vadd.f32 0.0, %v5597
        %v5599 = vpop.f32.mrb[0].mxu0
        %v5600 = vadd.f32 0.0, %v5599
        %5601 = vmatprep.mubr.f32.mxu0 0.0
        %5602 = vmatmul.mubr.f32.gmra.mrb[0].mxu0 %v5435
        %v5603 = vpop.f32.mrb[0].mxu0
        %v5604 = vadd.f32 0.0, %v5603
        %v5605 = vpop.f32.mrb[0].mxu0
        %v5606 = vadd.f32 0.0, %v5605
        %5607 = vmatprep.mubr.f32.mxu0 0.0
        %5608 = vmatmul.mubr.f32.gmra.mrb[0].mxu0 %v5438
        %v5609 = vpop.f32.mrb[0].mxu0
        %v5610 = vadd.f32 0.0, %v5609
        %v5611 = vpop.f32.mrb[0].mxu0
        %v5612 = vadd.f32 0.0, %v5611
        %5613 = vmatprep.mubr.f32.mxu0 0.0
        %5614 = vmatmul.mubr.f32.gmra.mrb[0].mxu0 %v5441
        %v5615 = vpop.f32.mrb[0].mxu0
        %v5616 = vadd.f32 0.0, %v5615
        %v5617 = vpop.f32.mrb[0].mxu0
        %v5618 = vadd.f32 0.0, %v5617
        %5619 = vmatprep.mubr.f32.mxu0 0.0
        %5620 = vmatmul.mubr.f32.gmra.mrb[0].mxu0 %v5444
        %v5621 = vpop.f32.mrb[0].mxu0
        %v5622 = vadd.f32 0.0, %v5621
        %v5623 = vpop.f32.mrb[0].mxu0
        %v5624 = vadd.f32 0.0, %v5623
        %5625 = vmatprep.mubr.f32.mxu0 0.0
        %5626 = vmatmul.mubr.f32.gmra.mrb[0].mxu0 %v5447
        %v5627 = vpop.f32.mrb[0].mxu0
        %v5628 = vadd.f32 0.0, %v5627
        %v5629 = vpop.f32.mrb[0].mxu0
        %v5630 = vadd.f32 0.0, %v5629
        %5631 = vmatprep.mubr.f32.mxu0 0.0
        %5632 = vmatmul.mubr.f32.gmra.mrb[0].mxu0 %v5450
        %v5633 = vpop.f32.mrb[0].mxu0
        %v5634 = vadd.f32 0.0, %v5633
        %v5635 = vpop.f32.mrb[0].mxu0
        %v5636 = vadd.f32 0.0, %v5635
        %5637 = vmatprep.mubr.f32.mxu0 0.0
        %5638 = vmatmul.mubr.f32.gmra.mrb[0].mxu0 %v5453
        %v5639 = vpop.f32.mrb[0].mxu0
        %v5640 = vadd.f32 0.0, %v5639
        %v5641 = vpop.f32.mrb[0].mxu0
        %v5642 = vadd.f32 0.0, %v5641
        %5643 = vmatprep.mubr.f32.mxu0 0.0
        %5644 = vmatmul.mubr.f32.gmra.mrb[0].mxu0 %v5456
        %v5645 = vpop.f32.mrb[0].mxu0
        %v5646 = vadd.f32 0.0, %v5645
        %v5647 = vpop.f32.mrb[0].mxu0
        %v5648 = vadd.f32 0.0, %v5647
        %5649 = vmatprep.mubr.f32.mxu0 0.0
        %5650 = vmatmul.mubr.f32.gmra.mrb[0].mxu0 %v5459
        %v5651 = vpop.f32.mrb[0].mxu0
        %v5652 = vadd.f32 0.0, %v5651
        %v5653 = vpop.f32.mrb[0].mxu0
        %v5654 = vadd.f32 0.0, %v5653
        %5655 = vmatprep.mubr.f32.mxu0 0.0
        %5656 = vmatmul.mubr.f32.gmra.mrb[0].mxu0 %v5462
        %v5657 = vpop.f32.mrb[0].mxu0
        %v5658 = vadd.f32 0.0, %v5657
        %v5659 = vpop.f32.mrb[0].mxu0
        %v5660 = vadd.f32 0.0, %v5659
        %5661 = vmatprep.mubr.f32.mxu0 0.0
        %5662 = vmatmul.mubr.f32.gmra.mrb[0].mxu0 %v5465
        %v5663 = vpop.f32.mrb[0].mxu0
        %v5664 = vadd.f32 0.0, %v5663
        %v5665 = vpop.f32.mrb[0].mxu0
        %v5666 = vadd.f32 0.0, %v5665
        %5667 = vmatprep.mubr.f32.mxu0 0.0
        %5668 = vmatmul.mubr.f32.gmra.mrb[0].mxu0 %v5468
        %v5669 = vpop.f32.mrb[0].mxu0
        %v5670 = vadd.f32 0.0, %v5669
        %v5671 = vpop.f32.mrb[0].mxu0
        %v5672 = vadd.f32 0.0, %v5671
        %5673 = vmatprep.mubr.f32.mxu0 0.0
        %5674 = vmatmul.mubr.f32.gmra.mrb[0].mxu0 %v5471
        %v5675 = vpop.f32.mrb[0].mxu0
        %v5676 = vadd.f32 0.0, %v5675
        %v5677 = vpop.f32.mrb[0].mxu0
        %v5678 = vadd.f32 0.0, %v5677
        %5679 = vmatprep.mubr.f32.mxu0 0.0
        %5680 = vmatmul.mubr.f32.gmra.mrb[0].mxu0 %v5474
        %v5681 = vpop.f32.mrb[0].mxu0
        %v5682 = vadd.f32 0.0, %v5681
        %v5683 = vpop.f32.mrb[0].mxu0
        %v5684 = vadd.f32 0.0, %v5683
        %5685 = vmatprep.mubr.f32.mxu0 0.0
        %5686 = vmatmul.mubr.f32.gmra.mrb[0].mxu0 %v5477
        %v5687 = vpop.f32.mrb[0].mxu0
        %v5688 = vadd.f32 0.0, %v5687
        %v5689 = vpop.f32.mrb[0].mxu0
        %v5690 = vadd.f32 0.0, %v5689
        %5691 = vmatprep.mubr.f32.mxu0 0.0
        %5692 = vmatmul.mubr.f32.gmra.mrb[0].mxu0 %v5480
        %v5693 = vpop.f32.mrb[0].mxu0
        %v5694 = vadd.f32 0.0, %v5693
        %v5695 = vpop.f32.mrb[0].mxu0
        %v5696 = vadd.f32 0.0, %v5695
        %5697 = vmatprep.mubr.f32.mxu0 0.0
        %5698 = vmatmul.mubr.f32.gmra.mrb[0].mxu0 %v5483
        %v5699 = vpop.f32.mrb[0].mxu0
        %v5700 = vadd.f32 0.0, %v5699
        %v5701 = vpop.f32.mrb[0].mxu0
        %v5702 = vadd.f32 0.0, %v5701
        %5703 = vmatprep.mubr.f32.mxu0 0.0
        %5704 = vmatmul.mubr.f32.gmra.mrb[0].mxu0 %v5486
        %v5705 = vpop.f32.mrb[0].mxu0
        %v5706 = vadd.f32 0.0, %v5705
        %v5707 = vpop.f32.mrb[0].mxu0
        %v5708 = vadd.f32 0.0, %v5707
        %5709 = vmatprep.mubr.f32.mxu0 0.0
        %5710 = vmatmul.mubr.f32.gmra.mrb[0].mxu0 %v5489
        %v5711 = vpop.f32.mrb[0].mxu0
        %v5712 = vadd.f32 0.0, %v5711
        %v5713 = vpop.f32.mrb[0].mxu0
        %v5714 = vadd.f32 0.0, %v5713
        %5715 = vmatprep.mubr.f32.mxu0 0.0
        %5716 = vmatmul.mubr.f32.gmra.mrb[0].mxu0 %v5492
        %v5717 = vpop.f32.mrb[0].mxu0
        %v5718 = vadd.f32 0.0, %v5717
        %v5719 = vpop.f32.mrb[0].mxu0
        %v5720 = vadd.f32 0.0, %v5719
        %5721 = vmatprep.mubr.f32.mxu0 0.0
        %5722 = vmatmul.mubr.f32.gmra.mrb[0].mxu0 %v5495
        %v5723 = vpop.f32.mrb[0].mxu0
        %v5724 = vadd.f32 0.0, %v5723
        %v5725 = vpop.f32.mrb[0].mxu0
        %v5726 = vadd.f32 0.0, %v5725
        %5727 = vmatprep.mubr.f32.mxu0 0.0
        %5728 = vmatmul.mubr.f32.gmra.mrb[0].mxu0 %v5498
        %v5729 = vpop.f32.mrb[0].mxu0
        %v5730 = vadd.f32 0.0, %v5729
        %v5731 = vpop.f32.mrb[0].mxu0
        %v5732 = vadd.f32 0.0, %v5731
        %5733 = vmatprep.mubr.f32.mxu0 0.0
        %5734 = vmatmul.mubr.f32.gmra.mrb[0].mxu0 %v5501
        %v5735 = vpop.f32.mrb[0].mxu0
        %v5736 = vadd.f32 0.0, %v5735
        %v5737 = vpop.f32.mrb[0].mxu0
        %v5738 = vadd.f32 0.0, %v5737
        %5739 = vmatprep.mubr.f32.mxu0 0.0
        %5740 = vmatmul.mubr.f32.gmra.mrb[0].mxu0 %v5504
        %v5741 = vpop.f32.mrb[0].mxu0
        %v5742 = vadd.f32 0.0, %v5741
        %v5743 = vpop.f32.mrb[0].mxu0
        %v5744 = vadd.f32 0.0, %v5743
        %5745 = vmatprep.mubr.f32.mxu0 0.0
        %5746 = vmatmul.mubr.f32.gmra.mrb[0].mxu0 %v5507
        %v5747 = vpop.f32.mrb[0].mxu0
        %v5748 = vadd.f32 0.0, %v5747
        %v5749 = vpop.f32.mrb[0].mxu0
        %v5750 = vadd.f32 0.0, %v5749
        %5751 = vmatprep.mubr.f32.mxu0 0.0
        %5752 = vmatmul.mubr.f32.gmra.mrb[0].mxu0 %v5510
        %v5753 = vpop.f32.mrb[0].mxu0
        %v5754 = vadd.f32 0.0, %v5753
        %v5755 = vpop.f32.mrb[0].mxu0
        %v5756 = vadd.f32 0.0, %v5755
        %5757 = vmatprep.mubr.f32.mxu0 0.0
        %5758 = vmatmul.mubr.f32.gmra.mrb[0].mxu0 %v5513
        %v5759 = vpop.f32.mrb[0].mxu0
        %v5760 = vadd.f32 0.0, %v5759
        %v5761 = vpop.f32.mrb[0].mxu0
        %v5762 = vadd.f32 0.0, %v5761
        %5763 = vmatprep.mubr.f32.mxu0 0.0
        %5764 = vmatmul.mubr.f32.gmra.mrb[0].mxu0 %v5516
        %v5765 = vpop.f32.mrb[0].mxu0
        %v5766 = vadd.f32 0.0, %v5765
        %v5767 = vpop.f32.mrb[0].mxu0
        %v5768 = vadd.f32 0.0, %v5767
        %5769 = vmatprep.mubr.f32.mxu0 0.0
        %5770 = vmatmul.mubr.f32.gmra.mrb[0].mxu0 %v5519
        %v5771 = vpop.f32.mrb[0].mxu0
        %v5772 = vadd.f32 0.0, %v5771
        %v5773 = vpop.f32.mrb[0].mxu0
        %v5774 = vadd.f32 0.0, %v5773
        %5775 = vmatprep.mubr.f32.mxu0 0.0
        %5776 = vmatmul.mubr.f32.gmra.mrb[0].mxu0 %v5522
        %v5777 = vpop.f32.mrb[0].mxu0
        %v5778 = vadd.f32 0.0, %v5777
        %v5779 = vpop.f32.mrb[0].mxu0
        %v5780 = vadd.f32 0.0, %v5779
        %5781 = vmatprep.mubr.f32.mxu0 0.0
        %5782 = vmatmul.mubr.f32.gmra.mrb[0].mxu0 %v5525
        %v5783 = vpop.f32.mrb[0].mxu0
        %v5784 = vadd.f32 0.0, %v5783
        %v5785 = vpop.f32.mrb[0].mxu0
        %v5786 = vadd.f32 0.0, %v5785
        %5787 = vdwg.mxu0
        %v5788 = vmax.f32 %v5598, %v5600
        %5789 = vmax.xlane.f32.xlu0 %v5788
        %v5790 = vpop.xlane.xlu0 %5789
        %v5791 = vmax.f32 %v5604, %v5606
        %5792 = vmax.xlane.f32.xlu0 %v5791
        %v5793 = vpop.xlane.xlu0 %5792
        %v5794 = vmax.f32 %v5610, %v5612
        %5795 = vmax.xlane.f32.xlu0 %v5794
        %v5796 = vpop.xlane.xlu0 %5795
        %v5797 = vmax.f32 %v5616, %v5618
        %5798 = vmax.xlane.f32.xlu0 %v5797
        %v5799 = vpop.xlane.xlu0 %5798
        %v5800 = vmax.f32 %v5622, %v5624
        %5801 = vmax.xlane.f32.xlu0 %v5800
        %v5802 = vpop.xlane.xlu0 %5801
        %v5803 = vmax.f32 %v5628, %v5630
        %5804 = vmax.xlane.f32.xlu0 %v5803
        %v5805 = vpop.xlane.xlu0 %5804
        %v5806 = vmax.f32 %v5634, %v5636
        %5807 = vmax.xlane.f32.xlu0 %v5806
        %v5808 = vpop.xlane.xlu0 %5807
        %v5809 = vmax.f32 %v5640, %v5642
        %5810 = vmax.xlane.f32.xlu0 %v5809
        %v5811 = vpop.xlane.xlu0 %5810
        %v5812 = vmax.f32 %v5646, %v5648
        %5813 = vmax.xlane.f32.xlu0 %v5812
        %v5814 = vpop.xlane.xlu0 %5813
        %v5815 = vmax.f32 %v5652, %v5654
        %5816 = vmax.xlane.f32.xlu0 %v5815
        %v5817 = vpop.xlane.xlu0 %5816
        %v5818 = vmax.f32 %v5658, %v5660
        %5819 = vmax.xlane.f32.xlu0 %v5818
        %v5820 = vpop.xlane.xlu0 %5819
        %v5821 = vmax.f32 %v5664, %v5666
        %5822 = vmax.xlane.f32.xlu0 %v5821
        %v5823 = vpop.xlane.xlu0 %5822
        %v5824 = vmax.f32 %v5670, %v5672
        %5825 = vmax.xlane.f32.xlu0 %v5824
        %v5826 = vpop.xlane.xlu0 %5825
        %v5827 = vmax.f32 %v5676, %v5678
        %5828 = vmax.xlane.f32.xlu0 %v5827
        %v5829 = vpop.xlane.xlu0 %5828
        %v5830 = vmax.f32 %v5682, %v5684
        %5831 = vmax.xlane.f32.xlu0 %v5830
        %v5832 = vpop.xlane.xlu0 %5831
        %v5833 = vmax.f32 %v5688, %v5690
        %5834 = vmax.xlane.f32.xlu0 %v5833
        %v5835 = vpop.xlane.xlu0 %5834
        %v5836 = vmax.f32 %v5694, %v5696
        %5837 = vmax.xlane.f32.xlu0 %v5836
        %v5838 = vpop.xlane.xlu0 %5837
        %v5839 = vmax.f32 %v5700, %v5702
        %5840 = vmax.xlane.f32.xlu0 %v5839
        %v5841 = vpop.xlane.xlu0 %5840
        %v5842 = vmax.f32 %v5706, %v5708
        %5843 = vmax.xlane.f32.xlu0 %v5842
        %v5844 = vpop.xlane.xlu0 %5843
        %v5845 = vmax.f32 %v5712, %v5714
        %5846 = vmax.xlane.f32.xlu0 %v5845
        %v5847 = vpop.xlane.xlu0 %5846
        %v5848 = vmax.f32 %v5718, %v5720
        %5849 = vmax.xlane.f32.xlu0 %v5848
        %v5850 = vpop.xlane.xlu0 %5849
        %v5851 = vmax.f32 %v5724, %v5726
        %5852 = vmax.xlane.f32.xlu0 %v5851
        %v5853 = vpop.xlane.xlu0 %5852
        %v5854 = vmax.f32 %v5730, %v5732
        %5855 = vmax.xlane.f32.xlu0 %v5854
        %v5856 = vpop.xlane.xlu0 %5855
        %v5857 = vmax.f32 %v5736, %v5738
        %5858 = vmax.xlane.f32.xlu0 %v5857
        %v5859 = vpop.xlane.xlu0 %5858
        %v5860 = vmax.f32 %v5742, %v5744
        %5861 = vmax.xlane.f32.xlu0 %v5860
        %v5862 = vpop.xlane.xlu0 %5861
        %v5863 = vmax.f32 %v5748, %v5750
        %5864 = vmax.xlane.f32.xlu0 %v5863
        %v5865 = vpop.xlane.xlu0 %5864
        %v5866 = vmax.f32 %v5754, %v5756
        %5867 = vmax.xlane.f32.xlu0 %v5866
        %v5868 = vpop.xlane.xlu0 %5867
        %v5869 = vmax.f32 %v5760, %v5762
        %5870 = vmax.xlane.f32.xlu0 %v5869
        %v5871 = vpop.xlane.xlu0 %5870
        %v5872 = vmax.f32 %v5766, %v5768
        %5873 = vmax.xlane.f32.xlu0 %v5872
        %v5874 = vpop.xlane.xlu0 %5873
        %v5875 = vmax.f32 %v5772, %v5774
        %5876 = vmax.xlane.f32.xlu0 %v5875
        %v5877 = vpop.xlane.xlu0 %5876
        %v5878 = vmax.f32 %v5778, %v5780
        %5879 = vmax.xlane.f32.xlu0 %v5878
        %v5880 = vpop.xlane.xlu0 %5879
        %v5881 = vmax.f32 %v5784, %v5786
        %5882 = vmax.xlane.f32.xlu0 %v5881
        %v5883 = vpop.xlane.xlu0 %5882
        %v5884 = vsub.f32 %v5598, %v5790
        %v5885 = vsub.f32 %v5600, %v5790
        %v5886 = vsub.f32 %v5604, %v5793
        %v5887 = vsub.f32 %v5606, %v5793
        %v5888 = vsub.f32 %v5610, %v5796
        %v5889 = vsub.f32 %v5612, %v5796
        %v5890 = vsub.f32 %v5616, %v5799
        %v5891 = vsub.f32 %v5618, %v5799
        %v5892 = vsub.f32 %v5622, %v5802
        %v5893 = vsub.f32 %v5624, %v5802
        %v5894 = vsub.f32 %v5628, %v5805
        %v5895 = vsub.f32 %v5630, %v5805
        %v5896 = vsub.f32 %v5634, %v5808
        %v5897 = vsub.f32 %v5636, %v5808
        %v5898 = vsub.f32 %v5640, %v5811
        %v5899 = vsub.f32 %v5642, %v5811
        %v5900 = vsub.f32 %v5646, %v5814
        %v5901 = vsub.f32 %v5648, %v5814
        %v5902 = vsub.f32 %v5652, %v5817
        %v5903 = vsub.f32 %v5654, %v5817
        %v5904 = vsub.f32 %v5658, %v5820
        %v5905 = vsub.f32 %v5660, %v5820
        %v5906 = vsub.f32 %v5664, %v5823
        %v5907 = vsub.f32 %v5666, %v5823
        %v5908 = vsub.f32 %v5670, %v5826
        %v5909 = vsub.f32 %v5672, %v5826
        %v5910 = vsub.f32 %v5676, %v5829
        %v5911 = vsub.f32 %v5678, %v5829
        %v5912 = vsub.f32 %v5682, %v5832
        %v5913 = vsub.f32 %v5684, %v5832
        %v5914 = vsub.f32 %v5688, %v5835
        %v5915 = vsub.f32 %v5690, %v5835
        %v5916 = vsub.f32 %v5694, %v5838
        %v5917 = vsub.f32 %v5696, %v5838
        %v5918 = vsub.f32 %v5700, %v5841
        %v5919 = vsub.f32 %v5702, %v5841
        %v5920 = vsub.f32 %v5706, %v5844
        %v5921 = vsub.f32 %v5708, %v5844
        %v5922 = vsub.f32 %v5712, %v5847
        %v5923 = vsub.f32 %v5714, %v5847
        %v5924 = vsub.f32 %v5718, %v5850
        %v5925 = vsub.f32 %v5720, %v5850
        %v5926 = vsub.f32 %v5724, %v5853
        %v5927 = vsub.f32 %v5726, %v5853
        %v5928 = vsub.f32 %v5730, %v5856
        %v5929 = vsub.f32 %v5732, %v5856
        %v5930 = vsub.f32 %v5736, %v5859
        %v5931 = vsub.f32 %v5738, %v5859
        %v5932 = vsub.f32 %v5742, %v5862
        %v5933 = vsub.f32 %v5744, %v5862
        %v5934 = vsub.f32 %v5748, %v5865
        %v5935 = vsub.f32 %v5750, %v5865
        %v5936 = vsub.f32 %v5754, %v5868
        %v5937 = vsub.f32 %v5756, %v5868
        %v5938 = vsub.f32 %v5760, %v5871
        %v5939 = vsub.f32 %v5762, %v5871
        %v5940 = vsub.f32 %v5766, %v5874
        %v5941 = vsub.f32 %v5768, %v5874
        %v5942 = vsub.f32 %v5772, %v5877
        %v5943 = vsub.f32 %v5774, %v5877
        %v5944 = vsub.f32 %v5778, %v5880
        %v5945 = vsub.f32 %v5780, %v5880
        %v5946 = vsub.f32 %v5784, %v5883
        %v5947 = vsub.f32 %v5786, %v5883
        %v5948 = vmul.f32 %v5884, 1.442695
        %v5949 = vpow.pop %v5948
        %v5950 = vmul.f32 %v5885, 1.442695
        %v5951 = vpow.pop %v5950
        %v5952 = vmul.f32 %v5886, 1.442695
        %v5953 = vpow.pop %v5952
        %v5954 = vmul.f32 %v5887, 1.442695
        %v5955 = vpow.pop %v5954
        %v5956 = vmul.f32 %v5888, 1.442695
        %v5957 = vpow.pop %v5956
        %v5958 = vmul.f32 %v5889, 1.442695
        %v5959 = vpow.pop %v5958
        %v5960 = vmul.f32 %v5890, 1.442695
        %v5961 = vpow.pop %v5960
        %v5962 = vmul.f32 %v5891, 1.442695
        %v5963 = vpow.pop %v5962
        %v5964 = vmul.f32 %v5892, 1.442695
        %v5965 = vpow.pop %v5964
        %v5966 = vmul.f32 %v5893, 1.442695
        %v5967 = vpow.pop %v5966
        %v5968 = vmul.f32 %v5894, 1.442695
        %v5969 = vpow.pop %v5968
        %v5970 = vmul.f32 %v5895, 1.442695
        %v5971 = vpow.pop %v5970
        %v5972 = vmul.f32 %v5896, 1.442695
        %v5973 = vpow.pop %v5972
        %v5974 = vmul.f32 %v5897, 1.442695
        %v5975 = vpow.pop %v5974
        %v5976 = vmul.f32 %v5898, 1.442695
        %v5977 = vpow.pop %v5976
        %v5978 = vmul.f32 %v5899, 1.442695
        %v5979 = vpow.pop %v5978
        %v5980 = vmul.f32 %v5900, 1.442695
        %v5981 = vpow.pop %v5980
        %v5982 = vmul.f32 %v5901, 1.442695
        %v5983 = vpow.pop %v5982
        %v5984 = vmul.f32 %v5902, 1.442695
        %v5985 = vpow.pop %v5984
        %v5986 = vmul.f32 %v5903, 1.442695
        %v5987 = vpow.pop %v5986
        %v5988 = vmul.f32 %v5904, 1.442695
        %v5989 = vpow.pop %v5988
        %v5990 = vmul.f32 %v5905, 1.442695
        %v5991 = vpow.pop %v5990
        %v5992 = vmul.f32 %v5906, 1.442695
        %v5993 = vpow.pop %v5992
        %v5994 = vmul.f32 %v5907, 1.442695
        %v5995 = vpow.pop %v5994
        %v5996 = vmul.f32 %v5908, 1.442695
        %v5997 = vpow.pop %v5996
        %v5998 = vmul.f32 %v5909, 1.442695
        %v5999 = vpow.pop %v5998
        %v6000 = vmul.f32 %v5910, 1.442695
        %v6001 = vpow.pop %v6000
        %v6002 = vmul.f32 %v5911, 1.442695
        %v6003 = vpow.pop %v6002
        %v6004 = vmul.f32 %v5912, 1.442695
        %v6005 = vpow.pop %v6004
        %v6006 = vmul.f32 %v5913, 1.442695
        %v6007 = vpow.pop %v6006
        %v6008 = vmul.f32 %v5914, 1.442695
        %v6009 = vpow.pop %v6008
        %v6010 = vmul.f32 %v5915, 1.442695
        %v6011 = vpow.pop %v6010
        %v6012 = vmul.f32 %v5916, 1.442695
        %v6013 = vpow.pop %v6012
        %v6014 = vmul.f32 %v5917, 1.442695
        %v6015 = vpow.pop %v6014
        %v6016 = vmul.f32 %v5918, 1.442695
        %v6017 = vpow.pop %v6016
        %v6018 = vmul.f32 %v5919, 1.442695
        %v6019 = vpow.pop %v6018
        %v6020 = vmul.f32 %v5920, 1.442695
        %v6021 = vpow.pop %v6020
        %v6022 = vmul.f32 %v5921, 1.442695
        %v6023 = vpow.pop %v6022
        %v6024 = vmul.f32 %v5922, 1.442695
        %v6025 = vpow.pop %v6024
        %v6026 = vmul.f32 %v5923, 1.442695
        %v6027 = vpow.pop %v6026
        %v6028 = vmul.f32 %v5924, 1.442695
        %v6029 = vpow.pop %v6028
        %v6030 = vmul.f32 %v5925, 1.442695
        %v6031 = vpow.pop %v6030
        %v6032 = vmul.f32 %v5926, 1.442695
        %v6033 = vpow.pop %v6032
        %v6034 = vmul.f32 %v5927, 1.442695
        %v6035 = vpow.pop %v6034
        %v6036 = vmul.f32 %v5928, 1.442695
        %v6037 = vpow.pop %v6036
        %v6038 = vmul.f32 %v5929, 1.442695
        %v6039 = vpow.pop %v6038
        %v6040 = vmul.f32 %v5930, 1.442695
        %v6041 = vpow.pop %v6040
        %v6042 = vmul.f32 %v5931, 1.442695
        %v6043 = vpow.pop %v6042
        %v6044 = vmul.f32 %v5932, 1.442695
        %v6045 = vpow.pop %v6044
        %v6046 = vmul.f32 %v5933, 1.442695
        %v6047 = vpow.pop %v6046
        %v6048 = vmul.f32 %v5934, 1.442695
        %v6049 = vpow.pop %v6048
        %v6050 = vmul.f32 %v5935, 1.442695
        %v6051 = vpow.pop %v6050
        %v6052 = vmul.f32 %v5936, 1.442695
        %v6053 = vpow.pop %v6052
        %v6054 = vmul.f32 %v5937, 1.442695
        %v6055 = vpow.pop %v6054
        %v6056 = vmul.f32 %v5938, 1.442695
        %v6057 = vpow.pop %v6056
        %v6058 = vmul.f32 %v5939, 1.442695
        %v6059 = vpow.pop %v6058
        %v6060 = vmul.f32 %v5940, 1.442695
        %v6061 = vpow.pop %v6060
        %v6062 = vmul.f32 %v5941, 1.442695
        %v6063 = vpow.pop %v6062
        %v6064 = vmul.f32 %v5942, 1.442695
        %v6065 = vpow.pop %v6064
        %v6066 = vmul.f32 %v5943, 1.442695
        %v6067 = vpow.pop %v6066
        %v6068 = vmul.f32 %v5944, 1.442695
        %v6069 = vpow.pop %v6068
        %v6070 = vmul.f32 %v5945, 1.442695
        %v6071 = vpow.pop %v6070
        %v6072 = vmul.f32 %v5946, 1.442695
        %v6073 = vpow.pop %v6072
        %v6074 = vmul.f32 %v5947, 1.442695
        %v6075 = vpow.pop %v6074
        %v6076 = vadd.f32 %v5949, %v5951
        %6077 = vadd.xlane.f32.xlu0 %v6076
        %v6078 = vpop.xlane.xlu0 %6077
        %v6079 = vadd.f32 %v5953, %v5955
        %6080 = vadd.xlane.f32.xlu0 %v6079
        %v6081 = vpop.xlane.xlu0 %6080
        %v6082 = vadd.f32 %v5957, %v5959
        %6083 = vadd.xlane.f32.xlu0 %v6082
        %v6084 = vpop.xlane.xlu0 %6083
        %v6085 = vadd.f32 %v5961, %v5963
        %6086 = vadd.xlane.f32.xlu0 %v6085
        %v6087 = vpop.xlane.xlu0 %6086
        %v6088 = vadd.f32 %v5965, %v5967
        %6089 = vadd.xlane.f32.xlu0 %v6088
        %v6090 = vpop.xlane.xlu0 %6089
        %v6091 = vadd.f32 %v5969, %v5971
        %6092 = vadd.xlane.f32.xlu0 %v6091
        %v6093 = vpop.xlane.xlu0 %6092
        %v6094 = vadd.f32 %v5973, %v5975
        %6095 = vadd.xlane.f32.xlu0 %v6094
        %v6096 = vpop.xlane.xlu0 %6095
        %v6097 = vadd.f32 %v5977, %v5979
        %6098 = vadd.xlane.f32.xlu0 %v6097
        %v6099 = vpop.xlane.xlu0 %6098
        %v6100 = vadd.f32 %v5981, %v5983
        %6101 = vadd.xlane.f32.xlu0 %v6100
        %v6102 = vpop.xlane.xlu0 %6101
        %v6103 = vadd.f32 %v5985, %v5987
        %6104 = vadd.xlane.f32.xlu0 %v6103
        %v6105 = vpop.xlane.xlu0 %6104
        %v6106 = vadd.f32 %v5989, %v5991
        %6107 = vadd.xlane.f32.xlu0 %v6106
        %v6108 = vpop.xlane.xlu0 %6107
        %v6109 = vadd.f32 %v5993, %v5995
        %6110 = vadd.xlane.f32.xlu0 %v6109
        %v6111 = vpop.xlane.xlu0 %6110
        %v6112 = vadd.f32 %v5997, %v5999
        %6113 = vadd.xlane.f32.xlu0 %v6112
        %v6114 = vpop.xlane.xlu0 %6113
        %v6115 = vadd.f32 %v6001, %v6003
        %6116 = vadd.xlane.f32.xlu0 %v6115
        %v6117 = vpop.xlane.xlu0 %6116
        %v6118 = vadd.f32 %v6005, %v6007
        %6119 = vadd.xlane.f32.xlu0 %v6118
        %v6120 = vpop.xlane.xlu0 %6119
        %v6121 = vadd.f32 %v6009, %v6011
        %6122 = vadd.xlane.f32.xlu0 %v6121
        %v6123 = vpop.xlane.xlu0 %6122
        %v6124 = vadd.f32 %v6013, %v6015
        %6125 = vadd.xlane.f32.xlu0 %v6124
        %v6126 = vpop.xlane.xlu0 %6125
        %v6127 = vadd.f32 %v6017, %v6019
        %6128 = vadd.xlane.f32.xlu0 %v6127
        %v6129 = vpop.xlane.xlu0 %6128
        %v6130 = vadd.f32 %v6021, %v6023
        %6131 = vadd.xlane.f32.xlu0 %v6130
        %v6132 = vpop.xlane.xlu0 %6131
        %v6133 = vadd.f32 %v6025, %v6027
        %6134 = vadd.xlane.f32.xlu0 %v6133
        %v6135 = vpop.xlane.xlu0 %6134
        %v6136 = vadd.f32 %v6029, %v6031
        %6137 = vadd.xlane.f32.xlu0 %v6136
        %v6138 = vpop.xlane.xlu0 %6137
        %v6139 = vadd.f32 %v6033, %v6035
        %6140 = vadd.xlane.f32.xlu0 %v6139
        %v6141 = vpop.xlane.xlu0 %6140
        %v6142 = vadd.f32 %v6037, %v6039
        %6143 = vadd.xlane.f32.xlu0 %v6142
        %v6144 = vpop.xlane.xlu0 %6143
        %v6145 = vadd.f32 %v6041, %v6043
        %6146 = vadd.xlane.f32.xlu0 %v6145
        %v6147 = vpop.xlane.xlu0 %6146
        %v6148 = vadd.f32 %v6045, %v6047
        %6149 = vadd.xlane.f32.xlu0 %v6148
        %v6150 = vpop.xlane.xlu0 %6149
        %v6151 = vadd.f32 %v6049, %v6051
        %6152 = vadd.xlane.f32.xlu0 %v6151
        %v6153 = vpop.xlane.xlu0 %6152
        %v6154 = vadd.f32 %v6053, %v6055
        %6155 = vadd.xlane.f32.xlu0 %v6154
        %v6156 = vpop.xlane.xlu0 %6155
        %v6157 = vadd.f32 %v6057, %v6059
        %6158 = vadd.xlane.f32.xlu0 %v6157
        %v6159 = vpop.xlane.xlu0 %6158
        %v6160 = vadd.f32 %v6061, %v6063
        %6161 = vadd.xlane.f32.xlu0 %v6160
        %v6162 = vpop.xlane.xlu0 %6161
        %v6163 = vadd.f32 %v6065, %v6067
        %6164 = vadd.xlane.f32.xlu0 %v6163
        %v6165 = vpop.xlane.xlu0 %6164
        %v6166 = vadd.f32 %v6069, %v6071
        %6167 = vadd.xlane.f32.xlu0 %v6166
        %v6168 = vpop.xlane.xlu0 %6167
        %v6169 = vadd.f32 %v6073, %v6075
        %6170 = vadd.xlane.f32.xlu0 %v6169
        %v6171 = vpop.xlane.xlu0 %6170
        %v6172 = vrcp.pop %v6078
        %v6173 = vrcp.pop %v6081
        %v6174 = vrcp.pop %v6084
        %v6175 = vrcp.pop %v6087
        %v6176 = vrcp.pop %v6090
        %v6177 = vrcp.pop %v6093
        %v6178 = vrcp.pop %v6096
        %v6179 = vrcp.pop %v6099
        %v6180 = vrcp.pop %v6102
        %v6181 = vrcp.pop %v6105
        %v6182 = vrcp.pop %v6108
        %v6183 = vrcp.pop %v6111
        %v6184 = vrcp.pop %v6114
        %v6185 = vrcp.pop %v6117
        %v6186 = vrcp.pop %v6120
        %v6187 = vrcp.pop %v6123
        %v6188 = vrcp.pop %v6126
        %v6189 = vrcp.pop %v6129
        %v6190 = vrcp.pop %v6132
        %v6191 = vrcp.pop %v6135
        %v6192 = vrcp.pop %v6138
        %v6193 = vrcp.pop %v6141
        %v6194 = vrcp.pop %v6144
        %v6195 = vrcp.pop %v6147
        %v6196 = vrcp.pop %v6150
        %v6197 = vrcp.pop %v6153
        %v6198 = vrcp.pop %v6156
        %v6199 = vrcp.pop %v6159
        %v6200 = vrcp.pop %v6162
        %v6201 = vrcp.pop %v6165
        %v6202 = vrcp.pop %v6168
        %v6203 = vrcp.pop %v6171
        %v6204 = vmul.f32 %v5949, %v6172
        %v6205 = vmul.f32 %v5951, %v6172
        %v6206 = vmul.f32 %v5953, %v6173
        %v6207 = vmul.f32 %v5955, %v6173
        %v6208 = vmul.f32 %v5957, %v6174
        %v6209 = vmul.f32 %v5959, %v6174
        %v6210 = vmul.f32 %v5961, %v6175
        %v6211 = vmul.f32 %v5963, %v6175
        %v6212 = vmul.f32 %v5965, %v6176
        %v6213 = vmul.f32 %v5967, %v6176
        %v6214 = vmul.f32 %v5969, %v6177
        %v6215 = vmul.f32 %v5971, %v6177
        %v6216 = vmul.f32 %v5973, %v6178
        %v6217 = vmul.f32 %v5975, %v6178
        %v6218 = vmul.f32 %v5977, %v6179
        %v6219 = vmul.f32 %v5979, %v6179
        %v6220 = vmul.f32 %v5981, %v6180
        %v6221 = vmul.f32 %v5983, %v6180
        %v6222 = vmul.f32 %v5985, %v6181
        %v6223 = vmul.f32 %v5987, %v6181
        %v6224 = vmul.f32 %v5989, %v6182
        %v6225 = vmul.f32 %v5991, %v6182
        %v6226 = vmul.f32 %v5993, %v6183
        %v6227 = vmul.f32 %v5995, %v6183
        %v6228 = vmul.f32 %v5997, %v6184
        %v6229 = vmul.f32 %v5999, %v6184
        %v6230 = vmul.f32 %v6001, %v6185
        %v6231 = vmul.f32 %v6003, %v6185
        %v6232 = vmul.f32 %v6005, %v6186
        %v6233 = vmul.f32 %v6007, %v6186
        %v6234 = vmul.f32 %v6009, %v6187
        %v6235 = vmul.f32 %v6011, %v6187
        %v6236 = vmul.f32 %v6013, %v6188
        %v6237 = vmul.f32 %v6015, %v6188
        %v6238 = vmul.f32 %v6017, %v6189
        %v6239 = vmul.f32 %v6019, %v6189
        %v6240 = vmul.f32 %v6021, %v6190
        %v6241 = vmul.f32 %v6023, %v6190
        %v6242 = vmul.f32 %v6025, %v6191
        %v6243 = vmul.f32 %v6027, %v6191
        %v6244 = vmul.f32 %v6029, %v6192
        %v6245 = vmul.f32 %v6031, %v6192
        %v6246 = vmul.f32 %v6033, %v6193
        %v6247 = vmul.f32 %v6035, %v6193
        %v6248 = vmul.f32 %v6037, %v6194
        %v6249 = vmul.f32 %v6039, %v6194
        %v6250 = vmul.f32 %v6041, %v6195
        %v6251 = vmul.f32 %v6043, %v6195
        %v6252 = vmul.f32 %v6045, %v6196
        %v6253 = vmul.f32 %v6047, %v6196
        %v6254 = vmul.f32 %v6049, %v6197
        %v6255 = vmul.f32 %v6051, %v6197
        %v6256 = vmul.f32 %v6053, %v6198
        %v6257 = vmul.f32 %v6055, %v6198
        %v6258 = vmul.f32 %v6057, %v6199
        %v6259 = vmul.f32 %v6059, %v6199
        %v6260 = vmul.f32 %v6061, %v6200
        %v6261 = vmul.f32 %v6063, %v6200
        %v6262 = vmul.f32 %v6065, %v6201
        %v6263 = vmul.f32 %v6067, %v6201
        %v6264 = vmul.f32 %v6069, %v6202
        %v6265 = vmul.f32 %v6071, %v6202
        %v6266 = vmul.f32 %v6073, %v6203
        %v6267 = vmul.f32 %v6075, %v6203
        %v6270 = vrot.slane %v425, 4
        %v6271 = vrot.slane %v427, 4
        %6274 = vmatprep.subr.mxu0 %v6205
        %6275 = vmatpush1.xpose.msra.mxu0 %v6204
        %6276 = vmatprep.subr.mxu0 %v6207
        %6277 = vmatpush1.xpose.msra.mxu0 %v6206
        %6278 = vmatprep.subr.mxu0 %v6209
        %6279 = vmatpush1.xpose.msra.mxu0 %v6208
        %6280 = vmatprep.subr.mxu0 %v6211
        %6281 = vmatpush1.xpose.msra.mxu0 %v6210
        %6282 = vmatprep.subr.mxu0 %v6213
        %6283 = vmatpush1.xpose.msra.mxu0 %v6212
        %6284 = vmatprep.subr.mxu0 %v6215
        %6285 = vmatpush1.xpose.msra.mxu0 %v6214
        %6286 = vmatprep.subr.mxu0 %v6217
        %6287 = vmatpush1.xpose.msra.mxu0 %v6216
        %6288 = vmatprep.subr.mxu0 %v6219
        %6289 = vmatpush1.xpose.msra.mxu0 %v6218
        %6290 = vmatprep.subr.mxu0 %v6221
        %6291 = vmatpush1.xpose.msra.mxu0 %v6220
        %6292 = vmatprep.subr.mxu0 %v6223
        %6293 = vmatpush1.xpose.msra.mxu0 %v6222
        %6294 = vmatprep.subr.mxu0 %v6225
        %6295 = vmatpush1.xpose.msra.mxu0 %v6224
        %6296 = vmatprep.subr.mxu0 %v6227
        %6297 = vmatpush1.xpose.msra.mxu0 %v6226
        %6298 = vmatprep.subr.mxu0 %v6229
        %6299 = vmatpush1.xpose.msra.mxu0 %v6228
        %6300 = vmatprep.subr.mxu0 %v6231
        %6301 = vmatpush1.xpose.msra.mxu0 %v6230
        %6302 = vmatprep.subr.mxu0 %v6233
        %6303 = vmatpush1.xpose.msra.mxu0 %v6232
        %6304 = vmatprep.subr.mxu0 %v6235
        %6305 = vmatpush1.xpose.msra.mxu0 %v6234
        %6306 = vmatprep.subr.mxu0 %v6237
        %6307 = vmatpush1.xpose.msra.mxu0 %v6236
        %6308 = vmatprep.subr.mxu0 %v6239
        %6309 = vmatpush1.xpose.msra.mxu0 %v6238
        %6310 = vmatprep.subr.mxu0 %v6241
        %6311 = vmatpush1.xpose.msra.mxu0 %v6240
        %6312 = vmatprep.subr.mxu0 %v6243
        %6313 = vmatpush1.xpose.msra.mxu0 %v6242
        %6314 = vmatprep.subr.mxu0 %v6245
        %6315 = vmatpush1.xpose.msra.mxu0 %v6244
        %6316 = vmatprep.subr.mxu0 %v6247
        %6317 = vmatpush1.xpose.msra.mxu0 %v6246
        %6318 = vmatprep.subr.mxu0 %v6249
        %6319 = vmatpush1.xpose.msra.mxu0 %v6248
        %6320 = vmatprep.subr.mxu0 %v6251
        %6321 = vmatpush1.xpose.msra.mxu0 %v6250
        %6322 = vmatprep.subr.mxu0 %v6253
        %6323 = vmatpush1.xpose.msra.mxu0 %v6252
        %6324 = vmatprep.subr.mxu0 %v6255
        %6325 = vmatpush1.xpose.msra.mxu0 %v6254
        %6326 = vmatprep.subr.mxu0 %v6257
        %6327 = vmatpush1.xpose.msra.mxu0 %v6256
        %6328 = vmatprep.subr.mxu0 %v6259
        %6329 = vmatpush1.xpose.msra.mxu0 %v6258
        %6330 = vmatprep.subr.mxu0 %v6261
        %6331 = vmatpush1.xpose.msra.mxu0 %v6260
        %6332 = vmatprep.subr.mxu0 %v6263
        %6333 = vmatpush1.xpose.msra.mxu0 %v6262
        %6334 = vmatprep.subr.mxu0 %v6265
        %6335 = vmatpush1.xpose.msra.mxu0 %v6264
        %6336 = vmatprep.subr.mxu0 %v6267
        %6337 = vmatpush1.xpose.msra.mxu0 %v6266
        %6338 = vmatprep.mubr.f32.mxu0 %v6271
        %6339 = vmatmul.mubr.f32.gmra.mrb[0].mxu0 %v6270
        %v6340 = vpop.f32.mrb[0].mxu0
        %v6341 = vadd.f32 0.0, %v6340
        %v6342 = vpop.f32.mrb[0].mxu0
        %v6343 = vadd.f32 0.0, %v6342
        %6344 = vdwg.mxu0
        %v6347 = vrot.slane %v6341, 4
        %v6348 = vrot.slane %v6343, 4
        %6351 = vst [vmem:[%s163 + $0x20] sm:$0xf0] %v6347
        %6352 = vst [vmem:[%s163 + $0x28] sm:$0xf0] %v6348
        %6353 = vxpose.xlu0.b32.start [1/16] %v441, 128
        %6354 = vxpose.xlu0.b32.cont [2/16] 0.0, 128
        %6355 = vxpose.xlu0.b32.cont [3/16] 0.0, 128
        %6356 = vxpose.xlu0.b32.cont [4/16] 0.0, 128
        %6357 = vxpose.xlu0.b32.cont [5/16] 0.0, 128
        %6358 = vxpose.xlu0.b32.cont [6/16] 0.0, 128
        %6359 = vxpose.xlu0.b32.cont [7/16] 0.0, 128
        %6360 = vxpose.xlu0.b32.cont [8/16] 0.0, 128
        %6361 = vxpose.xlu0.b32.cont [9/16] 0.0, 128
        %6362 = vxpose.xlu0.b32.cont [10/16] 0.0, 128
        %6363 = vxpose.xlu0.b32.cont [11/16] 0.0, 128
        %6364 = vxpose.xlu0.b32.cont [12/16] 0.0, 128
        %6365 = vxpose.xlu0.b32.cont [13/16] 0.0, 128
        %6366 = vxpose.xlu0.b32.cont [14/16] 0.0, 128
        %6367 = vxpose.xlu0.b32.cont [15/16] 0.0, 128
        %6368 = vxpose.xlu0.b32.end [16/16] 0.0, 128
        %v6369 = vpop.trf.xlu0
        %v6370 = vpop.trf.xlu0
        %v6371 = vpop.trf.xlu0
        %v6372 = vpop.trf.xlu0
        %v6373 = vpop.trf.xlu0
        %v6374 = vpop.trf.xlu0
        %v6375 = vpop.trf.xlu0
        %v6376 = vpop.trf.xlu0
        %v6377 = vpop.trf.xlu0
        %v6378 = vpop.trf.xlu0
        %v6379 = vpop.trf.xlu0
        %v6380 = vpop.trf.xlu0
        %v6381 = vpop.trf.xlu0
        %v6382 = vpop.trf.xlu0
        %v6383 = vpop.trf.xlu0
        %v6384 = vpop.trf.xlu0
        %6385 = vxpose.xlu0.b32.start [1/16] %v442, 128
        %6386 = vxpose.xlu0.b32.cont [2/16] 0.0, 128
        %6387 = vxpose.xlu0.b32.cont [3/16] 0.0, 128
        %6388 = vxpose.xlu0.b32.cont [4/16] 0.0, 128
        %6389 = vxpose.xlu0.b32.cont [5/16] 0.0, 128
        %6390 = vxpose.xlu0.b32.cont [6/16] 0.0, 128
        %6391 = vxpose.xlu0.b32.cont [7/16] 0.0, 128
        %6392 = vxpose.xlu0.b32.cont [8/16] 0.0, 128
        %6393 = vxpose.xlu0.b32.cont [9/16] 0.0, 128
        %6394 = vxpose.xlu0.b32.cont [10/16] 0.0, 128
        %6395 = vxpose.xlu0.b32.cont [11/16] 0.0, 128
        %6396 = vxpose.xlu0.b32.cont [12/16] 0.0, 128
        %6397 = vxpose.xlu0.b32.cont [13/16] 0.0, 128
        %6398 = vxpose.xlu0.b32.cont [14/16] 0.0, 128
        %6399 = vxpose.xlu0.b32.cont [15/16] 0.0, 128
        %6400 = vxpose.xlu0.b32.end [16/16] 0.0, 128
        %v6401 = vpop.trf.xlu0
        %v6402 = vpop.trf.xlu0
        %v6403 = vpop.trf.xlu0
        %v6404 = vpop.trf.xlu0
        %v6405 = vpop.trf.xlu0
        %v6406 = vpop.trf.xlu0
        %v6407 = vpop.trf.xlu0
        %v6408 = vpop.trf.xlu0
        %v6409 = vpop.trf.xlu0
        %v6410 = vpop.trf.xlu0
        %v6411 = vpop.trf.xlu0
        %v6412 = vpop.trf.xlu0
        %v6413 = vpop.trf.xlu0
        %v6414 = vpop.trf.xlu0
        %v6415 = vpop.trf.xlu0
        %v6416 = vpop.trf.xlu0
        %v6418 = vsel %vm256, %v6369, 0
        %v6421 = vsel %vm256, %v6370, 0
        %v6424 = vsel %vm256, %v6371, 0
        %v6427 = vsel %vm256, %v6372, 0
        %v6430 = vsel %vm256, %v6373, 0
        %v6433 = vsel %vm256, %v6374, 0
        %v6436 = vsel %vm256, %v6375, 0
        %v6439 = vsel %vm256, %v6376, 0
        %v6442 = vsel %vm256, %v6377, 0
        %v6445 = vsel %vm256, %v6378, 0
        %v6448 = vsel %vm256, %v6379, 0
        %v6451 = vsel %vm256, %v6380, 0
        %v6454 = vsel %vm256, %v6381, 0
        %v6457 = vsel %vm256, %v6382, 0
        %v6460 = vsel %vm256, %v6383, 0
        %v6463 = vsel %vm256, %v6384, 0
        %v6466 = vsel %vm256, %v6401, 0
        %v6469 = vsel %vm256, %v6402, 0
        %v6472 = vsel %vm256, %v6403, 0
        %v6475 = vsel %vm256, %v6404, 0
        %v6478 = vsel %vm256, %v6405, 0
        %v6481 = vsel %vm256, %v6406, 0
        %v6484 = vsel %vm256, %v6407, 0
        %v6487 = vsel %vm256, %v6408, 0
        %v6490 = vsel %vm256, %v6409, 0
        %v6493 = vsel %vm256, %v6410, 0
        %v6496 = vsel %vm256, %v6411, 0
        %v6499 = vsel %vm256, %v6412, 0
        %v6502 = vsel %vm256, %v6413, 0
        %v6505 = vsel %vm256, %v6414, 0
        %v6508 = vsel %vm256, %v6415, 0
        %v6511 = vsel %vm256, %v6416, 0
        %v6514 = vsel %vm293, %v407, 0
        %v6517 = vsel %vm293, %v409, 0
        %6519 = vmatprep.subr.mxu0 %v6517
        %6520 = vmatpush1.msra.mxu0 %v6514
        %6521 = vmatprep.subr.mxu0 0.0
        %6522 = vmatpush1.msra.mxu0 0.0
        %6523 = vmatprep.subr.mxu0 0.0
        %6524 = vmatpush1.msra.mxu0 0.0
        %6525 = vmatprep.subr.mxu0 0.0
        %6526 = vmatpush1.msra.mxu0 0.0
        %6527 = vmatprep.subr.mxu0 0.0
        %6528 = vmatpush1.msra.mxu0 0.0
        %6529 = vmatprep.subr.mxu0 0.0
        %6530 = vmatpush1.msra.mxu0 0.0
        %6531 = vmatprep.subr.mxu0 0.0
        %6532 = vmatpush1.msra.mxu0 0.0
        %6533 = vmatprep.subr.mxu0 0.0
        %6534 = vmatpush1.msra.mxu0 0.0
        %6535 = vmatprep.subr.mxu0 0.0
        %6536 = vmatpush1.msra.mxu0 0.0
        %6537 = vmatprep.subr.mxu0 0.0
        %6538 = vmatpush1.msra.mxu0 0.0
        %6539 = vmatprep.subr.mxu0 0.0
        %6540 = vmatpush1.msra.mxu0 0.0
        %6541 = vmatprep.subr.mxu0 0.0
        %6542 = vmatpush1.msra.mxu0 0.0
        %6543 = vmatprep.subr.mxu0 0.0
        %6544 = vmatpush1.msra.mxu0 0.0
        %6545 = vmatprep.subr.mxu0 0.0
        %6546 = vmatpush1.msra.mxu0 0.0
        %6547 = vmatprep.subr.mxu0 0.0
        %6548 = vmatpush1.msra.mxu0 0.0
        %6549 = vmatprep.subr.mxu0 0.0
        %6550 = vmatpush1.msra.mxu0 0.0
        %6551 = vmatprep.subr.mxu0 0.0
        %6552 = vmatpush1.msra.mxu0 0.0
        %6553 = vmatprep.subr.mxu0 0.0
        %6554 = vmatpush1.msra.mxu0 0.0
        %6555 = vmatprep.subr.mxu0 0.0
        %6556 = vmatpush1.msra.mxu0 0.0
        %6557 = vmatprep.subr.mxu0 0.0
        %6558 = vmatpush1.msra.mxu0 0.0
        %6559 = vmatprep.subr.mxu0 0.0
        %6560 = vmatpush1.msra.mxu0 0.0
        %6561 = vmatprep.subr.mxu0 0.0
        %6562 = vmatpush1.msra.mxu0 0.0
        %6563 = vmatprep.subr.mxu0 0.0
        %6564 = vmatpush1.msra.mxu0 0.0
        %6565 = vmatprep.subr.mxu0 0.0
        %6566 = vmatpush1.msra.mxu0 0.0
        %6567 = vmatprep.subr.mxu0 0.0
        %6568 = vmatpush1.msra.mxu0 0.0
        %6569 = vmatprep.subr.mxu0 0.0
        %6570 = vmatpush1.msra.mxu0 0.0
        %6571 = vmatprep.subr.mxu0 0.0
        %6572 = vmatpush1.msra.mxu0 0.0
        %6573 = vmatprep.subr.mxu0 0.0
        %6574 = vmatpush1.msra.mxu0 0.0
        %6575 = vmatprep.subr.mxu0 0.0
        %6576 = vmatpush1.msra.mxu0 0.0
        %6577 = vmatprep.subr.mxu0 0.0
        %6578 = vmatpush1.msra.mxu0 0.0
        %6579 = vmatprep.subr.mxu0 0.0
        %6580 = vmatpush1.msra.mxu0 0.0
        %6581 = vmatprep.subr.mxu0 0.0
        %6582 = vmatpush1.msra.mxu0 0.0
        %6583 = vmatprep.mubr.f32.mxu0 0.0
        %6584 = vmatmul.mubr.f32.gmra.mrb[0].mxu0 %v6418
        %v6585 = vpop.f32.mrb[0].mxu0
        %v6586 = vadd.f32 0.0, %v6585
        %v6587 = vpop.f32.mrb[0].mxu0
        %v6588 = vadd.f32 0.0, %v6587
        %6589 = vmatprep.mubr.f32.mxu0 0.0
        %6590 = vmatmul.mubr.f32.gmra.mrb[0].mxu0 %v6421
        %v6591 = vpop.f32.mrb[0].mxu0
        %v6592 = vadd.f32 0.0, %v6591
        %v6593 = vpop.f32.mrb[0].mxu0
        %v6594 = vadd.f32 0.0, %v6593
        %6595 = vmatprep.mubr.f32.mxu0 0.0
        %6596 = vmatmul.mubr.f32.gmra.mrb[0].mxu0 %v6424
        %v6597 = vpop.f32.mrb[0].mxu0
        %v6598 = vadd.f32 0.0, %v6597
        %v6599 = vpop.f32.mrb[0].mxu0
        %v6600 = vadd.f32 0.0, %v6599
        %6601 = vmatprep.mubr.f32.mxu0 0.0
        %6602 = vmatmul.mubr.f32.gmra.mrb[0].mxu0 %v6427
        %v6603 = vpop.f32.mrb[0].mxu0
        %v6604 = vadd.f32 0.0, %v6603
        %v6605 = vpop.f32.mrb[0].mxu0
        %v6606 = vadd.f32 0.0, %v6605
        %6607 = vmatprep.mubr.f32.mxu0 0.0
        %6608 = vmatmul.mubr.f32.gmra.mrb[0].mxu0 %v6430
        %v6609 = vpop.f32.mrb[0].mxu0
        %v6610 = vadd.f32 0.0, %v6609
        %v6611 = vpop.f32.mrb[0].mxu0
        %v6612 = vadd.f32 0.0, %v6611
        %6613 = vmatprep.mubr.f32.mxu0 0.0
        %6614 = vmatmul.mubr.f32.gmra.mrb[0].mxu0 %v6433
        %v6615 = vpop.f32.mrb[0].mxu0
        %v6616 = vadd.f32 0.0, %v6615
        %v6617 = vpop.f32.mrb[0].mxu0
        %v6618 = vadd.f32 0.0, %v6617
        %6619 = vmatprep.mubr.f32.mxu0 0.0
        %6620 = vmatmul.mubr.f32.gmra.mrb[0].mxu0 %v6436
        %v6621 = vpop.f32.mrb[0].mxu0
        %v6622 = vadd.f32 0.0, %v6621
        %v6623 = vpop.f32.mrb[0].mxu0
        %v6624 = vadd.f32 0.0, %v6623
        %6625 = vmatprep.mubr.f32.mxu0 0.0
        %6626 = vmatmul.mubr.f32.gmra.mrb[0].mxu0 %v6439
        %v6627 = vpop.f32.mrb[0].mxu0
        %v6628 = vadd.f32 0.0, %v6627
        %v6629 = vpop.f32.mrb[0].mxu0
        %v6630 = vadd.f32 0.0, %v6629
        %6631 = vmatprep.mubr.f32.mxu0 0.0
        %6632 = vmatmul.mubr.f32.gmra.mrb[0].mxu0 %v6442
        %v6633 = vpop.f32.mrb[0].mxu0
        %v6634 = vadd.f32 0.0, %v6633
        %v6635 = vpop.f32.mrb[0].mxu0
        %v6636 = vadd.f32 0.0, %v6635
        %6637 = vmatprep.mubr.f32.mxu0 0.0
        %6638 = vmatmul.mubr.f32.gmra.mrb[0].mxu0 %v6445
        %v6639 = vpop.f32.mrb[0].mxu0
        %v6640 = vadd.f32 0.0, %v6639
        %v6641 = vpop.f32.mrb[0].mxu0
        %v6642 = vadd.f32 0.0, %v6641
        %6643 = vmatprep.mubr.f32.mxu0 0.0
        %6644 = vmatmul.mubr.f32.gmra.mrb[0].mxu0 %v6448
        %v6645 = vpop.f32.mrb[0].mxu0
        %v6646 = vadd.f32 0.0, %v6645
        %v6647 = vpop.f32.mrb[0].mxu0
        %v6648 = vadd.f32 0.0, %v6647
        %6649 = vmatprep.mubr.f32.mxu0 0.0
        %6650 = vmatmul.mubr.f32.gmra.mrb[0].mxu0 %v6451
        %v6651 = vpop.f32.mrb[0].mxu0
        %v6652 = vadd.f32 0.0, %v6651
        %v6653 = vpop.f32.mrb[0].mxu0
        %v6654 = vadd.f32 0.0, %v6653
        %6655 = vmatprep.mubr.f32.mxu0 0.0
        %6656 = vmatmul.mubr.f32.gmra.mrb[0].mxu0 %v6454
        %v6657 = vpop.f32.mrb[0].mxu0
        %v6658 = vadd.f32 0.0, %v6657
        %v6659 = vpop.f32.mrb[0].mxu0
        %v6660 = vadd.f32 0.0, %v6659
        %6661 = vmatprep.mubr.f32.mxu0 0.0
        %6662 = vmatmul.mubr.f32.gmra.mrb[0].mxu0 %v6457
        %v6663 = vpop.f32.mrb[0].mxu0
        %v6664 = vadd.f32 0.0, %v6663
        %v6665 = vpop.f32.mrb[0].mxu0
        %v6666 = vadd.f32 0.0, %v6665
        %6667 = vmatprep.mubr.f32.mxu0 0.0
        %6668 = vmatmul.mubr.f32.gmra.mrb[0].mxu0 %v6460
        %v6669 = vpop.f32.mrb[0].mxu0
        %v6670 = vadd.f32 0.0, %v6669
        %v6671 = vpop.f32.mrb[0].mxu0
        %v6672 = vadd.f32 0.0, %v6671
        %6673 = vmatprep.mubr.f32.mxu0 0.0
        %6674 = vmatmul.mubr.f32.gmra.mrb[0].mxu0 %v6463
        %v6675 = vpop.f32.mrb[0].mxu0
        %v6676 = vadd.f32 0.0, %v6675
        %v6677 = vpop.f32.mrb[0].mxu0
        %v6678 = vadd.f32 0.0, %v6677
        %6679 = vmatprep.mubr.f32.mxu0 0.0
        %6680 = vmatmul.mubr.f32.gmra.mrb[0].mxu0 %v6466
        %v6681 = vpop.f32.mrb[0].mxu0
        %v6682 = vadd.f32 0.0, %v6681
        %v6683 = vpop.f32.mrb[0].mxu0
        %v6684 = vadd.f32 0.0, %v6683
        %6685 = vmatprep.mubr.f32.mxu0 0.0
        %6686 = vmatmul.mubr.f32.gmra.mrb[0].mxu0 %v6469
        %v6687 = vpop.f32.mrb[0].mxu0
        %v6688 = vadd.f32 0.0, %v6687
        %v6689 = vpop.f32.mrb[0].mxu0
        %v6690 = vadd.f32 0.0, %v6689
        %6691 = vmatprep.mubr.f32.mxu0 0.0
        %6692 = vmatmul.mubr.f32.gmra.mrb[0].mxu0 %v6472
        %v6693 = vpop.f32.mrb[0].mxu0
        %v6694 = vadd.f32 0.0, %v6693
        %v6695 = vpop.f32.mrb[0].mxu0
        %v6696 = vadd.f32 0.0, %v6695
        %6697 = vmatprep.mubr.f32.mxu0 0.0
        %6698 = vmatmul.mubr.f32.gmra.mrb[0].mxu0 %v6475
        %v6699 = vpop.f32.mrb[0].mxu0
        %v6700 = vadd.f32 0.0, %v6699
        %v6701 = vpop.f32.mrb[0].mxu0
        %v6702 = vadd.f32 0.0, %v6701
        %6703 = vmatprep.mubr.f32.mxu0 0.0
        %6704 = vmatmul.mubr.f32.gmra.mrb[0].mxu0 %v6478
        %v6705 = vpop.f32.mrb[0].mxu0
        %v6706 = vadd.f32 0.0, %v6705
        %v6707 = vpop.f32.mrb[0].mxu0
        %v6708 = vadd.f32 0.0, %v6707
        %6709 = vmatprep.mubr.f32.mxu0 0.0
        %6710 = vmatmul.mubr.f32.gmra.mrb[0].mxu0 %v6481
        %v6711 = vpop.f32.mrb[0].mxu0
        %v6712 = vadd.f32 0.0, %v6711
        %v6713 = vpop.f32.mrb[0].mxu0
        %v6714 = vadd.f32 0.0, %v6713
        %6715 = vmatprep.mubr.f32.mxu0 0.0
        %6716 = vmatmul.mubr.f32.gmra.mrb[0].mxu0 %v6484
        %v6717 = vpop.f32.mrb[0].mxu0
        %v6718 = vadd.f32 0.0, %v6717
        %v6719 = vpop.f32.mrb[0].mxu0
        %v6720 = vadd.f32 0.0, %v6719
        %6721 = vmatprep.mubr.f32.mxu0 0.0
        %6722 = vmatmul.mubr.f32.gmra.mrb[0].mxu0 %v6487
        %v6723 = vpop.f32.mrb[0].mxu0
        %v6724 = vadd.f32 0.0, %v6723
        %v6725 = vpop.f32.mrb[0].mxu0
        %v6726 = vadd.f32 0.0, %v6725
        %6727 = vmatprep.mubr.f32.mxu0 0.0
        %6728 = vmatmul.mubr.f32.gmra.mrb[0].mxu0 %v6490
        %v6729 = vpop.f32.mrb[0].mxu0
        %v6730 = vadd.f32 0.0, %v6729
        %v6731 = vpop.f32.mrb[0].mxu0
        %v6732 = vadd.f32 0.0, %v6731
        %6733 = vmatprep.mubr.f32.mxu0 0.0
        %6734 = vmatmul.mubr.f32.gmra.mrb[0].mxu0 %v6493
        %v6735 = vpop.f32.mrb[0].mxu0
        %v6736 = vadd.f32 0.0, %v6735
        %v6737 = vpop.f32.mrb[0].mxu0
        %v6738 = vadd.f32 0.0, %v6737
        %6739 = vmatprep.mubr.f32.mxu0 0.0
        %6740 = vmatmul.mubr.f32.gmra.mrb[0].mxu0 %v6496
        %v6741 = vpop.f32.mrb[0].mxu0
        %v6742 = vadd.f32 0.0, %v6741
        %v6743 = vpop.f32.mrb[0].mxu0
        %v6744 = vadd.f32 0.0, %v6743
        %6745 = vmatprep.mubr.f32.mxu0 0.0
        %6746 = vmatmul.mubr.f32.gmra.mrb[0].mxu0 %v6499
        %v6747 = vpop.f32.mrb[0].mxu0
        %v6748 = vadd.f32 0.0, %v6747
        %v6749 = vpop.f32.mrb[0].mxu0
        %v6750 = vadd.f32 0.0, %v6749
        %6751 = vmatprep.mubr.f32.mxu0 0.0
        %6752 = vmatmul.mubr.f32.gmra.mrb[0].mxu0 %v6502
        %v6753 = vpop.f32.mrb[0].mxu0
        %v6754 = vadd.f32 0.0, %v6753
        %v6755 = vpop.f32.mrb[0].mxu0
        %v6756 = vadd.f32 0.0, %v6755
        %6757 = vmatprep.mubr.f32.mxu0 0.0
        %6758 = vmatmul.mubr.f32.gmra.mrb[0].mxu0 %v6505
        %v6759 = vpop.f32.mrb[0].mxu0
        %v6760 = vadd.f32 0.0, %v6759
        %v6761 = vpop.f32.mrb[0].mxu0
        %v6762 = vadd.f32 0.0, %v6761
        %6763 = vmatprep.mubr.f32.mxu0 0.0
        %6764 = vmatmul.mubr.f32.gmra.mrb[0].mxu0 %v6508
        %v6765 = vpop.f32.mrb[0].mxu0
        %v6766 = vadd.f32 0.0, %v6765
        %v6767 = vpop.f32.mrb[0].mxu0
        %v6768 = vadd.f32 0.0, %v6767
        %6769 = vmatprep.mubr.f32.mxu0 0.0
        %6770 = vmatmul.mubr.f32.gmra.mrb[0].mxu0 %v6511
        %v6771 = vpop.f32.mrb[0].mxu0
        %v6772 = vadd.f32 0.0, %v6771
        %v6773 = vpop.f32.mrb[0].mxu0
        %v6774 = vadd.f32 0.0, %v6773
        %6775 = vdwg.mxu0
        %v6776 = vmax.f32 %v6586, %v6588
        %6777 = vmax.xlane.f32.xlu0 %v6776
        %v6778 = vpop.xlane.xlu0 %6777
        %v6779 = vmax.f32 %v6592, %v6594
        %6780 = vmax.xlane.f32.xlu0 %v6779
        %v6781 = vpop.xlane.xlu0 %6780
        %v6782 = vmax.f32 %v6598, %v6600
        %6783 = vmax.xlane.f32.xlu0 %v6782
        %v6784 = vpop.xlane.xlu0 %6783
        %v6785 = vmax.f32 %v6604, %v6606
        %6786 = vmax.xlane.f32.xlu0 %v6785
        %v6787 = vpop.xlane.xlu0 %6786
        %v6788 = vmax.f32 %v6610, %v6612
        %6789 = vmax.xlane.f32.xlu0 %v6788
        %v6790 = vpop.xlane.xlu0 %6789
        %v6791 = vmax.f32 %v6616, %v6618
        %6792 = vmax.xlane.f32.xlu0 %v6791
        %v6793 = vpop.xlane.xlu0 %6792
        %v6794 = vmax.f32 %v6622, %v6624
        %6795 = vmax.xlane.f32.xlu0 %v6794
        %v6796 = vpop.xlane.xlu0 %6795
        %v6797 = vmax.f32 %v6628, %v6630
        %6798 = vmax.xlane.f32.xlu0 %v6797
        %v6799 = vpop.xlane.xlu0 %6798
        %v6800 = vmax.f32 %v6634, %v6636
        %6801 = vmax.xlane.f32.xlu0 %v6800
        %v6802 = vpop.xlane.xlu0 %6801
        %v6803 = vmax.f32 %v6640, %v6642
        %6804 = vmax.xlane.f32.xlu0 %v6803
        %v6805 = vpop.xlane.xlu0 %6804
        %v6806 = vmax.f32 %v6646, %v6648
        %6807 = vmax.xlane.f32.xlu0 %v6806
        %v6808 = vpop.xlane.xlu0 %6807
        %v6809 = vmax.f32 %v6652, %v6654
        %6810 = vmax.xlane.f32.xlu0 %v6809
        %v6811 = vpop.xlane.xlu0 %6810
        %v6812 = vmax.f32 %v6658, %v6660
        %6813 = vmax.xlane.f32.xlu0 %v6812
        %v6814 = vpop.xlane.xlu0 %6813
        %v6815 = vmax.f32 %v6664, %v6666
        %6816 = vmax.xlane.f32.xlu0 %v6815
        %v6817 = vpop.xlane.xlu0 %6816
        %v6818 = vmax.f32 %v6670, %v6672
        %6819 = vmax.xlane.f32.xlu0 %v6818
        %v6820 = vpop.xlane.xlu0 %6819
        %v6821 = vmax.f32 %v6676, %v6678
        %6822 = vmax.xlane.f32.xlu0 %v6821
        %v6823 = vpop.xlane.xlu0 %6822
        %v6824 = vmax.f32 %v6682, %v6684
        %6825 = vmax.xlane.f32.xlu0 %v6824
        %v6826 = vpop.xlane.xlu0 %6825
        %v6827 = vmax.f32 %v6688, %v6690
        %6828 = vmax.xlane.f32.xlu0 %v6827
        %v6829 = vpop.xlane.xlu0 %6828
        %v6830 = vmax.f32 %v6694, %v6696
        %6831 = vmax.xlane.f32.xlu0 %v6830
        %v6832 = vpop.xlane.xlu0 %6831
        %v6833 = vmax.f32 %v6700, %v6702
        %6834 = vmax.xlane.f32.xlu0 %v6833
        %v6835 = vpop.xlane.xlu0 %6834
        %v6836 = vmax.f32 %v6706, %v6708
        %6837 = vmax.xlane.f32.xlu0 %v6836
        %v6838 = vpop.xlane.xlu0 %6837
        %v6839 = vmax.f32 %v6712, %v6714
        %6840 = vmax.xlane.f32.xlu0 %v6839
        %v6841 = vpop.xlane.xlu0 %6840
        %v6842 = vmax.f32 %v6718, %v6720
        %6843 = vmax.xlane.f32.xlu0 %v6842
        %v6844 = vpop.xlane.xlu0 %6843
        %v6845 = vmax.f32 %v6724, %v6726
        %6846 = vmax.xlane.f32.xlu0 %v6845
        %v6847 = vpop.xlane.xlu0 %6846
        %v6848 = vmax.f32 %v6730, %v6732
        %6849 = vmax.xlane.f32.xlu0 %v6848
        %v6850 = vpop.xlane.xlu0 %6849
        %v6851 = vmax.f32 %v6736, %v6738
        %6852 = vmax.xlane.f32.xlu0 %v6851
        %v6853 = vpop.xlane.xlu0 %6852
        %v6854 = vmax.f32 %v6742, %v6744
        %6855 = vmax.xlane.f32.xlu0 %v6854
        %v6856 = vpop.xlane.xlu0 %6855
        %v6857 = vmax.f32 %v6748, %v6750
        %6858 = vmax.xlane.f32.xlu0 %v6857
        %v6859 = vpop.xlane.xlu0 %6858
        %v6860 = vmax.f32 %v6754, %v6756
        %6861 = vmax.xlane.f32.xlu0 %v6860
        %v6862 = vpop.xlane.xlu0 %6861
        %v6863 = vmax.f32 %v6760, %v6762
        %6864 = vmax.xlane.f32.xlu0 %v6863
        %v6865 = vpop.xlane.xlu0 %6864
        %v6866 = vmax.f32 %v6766, %v6768
        %6867 = vmax.xlane.f32.xlu0 %v6866
        %v6868 = vpop.xlane.xlu0 %6867
        %v6869 = vmax.f32 %v6772, %v6774
        %6870 = vmax.xlane.f32.xlu0 %v6869
        %v6871 = vpop.xlane.xlu0 %6870
        %v6872 = vsub.f32 %v6586, %v6778
        %v6873 = vsub.f32 %v6588, %v6778
        %v6874 = vsub.f32 %v6592, %v6781
        %v6875 = vsub.f32 %v6594, %v6781
        %v6876 = vsub.f32 %v6598, %v6784
        %v6877 = vsub.f32 %v6600, %v6784
        %v6878 = vsub.f32 %v6604, %v6787
        %v6879 = vsub.f32 %v6606, %v6787
        %v6880 = vsub.f32 %v6610, %v6790
        %v6881 = vsub.f32 %v6612, %v6790
        %v6882 = vsub.f32 %v6616, %v6793
        %v6883 = vsub.f32 %v6618, %v6793
        %v6884 = vsub.f32 %v6622, %v6796
        %v6885 = vsub.f32 %v6624, %v6796
        %v6886 = vsub.f32 %v6628, %v6799
        %v6887 = vsub.f32 %v6630, %v6799
        %v6888 = vsub.f32 %v6634, %v6802
        %v6889 = vsub.f32 %v6636, %v6802
        %v6890 = vsub.f32 %v6640, %v6805
        %v6891 = vsub.f32 %v6642, %v6805
        %v6892 = vsub.f32 %v6646, %v6808
        %v6893 = vsub.f32 %v6648, %v6808
        %v6894 = vsub.f32 %v6652, %v6811
        %v6895 = vsub.f32 %v6654, %v6811
        %v6896 = vsub.f32 %v6658, %v6814
        %v6897 = vsub.f32 %v6660, %v6814
        %v6898 = vsub.f32 %v6664, %v6817
        %v6899 = vsub.f32 %v6666, %v6817
        %v6900 = vsub.f32 %v6670, %v6820
        %v6901 = vsub.f32 %v6672, %v6820
        %v6902 = vsub.f32 %v6676, %v6823
        %v6903 = vsub.f32 %v6678, %v6823
        %v6904 = vsub.f32 %v6682, %v6826
        %v6905 = vsub.f32 %v6684, %v6826
        %v6906 = vsub.f32 %v6688, %v6829
        %v6907 = vsub.f32 %v6690, %v6829
        %v6908 = vsub.f32 %v6694, %v6832
        %v6909 = vsub.f32 %v6696, %v6832
        %v6910 = vsub.f32 %v6700, %v6835
        %v6911 = vsub.f32 %v6702, %v6835
        %v6912 = vsub.f32 %v6706, %v6838
        %v6913 = vsub.f32 %v6708, %v6838
        %v6914 = vsub.f32 %v6712, %v6841
        %v6915 = vsub.f32 %v6714, %v6841
        %v6916 = vsub.f32 %v6718, %v6844
        %v6917 = vsub.f32 %v6720, %v6844
        %v6918 = vsub.f32 %v6724, %v6847
        %v6919 = vsub.f32 %v6726, %v6847
        %v6920 = vsub.f32 %v6730, %v6850
        %v6921 = vsub.f32 %v6732, %v6850
        %v6922 = vsub.f32 %v6736, %v6853
        %v6923 = vsub.f32 %v6738, %v6853
        %v6924 = vsub.f32 %v6742, %v6856
        %v6925 = vsub.f32 %v6744, %v6856
        %v6926 = vsub.f32 %v6748, %v6859
        %v6927 = vsub.f32 %v6750, %v6859
        %v6928 = vsub.f32 %v6754, %v6862
        %v6929 = vsub.f32 %v6756, %v6862
        %v6930 = vsub.f32 %v6760, %v6865
        %v6931 = vsub.f32 %v6762, %v6865
        %v6932 = vsub.f32 %v6766, %v6868
        %v6933 = vsub.f32 %v6768, %v6868
        %v6934 = vsub.f32 %v6772, %v6871
        %v6935 = vsub.f32 %v6774, %v6871
        %v6936 = vmul.f32 %v6872, 1.442695
        %v6937 = vpow.pop %v6936
        %v6938 = vmul.f32 %v6873, 1.442695
        %v6939 = vpow.pop %v6938
        %v6940 = vmul.f32 %v6874, 1.442695
        %v6941 = vpow.pop %v6940
        %v6942 = vmul.f32 %v6875, 1.442695
        %v6943 = vpow.pop %v6942
        %v6944 = vmul.f32 %v6876, 1.442695
        %v6945 = vpow.pop %v6944
        %v6946 = vmul.f32 %v6877, 1.442695
        %v6947 = vpow.pop %v6946
        %v6948 = vmul.f32 %v6878, 1.442695
        %v6949 = vpow.pop %v6948
        %v6950 = vmul.f32 %v6879, 1.442695
        %v6951 = vpow.pop %v6950
        %v6952 = vmul.f32 %v6880, 1.442695
        %v6953 = vpow.pop %v6952
        %v6954 = vmul.f32 %v6881, 1.442695
        %v6955 = vpow.pop %v6954
        %v6956 = vmul.f32 %v6882, 1.442695
        %v6957 = vpow.pop %v6956
        %v6958 = vmul.f32 %v6883, 1.442695
        %v6959 = vpow.pop %v6958
        %v6960 = vmul.f32 %v6884, 1.442695
        %v6961 = vpow.pop %v6960
        %v6962 = vmul.f32 %v6885, 1.442695
        %v6963 = vpow.pop %v6962
        %v6964 = vmul.f32 %v6886, 1.442695
        %v6965 = vpow.pop %v6964
        %v6966 = vmul.f32 %v6887, 1.442695
        %v6967 = vpow.pop %v6966
        %v6968 = vmul.f32 %v6888, 1.442695
        %v6969 = vpow.pop %v6968
        %v6970 = vmul.f32 %v6889, 1.442695
        %v6971 = vpow.pop %v6970
        %v6972 = vmul.f32 %v6890, 1.442695
        %v6973 = vpow.pop %v6972
        %v6974 = vmul.f32 %v6891, 1.442695
        %v6975 = vpow.pop %v6974
        %v6976 = vmul.f32 %v6892, 1.442695
        %v6977 = vpow.pop %v6976
        %v6978 = vmul.f32 %v6893, 1.442695
        %v6979 = vpow.pop %v6978
        %v6980 = vmul.f32 %v6894, 1.442695
        %v6981 = vpow.pop %v6980
        %v6982 = vmul.f32 %v6895, 1.442695
        %v6983 = vpow.pop %v6982
        %v6984 = vmul.f32 %v6896, 1.442695
        %v6985 = vpow.pop %v6984
        %v6986 = vmul.f32 %v6897, 1.442695
        %v6987 = vpow.pop %v6986
        %v6988 = vmul.f32 %v6898, 1.442695
        %v6989 = vpow.pop %v6988
        %v6990 = vmul.f32 %v6899, 1.442695
        %v6991 = vpow.pop %v6990
        %v6992 = vmul.f32 %v6900, 1.442695
        %v6993 = vpow.pop %v6992
        %v6994 = vmul.f32 %v6901, 1.442695
        %v6995 = vpow.pop %v6994
        %v6996 = vmul.f32 %v6902, 1.442695
        %v6997 = vpow.pop %v6996
        %v6998 = vmul.f32 %v6903, 1.442695
        %v6999 = vpow.pop %v6998
        %v7000 = vmul.f32 %v6904, 1.442695
        %v7001 = vpow.pop %v7000
        %v7002 = vmul.f32 %v6905, 1.442695
        %v7003 = vpow.pop %v7002
        %v7004 = vmul.f32 %v6906, 1.442695
        %v7005 = vpow.pop %v7004
        %v7006 = vmul.f32 %v6907, 1.442695
        %v7007 = vpow.pop %v7006
        %v7008 = vmul.f32 %v6908, 1.442695
        %v7009 = vpow.pop %v7008
        %v7010 = vmul.f32 %v6909, 1.442695
        %v7011 = vpow.pop %v7010
        %v7012 = vmul.f32 %v6910, 1.442695
        %v7013 = vpow.pop %v7012
        %v7014 = vmul.f32 %v6911, 1.442695
        %v7015 = vpow.pop %v7014
        %v7016 = vmul.f32 %v6912, 1.442695
        %v7017 = vpow.pop %v7016
        %v7018 = vmul.f32 %v6913, 1.442695
        %v7019 = vpow.pop %v7018
        %v7020 = vmul.f32 %v6914, 1.442695
        %v7021 = vpow.pop %v7020
        %v7022 = vmul.f32 %v6915, 1.442695
        %v7023 = vpow.pop %v7022
        %v7024 = vmul.f32 %v6916, 1.442695
        %v7025 = vpow.pop %v7024
        %v7026 = vmul.f32 %v6917, 1.442695
        %v7027 = vpow.pop %v7026
        %v7028 = vmul.f32 %v6918, 1.442695
        %v7029 = vpow.pop %v7028
        %v7030 = vmul.f32 %v6919, 1.442695
        %v7031 = vpow.pop %v7030
        %v7032 = vmul.f32 %v6920, 1.442695
        %v7033 = vpow.pop %v7032
        %v7034 = vmul.f32 %v6921, 1.442695
        %v7035 = vpow.pop %v7034
        %v7036 = vmul.f32 %v6922, 1.442695
        %v7037 = vpow.pop %v7036
        %v7038 = vmul.f32 %v6923, 1.442695
        %v7039 = vpow.pop %v7038
        %v7040 = vmul.f32 %v6924, 1.442695
        %v7041 = vpow.pop %v7040
        %v7042 = vmul.f32 %v6925, 1.442695
        %v7043 = vpow.pop %v7042
        %v7044 = vmul.f32 %v6926, 1.442695
        %v7045 = vpow.pop %v7044
        %v7046 = vmul.f32 %v6927, 1.442695
        %v7047 = vpow.pop %v7046
        %v7048 = vmul.f32 %v6928, 1.442695
        %v7049 = vpow.pop %v7048
        %v7050 = vmul.f32 %v6929, 1.442695
        %v7051 = vpow.pop %v7050
        %v7052 = vmul.f32 %v6930, 1.442695
        %v7053 = vpow.pop %v7052
        %v7054 = vmul.f32 %v6931, 1.442695
        %v7055 = vpow.pop %v7054
        %v7056 = vmul.f32 %v6932, 1.442695
        %v7057 = vpow.pop %v7056
        %v7058 = vmul.f32 %v6933, 1.442695
        %v7059 = vpow.pop %v7058
        %v7060 = vmul.f32 %v6934, 1.442695
        %v7061 = vpow.pop %v7060
        %v7062 = vmul.f32 %v6935, 1.442695
        %v7063 = vpow.pop %v7062
        %v7064 = vadd.f32 %v6937, %v6939
        %7065 = vadd.xlane.f32.xlu0 %v7064
        %v7066 = vpop.xlane.xlu0 %7065
        %v7067 = vadd.f32 %v6941, %v6943
        %7068 = vadd.xlane.f32.xlu0 %v7067
        %v7069 = vpop.xlane.xlu0 %7068
        %v7070 = vadd.f32 %v6945, %v6947
        %7071 = vadd.xlane.f32.xlu0 %v7070
        %v7072 = vpop.xlane.xlu0 %7071
        %v7073 = vadd.f32 %v6949, %v6951
        %7074 = vadd.xlane.f32.xlu0 %v7073
        %v7075 = vpop.xlane.xlu0 %7074
        %v7076 = vadd.f32 %v6953, %v6955
        %7077 = vadd.xlane.f32.xlu0 %v7076
        %v7078 = vpop.xlane.xlu0 %7077
        %v7079 = vadd.f32 %v6957, %v6959
        %7080 = vadd.xlane.f32.xlu0 %v7079
        %v7081 = vpop.xlane.xlu0 %7080
        %v7082 = vadd.f32 %v6961, %v6963
        %7083 = vadd.xlane.f32.xlu0 %v7082
        %v7084 = vpop.xlane.xlu0 %7083
        %v7085 = vadd.f32 %v6965, %v6967
        %7086 = vadd.xlane.f32.xlu0 %v7085
        %v7087 = vpop.xlane.xlu0 %7086
        %v7088 = vadd.f32 %v6969, %v6971
        %7089 = vadd.xlane.f32.xlu0 %v7088
        %v7090 = vpop.xlane.xlu0 %7089
        %v7091 = vadd.f32 %v6973, %v6975
        %7092 = vadd.xlane.f32.xlu0 %v7091
        %v7093 = vpop.xlane.xlu0 %7092
        %v7094 = vadd.f32 %v6977, %v6979
        %7095 = vadd.xlane.f32.xlu0 %v7094
        %v7096 = vpop.xlane.xlu0 %7095
        %v7097 = vadd.f32 %v6981, %v6983
        %7098 = vadd.xlane.f32.xlu0 %v7097
        %v7099 = vpop.xlane.xlu0 %7098
        %v7100 = vadd.f32 %v6985, %v6987
        %7101 = vadd.xlane.f32.xlu0 %v7100
        %v7102 = vpop.xlane.xlu0 %7101
        %v7103 = vadd.f32 %v6989, %v6991
        %7104 = vadd.xlane.f32.xlu0 %v7103
        %v7105 = vpop.xlane.xlu0 %7104
        %v7106 = vadd.f32 %v6993, %v6995
        %7107 = vadd.xlane.f32.xlu0 %v7106
        %v7108 = vpop.xlane.xlu0 %7107
        %v7109 = vadd.f32 %v6997, %v6999
        %7110 = vadd.xlane.f32.xlu0 %v7109
        %v7111 = vpop.xlane.xlu0 %7110
        %v7112 = vadd.f32 %v7001, %v7003
        %7113 = vadd.xlane.f32.xlu0 %v7112
        %v7114 = vpop.xlane.xlu0 %7113
        %v7115 = vadd.f32 %v7005, %v7007
        %7116 = vadd.xlane.f32.xlu0 %v7115
        %v7117 = vpop.xlane.xlu0 %7116
        %v7118 = vadd.f32 %v7009, %v7011
        %7119 = vadd.xlane.f32.xlu0 %v7118
        %v7120 = vpop.xlane.xlu0 %7119
        %v7121 = vadd.f32 %v7013, %v7015
        %7122 = vadd.xlane.f32.xlu0 %v7121
        %v7123 = vpop.xlane.xlu0 %7122
        %v7124 = vadd.f32 %v7017, %v7019
        %7125 = vadd.xlane.f32.xlu0 %v7124
        %v7126 = vpop.xlane.xlu0 %7125
        %v7127 = vadd.f32 %v7021, %v7023
        %7128 = vadd.xlane.f32.xlu0 %v7127
        %v7129 = vpop.xlane.xlu0 %7128
        %v7130 = vadd.f32 %v7025, %v7027
        %7131 = vadd.xlane.f32.xlu0 %v7130
        %v7132 = vpop.xlane.xlu0 %7131
        %v7133 = vadd.f32 %v7029, %v7031
        %7134 = vadd.xlane.f32.xlu0 %v7133
        %v7135 = vpop.xlane.xlu0 %7134
        %v7136 = vadd.f32 %v7033, %v7035
        %7137 = vadd.xlane.f32.xlu0 %v7136
        %v7138 = vpop.xlane.xlu0 %7137
        %v7139 = vadd.f32 %v7037, %v7039
        %7140 = vadd.xlane.f32.xlu0 %v7139
        %v7141 = vpop.xlane.xlu0 %7140
        %v7142 = vadd.f32 %v7041, %v7043
        %7143 = vadd.xlane.f32.xlu0 %v7142
        %v7144 = vpop.xlane.xlu0 %7143
        %v7145 = vadd.f32 %v7045, %v7047
        %7146 = vadd.xlane.f32.xlu0 %v7145
        %v7147 = vpop.xlane.xlu0 %7146
        %v7148 = vadd.f32 %v7049, %v7051
        %7149 = vadd.xlane.f32.xlu0 %v7148
        %v7150 = vpop.xlane.xlu0 %7149
        %v7151 = vadd.f32 %v7053, %v7055
        %7152 = vadd.xlane.f32.xlu0 %v7151
        %v7153 = vpop.xlane.xlu0 %7152
        %v7154 = vadd.f32 %v7057, %v7059
        %7155 = vadd.xlane.f32.xlu0 %v7154
        %v7156 = vpop.xlane.xlu0 %7155
        %v7157 = vadd.f32 %v7061, %v7063
        %7158 = vadd.xlane.f32.xlu0 %v7157
        %v7159 = vpop.xlane.xlu0 %7158
        %v7160 = vrcp.pop %v7066
        %v7161 = vrcp.pop %v7069
        %v7162 = vrcp.pop %v7072
        %v7163 = vrcp.pop %v7075
        %v7164 = vrcp.pop %v7078
        %v7165 = vrcp.pop %v7081
        %v7166 = vrcp.pop %v7084
        %v7167 = vrcp.pop %v7087
        %v7168 = vrcp.pop %v7090
        %v7169 = vrcp.pop %v7093
        %v7170 = vrcp.pop %v7096
        %v7171 = vrcp.pop %v7099
        %v7172 = vrcp.pop %v7102
        %v7173 = vrcp.pop %v7105
        %v7174 = vrcp.pop %v7108
        %v7175 = vrcp.pop %v7111
        %v7176 = vrcp.pop %v7114
        %v7177 = vrcp.pop %v7117
        %v7178 = vrcp.pop %v7120
        %v7179 = vrcp.pop %v7123
        %v7180 = vrcp.pop %v7126
        %v7181 = vrcp.pop %v7129
        %v7182 = vrcp.pop %v7132
        %v7183 = vrcp.pop %v7135
        %v7184 = vrcp.pop %v7138
        %v7185 = vrcp.pop %v7141
        %v7186 = vrcp.pop %v7144
        %v7187 = vrcp.pop %v7147
        %v7188 = vrcp.pop %v7150
        %v7189 = vrcp.pop %v7153
        %v7190 = vrcp.pop %v7156
        %v7191 = vrcp.pop %v7159
        %v7192 = vmul.f32 %v6937, %v7160
        %v7193 = vmul.f32 %v6939, %v7160
        %v7194 = vmul.f32 %v6941, %v7161
        %v7195 = vmul.f32 %v6943, %v7161
        %v7196 = vmul.f32 %v6945, %v7162
        %v7197 = vmul.f32 %v6947, %v7162
        %v7198 = vmul.f32 %v6949, %v7163
        %v7199 = vmul.f32 %v6951, %v7163
        %v7200 = vmul.f32 %v6953, %v7164
        %v7201 = vmul.f32 %v6955, %v7164
        %v7202 = vmul.f32 %v6957, %v7165
        %v7203 = vmul.f32 %v6959, %v7165
        %v7204 = vmul.f32 %v6961, %v7166
        %v7205 = vmul.f32 %v6963, %v7166
        %v7206 = vmul.f32 %v6965, %v7167
        %v7207 = vmul.f32 %v6967, %v7167
        %v7208 = vmul.f32 %v6969, %v7168
        %v7209 = vmul.f32 %v6971, %v7168
        %v7210 = vmul.f32 %v6973, %v7169
        %v7211 = vmul.f32 %v6975, %v7169
        %v7212 = vmul.f32 %v6977, %v7170
        %v7213 = vmul.f32 %v6979, %v7170
        %v7214 = vmul.f32 %v6981, %v7171
        %v7215 = vmul.f32 %v6983, %v7171
        %v7216 = vmul.f32 %v6985, %v7172
        %v7217 = vmul.f32 %v6987, %v7172
        %v7218 = vmul.f32 %v6989, %v7173
        %v7219 = vmul.f32 %v6991, %v7173
        %v7220 = vmul.f32 %v6993, %v7174
        %v7221 = vmul.f32 %v6995, %v7174
        %v7222 = vmul.f32 %v6997, %v7175
        %v7223 = vmul.f32 %v6999, %v7175
        %v7224 = vmul.f32 %v7001, %v7176
        %v7225 = vmul.f32 %v7003, %v7176
        %v7226 = vmul.f32 %v7005, %v7177
        %v7227 = vmul.f32 %v7007, %v7177
        %v7228 = vmul.f32 %v7009, %v7178
        %v7229 = vmul.f32 %v7011, %v7178
        %v7230 = vmul.f32 %v7013, %v7179
        %v7231 = vmul.f32 %v7015, %v7179
        %v7232 = vmul.f32 %v7017, %v7180
        %v7233 = vmul.f32 %v7019, %v7180
        %v7234 = vmul.f32 %v7021, %v7181
        %v7235 = vmul.f32 %v7023, %v7181
        %v7236 = vmul.f32 %v7025, %v7182
        %v7237 = vmul.f32 %v7027, %v7182
        %v7238 = vmul.f32 %v7029, %v7183
        %v7239 = vmul.f32 %v7031, %v7183
        %v7240 = vmul.f32 %v7033, %v7184
        %v7241 = vmul.f32 %v7035, %v7184
        %v7242 = vmul.f32 %v7037, %v7185
        %v7243 = vmul.f32 %v7039, %v7185
        %v7244 = vmul.f32 %v7041, %v7186
        %v7245 = vmul.f32 %v7043, %v7186
        %v7246 = vmul.f32 %v7045, %v7187
        %v7247 = vmul.f32 %v7047, %v7187
        %v7248 = vmul.f32 %v7049, %v7188
        %v7249 = vmul.f32 %v7051, %v7188
        %v7250 = vmul.f32 %v7053, %v7189
        %v7251 = vmul.f32 %v7055, %v7189
        %v7252 = vmul.f32 %v7057, %v7190
        %v7253 = vmul.f32 %v7059, %v7190
        %v7254 = vmul.f32 %v7061, %v7191
        %v7255 = vmul.f32 %v7063, %v7191
        %7256 = vmatprep.subr.mxu0 %v7193
        %7257 = vmatpush1.xpose.msra.mxu0 %v7192
        %7258 = vmatprep.subr.mxu0 %v7195
        %7259 = vmatpush1.xpose.msra.mxu0 %v7194
        %7260 = vmatprep.subr.mxu0 %v7197
        %7261 = vmatpush1.xpose.msra.mxu0 %v7196
        %7262 = vmatprep.subr.mxu0 %v7199
        %7263 = vmatpush1.xpose.msra.mxu0 %v7198
        %7264 = vmatprep.subr.mxu0 %v7201
        %7265 = vmatpush1.xpose.msra.mxu0 %v7200
        %7266 = vmatprep.subr.mxu0 %v7203
        %7267 = vmatpush1.xpose.msra.mxu0 %v7202
        %7268 = vmatprep.subr.mxu0 %v7205
        %7269 = vmatpush1.xpose.msra.mxu0 %v7204
        %7270 = vmatprep.subr.mxu0 %v7207
        %7271 = vmatpush1.xpose.msra.mxu0 %v7206
        %7272 = vmatprep.subr.mxu0 %v7209
        %7273 = vmatpush1.xpose.msra.mxu0 %v7208
        %7274 = vmatprep.subr.mxu0 %v7211
        %7275 = vmatpush1.xpose.msra.mxu0 %v7210
        %7276 = vmatprep.subr.mxu0 %v7213
        %7277 = vmatpush1.xpose.msra.mxu0 %v7212
        %7278 = vmatprep.subr.mxu0 %v7215
        %7279 = vmatpush1.xpose.msra.mxu0 %v7214
        %7280 = vmatprep.subr.mxu0 %v7217
        %7281 = vmatpush1.xpose.msra.mxu0 %v7216
        %7282 = vmatprep.subr.mxu0 %v7219
        %7283 = vmatpush1.xpose.msra.mxu0 %v7218
        %7284 = vmatprep.subr.mxu0 %v7221
        %7285 = vmatpush1.xpose.msra.mxu0 %v7220
        %7286 = vmatprep.subr.mxu0 %v7223
        %7287 = vmatpush1.xpose.msra.mxu0 %v7222
        %7288 = vmatprep.subr.mxu0 %v7225
        %7289 = vmatpush1.xpose.msra.mxu0 %v7224
        %7290 = vmatprep.subr.mxu0 %v7227
        %7291 = vmatpush1.xpose.msra.mxu0 %v7226
        %7292 = vmatprep.subr.mxu0 %v7229
        %7293 = vmatpush1.xpose.msra.mxu0 %v7228
        %7294 = vmatprep.subr.mxu0 %v7231
        %7295 = vmatpush1.xpose.msra.mxu0 %v7230
        %7296 = vmatprep.subr.mxu0 %v7233
        %7297 = vmatpush1.xpose.msra.mxu0 %v7232
        %7298 = vmatprep.subr.mxu0 %v7235
        %7299 = vmatpush1.xpose.msra.mxu0 %v7234
        %7300 = vmatprep.subr.mxu0 %v7237
        %7301 = vmatpush1.xpose.msra.mxu0 %v7236
        %7302 = vmatprep.subr.mxu0 %v7239
        %7303 = vmatpush1.xpose.msra.mxu0 %v7238
        %7304 = vmatprep.subr.mxu0 %v7241
        %7305 = vmatpush1.xpose.msra.mxu0 %v7240
        %7306 = vmatprep.subr.mxu0 %v7243
        %7307 = vmatpush1.xpose.msra.mxu0 %v7242
        %7308 = vmatprep.subr.mxu0 %v7245
        %7309 = vmatpush1.xpose.msra.mxu0 %v7244
        %7310 = vmatprep.subr.mxu0 %v7247
        %7311 = vmatpush1.xpose.msra.mxu0 %v7246
        %7312 = vmatprep.subr.mxu0 %v7249
        %7313 = vmatpush1.xpose.msra.mxu0 %v7248
        %7314 = vmatprep.subr.mxu0 %v7251
        %7315 = vmatpush1.xpose.msra.mxu0 %v7250
        %7316 = vmatprep.subr.mxu0 %v7253
        %7317 = vmatpush1.xpose.msra.mxu0 %v7252
        %7318 = vmatprep.subr.mxu0 %v7255
        %7319 = vmatpush1.xpose.msra.mxu0 %v7254
        %7320 = vmatprep.mubr.f32.mxu0 %v433
        %7321 = vmatmul.mubr.f32.gmra.mrb[0].mxu0 %v431
        %v7322 = vpop.f32.mrb[0].mxu0
        %v7323 = vadd.f32 0.0, %v7322
        %v7324 = vpop.f32.mrb[0].mxu0
        %v7325 = vadd.f32 0.0, %v7324
        %7326 = vdwg.mxu0
        %7327 = vst [vmem:[%s163 + $0x30] sm:$0xf] %v7323
        %7328 = vst [vmem:[%s163 + $0x38] sm:$0xf] %v7325
        %v7331 = vrot.slane %v441, 4
        %v7332 = vrot.slane %v442, 4
        %7335 = vxpose.xlu0.b32.start [1/16] %v7331, 128
        %7336 = vxpose.xlu0.b32.cont [2/16] 0.0, 128
        %7337 = vxpose.xlu0.b32.cont [3/16] 0.0, 128
        %7338 = vxpose.xlu0.b32.cont [4/16] 0.0, 128
        %7339 = vxpose.xlu0.b32.cont [5/16] 0.0, 128
        %7340 = vxpose.xlu0.b32.cont [6/16] 0.0, 128
        %7341 = vxpose.xlu0.b32.cont [7/16] 0.0, 128
        %7342 = vxpose.xlu0.b32.cont [8/16] 0.0, 128
        %7343 = vxpose.xlu0.b32.cont [9/16] 0.0, 128
        %7344 = vxpose.xlu0.b32.cont [10/16] 0.0, 128
        %7345 = vxpose.xlu0.b32.cont [11/16] 0.0, 128
        %7346 = vxpose.xlu0.b32.cont [12/16] 0.0, 128
        %7347 = vxpose.xlu0.b32.cont [13/16] 0.0, 128
        %7348 = vxpose.xlu0.b32.cont [14/16] 0.0, 128
        %7349 = vxpose.xlu0.b32.cont [15/16] 0.0, 128
        %7350 = vxpose.xlu0.b32.end [16/16] 0.0, 128
        %v7351 = vpop.trf.xlu0
        %v7352 = vpop.trf.xlu0
        %v7353 = vpop.trf.xlu0
        %v7354 = vpop.trf.xlu0
        %v7355 = vpop.trf.xlu0
        %v7356 = vpop.trf.xlu0
        %v7357 = vpop.trf.xlu0
        %v7358 = vpop.trf.xlu0
        %v7359 = vpop.trf.xlu0
        %v7360 = vpop.trf.xlu0
        %v7361 = vpop.trf.xlu0
        %v7362 = vpop.trf.xlu0
        %v7363 = vpop.trf.xlu0
        %v7364 = vpop.trf.xlu0
        %v7365 = vpop.trf.xlu0
        %v7366 = vpop.trf.xlu0
        %7367 = vxpose.xlu0.b32.start [1/16] %v7332, 128
        %7368 = vxpose.xlu0.b32.cont [2/16] 0.0, 128
        %7369 = vxpose.xlu0.b32.cont [3/16] 0.0, 128
        %7370 = vxpose.xlu0.b32.cont [4/16] 0.0, 128
        %7371 = vxpose.xlu0.b32.cont [5/16] 0.0, 128
        %7372 = vxpose.xlu0.b32.cont [6/16] 0.0, 128
        %7373 = vxpose.xlu0.b32.cont [7/16] 0.0, 128
        %7374 = vxpose.xlu0.b32.cont [8/16] 0.0, 128
        %7375 = vxpose.xlu0.b32.cont [9/16] 0.0, 128
        %7376 = vxpose.xlu0.b32.cont [10/16] 0.0, 128
        %7377 = vxpose.xlu0.b32.cont [11/16] 0.0, 128
        %7378 = vxpose.xlu0.b32.cont [12/16] 0.0, 128
        %7379 = vxpose.xlu0.b32.cont [13/16] 0.0, 128
        %7380 = vxpose.xlu0.b32.cont [14/16] 0.0, 128
        %7381 = vxpose.xlu0.b32.cont [15/16] 0.0, 128
        %7382 = vxpose.xlu0.b32.end [16/16] 0.0, 128
        %v7383 = vpop.trf.xlu0
        %v7384 = vpop.trf.xlu0
        %v7385 = vpop.trf.xlu0
        %v7386 = vpop.trf.xlu0
        %v7387 = vpop.trf.xlu0
        %v7388 = vpop.trf.xlu0
        %v7389 = vpop.trf.xlu0
        %v7390 = vpop.trf.xlu0
        %v7391 = vpop.trf.xlu0
        %v7392 = vpop.trf.xlu0
        %v7393 = vpop.trf.xlu0
        %v7394 = vpop.trf.xlu0
        %v7395 = vpop.trf.xlu0
        %v7396 = vpop.trf.xlu0
        %v7397 = vpop.trf.xlu0
        %v7398 = vpop.trf.xlu0
        %v7399 = vrot.slane %v407, 4
        %v7400 = vrot.slane %v409, 4
        %v7402 = vsel %vm256, %v7351, 0
        %v7405 = vsel %vm256, %v7352, 0
        %v7408 = vsel %vm256, %v7353, 0
        %v7411 = vsel %vm256, %v7354, 0
        %v7414 = vsel %vm256, %v7355, 0
        %v7417 = vsel %vm256, %v7356, 0
        %v7420 = vsel %vm256, %v7357, 0
        %v7423 = vsel %vm256, %v7358, 0
        %v7426 = vsel %vm256, %v7359, 0
        %v7429 = vsel %vm256, %v7360, 0
        %v7432 = vsel %vm256, %v7361, 0
        %v7435 = vsel %vm256, %v7362, 0
        %v7438 = vsel %vm256, %v7363, 0
        %v7441 = vsel %vm256, %v7364, 0
        %v7444 = vsel %vm256, %v7365, 0
        %v7447 = vsel %vm256, %v7366, 0
        %v7450 = vsel %vm256, %v7383, 0
        %v7453 = vsel %vm256, %v7384, 0
        %v7456 = vsel %vm256, %v7385, 0
        %v7459 = vsel %vm256, %v7386, 0
        %v7462 = vsel %vm256, %v7387, 0
        %v7465 = vsel %vm256, %v7388, 0
        %v7468 = vsel %vm256, %v7389, 0
        %v7471 = vsel %vm256, %v7390, 0
        %v7474 = vsel %vm256, %v7391, 0
        %v7477 = vsel %vm256, %v7392, 0
        %v7480 = vsel %vm256, %v7393, 0
        %v7483 = vsel %vm256, %v7394, 0
        %v7486 = vsel %vm256, %v7395, 0
        %v7489 = vsel %vm256, %v7396, 0
        %v7492 = vsel %vm256, %v7397, 0
        %v7495 = vsel %vm256, %v7398, 0
        %v7497 = vsel %vm293, %v7399, 0
        %v7499 = vsel %vm293, %v7400, 0
        %7501 = vmatprep.subr.mxu0 %v7499
        %7502 = vmatpush1.msra.mxu0 %v7497
        %7503 = vmatprep.subr.mxu0 0.0
        %7504 = vmatpush1.msra.mxu0 0.0
        %7505 = vmatprep.subr.mxu0 0.0
        %7506 = vmatpush1.msra.mxu0 0.0
        %7507 = vmatprep.subr.mxu0 0.0
        %7508 = vmatpush1.msra.mxu0 0.0
        %7509 = vmatprep.subr.mxu0 0.0
        %7510 = vmatpush1.msra.mxu0 0.0
        %7511 = vmatprep.subr.mxu0 0.0
        %7512 = vmatpush1.msra.mxu0 0.0
        %7513 = vmatprep.subr.mxu0 0.0
        %7514 = vmatpush1.msra.mxu0 0.0
        %7515 = vmatprep.subr.mxu0 0.0
        %7516 = vmatpush1.msra.mxu0 0.0
        %7517 = vmatprep.subr.mxu0 0.0
        %7518 = vmatpush1.msra.mxu0 0.0
        %7519 = vmatprep.subr.mxu0 0.0
        %7520 = vmatpush1.msra.mxu0 0.0
        %7521 = vmatprep.subr.mxu0 0.0
        %7522 = vmatpush1.msra.mxu0 0.0
        %7523 = vmatprep.subr.mxu0 0.0
        %7524 = vmatpush1.msra.mxu0 0.0
        %7525 = vmatprep.subr.mxu0 0.0
        %7526 = vmatpush1.msra.mxu0 0.0
        %7527 = vmatprep.subr.mxu0 0.0
        %7528 = vmatpush1.msra.mxu0 0.0
        %7529 = vmatprep.subr.mxu0 0.0
        %7530 = vmatpush1.msra.mxu0 0.0
        %7531 = vmatprep.subr.mxu0 0.0
        %7532 = vmatpush1.msra.mxu0 0.0
        %7533 = vmatprep.subr.mxu0 0.0
        %7534 = vmatpush1.msra.mxu0 0.0
        %7535 = vmatprep.subr.mxu0 0.0
        %7536 = vmatpush1.msra.mxu0 0.0
        %7537 = vmatprep.subr.mxu0 0.0
        %7538 = vmatpush1.msra.mxu0 0.0
        %7539 = vmatprep.subr.mxu0 0.0
        %7540 = vmatpush1.msra.mxu0 0.0
        %7541 = vmatprep.subr.mxu0 0.0
        %7542 = vmatpush1.msra.mxu0 0.0
        %7543 = vmatprep.subr.mxu0 0.0
        %7544 = vmatpush1.msra.mxu0 0.0
        %7545 = vmatprep.subr.mxu0 0.0
        %7546 = vmatpush1.msra.mxu0 0.0
        %7547 = vmatprep.subr.mxu0 0.0
        %7548 = vmatpush1.msra.mxu0 0.0
        %7549 = vmatprep.subr.mxu0 0.0
        %7550 = vmatpush1.msra.mxu0 0.0
        %7551 = vmatprep.subr.mxu0 0.0
        %7552 = vmatpush1.msra.mxu0 0.0
        %7553 = vmatprep.subr.mxu0 0.0
        %7554 = vmatpush1.msra.mxu0 0.0
        %7555 = vmatprep.subr.mxu0 0.0
        %7556 = vmatpush1.msra.mxu0 0.0
        %7557 = vmatprep.subr.mxu0 0.0
        %7558 = vmatpush1.msra.mxu0 0.0
        %7559 = vmatprep.subr.mxu0 0.0
        %7560 = vmatpush1.msra.mxu0 0.0
        %7561 = vmatprep.subr.mxu0 0.0
        %7562 = vmatpush1.msra.mxu0 0.0
        %7563 = vmatprep.subr.mxu0 0.0
        %7564 = vmatpush1.msra.mxu0 0.0
        %7565 = vmatprep.mubr.f32.mxu0 0.0
        %7566 = vmatmul.mubr.f32.gmra.mrb[0].mxu0 %v7402
        %v7567 = vpop.f32.mrb[0].mxu0
        %v7568 = vadd.f32 0.0, %v7567
        %v7569 = vpop.f32.mrb[0].mxu0
        %v7570 = vadd.f32 0.0, %v7569
        %7571 = vmatprep.mubr.f32.mxu0 0.0
        %7572 = vmatmul.mubr.f32.gmra.mrb[0].mxu0 %v7405
        %v7573 = vpop.f32.mrb[0].mxu0
        %v7574 = vadd.f32 0.0, %v7573
        %v7575 = vpop.f32.mrb[0].mxu0
        %v7576 = vadd.f32 0.0, %v7575
        %7577 = vmatprep.mubr.f32.mxu0 0.0
        %7578 = vmatmul.mubr.f32.gmra.mrb[0].mxu0 %v7408
        %v7579 = vpop.f32.mrb[0].mxu0
        %v7580 = vadd.f32 0.0, %v7579
        %v7581 = vpop.f32.mrb[0].mxu0
        %v7582 = vadd.f32 0.0, %v7581
        %7583 = vmatprep.mubr.f32.mxu0 0.0
        %7584 = vmatmul.mubr.f32.gmra.mrb[0].mxu0 %v7411
        %v7585 = vpop.f32.mrb[0].mxu0
        %v7586 = vadd.f32 0.0, %v7585
        %v7587 = vpop.f32.mrb[0].mxu0
        %v7588 = vadd.f32 0.0, %v7587
        %7589 = vmatprep.mubr.f32.mxu0 0.0
        %7590 = vmatmul.mubr.f32.gmra.mrb[0].mxu0 %v7414
        %v7591 = vpop.f32.mrb[0].mxu0
        %v7592 = vadd.f32 0.0, %v7591
        %v7593 = vpop.f32.mrb[0].mxu0
        %v7594 = vadd.f32 0.0, %v7593
        %7595 = vmatprep.mubr.f32.mxu0 0.0
        %7596 = vmatmul.mubr.f32.gmra.mrb[0].mxu0 %v7417
        %v7597 = vpop.f32.mrb[0].mxu0
        %v7598 = vadd.f32 0.0, %v7597
        %v7599 = vpop.f32.mrb[0].mxu0
        %v7600 = vadd.f32 0.0, %v7599
        %7601 = vmatprep.mubr.f32.mxu0 0.0
        %7602 = vmatmul.mubr.f32.gmra.mrb[0].mxu0 %v7420
        %v7603 = vpop.f32.mrb[0].mxu0
        %v7604 = vadd.f32 0.0, %v7603
        %v7605 = vpop.f32.mrb[0].mxu0
        %v7606 = vadd.f32 0.0, %v7605
        %7607 = vmatprep.mubr.f32.mxu0 0.0
        %7608 = vmatmul.mubr.f32.gmra.mrb[0].mxu0 %v7423
        %v7609 = vpop.f32.mrb[0].mxu0
        %v7610 = vadd.f32 0.0, %v7609
        %v7611 = vpop.f32.mrb[0].mxu0
        %v7612 = vadd.f32 0.0, %v7611
        %7613 = vmatprep.mubr.f32.mxu0 0.0
        %7614 = vmatmul.mubr.f32.gmra.mrb[0].mxu0 %v7426
        %v7615 = vpop.f32.mrb[0].mxu0
        %v7616 = vadd.f32 0.0, %v7615
        %v7617 = vpop.f32.mrb[0].mxu0
        %v7618 = vadd.f32 0.0, %v7617
        %7619 = vmatprep.mubr.f32.mxu0 0.0
        %7620 = vmatmul.mubr.f32.gmra.mrb[0].mxu0 %v7429
        %v7621 = vpop.f32.mrb[0].mxu0
        %v7622 = vadd.f32 0.0, %v7621
        %v7623 = vpop.f32.mrb[0].mxu0
        %v7624 = vadd.f32 0.0, %v7623
        %7625 = vmatprep.mubr.f32.mxu0 0.0
        %7626 = vmatmul.mubr.f32.gmra.mrb[0].mxu0 %v7432
        %v7627 = vpop.f32.mrb[0].mxu0
        %v7628 = vadd.f32 0.0, %v7627
        %v7629 = vpop.f32.mrb[0].mxu0
        %v7630 = vadd.f32 0.0, %v7629
        %7631 = vmatprep.mubr.f32.mxu0 0.0
        %7632 = vmatmul.mubr.f32.gmra.mrb[0].mxu0 %v7435
        %v7633 = vpop.f32.mrb[0].mxu0
        %v7634 = vadd.f32 0.0, %v7633
        %v7635 = vpop.f32.mrb[0].mxu0
        %v7636 = vadd.f32 0.0, %v7635
        %7637 = vmatprep.mubr.f32.mxu0 0.0
        %7638 = vmatmul.mubr.f32.gmra.mrb[0].mxu0 %v7438
        %v7639 = vpop.f32.mrb[0].mxu0
        %v7640 = vadd.f32 0.0, %v7639
        %v7641 = vpop.f32.mrb[0].mxu0
        %v7642 = vadd.f32 0.0, %v7641
        %7643 = vmatprep.mubr.f32.mxu0 0.0
        %7644 = vmatmul.mubr.f32.gmra.mrb[0].mxu0 %v7441
        %v7645 = vpop.f32.mrb[0].mxu0
        %v7646 = vadd.f32 0.0, %v7645
        %v7647 = vpop.f32.mrb[0].mxu0
        %v7648 = vadd.f32 0.0, %v7647
        %7649 = vmatprep.mubr.f32.mxu0 0.0
        %7650 = vmatmul.mubr.f32.gmra.mrb[0].mxu0 %v7444
        %v7651 = vpop.f32.mrb[0].mxu0
        %v7652 = vadd.f32 0.0, %v7651
        %v7653 = vpop.f32.mrb[0].mxu0
        %v7654 = vadd.f32 0.0, %v7653
        %7655 = vmatprep.mubr.f32.mxu0 0.0
        %7656 = vmatmul.mubr.f32.gmra.mrb[0].mxu0 %v7447
        %v7657 = vpop.f32.mrb[0].mxu0
        %v7658 = vadd.f32 0.0, %v7657
        %v7659 = vpop.f32.mrb[0].mxu0
        %v7660 = vadd.f32 0.0, %v7659
        %7661 = vmatprep.mubr.f32.mxu0 0.0
        %7662 = vmatmul.mubr.f32.gmra.mrb[0].mxu0 %v7450
        %v7663 = vpop.f32.mrb[0].mxu0
        %v7664 = vadd.f32 0.0, %v7663
        %v7665 = vpop.f32.mrb[0].mxu0
        %v7666 = vadd.f32 0.0, %v7665
        %7667 = vmatprep.mubr.f32.mxu0 0.0
        %7668 = vmatmul.mubr.f32.gmra.mrb[0].mxu0 %v7453
        %v7669 = vpop.f32.mrb[0].mxu0
        %v7670 = vadd.f32 0.0, %v7669
        %v7671 = vpop.f32.mrb[0].mxu0
        %v7672 = vadd.f32 0.0, %v7671
        %7673 = vmatprep.mubr.f32.mxu0 0.0
        %7674 = vmatmul.mubr.f32.gmra.mrb[0].mxu0 %v7456
        %v7675 = vpop.f32.mrb[0].mxu0
        %v7676 = vadd.f32 0.0, %v7675
        %v7677 = vpop.f32.mrb[0].mxu0
        %v7678 = vadd.f32 0.0, %v7677
        %7679 = vmatprep.mubr.f32.mxu0 0.0
        %7680 = vmatmul.mubr.f32.gmra.mrb[0].mxu0 %v7459
        %v7681 = vpop.f32.mrb[0].mxu0
        %v7682 = vadd.f32 0.0, %v7681
        %v7683 = vpop.f32.mrb[0].mxu0
        %v7684 = vadd.f32 0.0, %v7683
        %7685 = vmatprep.mubr.f32.mxu0 0.0
        %7686 = vmatmul.mubr.f32.gmra.mrb[0].mxu0 %v7462
        %v7687 = vpop.f32.mrb[0].mxu0
        %v7688 = vadd.f32 0.0, %v7687
        %v7689 = vpop.f32.mrb[0].mxu0
        %v7690 = vadd.f32 0.0, %v7689
        %7691 = vmatprep.mubr.f32.mxu0 0.0
        %7692 = vmatmul.mubr.f32.gmra.mrb[0].mxu0 %v7465
        %v7693 = vpop.f32.mrb[0].mxu0
        %v7694 = vadd.f32 0.0, %v7693
        %v7695 = vpop.f32.mrb[0].mxu0
        %v7696 = vadd.f32 0.0, %v7695
        %7697 = vmatprep.mubr.f32.mxu0 0.0
        %7698 = vmatmul.mubr.f32.gmra.mrb[0].mxu0 %v7468
        %v7699 = vpop.f32.mrb[0].mxu0
        %v7700 = vadd.f32 0.0, %v7699
        %v7701 = vpop.f32.mrb[0].mxu0
        %v7702 = vadd.f32 0.0, %v7701
        %7703 = vmatprep.mubr.f32.mxu0 0.0
        %7704 = vmatmul.mubr.f32.gmra.mrb[0].mxu0 %v7471
        %v7705 = vpop.f32.mrb[0].mxu0
        %v7706 = vadd.f32 0.0, %v7705
        %v7707 = vpop.f32.mrb[0].mxu0
        %v7708 = vadd.f32 0.0, %v7707
        %7709 = vmatprep.mubr.f32.mxu0 0.0
        %7710 = vmatmul.mubr.f32.gmra.mrb[0].mxu0 %v7474
        %v7711 = vpop.f32.mrb[0].mxu0
        %v7712 = vadd.f32 0.0, %v7711
        %v7713 = vpop.f32.mrb[0].mxu0
        %v7714 = vadd.f32 0.0, %v7713
        %7715 = vmatprep.mubr.f32.mxu0 0.0
        %7716 = vmatmul.mubr.f32.gmra.mrb[0].mxu0 %v7477
        %v7717 = vpop.f32.mrb[0].mxu0
        %v7718 = vadd.f32 0.0, %v7717
        %v7719 = vpop.f32.mrb[0].mxu0
        %v7720 = vadd.f32 0.0, %v7719
        %7721 = vmatprep.mubr.f32.mxu0 0.0
        %7722 = vmatmul.mubr.f32.gmra.mrb[0].mxu0 %v7480
        %v7723 = vpop.f32.mrb[0].mxu0
        %v7724 = vadd.f32 0.0, %v7723
        %v7725 = vpop.f32.mrb[0].mxu0
        %v7726 = vadd.f32 0.0, %v7725
        %7727 = vmatprep.mubr.f32.mxu0 0.0
        %7728 = vmatmul.mubr.f32.gmra.mrb[0].mxu0 %v7483
        %v7729 = vpop.f32.mrb[0].mxu0
        %v7730 = vadd.f32 0.0, %v7729
        %v7731 = vpop.f32.mrb[0].mxu0
        %v7732 = vadd.f32 0.0, %v7731
        %7733 = vmatprep.mubr.f32.mxu0 0.0
        %7734 = vmatmul.mubr.f32.gmra.mrb[0].mxu0 %v7486
        %v7735 = vpop.f32.mrb[0].mxu0
        %v7736 = vadd.f32 0.0, %v7735
        %v7737 = vpop.f32.mrb[0].mxu0
        %v7738 = vadd.f32 0.0, %v7737
        %7739 = vmatprep.mubr.f32.mxu0 0.0
        %7740 = vmatmul.mubr.f32.gmra.mrb[0].mxu0 %v7489
        %v7741 = vpop.f32.mrb[0].mxu0
        %v7742 = vadd.f32 0.0, %v7741
        %v7743 = vpop.f32.mrb[0].mxu0
        %v7744 = vadd.f32 0.0, %v7743
        %7745 = vmatprep.mubr.f32.mxu0 0.0
        %7746 = vmatmul.mubr.f32.gmra.mrb[0].mxu0 %v7492
        %v7747 = vpop.f32.mrb[0].mxu0
        %v7748 = vadd.f32 0.0, %v7747
        %v7749 = vpop.f32.mrb[0].mxu0
        %v7750 = vadd.f32 0.0, %v7749
        %7751 = vmatprep.mubr.f32.mxu0 0.0
        %7752 = vmatmul.mubr.f32.gmra.mrb[0].mxu0 %v7495
        %v7753 = vpop.f32.mrb[0].mxu0
        %v7754 = vadd.f32 0.0, %v7753
        %v7755 = vpop.f32.mrb[0].mxu0
        %v7756 = vadd.f32 0.0, %v7755
        %7757 = vdwg.mxu0
        %v7758 = vmax.f32 %v7568, %v7570
        %7759 = vmax.xlane.f32.xlu0 %v7758
        %v7760 = vpop.xlane.xlu0 %7759
        %v7761 = vmax.f32 %v7574, %v7576
        %7762 = vmax.xlane.f32.xlu0 %v7761
        %v7763 = vpop.xlane.xlu0 %7762
        %v7764 = vmax.f32 %v7580, %v7582
        %7765 = vmax.xlane.f32.xlu0 %v7764
        %v7766 = vpop.xlane.xlu0 %7765
        %v7767 = vmax.f32 %v7586, %v7588
        %7768 = vmax.xlane.f32.xlu0 %v7767
        %v7769 = vpop.xlane.xlu0 %7768
        %v7770 = vmax.f32 %v7592, %v7594
        %7771 = vmax.xlane.f32.xlu0 %v7770
        %v7772 = vpop.xlane.xlu0 %7771
        %v7773 = vmax.f32 %v7598, %v7600
        %7774 = vmax.xlane.f32.xlu0 %v7773
        %v7775 = vpop.xlane.xlu0 %7774
        %v7776 = vmax.f32 %v7604, %v7606
        %7777 = vmax.xlane.f32.xlu0 %v7776
        %v7778 = vpop.xlane.xlu0 %7777
        %v7779 = vmax.f32 %v7610, %v7612
        %7780 = vmax.xlane.f32.xlu0 %v7779
        %v7781 = vpop.xlane.xlu0 %7780
        %v7782 = vmax.f32 %v7616, %v7618
        %7783 = vmax.xlane.f32.xlu0 %v7782
        %v7784 = vpop.xlane.xlu0 %7783
        %v7785 = vmax.f32 %v7622, %v7624
        %7786 = vmax.xlane.f32.xlu0 %v7785
        %v7787 = vpop.xlane.xlu0 %7786
        %v7788 = vmax.f32 %v7628, %v7630
        %7789 = vmax.xlane.f32.xlu0 %v7788
        %v7790 = vpop.xlane.xlu0 %7789
        %v7791 = vmax.f32 %v7634, %v7636
        %7792 = vmax.xlane.f32.xlu0 %v7791
        %v7793 = vpop.xlane.xlu0 %7792
        %v7794 = vmax.f32 %v7640, %v7642
        %7795 = vmax.xlane.f32.xlu0 %v7794
        %v7796 = vpop.xlane.xlu0 %7795
        %v7797 = vmax.f32 %v7646, %v7648
        %7798 = vmax.xlane.f32.xlu0 %v7797
        %v7799 = vpop.xlane.xlu0 %7798
        %v7800 = vmax.f32 %v7652, %v7654
        %7801 = vmax.xlane.f32.xlu0 %v7800
        %v7802 = vpop.xlane.xlu0 %7801
        %v7803 = vmax.f32 %v7658, %v7660
        %7804 = vmax.xlane.f32.xlu0 %v7803
        %v7805 = vpop.xlane.xlu0 %7804
        %v7806 = vmax.f32 %v7664, %v7666
        %7807 = vmax.xlane.f32.xlu0 %v7806
        %v7808 = vpop.xlane.xlu0 %7807
        %v7809 = vmax.f32 %v7670, %v7672
        %7810 = vmax.xlane.f32.xlu0 %v7809
        %v7811 = vpop.xlane.xlu0 %7810
        %v7812 = vmax.f32 %v7676, %v7678
        %7813 = vmax.xlane.f32.xlu0 %v7812
        %v7814 = vpop.xlane.xlu0 %7813
        %v7815 = vmax.f32 %v7682, %v7684
        %7816 = vmax.xlane.f32.xlu0 %v7815
        %v7817 = vpop.xlane.xlu0 %7816
        %v7818 = vmax.f32 %v7688, %v7690
        %7819 = vmax.xlane.f32.xlu0 %v7818
        %v7820 = vpop.xlane.xlu0 %7819
        %v7821 = vmax.f32 %v7694, %v7696
        %7822 = vmax.xlane.f32.xlu0 %v7821
        %v7823 = vpop.xlane.xlu0 %7822
        %v7824 = vmax.f32 %v7700, %v7702
        %7825 = vmax.xlane.f32.xlu0 %v7824
        %v7826 = vpop.xlane.xlu0 %7825
        %v7827 = vmax.f32 %v7706, %v7708
        %7828 = vmax.xlane.f32.xlu0 %v7827
        %v7829 = vpop.xlane.xlu0 %7828
        %v7830 = vmax.f32 %v7712, %v7714
        %7831 = vmax.xlane.f32.xlu0 %v7830
        %v7832 = vpop.xlane.xlu0 %7831
        %v7833 = vmax.f32 %v7718, %v7720
        %7834 = vmax.xlane.f32.xlu0 %v7833
        %v7835 = vpop.xlane.xlu0 %7834
        %v7836 = vmax.f32 %v7724, %v7726
        %7837 = vmax.xlane.f32.xlu0 %v7836
        %v7838 = vpop.xlane.xlu0 %7837
        %v7839 = vmax.f32 %v7730, %v7732
        %7840 = vmax.xlane.f32.xlu0 %v7839
        %v7841 = vpop.xlane.xlu0 %7840
        %v7842 = vmax.f32 %v7736, %v7738
        %7843 = vmax.xlane.f32.xlu0 %v7842
        %v7844 = vpop.xlane.xlu0 %7843
        %v7845 = vmax.f32 %v7742, %v7744
        %7846 = vmax.xlane.f32.xlu0 %v7845
        %v7847 = vpop.xlane.xlu0 %7846
        %v7848 = vmax.f32 %v7748, %v7750
        %7849 = vmax.xlane.f32.xlu0 %v7848
        %v7850 = vpop.xlane.xlu0 %7849
        %v7851 = vmax.f32 %v7754, %v7756
        %7852 = vmax.xlane.f32.xlu0 %v7851
        %v7853 = vpop.xlane.xlu0 %7852
        %v7854 = vsub.f32 %v7568, %v7760
        %v7855 = vsub.f32 %v7570, %v7760
        %v7856 = vsub.f32 %v7574, %v7763
        %v7857 = vsub.f32 %v7576, %v7763
        %v7858 = vsub.f32 %v7580, %v7766
        %v7859 = vsub.f32 %v7582, %v7766
        %v7860 = vsub.f32 %v7586, %v7769
        %v7861 = vsub.f32 %v7588, %v7769
        %v7862 = vsub.f32 %v7592, %v7772
        %v7863 = vsub.f32 %v7594, %v7772
        %v7864 = vsub.f32 %v7598, %v7775
        %v7865 = vsub.f32 %v7600, %v7775
        %v7866 = vsub.f32 %v7604, %v7778
        %v7867 = vsub.f32 %v7606, %v7778
        %v7868 = vsub.f32 %v7610, %v7781
        %v7869 = vsub.f32 %v7612, %v7781
        %v7870 = vsub.f32 %v7616, %v7784
        %v7871 = vsub.f32 %v7618, %v7784
        %v7872 = vsub.f32 %v7622, %v7787
        %v7873 = vsub.f32 %v7624, %v7787
        %v7874 = vsub.f32 %v7628, %v7790
        %v7875 = vsub.f32 %v7630, %v7790
        %v7876 = vsub.f32 %v7634, %v7793
        %v7877 = vsub.f32 %v7636, %v7793
        %v7878 = vsub.f32 %v7640, %v7796
        %v7879 = vsub.f32 %v7642, %v7796
        %v7880 = vsub.f32 %v7646, %v7799
        %v7881 = vsub.f32 %v7648, %v7799
        %v7882 = vsub.f32 %v7652, %v7802
        %v7883 = vsub.f32 %v7654, %v7802
        %v7884 = vsub.f32 %v7658, %v7805
        %v7885 = vsub.f32 %v7660, %v7805
        %v7886 = vsub.f32 %v7664, %v7808
        %v7887 = vsub.f32 %v7666, %v7808
        %v7888 = vsub.f32 %v7670, %v7811
        %v7889 = vsub.f32 %v7672, %v7811
        %v7890 = vsub.f32 %v7676, %v7814
        %v7891 = vsub.f32 %v7678, %v7814
        %v7892 = vsub.f32 %v7682, %v7817
        %v7893 = vsub.f32 %v7684, %v7817
        %v7894 = vsub.f32 %v7688, %v7820
        %v7895 = vsub.f32 %v7690, %v7820
        %v7896 = vsub.f32 %v7694, %v7823
        %v7897 = vsub.f32 %v7696, %v7823
        %v7898 = vsub.f32 %v7700, %v7826
        %v7899 = vsub.f32 %v7702, %v7826
        %v7900 = vsub.f32 %v7706, %v7829
        %v7901 = vsub.f32 %v7708, %v7829
        %v7902 = vsub.f32 %v7712, %v7832
        %v7903 = vsub.f32 %v7714, %v7832
        %v7904 = vsub.f32 %v7718, %v7835
        %v7905 = vsub.f32 %v7720, %v7835
        %v7906 = vsub.f32 %v7724, %v7838
        %v7907 = vsub.f32 %v7726, %v7838
        %v7908 = vsub.f32 %v7730, %v7841
        %v7909 = vsub.f32 %v7732, %v7841
        %v7910 = vsub.f32 %v7736, %v7844
        %v7911 = vsub.f32 %v7738, %v7844
        %v7912 = vsub.f32 %v7742, %v7847
        %v7913 = vsub.f32 %v7744, %v7847
        %v7914 = vsub.f32 %v7748, %v7850
        %v7915 = vsub.f32 %v7750, %v7850
        %v7916 = vsub.f32 %v7754, %v7853
        %v7917 = vsub.f32 %v7756, %v7853
        %v7918 = vmul.f32 %v7854, 1.442695
        %v7919 = vpow.pop %v7918
        %v7920 = vmul.f32 %v7855, 1.442695
        %v7921 = vpow.pop %v7920
        %v7922 = vmul.f32 %v7856, 1.442695
        %v7923 = vpow.pop %v7922
        %v7924 = vmul.f32 %v7857, 1.442695
        %v7925 = vpow.pop %v7924
        %v7926 = vmul.f32 %v7858, 1.442695
        %v7927 = vpow.pop %v7926
        %v7928 = vmul.f32 %v7859, 1.442695
        %v7929 = vpow.pop %v7928
        %v7930 = vmul.f32 %v7860, 1.442695
        %v7931 = vpow.pop %v7930
        %v7932 = vmul.f32 %v7861, 1.442695
        %v7933 = vpow.pop %v7932
        %v7934 = vmul.f32 %v7862, 1.442695
        %v7935 = vpow.pop %v7934
        %v7936 = vmul.f32 %v7863, 1.442695
        %v7937 = vpow.pop %v7936
        %v7938 = vmul.f32 %v7864, 1.442695
        %v7939 = vpow.pop %v7938
        %v7940 = vmul.f32 %v7865, 1.442695
        %v7941 = vpow.pop %v7940
        %v7942 = vmul.f32 %v7866, 1.442695
        %v7943 = vpow.pop %v7942
        %v7944 = vmul.f32 %v7867, 1.442695
        %v7945 = vpow.pop %v7944
        %v7946 = vmul.f32 %v7868, 1.442695
        %v7947 = vpow.pop %v7946
        %v7948 = vmul.f32 %v7869, 1.442695
        %v7949 = vpow.pop %v7948
        %v7950 = vmul.f32 %v7870, 1.442695
        %v7951 = vpow.pop %v7950
        %v7952 = vmul.f32 %v7871, 1.442695
        %v7953 = vpow.pop %v7952
        %v7954 = vmul.f32 %v7872, 1.442695
        %v7955 = vpow.pop %v7954
        %v7956 = vmul.f32 %v7873, 1.442695
        %v7957 = vpow.pop %v7956
        %v7958 = vmul.f32 %v7874, 1.442695
        %v7959 = vpow.pop %v7958
        %v7960 = vmul.f32 %v7875, 1.442695
        %v7961 = vpow.pop %v7960
        %v7962 = vmul.f32 %v7876, 1.442695
        %v7963 = vpow.pop %v7962
        %v7964 = vmul.f32 %v7877, 1.442695
        %v7965 = vpow.pop %v7964
        %v7966 = vmul.f32 %v7878, 1.442695
        %v7967 = vpow.pop %v7966
        %v7968 = vmul.f32 %v7879, 1.442695
        %v7969 = vpow.pop %v7968
        %v7970 = vmul.f32 %v7880, 1.442695
        %v7971 = vpow.pop %v7970
        %v7972 = vmul.f32 %v7881, 1.442695
        %v7973 = vpow.pop %v7972
        %v7974 = vmul.f32 %v7882, 1.442695
        %v7975 = vpow.pop %v7974
        %v7976 = vmul.f32 %v7883, 1.442695
        %v7977 = vpow.pop %v7976
        %v7978 = vmul.f32 %v7884, 1.442695
        %v7979 = vpow.pop %v7978
        %v7980 = vmul.f32 %v7885, 1.442695
        %v7981 = vpow.pop %v7980
        %v7982 = vmul.f32 %v7886, 1.442695
        %v7983 = vpow.pop %v7982
        %v7984 = vmul.f32 %v7887, 1.442695
        %v7985 = vpow.pop %v7984
        %v7986 = vmul.f32 %v7888, 1.442695
        %v7987 = vpow.pop %v7986
        %v7988 = vmul.f32 %v7889, 1.442695
        %v7989 = vpow.pop %v7988
        %v7990 = vmul.f32 %v7890, 1.442695
        %v7991 = vpow.pop %v7990
        %v7992 = vmul.f32 %v7891, 1.442695
        %v7993 = vpow.pop %v7992
        %v7994 = vmul.f32 %v7892, 1.442695
        %v7995 = vpow.pop %v7994
        %v7996 = vmul.f32 %v7893, 1.442695
        %v7997 = vpow.pop %v7996
        %v7998 = vmul.f32 %v7894, 1.442695
        %v7999 = vpow.pop %v7998
        %v8000 = vmul.f32 %v7895, 1.442695
        %v8001 = vpow.pop %v8000
        %v8002 = vmul.f32 %v7896, 1.442695
        %v8003 = vpow.pop %v8002
        %v8004 = vmul.f32 %v7897, 1.442695
        %v8005 = vpow.pop %v8004
        %v8006 = vmul.f32 %v7898, 1.442695
        %v8007 = vpow.pop %v8006
        %v8008 = vmul.f32 %v7899, 1.442695
        %v8009 = vpow.pop %v8008
        %v8010 = vmul.f32 %v7900, 1.442695
        %v8011 = vpow.pop %v8010
        %v8012 = vmul.f32 %v7901, 1.442695
        %v8013 = vpow.pop %v8012
        %v8014 = vmul.f32 %v7902, 1.442695
        %v8015 = vpow.pop %v8014
        %v8016 = vmul.f32 %v7903, 1.442695
        %v8017 = vpow.pop %v8016
        %v8018 = vmul.f32 %v7904, 1.442695
        %v8019 = vpow.pop %v8018
        %v8020 = vmul.f32 %v7905, 1.442695
        %v8021 = vpow.pop %v8020
        %v8022 = vmul.f32 %v7906, 1.442695
        %v8023 = vpow.pop %v8022
        %v8024 = vmul.f32 %v7907, 1.442695
        %v8025 = vpow.pop %v8024
        %v8026 = vmul.f32 %v7908, 1.442695
        %v8027 = vpow.pop %v8026
        %v8028 = vmul.f32 %v7909, 1.442695
        %v8029 = vpow.pop %v8028
        %v8030 = vmul.f32 %v7910, 1.442695
        %v8031 = vpow.pop %v8030
        %v8032 = vmul.f32 %v7911, 1.442695
        %v8033 = vpow.pop %v8032
        %v8034 = vmul.f32 %v7912, 1.442695
        %v8035 = vpow.pop %v8034
        %v8036 = vmul.f32 %v7913, 1.442695
        %v8037 = vpow.pop %v8036
        %v8038 = vmul.f32 %v7914, 1.442695
        %v8039 = vpow.pop %v8038
        %v8040 = vmul.f32 %v7915, 1.442695
        %v8041 = vpow.pop %v8040
        %v8042 = vmul.f32 %v7916, 1.442695
        %v8043 = vpow.pop %v8042
        %v8044 = vmul.f32 %v7917, 1.442695
        %v8045 = vpow.pop %v8044
        %v8046 = vadd.f32 %v7919, %v7921
        %8047 = vadd.xlane.f32.xlu0 %v8046
        %v8048 = vpop.xlane.xlu0 %8047
        %v8049 = vadd.f32 %v7923, %v7925
        %8050 = vadd.xlane.f32.xlu0 %v8049
        %v8051 = vpop.xlane.xlu0 %8050
        %v8052 = vadd.f32 %v7927, %v7929
        %8053 = vadd.xlane.f32.xlu0 %v8052
        %v8054 = vpop.xlane.xlu0 %8053
        %v8055 = vadd.f32 %v7931, %v7933
        %8056 = vadd.xlane.f32.xlu0 %v8055
        %v8057 = vpop.xlane.xlu0 %8056
        %v8058 = vadd.f32 %v7935, %v7937
        %8059 = vadd.xlane.f32.xlu0 %v8058
        %v8060 = vpop.xlane.xlu0 %8059
        %v8061 = vadd.f32 %v7939, %v7941
        %8062 = vadd.xlane.f32.xlu0 %v8061
        %v8063 = vpop.xlane.xlu0 %8062
        %v8064 = vadd.f32 %v7943, %v7945
        %8065 = vadd.xlane.f32.xlu0 %v8064
        %v8066 = vpop.xlane.xlu0 %8065
        %v8067 = vadd.f32 %v7947, %v7949
        %8068 = vadd.xlane.f32.xlu0 %v8067
        %v8069 = vpop.xlane.xlu0 %8068
        %v8070 = vadd.f32 %v7951, %v7953
        %8071 = vadd.xlane.f32.xlu0 %v8070
        %v8072 = vpop.xlane.xlu0 %8071
        %v8073 = vadd.f32 %v7955, %v7957
        %8074 = vadd.xlane.f32.xlu0 %v8073
        %v8075 = vpop.xlane.xlu0 %8074
        %v8076 = vadd.f32 %v7959, %v7961
        %8077 = vadd.xlane.f32.xlu0 %v8076
        %v8078 = vpop.xlane.xlu0 %8077
        %v8079 = vadd.f32 %v7963, %v7965
        %8080 = vadd.xlane.f32.xlu0 %v8079
        %v8081 = vpop.xlane.xlu0 %8080
        %v8082 = vadd.f32 %v7967, %v7969
        %8083 = vadd.xlane.f32.xlu0 %v8082
        %v8084 = vpop.xlane.xlu0 %8083
        %v8085 = vadd.f32 %v7971, %v7973
        %8086 = vadd.xlane.f32.xlu0 %v8085
        %v8087 = vpop.xlane.xlu0 %8086
        %v8088 = vadd.f32 %v7975, %v7977
        %8089 = vadd.xlane.f32.xlu0 %v8088
        %v8090 = vpop.xlane.xlu0 %8089
        %v8091 = vadd.f32 %v7979, %v7981
        %8092 = vadd.xlane.f32.xlu0 %v8091
        %v8093 = vpop.xlane.xlu0 %8092
        %v8094 = vadd.f32 %v7983, %v7985
        %8095 = vadd.xlane.f32.xlu0 %v8094
        %v8096 = vpop.xlane.xlu0 %8095
        %v8097 = vadd.f32 %v7987, %v7989
        %8098 = vadd.xlane.f32.xlu0 %v8097
        %v8099 = vpop.xlane.xlu0 %8098
        %v8100 = vadd.f32 %v7991, %v7993
        %8101 = vadd.xlane.f32.xlu0 %v8100
        %v8102 = vpop.xlane.xlu0 %8101
        %v8103 = vadd.f32 %v7995, %v7997
        %8104 = vadd.xlane.f32.xlu0 %v8103
        %v8105 = vpop.xlane.xlu0 %8104
        %v8106 = vadd.f32 %v7999, %v8001
        %8107 = vadd.xlane.f32.xlu0 %v8106
        %v8108 = vpop.xlane.xlu0 %8107
        %v8109 = vadd.f32 %v8003, %v8005
        %8110 = vadd.xlane.f32.xlu0 %v8109
        %v8111 = vpop.xlane.xlu0 %8110
        %v8112 = vadd.f32 %v8007, %v8009
        %8113 = vadd.xlane.f32.xlu0 %v8112
        %v8114 = vpop.xlane.xlu0 %8113
        %v8115 = vadd.f32 %v8011, %v8013
        %8116 = vadd.xlane.f32.xlu0 %v8115
        %v8117 = vpop.xlane.xlu0 %8116
        %v8118 = vadd.f32 %v8015, %v8017
        %8119 = vadd.xlane.f32.xlu0 %v8118
        %v8120 = vpop.xlane.xlu0 %8119
        %v8121 = vadd.f32 %v8019, %v8021
        %8122 = vadd.xlane.f32.xlu0 %v8121
        %v8123 = vpop.xlane.xlu0 %8122
        %v8124 = vadd.f32 %v8023, %v8025
        %8125 = vadd.xlane.f32.xlu0 %v8124
        %v8126 = vpop.xlane.xlu0 %8125
        %v8127 = vadd.f32 %v8027, %v8029
        %8128 = vadd.xlane.f32.xlu0 %v8127
        %v8129 = vpop.xlane.xlu0 %8128
        %v8130 = vadd.f32 %v8031, %v8033
        %8131 = vadd.xlane.f32.xlu0 %v8130
        %v8132 = vpop.xlane.xlu0 %8131
        %v8133 = vadd.f32 %v8035, %v8037
        %8134 = vadd.xlane.f32.xlu0 %v8133
        %v8135 = vpop.xlane.xlu0 %8134
        %v8136 = vadd.f32 %v8039, %v8041
        %8137 = vadd.xlane.f32.xlu0 %v8136
        %v8138 = vpop.xlane.xlu0 %8137
        %v8139 = vadd.f32 %v8043, %v8045
        %8140 = vadd.xlane.f32.xlu0 %v8139
        %v8141 = vpop.xlane.xlu0 %8140
        %v8142 = vrcp.pop %v8048
        %v8143 = vrcp.pop %v8051
        %v8144 = vrcp.pop %v8054
        %v8145 = vrcp.pop %v8057
        %v8146 = vrcp.pop %v8060
        %v8147 = vrcp.pop %v8063
        %v8148 = vrcp.pop %v8066
        %v8149 = vrcp.pop %v8069
        %v8150 = vrcp.pop %v8072
        %v8151 = vrcp.pop %v8075
        %v8152 = vrcp.pop %v8078
        %v8153 = vrcp.pop %v8081
        %v8154 = vrcp.pop %v8084
        %v8155 = vrcp.pop %v8087
        %v8156 = vrcp.pop %v8090
        %v8157 = vrcp.pop %v8093
        %v8158 = vrcp.pop %v8096
        %v8159 = vrcp.pop %v8099
        %v8160 = vrcp.pop %v8102
        %v8161 = vrcp.pop %v8105
        %v8162 = vrcp.pop %v8108
        %v8163 = vrcp.pop %v8111
        %v8164 = vrcp.pop %v8114
        %v8165 = vrcp.pop %v8117
        %v8166 = vrcp.pop %v8120
        %v8167 = vrcp.pop %v8123
        %v8168 = vrcp.pop %v8126
        %v8169 = vrcp.pop %v8129
        %v8170 = vrcp.pop %v8132
        %v8171 = vrcp.pop %v8135
        %v8172 = vrcp.pop %v8138
        %v8173 = vrcp.pop %v8141
        %v8174 = vmul.f32 %v7919, %v8142
        %v8175 = vmul.f32 %v7921, %v8142
        %v8176 = vmul.f32 %v7923, %v8143
        %v8177 = vmul.f32 %v7925, %v8143
        %v8178 = vmul.f32 %v7927, %v8144
        %v8179 = vmul.f32 %v7929, %v8144
        %v8180 = vmul.f32 %v7931, %v8145
        %v8181 = vmul.f32 %v7933, %v8145
        %v8182 = vmul.f32 %v7935, %v8146
        %v8183 = vmul.f32 %v7937, %v8146
        %v8184 = vmul.f32 %v7939, %v8147
        %v8185 = vmul.f32 %v7941, %v8147
        %v8186 = vmul.f32 %v7943, %v8148
        %v8187 = vmul.f32 %v7945, %v8148
        %v8188 = vmul.f32 %v7947, %v8149
        %v8189 = vmul.f32 %v7949, %v8149
        %v8190 = vmul.f32 %v7951, %v8150
        %v8191 = vmul.f32 %v7953, %v8150
        %v8192 = vmul.f32 %v7955, %v8151
        %v8193 = vmul.f32 %v7957, %v8151
        %v8194 = vmul.f32 %v7959, %v8152
        %v8195 = vmul.f32 %v7961, %v8152
        %v8196 = vmul.f32 %v7963, %v8153
        %v8197 = vmul.f32 %v7965, %v8153
        %v8198 = vmul.f32 %v7967, %v8154
        %v8199 = vmul.f32 %v7969, %v8154
        %v8200 = vmul.f32 %v7971, %v8155
        %v8201 = vmul.f32 %v7973, %v8155
        %v8202 = vmul.f32 %v7975, %v8156
        %v8203 = vmul.f32 %v7977, %v8156
        %v8204 = vmul.f32 %v7979, %v8157
        %v8205 = vmul.f32 %v7981, %v8157
        %v8206 = vmul.f32 %v7983, %v8158
        %v8207 = vmul.f32 %v7985, %v8158
        %v8208 = vmul.f32 %v7987, %v8159
        %v8209 = vmul.f32 %v7989, %v8159
        %v8210 = vmul.f32 %v7991, %v8160
        %v8211 = vmul.f32 %v7993, %v8160
        %v8212 = vmul.f32 %v7995, %v8161
        %v8213 = vmul.f32 %v7997, %v8161
        %v8214 = vmul.f32 %v7999, %v8162
        %v8215 = vmul.f32 %v8001, %v8162
        %v8216 = vmul.f32 %v8003, %v8163
        %v8217 = vmul.f32 %v8005, %v8163
        %v8218 = vmul.f32 %v8007, %v8164
        %v8219 = vmul.f32 %v8009, %v8164
        %v8220 = vmul.f32 %v8011, %v8165
        %v8221 = vmul.f32 %v8013, %v8165
        %v8222 = vmul.f32 %v8015, %v8166
        %v8223 = vmul.f32 %v8017, %v8166
        %v8224 = vmul.f32 %v8019, %v8167
        %v8225 = vmul.f32 %v8021, %v8167
        %v8226 = vmul.f32 %v8023, %v8168
        %v8227 = vmul.f32 %v8025, %v8168
        %v8228 = vmul.f32 %v8027, %v8169
        %v8229 = vmul.f32 %v8029, %v8169
        %v8230 = vmul.f32 %v8031, %v8170
        %v8231 = vmul.f32 %v8033, %v8170
        %v8232 = vmul.f32 %v8035, %v8171
        %v8233 = vmul.f32 %v8037, %v8171
        %v8234 = vmul.f32 %v8039, %v8172
        %v8235 = vmul.f32 %v8041, %v8172
        %v8236 = vmul.f32 %v8043, %v8173
        %v8237 = vmul.f32 %v8045, %v8173
        %v8240 = vrot.slane %v431, 4
        %v8241 = vrot.slane %v433, 4
        %8244 = vmatprep.subr.mxu0 %v8175
        %8245 = vmatpush1.xpose.msra.mxu0 %v8174
        %8246 = vmatprep.subr.mxu0 %v8177
        %8247 = vmatpush1.xpose.msra.mxu0 %v8176
        %8248 = vmatprep.subr.mxu0 %v8179
        %8249 = vmatpush1.xpose.msra.mxu0 %v8178
        %8250 = vmatprep.subr.mxu0 %v8181
        %8251 = vmatpush1.xpose.msra.mxu0 %v8180
        %8252 = vmatprep.subr.mxu0 %v8183
        %8253 = vmatpush1.xpose.msra.mxu0 %v8182
        %8254 = vmatprep.subr.mxu0 %v8185
        %8255 = vmatpush1.xpose.msra.mxu0 %v8184
        %8256 = vmatprep.subr.mxu0 %v8187
        %8257 = vmatpush1.xpose.msra.mxu0 %v8186
        %8258 = vmatprep.subr.mxu0 %v8189
        %8259 = vmatpush1.xpose.msra.mxu0 %v8188
        %8260 = vmatprep.subr.mxu0 %v8191
        %8261 = vmatpush1.xpose.msra.mxu0 %v8190
        %8262 = vmatprep.subr.mxu0 %v8193
        %8263 = vmatpush1.xpose.msra.mxu0 %v8192
        %8264 = vmatprep.subr.mxu0 %v8195
        %8265 = vmatpush1.xpose.msra.mxu0 %v8194
        %8266 = vmatprep.subr.mxu0 %v8197
        %8267 = vmatpush1.xpose.msra.mxu0 %v8196
        %8268 = vmatprep.subr.mxu0 %v8199
        %8269 = vmatpush1.xpose.msra.mxu0 %v8198
        %8270 = vmatprep.subr.mxu0 %v8201
        %8271 = vmatpush1.xpose.msra.mxu0 %v8200
        %8272 = vmatprep.subr.mxu0 %v8203
        %8273 = vmatpush1.xpose.msra.mxu0 %v8202
        %8274 = vmatprep.subr.mxu0 %v8205
        %8275 = vmatpush1.xpose.msra.mxu0 %v8204
        %8276 = vmatprep.subr.mxu0 %v8207
        %8277 = vmatpush1.xpose.msra.mxu0 %v8206
        %8278 = vmatprep.subr.mxu0 %v8209
        %8279 = vmatpush1.xpose.msra.mxu0 %v8208
        %8280 = vmatprep.subr.mxu0 %v8211
        %8281 = vmatpush1.xpose.msra.mxu0 %v8210
        %8282 = vmatprep.subr.mxu0 %v8213
        %8283 = vmatpush1.xpose.msra.mxu0 %v8212
        %8284 = vmatprep.subr.mxu0 %v8215
        %8285 = vmatpush1.xpose.msra.mxu0 %v8214
        %8286 = vmatprep.subr.mxu0 %v8217
        %8287 = vmatpush1.xpose.msra.mxu0 %v8216
        %8288 = vmatprep.subr.mxu0 %v8219
        %8289 = vmatpush1.xpose.msra.mxu0 %v8218
        %8290 = vmatprep.subr.mxu0 %v8221
        %8291 = vmatpush1.xpose.msra.mxu0 %v8220
        %8292 = vmatprep.subr.mxu0 %v8223
        %8293 = vmatpush1.xpose.msra.mxu0 %v8222
        %8294 = vmatprep.subr.mxu0 %v8225
        %8295 = vmatpush1.xpose.msra.mxu0 %v8224
        %8296 = vmatprep.subr.mxu0 %v8227
        %8297 = vmatpush1.xpose.msra.mxu0 %v8226
        %8298 = vmatprep.subr.mxu0 %v8229
        %8299 = vmatpush1.xpose.msra.mxu0 %v8228
        %8300 = vmatprep.subr.mxu0 %v8231
        %8301 = vmatpush1.xpose.msra.mxu0 %v8230
        %8302 = vmatprep.subr.mxu0 %v8233
        %8303 = vmatpush1.xpose.msra.mxu0 %v8232
        %8304 = vmatprep.subr.mxu0 %v8235
        %8305 = vmatpush1.xpose.msra.mxu0 %v8234
        %8306 = vmatprep.subr.mxu0 %v8237
        %8307 = vmatpush1.xpose.msra.mxu0 %v8236
        %8308 = vmatprep.mubr.f32.mxu0 %v8241
        %8309 = vmatmul.mubr.f32.gmra.mrb[0].mxu0 %v8240
        %v8310 = vpop.f32.mrb[0].mxu0
        %v8311 = vadd.f32 0.0, %v8310
        %v8312 = vpop.f32.mrb[0].mxu0
        %v8313 = vadd.f32 0.0, %v8312
        %8314 = vdwg.mxu0
        %v8317 = vrot.slane %v8311, 4
        %v8318 = vrot.slane %v8313, 4
        %8321 = vst [vmem:[%s163 + $0x30] sm:$0xf0] %v8317
        %8322 = vst [vmem:[%s163 + $0x38] sm:$0xf0] %v8318
        %s8323 = sand.u32 %s93, 1
        %s8324 = scalar_lea.sflag [#allocation3], %s8323
        %s8325 = sand.u32 %s93, 1
        %s8326 = smul.addr %s8325, 64
        %s8327 = scalar_lea.vmem [#allocation2], %s8326
        // Predicated region
        $region33: #{tpu_custom_call.1} parent=31 // pred_check
          %p8328 = pneg %p103
        $region34: #{tpu_custom_call.1} parent=31 // pred_check_branch
          %8330 = sbr.rel (%p8328) target = $region36
        $region35: #{tpu_custom_call.1} parent=31 // pred_region
          %s8332 = ssub.s32 1024, 1024
          %8333 = vsyncadd %s8324, %s8332
          %s8334 = smul.addr %s17, 8
          %s8335 = smul.addr %s8334, 128
          %s8336 = scalar_lea.hbm %s3, %s8335
          %s8337 = sshll.u32 %s8327, 4
          %s8338 = int_to_ptr.vmem [resolvable:$true] %s8337
          %8343 = dma.vmem_to_hbm [thread:$0]  %s8338, 1024, %s8336, %s8324, 256, 256, 16
        $region36: #{tpu_custom_call.1} parent=31 // pred_fallthru
          _
      $region32: #{tpu_custom_call.1} parent=5 // pred_fallthru
        _
      %p8344 = scmp.le.s32.totalorder 2, %s12
      // Predicated region
      $region37: #{tpu_custom_call.1} parent=5 // pred_check
        %p8345 = pneg %p8344
      $region38: #{tpu_custom_call.1} parent=5 // pred_check_branch
        %8347 = sbr.rel (%p8345) target = $region40
      $region39: #{tpu_custom_call.1} parent=5 // pred_region
        %s8348 = ssub.s32 %s12, 2
        // Predicated region
        $region41: #{tpu_custom_call.1} parent=39 // pred_check
          %p8349 = pneg %p109
        $region42: #{tpu_custom_call.1} parent=39 // pred_check_branch
          %8351 = sbr.rel (%p8349) target = $region44
        $region43: #{tpu_custom_call.1} parent=39 // pred_region
          %s8352 = sand.u32 %s94, 1
          %s8353 = scalar_lea.sflag [#allocation3], %s8352
          %s8354 = sand.u32 %s94, 1
          %s8355 = smul.addr %s8354, 64
          %s8356 = scalar_lea.vmem [#allocation2], %s8355
          %8357 = dma.done %s8353, 1024
        $region44: #{tpu_custom_call.1} parent=39 // pred_fallthru
          _
      $region40: #{tpu_custom_call.1} parent=5 // pred_fallthru
        _
    $region6: #{tpu_custom_call.1} parent=1 // loop_footer
      %s16 = sadd.s32 1, %s12
    $region7: #{tpu_custom_call.1} parent=1 // loop_footer_branch
      %11 = sbr.rel target = $region3
    $region8: #{tpu_custom_call.1} parent=1 // loop_exit
      _
    %8358 = vsyncpa [#allocation3], 1
    %s8359 = scalar_lea.sflag [#allocation3], 1
    %8360 = vsyncpa %s8359, 1

</llo_original>
